<compile_context>
chip_gen: v6e
topology: v6e:2x2x1
jax: 0.10.0
libtpu: 0.0.40
codegen_flags: <defaults>
</compile_context>

<pallas_src>
import functools

import jax
import jax.numpy as jnp
from jax.experimental import pallas as pl
from jax.experimental.pallas import tpu as pltpu


# -----------------------------------------------------------------------------
# Kernel
# -----------------------------------------------------------------------------
def _layernorm(v, w, b, eps=1e-5):
    mu = jnp.mean(v, axis=-1, keepdims=True)
    var = jnp.mean((v - mu) ** 2, axis=-1, keepdims=True)
    return (v - mu) * jax.lax.rsqrt(var + eps) * w + b


def mit_kernel(x_ref, pos_ref,
               ln1w_ref, ln1b_ref, wqkv_ref, bqkv_ref, wo_ref, bo_ref,
               ln2w_ref, ln2b_ref, w1_ref, b1_ref, w2_ref, b2_ref,
               o_ref, *, head_dim):
    Bb, T, D = x_ref.shape
    H = D // head_dim
    BT = Bb * T

    x3 = x_ref[...].astype(jnp.float32)                         # (Bb, T, D) = ori_x
    h = (x3 + pos_ref[...][None].astype(jnp.float32)).reshape(BT, D)

    # ---- ResidualAttentionBlock: h = h + attn(ln_1(h)) ----
    ln1 = _layernorm(h, ln1w_ref[...], ln1b_ref[...])
    qkv = jnp.dot(ln1.astype(jnp.bfloat16), wqkv_ref[...],
                  preferred_element_type=jnp.float32) + bqkv_ref[...]   # (BT, 3D)

    # Per-head attention (static loop over H); batched over Bb inside each head.
    # Q is already scaled by 1/sqrt(head_dim) (folded into wqkv/bqkv by wrapper).
    head_outs = []
    for hh in range(H):
        lo = hh * head_dim
        qh = qkv[:, lo:lo + head_dim].reshape(Bb, T, head_dim)
        kh = qkv[:, D + lo:D + lo + head_dim].reshape(Bb, T, head_dim)
        vh = qkv[:, 2 * D + lo:2 * D + lo + head_dim].reshape(Bb, T, head_dim)
        s = jnp.einsum('btd,bsd->bts', qh, kh,
                       preferred_element_type=jnp.float32)              # (Bb, T, T)
        s = s - jnp.max(s, axis=-1, keepdims=True)
        p = jnp.exp(s)
        p = p * pl.reciprocal(jnp.sum(p, axis=-1, keepdims=True), approx=True)
        head_outs.append(jnp.einsum('bts,bsd->btd', p, vh,
                                    preferred_element_type=jnp.float32))
    attn = jnp.concatenate(head_outs, axis=-1).reshape(BT, D)
    attn = jnp.dot(attn.astype(jnp.bfloat16), wo_ref[...],
                   preferred_element_type=jnp.float32) + bo_ref[...]
    h = h + attn

    # ---- ResidualAttentionBlock: h = h + mlp(ln_2(h)) ----
    ln2 = _layernorm(h, ln2w_ref[...], ln2b_ref[...])
    m = jnp.dot(ln2.astype(jnp.bfloat16), w1_ref[...],
                preferred_element_type=jnp.float32) + b1_ref[...]
    m = m * jax.nn.sigmoid(1.702 * m)                            # QuickGELU
    m = jnp.dot(m.astype(jnp.bfloat16), w2_ref[...],
                preferred_element_type=jnp.float32) + b2_ref[...]
    h = h + m

    # ---- outer residual with ori_x, then mean over frames T ----
    # NOTE: torch casts the transformer output to ori_x.dtype before the add;
    # compute stays f32 here (identical for f32 inputs, benign for bf16).
    out3 = h.reshape(Bb, T, D) + x3
    o_ref[...] = jnp.mean(out3, axis=1).astype(o_ref.dtype)      # (Bb, D)


# -----------------------------------------------------------------------------
# Wrapper
# -----------------------------------------------------------------------------
def _pick_bblk(B, T, target_rows=256):
    """Largest divisor of B with Bblk*T ~ target rows, preferring multiples of 8
    and a grid length >= 2 (megacore)."""
    want = max(8, target_rows // max(T, 1))
    divisors = [d for d in range(1, B + 1) if B % d == 0]

    def score(d):
        return (d <= want, d % 8 == 0, (B // d) >= 2, d)

    return max(divisors, key=score)


def mit_forward(x, params, head_dim=64):
    B, T, D = x.shape
    assert D % head_dim == 0, "embed_dim must be a multiple of head_dim (64)"
    H = D // head_dim
    Bblk = _pick_bblk(B, T)

    # Fold 1/sqrt(head_dim) into Q columns; cast matmul weights to bf16.
    scale = 1.0 / (head_dim ** 0.5)
    col_scale = jnp.concatenate(
        [jnp.full((D,), scale, jnp.float32), jnp.ones((2 * D,), jnp.float32)])
    wqkv = (params["wqkv_t"] * col_scale[None, :]).astype(jnp.bfloat16)
    bqkv = (params["bqkv"] * col_scale[None, :]).astype(jnp.float32)

    weights = [
        params["pos"].astype(jnp.float32),
        params["ln1_w"].astype(jnp.float32), params["ln1_b"].astype(jnp.float32),
        wqkv, bqkv,
        params["wo_t"].astype(jnp.bfloat16), params["bo"].astype(jnp.float32),
        params["ln2_w"].astype(jnp.float32), params["ln2_b"].astype(jnp.float32),
        params["w1_t"].astype(jnp.bfloat16), params["b1"].astype(jnp.float32),
        params["w2_t"].astype(jnp.bfloat16), params["b2"].astype(jnp.float32),
    ]

    def wspec(arr):
        nd = arr.ndim
        # Constant across the grid -> single-buffer to halve weight VMEM.
        return pl.BlockSpec(arr.shape, lambda i, _nd=nd: (0,) * _nd,
                            pipeline_mode=pl.Buffered(1))

    in_specs = [pl.BlockSpec((Bblk, T, D), lambda i: (i, 0, 0))]
    in_specs += [wspec(w) for w in weights]
    out_specs = pl.BlockSpec((Bblk, D), lambda i: (i, 0))

    # VMEM budget: 1x weights (single-buffered) + 2x (x tile + out tile)
    # + in-kernel f32 temporaries (qkv 3D, mlp 4D, misc D-wide slabs) + headroom.
    bpe = lambda a: a.size * a.dtype.itemsize
    weight_bytes = sum(bpe(w) for w in weights)
    x_tile = Bblk * T * D * 4
    out_tile = Bblk * D * 4
    tmp_bytes = Bblk * T * (3 * D + 4 * D + 8 * D) * 4
    vmem_limit = int(min(64 * 2 ** 20,
                         max(32 * 2 ** 20,
                             weight_bytes + 2 * (x_tile + out_tile)
                             + tmp_bytes + (8 << 20))))

    flops = (2 * B * T * D * (3 * D)          # qkv projection
             + 2 * B * T * D * D              # attention out projection
             + 2 * 2 * B * T * D * (4 * D)    # MLP
             + 4 * B * H * T * T * head_dim)  # attention score + weighted sum
    transcendentals = B * H * T * T + B * T * 4 * D
    bytes_accessed = bpe(x) + weight_bytes + B * D * x.dtype.itemsize

    return pl.pallas_call(
        functools.partial(mit_kernel, head_dim=head_dim),
        out_shape=jax.ShapeDtypeStruct((B, D), x.dtype),
        grid_spec=pltpu.PrefetchScalarGridSpec(
            num_scalar_prefetch=0,
            grid=(B // Bblk,),
            in_specs=in_specs,
            out_specs=out_specs,
        ),
        compiler_params=pltpu.CompilerParams(
            dimension_semantics=("parallel",),
            vmem_limit_bytes=vmem_limit),
        cost_estimate=pl.CostEstimate(flops=int(flops),
                                      transcendentals=int(transcendentals),
                                      bytes_accessed=int(bytes_accessed)),
    )(x, *weights)


# -----------------------------------------------------------------------------
# Pure-JAX reference (mirrors the PyTorch forward, f32 weights)
# -----------------------------------------------------------------------------
def ref_forward(x, p, head_dim=64):
    B, T, D = x.shape
    H = D // head_dim
    h = x + p["pos"][None]
    ln1 = _layernorm(h, p["ln1_w"], p["ln1_b"])
    qkv = ln1 @ p["wqkv_t"] + p["bqkv"]
    q, k, v = jnp.split(qkv, 3, axis=-1)
    q = q.reshape(B, T, H, head_dim).transpose(0, 2, 1, 3) / jnp.sqrt(head_dim)
    k = k.reshape(B, T, H, head_dim).transpose(0, 2, 1, 3)
    v = v.reshape(B, T, H, head_dim).transpose(0, 2, 1, 3)
    s = q @ k.transpose(0, 1, 3, 2)
    pm = jax.nn.softmax(s, axis=-1)
    o = (pm @ v).transpose(0, 2, 1, 3).reshape(B, T, D)
    h = h + (o @ p["wo_t"] + p["bo"])
    ln2 = _layernorm(h, p["ln2_w"], p["ln2_b"])
    m = ln2 @ p["w1_t"] + p["b1"]
    m = m * jax.nn.sigmoid(1.702 * m)
    h = h + (m @ p["w2_t"] + p["b2"])
    return (h + x).mean(axis=1)


# -----------------------------------------------------------------------------
# Deterministic parameter init (synthetic; shapes from the module __init__)
# -----------------------------------------------------------------------------
def make_params(key, T, D):
    ks = jax.random.split(key, 8)
    tn = lambda k, shape: (0.02 * jax.random.truncated_normal(k, -2.0, 2.0, shape)
                           ).astype(jnp.float32)
    return {
        "pos":    tn(ks[0], (T, D)),                 # positional_embedding (1,T,D) squeezed
        "ln1_w":  jnp.ones((1, D), jnp.float32),
        "ln1_b":  jnp.zeros((1, D), jnp.float32),
        "wqkv_t": tn(ks[1], (D, 3 * D)),             # in_proj_weight^T
        "bqkv":   jnp.zeros((1, 3 * D), jnp.float32),
        "wo_t":   tn(ks[2], (D, D)),                 # out_proj.weight^T
        "bo":     jnp.zeros((1, D), jnp.float32),
        "ln2_w":  jnp.ones((1, D), jnp.float32),
        "ln2_b":  jnp.zeros((1, D), jnp.float32),
        "w1_t":   tn(ks[3], (D, 4 * D)),             # mlp.c_fc.weight^T
        "b1":     jnp.zeros((1, 4 * D), jnp.float32),
        "w2_t":   tn(ks[4], (4 * D, D)),             # mlp.c_proj.weight^T
        "b2":     jnp.zeros((1, D), jnp.float32),
    }


if __name__ == "__main__":
    # Small but module-consistent shapes: T frames, embed_dim multiple of 64.
    # B=32, T=8 -> Bblk=16, grid=(2,), matmul M = Bblk*T = 128 rows.
    B, T, D = 32, 8, 128          # transformer_heads = D // 64 = 2
    key = jax.random.PRNGKey(0)
    kx, kp = jax.random.split(key)
    x = jax.random.normal(kx, (B, T, D), dtype=jnp.float32)
    params = make_params(kp, T, D)

    out = jax.block_until_ready(mit_forward(x, params))
    ref = ref_forward(x, params)

    assert out.shape == (B, D)
    err = float(jnp.max(jnp.abs(out - ref)))
    # Kernel feeds bf16 operands to the MXU and uses the approx softmax
    # reciprocal, so allow a small delta vs the pure-f32 reference.
    assert jnp.allclose(out, ref, atol=5e-3, rtol=5e-3), f"max abs err {err}"

    print("KERNEL_OK")
</pallas_src>

<mosaic_0001>
module attributes {stable_mosaic.version = 11 : i64} {
  func.func @mit_kernel(%arg0: i32, %arg1: memref<16x8x128xf32, #tpu.memory_space<vmem>>, %arg2: memref<8x128xf32, #tpu.memory_space<vmem>>, %arg3: memref<1x128xf32, #tpu.memory_space<vmem>>, %arg4: memref<1x128xf32, #tpu.memory_space<vmem>>, %arg5: memref<128x384xbf16, #tpu.memory_space<vmem>>, %arg6: memref<1x384xf32, #tpu.memory_space<vmem>>, %arg7: memref<128x128xbf16, #tpu.memory_space<vmem>>, %arg8: memref<1x128xf32, #tpu.memory_space<vmem>>, %arg9: memref<1x128xf32, #tpu.memory_space<vmem>>, %arg10: memref<1x128xf32, #tpu.memory_space<vmem>>, %arg11: memref<128x512xbf16, #tpu.memory_space<vmem>>, %arg12: memref<1x512xf32, #tpu.memory_space<vmem>>, %arg13: memref<512x128xbf16, #tpu.memory_space<vmem>>, %arg14: memref<1x128xf32, #tpu.memory_space<vmem>>, %arg15: memref<16x128xf32, #tpu.memory_space<vmem>>) attributes {dimension_semantics = [#tpu.dimension_semantics<parallel>], iteration_bounds = array<i64: 2>, scalar_prefetch = 0 : i64, scratch_operands = 0 : i64, tpu.core_type = #tpu.core_type<tc>, window_params = [{transform_indices = @transform_0, window_bounds = array<i64: 16, 8, 128>}, {pipeline_mode = #tpu.pipeline_mode<synchronous>, transform_indices = @transform_1, window_bounds = array<i64: 8, 128>}, {pipeline_mode = #tpu.pipeline_mode<synchronous>, transform_indices = @transform_2, window_bounds = array<i64: 1, 128>}, {pipeline_mode = #tpu.pipeline_mode<synchronous>, transform_indices = @transform_3, window_bounds = array<i64: 1, 128>}, {pipeline_mode = #tpu.pipeline_mode<synchronous>, transform_indices = @transform_4, window_bounds = array<i64: 128, 384>}, {pipeline_mode = #tpu.pipeline_mode<synchronous>, transform_indices = @transform_5, window_bounds = array<i64: 1, 384>}, {pipeline_mode = #tpu.pipeline_mode<synchronous>, transform_indices = @transform_6, window_bounds = array<i64: 128, 128>}, {pipeline_mode = #tpu.pipeline_mode<synchronous>, transform_indices = @transform_7, window_bounds = array<i64: 1, 128>}, {pipeline_mode = #tpu.pipeline_mode<synchronous>, transform_indices = @transform_8, window_bounds = array<i64: 1, 128>}, {pipeline_mode = #tpu.pipeline_mode<synchronous>, transform_indices = @transform_9, window_bounds = array<i64: 1, 128>}, {pipeline_mode = #tpu.pipeline_mode<synchronous>, transform_indices = @transform_10, window_bounds = array<i64: 128, 512>}, {pipeline_mode = #tpu.pipeline_mode<synchronous>, transform_indices = @transform_11, window_bounds = array<i64: 1, 512>}, {pipeline_mode = #tpu.pipeline_mode<synchronous>, transform_indices = @transform_12, window_bounds = array<i64: 512, 128>}, {pipeline_mode = #tpu.pipeline_mode<synchronous>, transform_indices = @transform_13, window_bounds = array<i64: 1, 128>}, {transform_indices = @transform_14, window_bounds = array<i64: 16, 128>}]} {
    %c0 = arith.constant 0 : index
    %c0_0 = arith.constant 0 : index
    %c0_1 = arith.constant 0 : index
    %0 = vector.load %arg1[%c0, %c0_0, %c0_1] : memref<16x8x128xf32, #tpu.memory_space<vmem>>, vector<16x8x128xf32>
    %c0_2 = arith.constant 0 : index
    %c0_3 = arith.constant 0 : index
    %1 = vector.load %arg2[%c0_2, %c0_3] : memref<8x128xf32, #tpu.memory_space<vmem>>, vector<8x128xf32>
    %2 = vector.shape_cast %1 : vector<8x128xf32> to vector<1x8x128xf32>
    %3 = vector.broadcast %2 : vector<1x8x128xf32> to vector<16x8x128xf32>
    %4 = arith.addf %0, %3 : vector<16x8x128xf32>
    %5 = vector.shape_cast %4 : vector<16x8x128xf32> to vector<128x128xf32>
    %c0_4 = arith.constant 0 : index
    %c0_5 = arith.constant 0 : index
    %6 = vector.load %arg3[%c0_4, %c0_5] : memref<1x128xf32, #tpu.memory_space<vmem>>, vector<1x128xf32>
    %c0_6 = arith.constant 0 : index
    %c0_7 = arith.constant 0 : index
    %7 = vector.load %arg4[%c0_6, %c0_7] : memref<1x128xf32, #tpu.memory_space<vmem>>, vector<1x128xf32>
    %cst = arith.constant dense<0.000000e+00> : vector<128xf32>
    %8 = vector.multi_reduction <add>, %5, %cst [1] : vector<128x128xf32> to vector<128xf32>
    %9 = vector.shape_cast %8 : vector<128xf32> to vector<128x1xf32>
    %cst_8 = arith.constant 1.280000e+02 : f32
    %10 = vector.broadcast %cst_8 : f32 to vector<128x1xf32>
    %11 = arith.divf %9, %10 : vector<128x1xf32>
    %12 = vector.broadcast %11 : vector<128x1xf32> to vector<128x128xf32>
    %13 = arith.subf %5, %12 : vector<128x128xf32>
    %14 = arith.mulf %13, %13 : vector<128x128xf32>
    %cst_9 = arith.constant dense<0.000000e+00> : vector<128xf32>
    %15 = vector.multi_reduction <add>, %14, %cst_9 [1] : vector<128x128xf32> to vector<128xf32>
    %16 = vector.shape_cast %15 : vector<128xf32> to vector<128x1xf32>
    %cst_10 = arith.constant 1.280000e+02 : f32
    %17 = vector.broadcast %cst_10 : f32 to vector<128x1xf32>
    %18 = arith.divf %16, %17 : vector<128x1xf32>
    %19 = vector.broadcast %11 : vector<128x1xf32> to vector<128x128xf32>
    %20 = arith.subf %5, %19 : vector<128x128xf32>
    %cst_11 = arith.constant 9.99999974E-6 : f32
    %21 = vector.broadcast %cst_11 : f32 to vector<128x1xf32>
    %22 = arith.addf %18, %21 : vector<128x1xf32>
    %23 = math.rsqrt %22 : vector<128x1xf32>
    %24 = vector.broadcast %23 : vector<128x1xf32> to vector<128x128xf32>
    %25 = arith.mulf %20, %24 : vector<128x128xf32>
    %26 = vector.broadcast %6 : vector<1x128xf32> to vector<128x128xf32>
    %27 = arith.mulf %25, %26 : vector<128x128xf32>
    %28 = vector.broadcast %7 : vector<1x128xf32> to vector<128x128xf32>
    %29 = arith.addf %27, %28 : vector<128x128xf32>
    %30 = arith.truncf %29 : vector<128x128xf32> to vector<128x128xbf16>
    %c0_12 = arith.constant 0 : index
    %c0_13 = arith.constant 0 : index
    %31 = vector.load %arg5[%c0_12, %c0_13] : memref<128x384xbf16, #tpu.memory_space<vmem>>, vector<128x384xbf16>
    %cst_14 = arith.constant dense<0.000000e+00> : vector<128x384xf32>
    %32 = tpu.matmul %30, %31, %cst_14 {dimension_numbers = #tpu.dot_dimension_numbers<[1], [0], [0], [1], [0, 0, 1, 1], [], []>} : vector<128x128xbf16>, vector<128x384xbf16>, vector<128x384xf32> -> vector<128x384xf32>
    %c0_15 = arith.constant 0 : index
    %c0_16 = arith.constant 0 : index
    %33 = vector.load %arg6[%c0_15, %c0_16] : memref<1x384xf32, #tpu.memory_space<vmem>>, vector<1x384xf32>
    %34 = vector.broadcast %33 : vector<1x384xf32> to vector<128x384xf32>
    %35 = arith.addf %32, %34 : vector<128x384xf32>
    %36 = vector.extract_strided_slice %35 {offsets = [0, 0], sizes = [128, 64], strides = [1, 1]} : vector<128x384xf32> to vector<128x64xf32>
    %37 = vector.shape_cast %36 : vector<128x64xf32> to vector<16x8x64xf32>
    %38 = vector.extract_strided_slice %35 {offsets = [0, 128], sizes = [128, 64], strides = [1, 1]} : vector<128x384xf32> to vector<128x64xf32>
    %39 = vector.shape_cast %38 : vector<128x64xf32> to vector<16x8x64xf32>
    %40 = vector.extract_strided_slice %35 {offsets = [0, 256], sizes = [128, 64], strides = [1, 1]} : vector<128x384xf32> to vector<128x64xf32>
    %41 = vector.shape_cast %40 : vector<128x64xf32> to vector<16x8x64xf32>
    "tpu.trace_start"() <{level = 10 : i32, message = "btd,bsd->bts"}> : () -> ()
    %cst_17 = arith.constant dense<0.000000e+00> : vector<16x8x8xf32>
    %42 = tpu.matmul %37, %39, %cst_17 {dimension_numbers = #tpu.dot_dimension_numbers<[2], [2], [1], [1], [0, 0, 0, 1, 1, 1], [0], [0]>} : vector<16x8x64xf32>, vector<16x8x64xf32>, vector<16x8x8xf32> -> vector<16x8x8xf32>
    "tpu.trace_stop"() : () -> ()
    %cst_18 = arith.constant dense<0xFF800000> : vector<16x8xf32>
    %43 = vector.multi_reduction <maximumf>, %42, %cst_18 [2] : vector<16x8x8xf32> to vector<16x8xf32>
    %44 = vector.shape_cast %43 : vector<16x8xf32> to vector<16x8x1xf32>
    %45 = vector.broadcast %44 : vector<16x8x1xf32> to vector<16x8x8xf32>
    %46 = arith.subf %42, %45 : vector<16x8x8xf32>
    %47 = math.exp %46 : vector<16x8x8xf32>
    %cst_19 = arith.constant dense<0.000000e+00> : vector<16x8xf32>
    %48 = vector.multi_reduction <add>, %47, %cst_19 [2] : vector<16x8x8xf32> to vector<16x8xf32>
    %49 = vector.shape_cast %48 : vector<16x8xf32> to vector<16x8x1xf32>
    %50 = tpu.reciprocal %49 {approx = true} : vector<16x8x1xf32> -> vector<16x8x1xf32>
    %51 = vector.broadcast %50 : vector<16x8x1xf32> to vector<16x8x8xf32>
    %52 = arith.mulf %47, %51 : vector<16x8x8xf32>
    "tpu.trace_start"() <{level = 10 : i32, message = "bts,bsd->btd"}> : () -> ()
    %cst_20 = arith.constant dense<0.000000e+00> : vector<16x8x64xf32>
    %53 = tpu.matmul %52, %41, %cst_20 {dimension_numbers = #tpu.dot_dimension_numbers<[2], [1], [1], [2], [0, 0, 0, 1, 1, 2], [0], [0]>} : vector<16x8x8xf32>, vector<16x8x64xf32>, vector<16x8x64xf32> -> vector<16x8x64xf32>
    "tpu.trace_stop"() : () -> ()
    %54 = vector.extract_strided_slice %35 {offsets = [0, 64], sizes = [128, 64], strides = [1, 1]} : vector<128x384xf32> to vector<128x64xf32>
    %55 = vector.shape_cast %54 : vector<128x64xf32> to vector<16x8x64xf32>
    %56 = vector.extract_strided_slice %35 {offsets = [0, 192], sizes = [128, 64], strides = [1, 1]} : vector<128x384xf32> to vector<128x64xf32>
    %57 = vector.shape_cast %56 : vector<128x64xf32> to vector<16x8x64xf32>
    %58 = vector.extract_strided_slice %35 {offsets = [0, 320], sizes = [128, 64], strides = [1, 1]} : vector<128x384xf32> to vector<128x64xf32>
    %59 = vector.shape_cast %58 : vector<128x64xf32> to vector<16x8x64xf32>
    "tpu.trace_start"() <{level = 10 : i32, message = "btd,bsd->bts"}> : () -> ()
    %cst_21 = arith.constant dense<0.000000e+00> : vector<16x8x8xf32>
    %60 = tpu.matmul %55, %57, %cst_21 {dimension_numbers = #tpu.dot_dimension_numbers<[2], [2], [1], [1], [0, 0, 0, 1, 1, 1], [0], [0]>} : vector<16x8x64xf32>, vector<16x8x64xf32>, vector<16x8x8xf32> -> vector<16x8x8xf32>
    "tpu.trace_stop"() : () -> ()
    %cst_22 = arith.constant dense<0xFF800000> : vector<16x8xf32>
    %61 = vector.multi_reduction <maximumf>, %60, %cst_22 [2] : vector<16x8x8xf32> to vector<16x8xf32>
    %62 = vector.shape_cast %61 : vector<16x8xf32> to vector<16x8x1xf32>
    %63 = vector.broadcast %62 : vector<16x8x1xf32> to vector<16x8x8xf32>
    %64 = arith.subf %60, %63 : vector<16x8x8xf32>
    %65 = math.exp %64 : vector<16x8x8xf32>
    %cst_23 = arith.constant dense<0.000000e+00> : vector<16x8xf32>
    %66 = vector.multi_reduction <add>, %65, %cst_23 [2] : vector<16x8x8xf32> to vector<16x8xf32>
    %67 = vector.shape_cast %66 : vector<16x8xf32> to vector<16x8x1xf32>
    %68 = tpu.reciprocal %67 {approx = true} : vector<16x8x1xf32> -> vector<16x8x1xf32>
    %69 = vector.broadcast %68 : vector<16x8x1xf32> to vector<16x8x8xf32>
    %70 = arith.mulf %65, %69 : vector<16x8x8xf32>
    "tpu.trace_start"() <{level = 10 : i32, message = "bts,bsd->btd"}> : () -> ()
    %cst_24 = arith.constant dense<0.000000e+00> : vector<16x8x64xf32>
    %71 = tpu.matmul %70, %59, %cst_24 {dimension_numbers = #tpu.dot_dimension_numbers<[2], [1], [1], [2], [0, 0, 0, 1, 1, 2], [0], [0]>} : vector<16x8x8xf32>, vector<16x8x64xf32>, vector<16x8x64xf32> -> vector<16x8x64xf32>
    "tpu.trace_stop"() : () -> ()
    %72 = tpu.concatenate %53, %71 in 2 : vector<16x8x64xf32>, vector<16x8x64xf32> -> vector<16x8x128xf32>
    %73 = vector.shape_cast %72 : vector<16x8x128xf32> to vector<128x128xf32>
    %74 = arith.truncf %73 : vector<128x128xf32> to vector<128x128xbf16>
    %c0_25 = arith.constant 0 : index
    %c0_26 = arith.constant 0 : index
    %75 = vector.load %arg7[%c0_25, %c0_26] : memref<128x128xbf16, #tpu.memory_space<vmem>>, vector<128x128xbf16>
    %cst_27 = arith.constant dense<0.000000e+00> : vector<128x128xf32>
    %76 = tpu.matmul %74, %75, %cst_27 {dimension_numbers = #tpu.dot_dimension_numbers<[1], [0], [0], [1], [0, 0, 1, 1], [], []>} : vector<128x128xbf16>, vector<128x128xbf16>, vector<128x128xf32> -> vector<128x128xf32>
    %c0_28 = arith.constant 0 : index
    %c0_29 = arith.constant 0 : index
    %77 = vector.load %arg8[%c0_28, %c0_29] : memref<1x128xf32, #tpu.memory_space<vmem>>, vector<1x128xf32>
    %78 = vector.broadcast %77 : vector<1x128xf32> to vector<128x128xf32>
    %79 = arith.addf %76, %78 : vector<128x128xf32>
    %80 = arith.addf %5, %79 : vector<128x128xf32>
    %c0_30 = arith.constant 0 : index
    %c0_31 = arith.constant 0 : index
    %81 = vector.load %arg9[%c0_30, %c0_31] : memref<1x128xf32, #tpu.memory_space<vmem>>, vector<1x128xf32>
    %c0_32 = arith.constant 0 : index
    %c0_33 = arith.constant 0 : index
    %82 = vector.load %arg10[%c0_32, %c0_33] : memref<1x128xf32, #tpu.memory_space<vmem>>, vector<1x128xf32>
    %cst_34 = arith.constant dense<0.000000e+00> : vector<128xf32>
    %83 = vector.multi_reduction <add>, %80, %cst_34 [1] : vector<128x128xf32> to vector<128xf32>
    %84 = vector.shape_cast %83 : vector<128xf32> to vector<128x1xf32>
    %cst_35 = arith.constant 1.280000e+02 : f32
    %85 = vector.broadcast %cst_35 : f32 to vector<128x1xf32>
    %86 = arith.divf %84, %85 : vector<128x1xf32>
    %87 = vector.broadcast %86 : vector<128x1xf32> to vector<128x128xf32>
    %88 = arith.subf %80, %87 : vector<128x128xf32>
    %89 = arith.mulf %88, %88 : vector<128x128xf32>
    %cst_36 = arith.constant dense<0.000000e+00> : vector<128xf32>
    %90 = vector.multi_reduction <add>, %89, %cst_36 [1] : vector<128x128xf32> to vector<128xf32>
    %91 = vector.shape_cast %90 : vector<128xf32> to vector<128x1xf32>
    %cst_37 = arith.constant 1.280000e+02 : f32
    %92 = vector.broadcast %cst_37 : f32 to vector<128x1xf32>
    %93 = arith.divf %91, %92 : vector<128x1xf32>
    %94 = vector.broadcast %86 : vector<128x1xf32> to vector<128x128xf32>
    %95 = arith.subf %80, %94 : vector<128x128xf32>
    %cst_38 = arith.constant 9.99999974E-6 : f32
    %96 = vector.broadcast %cst_38 : f32 to vector<128x1xf32>
    %97 = arith.addf %93, %96 : vector<128x1xf32>
    %98 = math.rsqrt %97 : vector<128x1xf32>
    %99 = vector.broadcast %98 : vector<128x1xf32> to vector<128x128xf32>
    %100 = arith.mulf %95, %99 : vector<128x128xf32>
    %101 = vector.broadcast %81 : vector<1x128xf32> to vector<128x128xf32>
    %102 = arith.mulf %100, %101 : vector<128x128xf32>
    %103 = vector.broadcast %82 : vector<1x128xf32> to vector<128x128xf32>
    %104 = arith.addf %102, %103 : vector<128x128xf32>
    %105 = arith.truncf %104 : vector<128x128xf32> to vector<128x128xbf16>
    %c0_39 = arith.constant 0 : index
    %c0_40 = arith.constant 0 : index
    %106 = vector.load %arg11[%c0_39, %c0_40] : memref<128x512xbf16, #tpu.memory_space<vmem>>, vector<128x512xbf16>
    %cst_41 = arith.constant dense<0.000000e+00> : vector<128x512xf32>
    %107 = tpu.matmul %105, %106, %cst_41 {dimension_numbers = #tpu.dot_dimension_numbers<[1], [0], [0], [1], [0, 0, 1, 1], [], []>} : vector<128x128xbf16>, vector<128x512xbf16>, vector<128x512xf32> -> vector<128x512xf32>
    %c0_42 = arith.constant 0 : index
    %c0_43 = arith.constant 0 : index
    %108 = vector.load %arg12[%c0_42, %c0_43] : memref<1x512xf32, #tpu.memory_space<vmem>>, vector<1x512xf32>
    %109 = vector.broadcast %108 : vector<1x512xf32> to vector<128x512xf32>
    %110 = arith.addf %107, %109 : vector<128x512xf32>
    %cst_44 = arith.constant 1.702000e+00 : f32
    %111 = vector.broadcast %cst_44 : f32 to vector<128x512xf32>
    %112 = arith.mulf %111, %110 : vector<128x512xf32>
    %113 = arith.negf %112 : vector<128x512xf32>
    %114 = math.exp %113 : vector<128x512xf32>
    %cst_45 = arith.constant 1.000000e+00 : f32
    %115 = vector.broadcast %cst_45 : f32 to vector<128x512xf32>
    %116 = arith.addf %115, %114 : vector<128x512xf32>
    %117 = arith.divf %115, %116 : vector<128x512xf32>
    %118 = arith.mulf %110, %117 : vector<128x512xf32>
    %119 = arith.truncf %118 : vector<128x512xf32> to vector<128x512xbf16>
    %c0_46 = arith.constant 0 : index
    %c0_47 = arith.constant 0 : index
    %120 = vector.load %arg13[%c0_46, %c0_47] : memref<512x128xbf16, #tpu.memory_space<vmem>>, vector<512x128xbf16>
    %cst_48 = arith.constant dense<0.000000e+00> : vector<128x128xf32>
    %121 = tpu.matmul %119, %120, %cst_48 {dimension_numbers = #tpu.dot_dimension_numbers<[1], [0], [0], [1], [0, 0, 1, 1], [], []>} : vector<128x512xbf16>, vector<512x128xbf16>, vector<128x128xf32> -> vector<128x128xf32>
    %c0_49 = arith.constant 0 : index
    %c0_50 = arith.constant 0 : index
    %122 = vector.load %arg14[%c0_49, %c0_50] : memref<1x128xf32, #tpu.memory_space<vmem>>, vector<1x128xf32>
    %123 = vector.broadcast %122 : vector<1x128xf32> to vector<128x128xf32>
    %124 = arith.addf %121, %123 : vector<128x128xf32>
    %125 = arith.addf %80, %124 : vector<128x128xf32>
    %126 = vector.shape_cast %125 : vector<128x128xf32> to vector<16x8x128xf32>
    %127 = arith.addf %126, %0 : vector<16x8x128xf32>
    %cst_51 = arith.constant dense<0.000000e+00> : vector<16x128xf32>
    %128 = vector.multi_reduction <add>, %127, %cst_51 [1] : vector<16x8x128xf32> to vector<16x128xf32>
    %cst_52 = arith.constant 8.000000e+00 : f32
    %129 = vector.broadcast %cst_52 : f32 to vector<16x128xf32>
    %130 = arith.divf %128, %129 : vector<16x128xf32>
    %c0_53 = arith.constant 0 : index
    %c0_54 = arith.constant 0 : index
    %131 = vector.load %arg15[%c0_53, %c0_54] : memref<16x128xf32, #tpu.memory_space<vmem>>, vector<16x128xf32>
    tpu.vector_store %arg15[%c0_53, %c0_54], %130 {strides = array<i32>} : memref<16x128xf32, #tpu.memory_space<vmem>>, vector<16x128xf32>,
    return
  }
  func.func @transform_0(%arg0: i32) -> (i32, i32, i32) {
    %c0_i32 = arith.constant 0 : i32
    %c0_i32_0 = arith.constant 0 : i32
    %c0_i32_1 = arith.constant 0 : i32
    return %arg0, %c0_i32, %c0_i32_0 : i32, i32, i32
  }
  func.func @transform_1(%arg0: i32) -> (i32, i32) {
    %c0_i32 = arith.constant 0 : i32
    %c0_i32_0 = arith.constant 0 : i32
    %c0_i32_1 = arith.constant 0 : i32
    return %c0_i32, %c0_i32_0 : i32, i32
  }
  func.func @transform_2(%arg0: i32) -> (i32, i32) {
    %c0_i32 = arith.constant 0 : i32
    %c0_i32_0 = arith.constant 0 : i32
    %c0_i32_1 = arith.constant 0 : i32
    return %c0_i32, %c0_i32_0 : i32, i32
  }
  func.func @transform_3(%arg0: i32) -> (i32, i32) {
    %c0_i32 = arith.constant 0 : i32
    %c0_i32_0 = arith.constant 0 : i32
    %c0_i32_1 = arith.constant 0 : i32
    return %c0_i32, %c0_i32_0 : i32, i32
  }
  func.func @transform_4(%arg0: i32) -> (i32, i32) {
    %c0_i32 = arith.constant 0 : i32
    %c0_i32_0 = arith.constant 0 : i32
    %c0_i32_1 = arith.constant 0 : i32
    return %c0_i32, %c0_i32_0 : i32, i32
  }
  func.func @transform_5(%arg0: i32) -> (i32, i32) {
    %c0_i32 = arith.constant 0 : i32
    %c0_i32_0 = arith.constant 0 : i32
    %c0_i32_1 = arith.constant 0 : i32
    return %c0_i32, %c0_i32_0 : i32, i32
  }
  func.func @transform_6(%arg0: i32) -> (i32, i32) {
    %c0_i32 = arith.constant 0 : i32
    %c0_i32_0 = arith.constant 0 : i32
    %c0_i32_1 = arith.constant 0 : i32
    return %c0_i32, %c0_i32_0 : i32, i32
  }
  func.func @transform_7(%arg0: i32) -> (i32, i32) {
    %c0_i32 = arith.constant 0 : i32
    %c0_i32_0 = arith.constant 0 : i32
    %c0_i32_1 = arith.constant 0 : i32
    return %c0_i32, %c0_i32_0 : i32, i32
  }
  func.func @transform_8(%arg0: i32) -> (i32, i32) {
    %c0_i32 = arith.constant 0 : i32
    %c0_i32_0 = arith.constant 0 : i32
    %c0_i32_1 = arith.constant 0 : i32
    return %c0_i32, %c0_i32_0 : i32, i32
  }
  func.func @transform_9(%arg0: i32) -> (i32, i32) {
    %c0_i32 = arith.constant 0 : i32
    %c0_i32_0 = arith.constant 0 : i32
    %c0_i32_1 = arith.constant 0 : i32
    return %c0_i32, %c0_i32_0 : i32, i32
  }
  func.func @transform_10(%arg0: i32) -> (i32, i32) {
    %c0_i32 = arith.constant 0 : i32
    %c0_i32_0 = arith.constant 0 : i32
    %c0_i32_1 = arith.constant 0 : i32
    return %c0_i32, %c0_i32_0 : i32, i32
  }
  func.func @transform_11(%arg0: i32) -> (i32, i32) {
    %c0_i32 = arith.constant 0 : i32
    %c0_i32_0 = arith.constant 0 : i32
    %c0_i32_1 = arith.constant 0 : i32
    return %c0_i32, %c0_i32_0 : i32, i32
  }
  func.func @transform_12(%arg0: i32) -> (i32, i32) {
    %c0_i32 = arith.constant 0 : i32
    %c0_i32_0 = arith.constant 0 : i32
    %c0_i32_1 = arith.constant 0 : i32
    return %c0_i32, %c0_i32_0 : i32, i32
  }
  func.func @transform_13(%arg0: i32) -> (i32, i32) {
    %c0_i32 = arith.constant 0 : i32
    %c0_i32_0 = arith.constant 0 : i32
    %c0_i32_1 = arith.constant 0 : i32
    return %c0_i32, %c0_i32_0 : i32, i32
  }
  func.func @transform_14(%arg0: i32) -> (i32, i32) {
    %c0_i32 = arith.constant 0 : i32
    %c0_i32_0 = arith.constant 0 : i32
    return %arg0, %c0_i32 : i32, i32
  }
}

</mosaic_0001>

<llo_original>
// kernel: tpu_custom_call.1
$region0: #{tpu_custom_call.1}
  #allocation0 [shape = 'u32[]', space=smem, size = 0x4, offset = 0x4, fixed_abs, tag = 'smem constant byte address 0x4 - core index']
  #allocation1 [shape = 'u32[144,128]{1,0:T(1,128)}', space=vmem, size = 0x12000, scoped, tag = 'internal scratch']
  %s0 = inlined_call_operand.hbm [shape: f32[32,8,128], index: 0, kind: input, shape index: {}]
  %s1 = inlined_call_operand.hbm [shape: f32[8,128], index: 1, kind: input, shape index: {}]
  %s2 = inlined_call_operand.hbm [shape: f32[1,128], index: 2, kind: input, shape index: {}]
  %s3 = inlined_call_operand.hbm [shape: f32[1,128], index: 3, kind: input, shape index: {}]
  %s4 = inlined_call_operand.hbm [shape: bf16[128,384], index: 4, kind: input, shape index: {}]
  %s5 = inlined_call_operand.vmem [shape: f32[1,384], index: 5, kind: input, shape index: {}]
  %s6 = inlined_call_operand.hbm [shape: bf16[128,128], index: 6, kind: input, shape index: {}]
  %s7 = inlined_call_operand.vmem [shape: f32[1,128], index: 7, kind: input, shape index: {}]
  %s8 = inlined_call_operand.vmem [shape: f32[1,128], index: 8, kind: input, shape index: {}]
  %s9 = inlined_call_operand.vmem [shape: f32[1,128], index: 9, kind: input, shape index: {}]
  %s10 = inlined_call_operand.hbm [shape: bf16[128,512], index: 10, kind: input, shape index: {}]
  %s11 = inlined_call_operand.vmem [shape: f32[1,512], index: 11, kind: input, shape index: {}]
  %s12 = inlined_call_operand.hbm [shape: bf16[512,128], index: 12, kind: input, shape index: {}]
  %s13 = inlined_call_operand.vmem [shape: f32[1,128], index: 13, kind: input, shape index: {}]
  %s14 = inlined_call_operand.hbm [shape: f32[32,128], index: 14, kind: output, shape index: {}]
  %s15 = sld [smem:[#allocation0]]
  $region121: #{tpu_custom_call.1} parent=0
    _
  %s17 = ssub.s32 1, %s15
  %s18 = scalar_select 0, %s17, %s15
  $region1: #{tpu_custom_call.1} parent=0
    #allocation2 [shape = 'u8[131072]{0}', space=vmem, size = 0x20000, scoped, tag = 'input window, operand 0']
    #allocation3 [shape = 's32[2]{0}', space=sflag, size = 0x8, scoped, tag = 'scoped memory for tpu_custom_call.1']
    #allocation4 [shape = 's32[2]{0}', space=sflag, size = 0x8, scoped, tag = 'scoped memory for tpu_custom_call.1']
    #allocation5 [shape = 'u8[4096]{0}', space=vmem, size = 0x1000, scoped, tag = 'input window, operand 1, single buffered']
    #allocation6 [shape = 's32[1]{0}', space=sflag, size = 0x4, scoped, tag = 'scoped memory for tpu_custom_call.1']
    #allocation7 [shape = 'u8[512]{0}', space=vmem, size = 0x400, scoped, tag = 'input window, operand 2, single buffered']
    #allocation8 [shape = 'u8[512]{0}', space=vmem, size = 0x400, scoped, tag = 'input window, operand 3, single buffered']
    #allocation9 [shape = 's32[1]{0}', space=sflag, size = 0x4, scoped, tag = 'scoped memory for tpu_custom_call.1']
    #allocation10 [shape = 'u8[98304]{0}', space=vmem, size = 0x18000, scoped, tag = 'input window, operand 4, single buffered']
    #allocation11 [shape = 'u8[32768]{0}', space=vmem, size = 0x8000, scoped, tag = 'input window, operand 6, single buffered']
    #allocation12 [shape = 's32[1]{0}', space=sflag, size = 0x4, scoped, tag = 'scoped memory for tpu_custom_call.1']
    #allocation13 [shape = 'u8[131072]{0}', space=vmem, size = 0x20000, scoped, tag = 'input window, operand 10, single buffered']
    #allocation14 [shape = 'u8[131072]{0}', space=vmem, size = 0x20000, scoped, tag = 'input window, operand 12, single buffered']
    #allocation15 [shape = 's32[1]{0}', space=sflag, size = 0x4, scoped, tag = 'scoped memory for tpu_custom_call.1']
    #allocation16 [shape = 'u8[16384]{0}', space=vmem, size = 0x4000, scoped, tag = 'output window, operand 0']
    %19 = vsyncpa [#allocation3], 0
    %s20 = scalar_lea.sflag [#allocation3], 1
    %21 = vsyncpa %s20, 0
    %22 = vsyncpa [#allocation6], 0
    %23 = vsyncpa [#allocation9], 0
    %24 = vsyncpa [#allocation12], 0
    %25 = vsyncpa [#allocation15], 0
    %26 = vsyncpa [#allocation4], 0
    %s27 = scalar_lea.sflag [#allocation4], 1
    %28 = vsyncpa %s27, 0
    loop: start=0, step=1, limit=4
    $region2: #{tpu_custom_call.1} parent=1 // loop_pre_header
      _
    $region3: #{tpu_custom_call.1} parent=1 // loop_header
      %s30 = sphi 0, %s34
      %p31 = scmp.ge.s32.totalorder %s30, 4
      %s40 = sphi 0, %s42
      %s43 = sphi 0, %s40
      %s44 = sphi 0, %s43
      %s60 = sphi 0, %s44
      %s64 = sphi 0, %s64
      %s66 = sphi 0, %s64
      %s67 = sphi 0, %s66
      %s81 = sphi 0, %s67
      %s85 = sphi 0, %s85
      %s87 = sphi 0, %s85
      %s88 = sphi 0, %s87
      %s102 = sphi 0, %s88
      %s106 = sphi 0, %s106
      %s108 = sphi 0, %s106
      %s109 = sphi 0, %s108
      %s123 = sphi 0, %s109
      %s127 = sphi 0, %s127
      %s129 = sphi 0, %s127
      %s130 = sphi 0, %s129
      %s144 = sphi 0, %s130
      %s148 = sphi 0, %s148
      %s150 = sphi 0, %s148
      %s151 = sphi 0, %s150
      %s165 = sphi 0, %s151
      %s169 = sphi 0, %s169
      %s171 = sphi 0, %s169
      %s172 = sphi 0, %s171
      %s186 = sphi 0, %s172
      %s190 = sphi 0, %s190
      %s192 = sphi 0, %s190
      %s193 = sphi 0, %s192
      %s207 = sphi 0, %s193
      %s211 = sphi 0, %s211
      %s213 = sphi 0, %s211
      %s214 = sphi 0, %s213
      %s228 = sphi 0, %s214
      %s232 = sphi 0, %s232
      %s234 = sphi 0, %s232
      %s235 = sphi 0, %s234
      %s249 = sphi 0, %s235
      %s253 = sphi 0, %s253
      %s255 = sphi 0, %s253
      %s256 = sphi 0, %s255
      %s270 = sphi 0, %s256
      %s274 = sphi 0, %s274
      %s276 = sphi 0, %s274
      %s277 = sphi 0, %s276
      %s291 = sphi 0, %s277
      %s295 = sphi 0, %s295
      %s297 = sphi 0, %s295
      %s298 = sphi 0, %s297
      %s312 = sphi 0, %s298
      %s316 = sphi 0, %s316
      %s318 = sphi 0, %s316
      %s319 = sphi 0, %s318
      %s333 = sphi 0, %s319
      %s339 = sphi 0, %s341
      %s342 = sphi 0, %s339
      %s343 = sphi 0, %s342
      %s359 = sphi 0, %s343
    $region4: #{tpu_custom_call.1} parent=1 // loop_header_branch
      %33 = sbr.rel (%p31) target = $region8
    $region5: #{tpu_custom_call.1} parent=1 // loop_body
      %s35 = ssub.s32 %s30, 1
      %s36 = ssub.s32 %s30, 2
      %s37 = sadd.s32 %s30, 1
      %s38 = ssub.s32 %s30, %s37
      %p39 = scmp.eq.s32.totalorder %s38, 0
      %s41 = sadd.s32 %s40, 1
      %s42 = scalar_select %p39, %s40, %s41
      %p45 = pneg %p39
      %p46 = scmp.eq.s32.totalorder %s30, 1
      %p47 = por %p45, %p46
      %p48 = scmp.ne.s32.totalorder %s40, %s43
      %p49 = scmp.eq.s32.totalorder %s30, 0
      %p50 = por %p48, %p49
      %p51 = scmp.ne.s32.totalorder %s40, %s43
      %p52 = scmp.eq.s32.totalorder %s35, 1
      %p53 = por %p51, %p52
      %p54 = scmp.ne.s32.totalorder %s43, %s44
      %p55 = scmp.eq.s32.totalorder %s35, 0
      %p56 = por %p54, %p55
      %p57 = scmp.ne.s32.totalorder %s43, %s44
      %p58 = scmp.eq.s32.totalorder %s36, 1
      %p59 = por %p57, %p58
      %p61 = scmp.ne.s32.totalorder %s44, %s60
      %p62 = scmp.eq.s32.totalorder %s36, 0
      %p63 = por %p61, %p62
      %s65 = sadd.s32 %s64, 1
      %p68 = scmp.eq.s32.totalorder %s30, 1
      %p69 = scmp.ne.s32.totalorder %s64, %s66
      %p70 = scmp.eq.s32.totalorder %s30, 0
      %p71 = por %p69, %p70
      %p72 = scmp.ne.s32.totalorder %s64, %s66
      %p73 = scmp.eq.s32.totalorder %s35, 1
      %p74 = por %p72, %p73
      %p75 = scmp.ne.s32.totalorder %s66, %s67
      %p76 = scmp.eq.s32.totalorder %s35, 0
      %p77 = por %p75, %p76
      %p78 = scmp.ne.s32.totalorder %s66, %s67
      %p79 = scmp.eq.s32.totalorder %s36, 1
      %p80 = por %p78, %p79
      %p82 = scmp.ne.s32.totalorder %s67, %s81
      %p83 = scmp.eq.s32.totalorder %s36, 0
      %p84 = por %p82, %p83
      %s86 = sadd.s32 %s85, 1
      %p89 = scmp.eq.s32.totalorder %s30, 1
      %p90 = scmp.ne.s32.totalorder %s85, %s87
      %p91 = scmp.eq.s32.totalorder %s30, 0
      %p92 = por %p90, %p91
      %p93 = scmp.ne.s32.totalorder %s85, %s87
      %p94 = scmp.eq.s32.totalorder %s35, 1
      %p95 = por %p93, %p94
      %p96 = scmp.ne.s32.totalorder %s87, %s88
      %p97 = scmp.eq.s32.totalorder %s35, 0
      %p98 = por %p96, %p97
      %p99 = scmp.ne.s32.totalorder %s87, %s88
      %p100 = scmp.eq.s32.totalorder %s36, 1
      %p101 = por %p99, %p100
      %p103 = scmp.ne.s32.totalorder %s88, %s102
      %p104 = scmp.eq.s32.totalorder %s36, 0
      %p105 = por %p103, %p104
      %s107 = sadd.s32 %s106, 1
      %p110 = scmp.eq.s32.totalorder %s30, 1
      %p111 = scmp.ne.s32.totalorder %s106, %s108
      %p112 = scmp.eq.s32.totalorder %s30, 0
      %p113 = por %p111, %p112
      %p114 = scmp.ne.s32.totalorder %s106, %s108
      %p115 = scmp.eq.s32.totalorder %s35, 1
      %p116 = por %p114, %p115
      %p117 = scmp.ne.s32.totalorder %s108, %s109
      %p118 = scmp.eq.s32.totalorder %s35, 0
      %p119 = por %p117, %p118
      %p120 = scmp.ne.s32.totalorder %s108, %s109
      %p121 = scmp.eq.s32.totalorder %s36, 1
      %p122 = por %p120, %p121
      %p124 = scmp.ne.s32.totalorder %s109, %s123
      %p125 = scmp.eq.s32.totalorder %s36, 0
      %p126 = por %p124, %p125
      %s128 = sadd.s32 %s127, 1
      %p131 = scmp.eq.s32.totalorder %s30, 1
      %p132 = scmp.ne.s32.totalorder %s127, %s129
      %p133 = scmp.eq.s32.totalorder %s30, 0
      %p134 = por %p132, %p133
      %p135 = scmp.ne.s32.totalorder %s127, %s129
      %p136 = scmp.eq.s32.totalorder %s35, 1
      %p137 = por %p135, %p136
      %p138 = scmp.ne.s32.totalorder %s129, %s130
      %p139 = scmp.eq.s32.totalorder %s35, 0
      %p140 = por %p138, %p139
      %p141 = scmp.ne.s32.totalorder %s129, %s130
      %p142 = scmp.eq.s32.totalorder %s36, 1
      %p143 = por %p141, %p142
      %p145 = scmp.ne.s32.totalorder %s130, %s144
      %p146 = scmp.eq.s32.totalorder %s36, 0
      %p147 = por %p145, %p146
      %s149 = sadd.s32 %s148, 1
      %p152 = scmp.eq.s32.totalorder %s30, 1
      %p153 = scmp.ne.s32.totalorder %s148, %s150
      %p154 = scmp.eq.s32.totalorder %s30, 0
      %p155 = por %p153, %p154
      %p156 = scmp.ne.s32.totalorder %s148, %s150
      %p157 = scmp.eq.s32.totalorder %s35, 1
      %p158 = por %p156, %p157
      %p159 = scmp.ne.s32.totalorder %s150, %s151
      %p160 = scmp.eq.s32.totalorder %s35, 0
      %p161 = por %p159, %p160
      %p162 = scmp.ne.s32.totalorder %s150, %s151
      %p163 = scmp.eq.s32.totalorder %s36, 1
      %p164 = por %p162, %p163
      %p166 = scmp.ne.s32.totalorder %s151, %s165
      %p167 = scmp.eq.s32.totalorder %s36, 0
      %p168 = por %p166, %p167
      %s170 = sadd.s32 %s169, 1
      %p173 = scmp.eq.s32.totalorder %s30, 1
      %p174 = scmp.ne.s32.totalorder %s169, %s171
      %p175 = scmp.eq.s32.totalorder %s30, 0
      %p176 = por %p174, %p175
      %p177 = scmp.ne.s32.totalorder %s169, %s171
      %p178 = scmp.eq.s32.totalorder %s35, 1
      %p179 = por %p177, %p178
      %p180 = scmp.ne.s32.totalorder %s171, %s172
      %p181 = scmp.eq.s32.totalorder %s35, 0
      %p182 = por %p180, %p181
      %p183 = scmp.ne.s32.totalorder %s171, %s172
      %p184 = scmp.eq.s32.totalorder %s36, 1
      %p185 = por %p183, %p184
      %p187 = scmp.ne.s32.totalorder %s172, %s186
      %p188 = scmp.eq.s32.totalorder %s36, 0
      %p189 = por %p187, %p188
      %s191 = sadd.s32 %s190, 1
      %p194 = scmp.eq.s32.totalorder %s30, 1
      %p195 = scmp.ne.s32.totalorder %s190, %s192
      %p196 = scmp.eq.s32.totalorder %s30, 0
      %p197 = por %p195, %p196
      %p198 = scmp.ne.s32.totalorder %s190, %s192
      %p199 = scmp.eq.s32.totalorder %s35, 1
      %p200 = por %p198, %p199
      %p201 = scmp.ne.s32.totalorder %s192, %s193
      %p202 = scmp.eq.s32.totalorder %s35, 0
      %p203 = por %p201, %p202
      %p204 = scmp.ne.s32.totalorder %s192, %s193
      %p205 = scmp.eq.s32.totalorder %s36, 1
      %p206 = por %p204, %p205
      %p208 = scmp.ne.s32.totalorder %s193, %s207
      %p209 = scmp.eq.s32.totalorder %s36, 0
      %p210 = por %p208, %p209
      %s212 = sadd.s32 %s211, 1
      %p215 = scmp.eq.s32.totalorder %s30, 1
      %p216 = scmp.ne.s32.totalorder %s211, %s213
      %p217 = scmp.eq.s32.totalorder %s30, 0
      %p218 = por %p216, %p217
      %p219 = scmp.ne.s32.totalorder %s211, %s213
      %p220 = scmp.eq.s32.totalorder %s35, 1
      %p221 = por %p219, %p220
      %p222 = scmp.ne.s32.totalorder %s213, %s214
      %p223 = scmp.eq.s32.totalorder %s35, 0
      %p224 = por %p222, %p223
      %p225 = scmp.ne.s32.totalorder %s213, %s214
      %p226 = scmp.eq.s32.totalorder %s36, 1
      %p227 = por %p225, %p226
      %p229 = scmp.ne.s32.totalorder %s214, %s228
      %p230 = scmp.eq.s32.totalorder %s36, 0
      %p231 = por %p229, %p230
      %s233 = sadd.s32 %s232, 1
      %p236 = scmp.eq.s32.totalorder %s30, 1
      %p237 = scmp.ne.s32.totalorder %s232, %s234
      %p238 = scmp.eq.s32.totalorder %s30, 0
      %p239 = por %p237, %p238
      %p240 = scmp.ne.s32.totalorder %s232, %s234
      %p241 = scmp.eq.s32.totalorder %s35, 1
      %p242 = por %p240, %p241
      %p243 = scmp.ne.s32.totalorder %s234, %s235
      %p244 = scmp.eq.s32.totalorder %s35, 0
      %p245 = por %p243, %p244
      %p246 = scmp.ne.s32.totalorder %s234, %s235
      %p247 = scmp.eq.s32.totalorder %s36, 1
      %p248 = por %p246, %p247
      %p250 = scmp.ne.s32.totalorder %s235, %s249
      %p251 = scmp.eq.s32.totalorder %s36, 0
      %p252 = por %p250, %p251
      %s254 = sadd.s32 %s253, 1
      %p257 = scmp.eq.s32.totalorder %s30, 1
      %p258 = scmp.ne.s32.totalorder %s253, %s255
      %p259 = scmp.eq.s32.totalorder %s30, 0
      %p260 = por %p258, %p259
      %p261 = scmp.ne.s32.totalorder %s253, %s255
      %p262 = scmp.eq.s32.totalorder %s35, 1
      %p263 = por %p261, %p262
      %p264 = scmp.ne.s32.totalorder %s255, %s256
      %p265 = scmp.eq.s32.totalorder %s35, 0
      %p266 = por %p264, %p265
      %p267 = scmp.ne.s32.totalorder %s255, %s256
      %p268 = scmp.eq.s32.totalorder %s36, 1
      %p269 = por %p267, %p268
      %p271 = scmp.ne.s32.totalorder %s256, %s270
      %p272 = scmp.eq.s32.totalorder %s36, 0
      %p273 = por %p271, %p272
      %s275 = sadd.s32 %s274, 1
      %p278 = scmp.eq.s32.totalorder %s30, 1
      %p279 = scmp.ne.s32.totalorder %s274, %s276
      %p280 = scmp.eq.s32.totalorder %s30, 0
      %p281 = por %p279, %p280
      %p282 = scmp.ne.s32.totalorder %s274, %s276
      %p283 = scmp.eq.s32.totalorder %s35, 1
      %p284 = por %p282, %p283
      %p285 = scmp.ne.s32.totalorder %s276, %s277
      %p286 = scmp.eq.s32.totalorder %s35, 0
      %p287 = por %p285, %p286
      %p288 = scmp.ne.s32.totalorder %s276, %s277
      %p289 = scmp.eq.s32.totalorder %s36, 1
      %p290 = por %p288, %p289
      %p292 = scmp.ne.s32.totalorder %s277, %s291
      %p293 = scmp.eq.s32.totalorder %s36, 0
      %p294 = por %p292, %p293
      %s296 = sadd.s32 %s295, 1
      %p299 = scmp.eq.s32.totalorder %s30, 1
      %p300 = scmp.ne.s32.totalorder %s295, %s297
      %p301 = scmp.eq.s32.totalorder %s30, 0
      %p302 = por %p300, %p301
      %p303 = scmp.ne.s32.totalorder %s295, %s297
      %p304 = scmp.eq.s32.totalorder %s35, 1
      %p305 = por %p303, %p304
      %p306 = scmp.ne.s32.totalorder %s297, %s298
      %p307 = scmp.eq.s32.totalorder %s35, 0
      %p308 = por %p306, %p307
      %p309 = scmp.ne.s32.totalorder %s297, %s298
      %p310 = scmp.eq.s32.totalorder %s36, 1
      %p311 = por %p309, %p310
      %p313 = scmp.ne.s32.totalorder %s298, %s312
      %p314 = scmp.eq.s32.totalorder %s36, 0
      %p315 = por %p313, %p314
      %s317 = sadd.s32 %s316, 1
      %p320 = scmp.eq.s32.totalorder %s30, 1
      %p321 = scmp.ne.s32.totalorder %s316, %s318
      %p322 = scmp.eq.s32.totalorder %s30, 0
      %p323 = por %p321, %p322
      %p324 = scmp.ne.s32.totalorder %s316, %s318
      %p325 = scmp.eq.s32.totalorder %s35, 1
      %p326 = por %p324, %p325
      %p327 = scmp.ne.s32.totalorder %s318, %s319
      %p328 = scmp.eq.s32.totalorder %s35, 0
      %p329 = por %p327, %p328
      %p330 = scmp.ne.s32.totalorder %s318, %s319
      %p331 = scmp.eq.s32.totalorder %s36, 1
      %p332 = por %p330, %p331
      %p334 = scmp.ne.s32.totalorder %s319, %s333
      %p335 = scmp.eq.s32.totalorder %s36, 0
      %p336 = por %p334, %p335
      %s337 = ssub.s32 %s30, %s37
      %p338 = scmp.eq.s32.totalorder %s337, 0
      %s340 = sadd.s32 %s339, 1
      %s341 = scalar_select %p338, %s339, %s340
      %p344 = pneg %p338
      %p345 = scmp.eq.s32.totalorder %s30, 1
      %p346 = por %p344, %p345
      %p347 = scmp.ne.s32.totalorder %s339, %s342
      %p348 = scmp.eq.s32.totalorder %s30, 0
      %p349 = por %p347, %p348
      %p350 = scmp.ne.s32.totalorder %s339, %s342
      %p351 = scmp.eq.s32.totalorder %s35, 1
      %p352 = por %p350, %p351
      %p353 = scmp.ne.s32.totalorder %s342, %s343
      %p354 = scmp.eq.s32.totalorder %s35, 0
      %p355 = por %p353, %p354
      %p356 = scmp.ne.s32.totalorder %s342, %s343
      %p357 = scmp.eq.s32.totalorder %s36, 1
      %p358 = por %p356, %p357
      %p360 = scmp.ne.s32.totalorder %s343, %s359
      %p361 = scmp.eq.s32.totalorder %s36, 0
      %p362 = por %p360, %p361
      %p363 = scmp.le.s32.totalorder 1, %s30
      %p364 = scmp.lt.s32.totalorder %s30, 3
      %p365 = pnand %p363, %p364
      %p366 = pneg %p365
      // Predicated region
      $region9: #{tpu_custom_call.1} parent=5 // pred_check
        _
      $region10: #{tpu_custom_call.1} parent=5 // pred_check_branch
        %368 = sbr.rel (%p365) target = $region12
      $region11: #{tpu_custom_call.1} parent=5 // pred_region
        %s369 = ssub.s32 %s30, 1
        // Predicated region
        $region13: #{tpu_custom_call.1} parent=11 // pred_check
          %p370 = pneg %p77
        $region14: #{tpu_custom_call.1} parent=11 // pred_check_branch
          %372 = sbr.rel (%p370) target = $region16
        $region15: #{tpu_custom_call.1} parent=11 // pred_region
          %s374 = ssub.s32 128, 128
          %375 = vsyncadd [#allocation6], %s374
          %s377 = sshll.u32 [#allocation5], 4
          %s378 = int_to_ptr.vmem [resolvable:$true] %s377
          %380 = dma.hbm_to_vmem [thread:$0]  %s1, 128, %s378, [#allocation6]
        $region16: #{tpu_custom_call.1} parent=11 // pred_fallthru
          _
        // Predicated region
        $region17: #{tpu_custom_call.1} parent=11 // pred_check
          %p381 = pneg %p98
        $region18: #{tpu_custom_call.1} parent=11 // pred_check_branch
          %383 = sbr.rel (%p381) target = $region20
        $region19: #{tpu_custom_call.1} parent=11 // pred_region
          %s385 = ssub.s32 16, 16
          %386 = vsyncadd [#allocation6], %s385
          %s388 = sshll.u32 [#allocation7], 4
          %s389 = int_to_ptr.vmem [resolvable:$true] %s388
          %391 = dma.hbm_to_vmem [thread:$0]  %s2, 16, %s389, [#allocation6]
        $region20: #{tpu_custom_call.1} parent=11 // pred_fallthru
          _
        // Predicated region
        $region21: #{tpu_custom_call.1} parent=11 // pred_check
          %p392 = pneg %p119
        $region22: #{tpu_custom_call.1} parent=11 // pred_check_branch
          %394 = sbr.rel (%p392) target = $region24
        $region23: #{tpu_custom_call.1} parent=11 // pred_region
          %s396 = ssub.s32 16, 16
          %397 = vsyncadd [#allocation9], %s396
          %s399 = sshll.u32 [#allocation8], 4
          %s400 = int_to_ptr.vmem [resolvable:$true] %s399
          %402 = dma.hbm_to_vmem [thread:$0]  %s3, 16, %s400, [#allocation9]
        $region24: #{tpu_custom_call.1} parent=11 // pred_fallthru
          _
        // Predicated region
        $region25: #{tpu_custom_call.1} parent=11 // pred_check
          %p403 = pneg %p140
        $region26: #{tpu_custom_call.1} parent=11 // pred_check_branch
          %405 = sbr.rel (%p403) target = $region28
        $region27: #{tpu_custom_call.1} parent=11 // pred_region
          %s407 = ssub.s32 3072, 3072
          %408 = vsyncadd [#allocation9], %s407
          %s409 = sshll.u32 [#allocation10], 4
          %s410 = int_to_ptr.vmem [resolvable:$true] %s409
          %415 = dma.hbm_to_vmem [thread:$0]  %s4, 3072, %s410, [#allocation9], 192, 192, 12
        $region28: #{tpu_custom_call.1} parent=11 // pred_fallthru
          _
        // Predicated region
        $region29: #{tpu_custom_call.1} parent=11 // pred_check
          %p416 = pneg %p161
        $region30: #{tpu_custom_call.1} parent=11 // pred_check_branch
          %418 = sbr.rel (%p416) target = $region32
        $region31: #{tpu_custom_call.1} parent=11 // pred_region
          _
        $region32: #{tpu_custom_call.1} parent=11 // pred_fallthru
          _
        // Predicated region
        $region33: #{tpu_custom_call.1} parent=11 // pred_check
          %p419 = pneg %p182
        $region34: #{tpu_custom_call.1} parent=11 // pred_check_branch
          %421 = sbr.rel (%p419) target = $region36
        $region35: #{tpu_custom_call.1} parent=11 // pred_region
          %s423 = ssub.s32 1024, 1024
          %424 = vsyncadd [#allocation12], %s423
          %s425 = sshll.u32 [#allocation11], 4
          %s426 = int_to_ptr.vmem [resolvable:$true] %s425
          %431 = dma.hbm_to_vmem [thread:$0]  %s6, 1024, %s426, [#allocation12], 64, 64, 4
        $region36: #{tpu_custom_call.1} parent=11 // pred_fallthru
          _
        // Predicated region
        $region37: #{tpu_custom_call.1} parent=11 // pred_check
          %p432 = pneg %p203
        $region38: #{tpu_custom_call.1} parent=11 // pred_check_branch
          %434 = sbr.rel (%p432) target = $region40
        $region39: #{tpu_custom_call.1} parent=11 // pred_region
          _
        $region40: #{tpu_custom_call.1} parent=11 // pred_fallthru
          _
        // Predicated region
        $region41: #{tpu_custom_call.1} parent=11 // pred_check
          %p435 = pneg %p224
        $region42: #{tpu_custom_call.1} parent=11 // pred_check_branch
          %437 = sbr.rel (%p435) target = $region44
        $region43: #{tpu_custom_call.1} parent=11 // pred_region
          _
        $region44: #{tpu_custom_call.1} parent=11 // pred_fallthru
          _
        // Predicated region
        $region45: #{tpu_custom_call.1} parent=11 // pred_check
          %p438 = pneg %p245
        $region46: #{tpu_custom_call.1} parent=11 // pred_check_branch
          %440 = sbr.rel (%p438) target = $region48
        $region47: #{tpu_custom_call.1} parent=11 // pred_region
          _
        $region48: #{tpu_custom_call.1} parent=11 // pred_fallthru
          _
        // Predicated region
        $region49: #{tpu_custom_call.1} parent=11 // pred_check
          %p441 = pneg %p266
        $region50: #{tpu_custom_call.1} parent=11 // pred_check_branch
          %443 = sbr.rel (%p441) target = $region52
        $region51: #{tpu_custom_call.1} parent=11 // pred_region
          %s445 = ssub.s32 4096, 4096
          %446 = vsyncadd [#allocation12], %s445
          %s447 = sshll.u32 [#allocation13], 4
          %s448 = int_to_ptr.vmem [resolvable:$true] %s447
          %453 = dma.hbm_to_vmem [thread:$0]  %s10, 4096, %s448, [#allocation12], 256, 256, 16
        $region52: #{tpu_custom_call.1} parent=11 // pred_fallthru
          _
        // Predicated region
        $region53: #{tpu_custom_call.1} parent=11 // pred_check
          %p454 = pneg %p287
        $region54: #{tpu_custom_call.1} parent=11 // pred_check_branch
          %456 = sbr.rel (%p454) target = $region56
        $region55: #{tpu_custom_call.1} parent=11 // pred_region
          _
        $region56: #{tpu_custom_call.1} parent=11 // pred_fallthru
          _
        // Predicated region
        $region57: #{tpu_custom_call.1} parent=11 // pred_check
          %p457 = pneg %p308
        $region58: #{tpu_custom_call.1} parent=11 // pred_check_branch
          %459 = sbr.rel (%p457) target = $region60
        $region59: #{tpu_custom_call.1} parent=11 // pred_region
          %s461 = ssub.s32 4096, 4096
          %462 = vsyncadd [#allocation15], %s461
          %s463 = sshll.u32 [#allocation14], 4
          %s464 = int_to_ptr.vmem [resolvable:$true] %s463
          %469 = dma.hbm_to_vmem [thread:$0]  %s12, 4096, %s464, [#allocation15], 64, 64, 4
        $region60: #{tpu_custom_call.1} parent=11 // pred_fallthru
          _
        // Predicated region
        $region61: #{tpu_custom_call.1} parent=11 // pred_check
          %p470 = pneg %p329
        $region62: #{tpu_custom_call.1} parent=11 // pred_check_branch
          %472 = sbr.rel (%p470) target = $region64
        $region63: #{tpu_custom_call.1} parent=11 // pred_region
          _
        $region64: #{tpu_custom_call.1} parent=11 // pred_fallthru
          _
      $region12: #{tpu_custom_call.1} parent=5 // pred_fallthru
        _
      %p473 = scmp.lt.s32.totalorder %s30, 2
      // Predicated region
      $region65: #{tpu_custom_call.1} parent=5 // pred_check
        %p474 = pneg %p473
      $region66: #{tpu_custom_call.1} parent=5 // pred_check_branch
        %476 = sbr.rel (%p474) target = $region68
      $region67: #{tpu_custom_call.1} parent=5 // pred_region
        // Predicated region
        $region69: #{tpu_custom_call.1} parent=67 // pred_check
          %p477 = pneg %p50
        $region70: #{tpu_custom_call.1} parent=67 // pred_check_branch
          %479 = sbr.rel (%p477) target = $region72
        $region71: #{tpu_custom_call.1} parent=67 // pred_region
          %s480 = sand.u32 %s40, 1
          %s481 = scalar_lea.sflag [#allocation3], %s480
          %s482 = sand.u32 %s40, 1
          %s483 = smul.addr %s482, 128
          %s484 = scalar_lea.vmem [#allocation2], %s483
          %s485 = smul.u32 16, %s30
          %s487 = ssub.s32 2048, 2048
          %488 = vsyncadd %s481, %s487
          %s489 = smul.addr %s485, 128
          %s490 = scalar_lea.hbm %s0, %s489
          %s491 = sshll.u32 %s484, 4
          %s492 = int_to_ptr.vmem [resolvable:$true] %s491
          %497 = dma.hbm_to_vmem [thread:$0]  %s490, 2048, %s492, %s481, 128, 128, 8
        $region72: #{tpu_custom_call.1} parent=67 // pred_fallthru
          _
      $region68: #{tpu_custom_call.1} parent=5 // pred_fallthru
        _
      %p498 = scmp.le.s32.totalorder 1, %s30
      %p499 = scmp.lt.s32.totalorder %s30, 3
      %p500 = pnand %p498, %p499
      %p501 = pneg %p500
      // Predicated region
      $region73: #{tpu_custom_call.1} parent=5 // pred_check
        _
      $region74: #{tpu_custom_call.1} parent=5 // pred_check_branch
        %503 = sbr.rel (%p500) target = $region76
      $region75: #{tpu_custom_call.1} parent=5 // pred_region
        %s504 = ssub.s32 %s30, 1
        %s505 = sand.u32 %s43, 1
        %s506 = scalar_lea.sflag [#allocation3], %s505
        %s507 = sand.u32 %s43, 1
        %s508 = smul.addr %s507, 128
        %s509 = scalar_lea.vmem [#allocation2], %s508
        // Predicated region
        $region77: #{tpu_custom_call.1} parent=75 // pred_check
          %p510 = pneg %p56
        $region78: #{tpu_custom_call.1} parent=75 // pred_check_branch
          %512 = sbr.rel (%p510) target = $region80
        $region79: #{tpu_custom_call.1} parent=75 // pred_region
          %513 = dma.done %s506, 2048
        $region80: #{tpu_custom_call.1} parent=75 // pred_fallthru
          _
        // Predicated region
        $region81: #{tpu_custom_call.1} parent=75 // pred_check
          %p514 = pneg %p77
        $region82: #{tpu_custom_call.1} parent=75 // pred_check_branch
          %516 = sbr.rel (%p514) target = $region84
        $region83: #{tpu_custom_call.1} parent=75 // pred_region
          %517 = dma.done [#allocation6], 128
        $region84: #{tpu_custom_call.1} parent=75 // pred_fallthru
          _
        // Predicated region
        $region85: #{tpu_custom_call.1} parent=75 // pred_check
          %p518 = pneg %p98
        $region86: #{tpu_custom_call.1} parent=75 // pred_check_branch
          %520 = sbr.rel (%p518) target = $region88
        $region87: #{tpu_custom_call.1} parent=75 // pred_region
          %521 = dma.done [#allocation6], 16
        $region88: #{tpu_custom_call.1} parent=75 // pred_fallthru
          _
        // Predicated region
        $region89: #{tpu_custom_call.1} parent=75 // pred_check
          %p522 = pneg %p119
        $region90: #{tpu_custom_call.1} parent=75 // pred_check_branch
          %524 = sbr.rel (%p522) target = $region92
        $region91: #{tpu_custom_call.1} parent=75 // pred_region
          %525 = dma.done [#allocation9], 16
        $region92: #{tpu_custom_call.1} parent=75 // pred_fallthru
          _
        // Predicated region
        $region93: #{tpu_custom_call.1} parent=75 // pred_check
          %p526 = pneg %p140
        $region94: #{tpu_custom_call.1} parent=75 // pred_check_branch
          %528 = sbr.rel (%p526) target = $region96
        $region95: #{tpu_custom_call.1} parent=75 // pred_region
          %529 = dma.done [#allocation9], 3072
        $region96: #{tpu_custom_call.1} parent=75 // pred_fallthru
          _
        // Predicated region
        $region97: #{tpu_custom_call.1} parent=75 // pred_check
          %p530 = pneg %p182
        $region98: #{tpu_custom_call.1} parent=75 // pred_check_branch
          %532 = sbr.rel (%p530) target = $region100
        $region99: #{tpu_custom_call.1} parent=75 // pred_region
          %533 = dma.done [#allocation12], 1024
        $region100: #{tpu_custom_call.1} parent=75 // pred_fallthru
          _
        // Predicated region
        $region101: #{tpu_custom_call.1} parent=75 // pred_check
          %p534 = pneg %p266
        $region102: #{tpu_custom_call.1} parent=75 // pred_check_branch
          %536 = sbr.rel (%p534) target = $region104
        $region103: #{tpu_custom_call.1} parent=75 // pred_region
          %537 = dma.done [#allocation12], 4096
        $region104: #{tpu_custom_call.1} parent=75 // pred_fallthru
          _
        // Predicated region
        $region105: #{tpu_custom_call.1} parent=75 // pred_check
          %p538 = pneg %p308
        $region106: #{tpu_custom_call.1} parent=75 // pred_check_branch
          %540 = sbr.rel (%p538) target = $region108
        $region107: #{tpu_custom_call.1} parent=75 // pred_region
          %541 = dma.done [#allocation15], 4096
        $region108: #{tpu_custom_call.1} parent=75 // pred_fallthru
          _
        %s542 = sand.u32 %s43, 1
        %s543 = scalar_lea.sflag [#allocation3], %s542
        %s544 = sand.u32 %s43, 1
        %s545 = smul.addr %s544, 128
        %s546 = scalar_lea.vmem [#allocation2], %s545
        %p547 = pneg %p56
        %p548 = pneg %p53
        %p549 = pneg %p77
        %p550 = pneg %p74
        %p551 = pneg %p98
        %p552 = pneg %p95
        %p553 = pneg %p119
        %p554 = pneg %p116
        %p555 = pneg %p140
        %p556 = pneg %p137
        %p557 = pneg %p161
        %p558 = pneg %p158
        %p559 = pneg %p182
        %p560 = pneg %p179
        %p561 = pneg %p203
        %p562 = pneg %p200
        %p563 = pneg %p224
        %p564 = pneg %p221
        %p565 = pneg %p245
        %p566 = pneg %p242
        %p567 = pneg %p266
        %p568 = pneg %p263
        %p569 = pneg %p287
        %p570 = pneg %p284
        %p571 = pneg %p308
        %p572 = pneg %p305
        %p573 = pneg %p329
        %p574 = pneg %p326
        %p575 = pneg %p355
        %p576 = pneg %p352
        %s577 = sand.u32 %s342, 1
        %s578 = scalar_lea.sflag [#allocation4], %s577
        %s579 = sand.u32 %s342, 1
        %s580 = smul.addr %s579, 16
        %s581 = scalar_lea.vmem [#allocation16], %s580
        %s582 = smul.u32 16, %s35
        %s583 = smul.u32 2, %s35
        %v585 = vld [vmem:[%s509] sm:$0xff]
        %v586 = vld [vmem:[%s509 + $0x8] sm:$0xff]
        %v587 = vld [vmem:[%s509 + $0x10] sm:$0xff]
        %v588 = vld [vmem:[%s509 + $0x18] sm:$0xff]
        %v589 = vld [vmem:[%s509 + $0x20] sm:$0xff]
        %v590 = vld [vmem:[%s509 + $0x28] sm:$0xff]
        %v591 = vld [vmem:[%s509 + $0x30] sm:$0xff]
        %v592 = vld [vmem:[%s509 + $0x38] sm:$0xff]
        %v593 = vld [vmem:[%s509 + $0x40] sm:$0xff]
        %v594 = vld [vmem:[%s509 + $0x48] sm:$0xff]
        %v595 = vld [vmem:[%s509 + $0x50] sm:$0xff]
        %v596 = vld [vmem:[%s509 + $0x58] sm:$0xff]
        %v597 = vld [vmem:[%s509 + $0x60] sm:$0xff]
        %v598 = vld [vmem:[%s509 + $0x68] sm:$0xff]
        %v599 = vld [vmem:[%s509 + $0x70] sm:$0xff]
        %v600 = vld [vmem:[%s509 + $0x78] sm:$0xff]
        %v601 = vld [vmem:[#allocation5] sm:$0xff]
        %v602 = vadd.f32 %v585, %v601
        %v603 = vadd.f32 %v586, %v601
        %v604 = vadd.f32 %v587, %v601
        %v605 = vadd.f32 %v588, %v601
        %v606 = vadd.f32 %v589, %v601
        %v607 = vadd.f32 %v590, %v601
        %v608 = vadd.f32 %v591, %v601
        %v609 = vadd.f32 %v592, %v601
        %v610 = vadd.f32 %v593, %v601
        %v611 = vadd.f32 %v594, %v601
        %v612 = vadd.f32 %v595, %v601
        %v613 = vadd.f32 %v596, %v601
        %v614 = vadd.f32 %v597, %v601
        %v615 = vadd.f32 %v598, %v601
        %v616 = vadd.f32 %v599, %v601
        %v617 = vadd.f32 %v600, %v601
        %v618 = vld [vmem:[#allocation7] sm:$0x1]
        %v619 = vld [vmem:[#allocation8] sm:$0x1]
        %620 = vadd.xlane.f32.xlu0 %v602
        %v621 = vpop.xlane.xlu0 %620
        %622 = vadd.xlane.f32.xlu0 %v603
        %v623 = vpop.xlane.xlu0 %622
        %624 = vadd.xlane.f32.xlu0 %v604
        %v625 = vpop.xlane.xlu0 %624
        %626 = vadd.xlane.f32.xlu0 %v605
        %v627 = vpop.xlane.xlu0 %626
        %628 = vadd.xlane.f32.xlu0 %v606
        %v629 = vpop.xlane.xlu0 %628
        %630 = vadd.xlane.f32.xlu0 %v607
        %v631 = vpop.xlane.xlu0 %630
        %632 = vadd.xlane.f32.xlu0 %v608
        %v633 = vpop.xlane.xlu0 %632
        %634 = vadd.xlane.f32.xlu0 %v609
        %v635 = vpop.xlane.xlu0 %634
        %636 = vadd.xlane.f32.xlu0 %v610
        %v637 = vpop.xlane.xlu0 %636
        %638 = vadd.xlane.f32.xlu0 %v611
        %v639 = vpop.xlane.xlu0 %638
        %640 = vadd.xlane.f32.xlu0 %v612
        %v641 = vpop.xlane.xlu0 %640
        %642 = vadd.xlane.f32.xlu0 %v613
        %v643 = vpop.xlane.xlu0 %642
        %644 = vadd.xlane.f32.xlu0 %v614
        %v645 = vpop.xlane.xlu0 %644
        %646 = vadd.xlane.f32.xlu0 %v615
        %v647 = vpop.xlane.xlu0 %646
        %648 = vadd.xlane.f32.xlu0 %v616
        %v649 = vpop.xlane.xlu0 %648
        %650 = vadd.xlane.f32.xlu0 %v617
        %v651 = vpop.xlane.xlu0 %650
        %v652 = vrcp.pop 128.0
        %v653 = vmul.f32 %v621, %v652
        %v654 = vmul.f32 %v623, %v652
        %v655 = vmul.f32 %v625, %v652
        %v656 = vmul.f32 %v627, %v652
        %v657 = vmul.f32 %v629, %v652
        %v658 = vmul.f32 %v631, %v652
        %v659 = vmul.f32 %v633, %v652
        %v660 = vmul.f32 %v635, %v652
        %v661 = vmul.f32 %v637, %v652
        %v662 = vmul.f32 %v639, %v652
        %v663 = vmul.f32 %v641, %v652
        %v664 = vmul.f32 %v643, %v652
        %v665 = vmul.f32 %v645, %v652
        %v666 = vmul.f32 %v647, %v652
        %v667 = vmul.f32 %v649, %v652
        %v668 = vmul.f32 %v651, %v652
        %v669 = vsub.f32 %v602, %v653
        %v670 = vsub.f32 %v603, %v654
        %v671 = vsub.f32 %v604, %v655
        %v672 = vsub.f32 %v605, %v656
        %v673 = vsub.f32 %v606, %v657
        %v674 = vsub.f32 %v607, %v658
        %v675 = vsub.f32 %v608, %v659
        %v676 = vsub.f32 %v609, %v660
        %v677 = vsub.f32 %v610, %v661
        %v678 = vsub.f32 %v611, %v662
        %v679 = vsub.f32 %v612, %v663
        %v680 = vsub.f32 %v613, %v664
        %v681 = vsub.f32 %v614, %v665
        %v682 = vsub.f32 %v615, %v666
        %v683 = vsub.f32 %v616, %v667
        %v684 = vsub.f32 %v617, %v668
        %v685 = vmul.f32 %v669, %v669
        %v686 = vmul.f32 %v670, %v670
        %v687 = vmul.f32 %v671, %v671
        %v688 = vmul.f32 %v672, %v672
        %v689 = vmul.f32 %v673, %v673
        %v690 = vmul.f32 %v674, %v674
        %v691 = vmul.f32 %v675, %v675
        %v692 = vmul.f32 %v676, %v676
        %v693 = vmul.f32 %v677, %v677
        %v694 = vmul.f32 %v678, %v678
        %v695 = vmul.f32 %v679, %v679
        %v696 = vmul.f32 %v680, %v680
        %v697 = vmul.f32 %v681, %v681
        %v698 = vmul.f32 %v682, %v682
        %v699 = vmul.f32 %v683, %v683
        %v700 = vmul.f32 %v684, %v684
        %701 = vadd.xlane.f32.xlu0 %v685
        %v702 = vpop.xlane.xlu0 %701
        %703 = vadd.xlane.f32.xlu0 %v686
        %v704 = vpop.xlane.xlu0 %703
        %705 = vadd.xlane.f32.xlu0 %v687
        %v706 = vpop.xlane.xlu0 %705
        %707 = vadd.xlane.f32.xlu0 %v688
        %v708 = vpop.xlane.xlu0 %707
        %709 = vadd.xlane.f32.xlu0 %v689
        %v710 = vpop.xlane.xlu0 %709
        %711 = vadd.xlane.f32.xlu0 %v690
        %v712 = vpop.xlane.xlu0 %711
        %713 = vadd.xlane.f32.xlu0 %v691
        %v714 = vpop.xlane.xlu0 %713
        %715 = vadd.xlane.f32.xlu0 %v692
        %v716 = vpop.xlane.xlu0 %715
        %717 = vadd.xlane.f32.xlu0 %v693
        %v718 = vpop.xlane.xlu0 %717
        %719 = vadd.xlane.f32.xlu0 %v694
        %v720 = vpop.xlane.xlu0 %719
        %721 = vadd.xlane.f32.xlu0 %v695
        %v722 = vpop.xlane.xlu0 %721
        %723 = vadd.xlane.f32.xlu0 %v696
        %v724 = vpop.xlane.xlu0 %723
        %725 = vadd.xlane.f32.xlu0 %v697
        %v726 = vpop.xlane.xlu0 %725
        %727 = vadd.xlane.f32.xlu0 %v698
        %v728 = vpop.xlane.xlu0 %727
        %729 = vadd.xlane.f32.xlu0 %v699
        %v730 = vpop.xlane.xlu0 %729
        %731 = vadd.xlane.f32.xlu0 %v700
        %v732 = vpop.xlane.xlu0 %731
        %v733 = vmul.f32 %v702, %v652
        %v734 = vmul.f32 %v704, %v652
        %v735 = vmul.f32 %v706, %v652
        %v736 = vmul.f32 %v708, %v652
        %v737 = vmul.f32 %v710, %v652
        %v738 = vmul.f32 %v712, %v652
        %v739 = vmul.f32 %v714, %v652
        %v740 = vmul.f32 %v716, %v652
        %v741 = vmul.f32 %v718, %v652
        %v742 = vmul.f32 %v720, %v652
        %v743 = vmul.f32 %v722, %v652
        %v744 = vmul.f32 %v724, %v652
        %v745 = vmul.f32 %v726, %v652
        %v746 = vmul.f32 %v728, %v652
        %v747 = vmul.f32 %v730, %v652
        %v748 = vmul.f32 %v732, %v652
        %v749 = vadd.f32 %v733, 1e-05
        %v750 = vadd.f32 %v734, 1e-05
        %v751 = vadd.f32 %v735, 1e-05
        %v752 = vadd.f32 %v736, 1e-05
        %v753 = vadd.f32 %v737, 1e-05
        %v754 = vadd.f32 %v738, 1e-05
        %v755 = vadd.f32 %v739, 1e-05
        %v756 = vadd.f32 %v740, 1e-05
        %v757 = vadd.f32 %v741, 1e-05
        %v758 = vadd.f32 %v742, 1e-05
        %v759 = vadd.f32 %v743, 1e-05
        %v760 = vadd.f32 %v744, 1e-05
        %v761 = vadd.f32 %v745, 1e-05
        %v762 = vadd.f32 %v746, 1e-05
        %v763 = vadd.f32 %v747, 1e-05
        %v764 = vadd.f32 %v748, 1e-05
        %v765 = vrsqrt.pop %v749
        %v766 = vrsqrt.pop %v750
        %v767 = vrsqrt.pop %v751
        %v768 = vrsqrt.pop %v752
        %v769 = vrsqrt.pop %v753
        %v770 = vrsqrt.pop %v754
        %v771 = vrsqrt.pop %v755
        %v772 = vrsqrt.pop %v756
        %v773 = vrsqrt.pop %v757
        %v774 = vrsqrt.pop %v758
        %v775 = vrsqrt.pop %v759
        %v776 = vrsqrt.pop %v760
        %v777 = vrsqrt.pop %v761
        %v778 = vrsqrt.pop %v762
        %v779 = vrsqrt.pop %v763
        %v780 = vrsqrt.pop %v764
        %v781 = vmul.f32 %v669, %v765
        %v782 = vmul.f32 %v670, %v766
        %v783 = vmul.f32 %v671, %v767
        %v784 = vmul.f32 %v672, %v768
        %v785 = vmul.f32 %v673, %v769
        %v786 = vmul.f32 %v674, %v770
        %v787 = vmul.f32 %v675, %v771
        %v788 = vmul.f32 %v676, %v772
        %v789 = vmul.f32 %v677, %v773
        %v790 = vmul.f32 %v678, %v774
        %v791 = vmul.f32 %v679, %v775
        %v792 = vmul.f32 %v680, %v776
        %v793 = vmul.f32 %v681, %v777
        %v794 = vmul.f32 %v682, %v778
        %v795 = vmul.f32 %v683, %v779
        %v796 = vmul.f32 %v684, %v780
        %v798 = vlaneseq
        %v799 = vshrl.u32 %v798, 7
        %v800 = vsub.s32 0, %v799
        %v801 = vrot.slane %v618, %v800
        %v803 = vmul.f32 %v781, %v801
        %v804 = vmul.f32 %v782, %v801
        %v805 = vmul.f32 %v783, %v801
        %v806 = vmul.f32 %v784, %v801
        %v807 = vmul.f32 %v785, %v801
        %v808 = vmul.f32 %v786, %v801
        %v809 = vmul.f32 %v787, %v801
        %v810 = vmul.f32 %v788, %v801
        %v811 = vmul.f32 %v789, %v801
        %v812 = vmul.f32 %v790, %v801
        %v813 = vmul.f32 %v791, %v801
        %v814 = vmul.f32 %v792, %v801
        %v815 = vmul.f32 %v793, %v801
        %v816 = vmul.f32 %v794, %v801
        %v817 = vmul.f32 %v795, %v801
        %v818 = vmul.f32 %v796, %v801
        %v820 = vlaneseq
        %v821 = vshrl.u32 %v820, 7
        %v822 = vsub.s32 0, %v821
        %v823 = vrot.slane %v619, %v822
        %v825 = vadd.f32 %v803, %v823
        %v826 = vadd.f32 %v804, %v823
        %v827 = vadd.f32 %v805, %v823
        %v828 = vadd.f32 %v806, %v823
        %v829 = vadd.f32 %v807, %v823
        %v830 = vadd.f32 %v808, %v823
        %v831 = vadd.f32 %v809, %v823
        %v832 = vadd.f32 %v810, %v823
        %v833 = vadd.f32 %v811, %v823
        %v834 = vadd.f32 %v812, %v823
        %v835 = vadd.f32 %v813, %v823
        %v836 = vadd.f32 %v814, %v823
        %v837 = vadd.f32 %v815, %v823
        %v838 = vadd.f32 %v816, %v823
        %v839 = vadd.f32 %v817, %v823
        %v840 = vadd.f32 %v818, %v823
        %v841 = vpack.c.bf16 %v826, %v825
        %v842 = vpack.c.bf16 %v828, %v827
        %v843 = vpack.c.bf16 %v830, %v829
        %v844 = vpack.c.bf16 %v832, %v831
        %v845 = vpack.c.bf16 %v834, %v833
        %v846 = vpack.c.bf16 %v836, %v835
        %v847 = vpack.c.bf16 %v838, %v837
        %v848 = vpack.c.bf16 %v840, %v839
        %v849 = vld [vmem:[#allocation10] sm:$0xff]
        %v850 = vld [vmem:[#allocation10 + $0x8] sm:$0xf]
        %v851 = vld [vmem:[#allocation10 + $0xc] sm:$0xff]
        %v852 = vld [vmem:[#allocation10 + $0x14] sm:$0xf]
        %v853 = vld [vmem:[#allocation10 + $0x18] sm:$0xff]
        %v854 = vld [vmem:[#allocation10 + $0x20] sm:$0xf]
        %v855 = vld [vmem:[#allocation10 + $0x24] sm:$0xff]
        %v856 = vld [vmem:[#allocation10 + $0x2c] sm:$0xf]
        %v857 = vld [vmem:[#allocation10 + $0x30] sm:$0xff]
        %v858 = vld [vmem:[#allocation10 + $0x38] sm:$0xf]
        %v859 = vld [vmem:[#allocation10 + $0x3c] sm:$0xff]
        %v860 = vld [vmem:[#allocation10 + $0x44] sm:$0xf]
        %v861 = vld [vmem:[#allocation10 + $0x48] sm:$0xff]
        %v862 = vld [vmem:[#allocation10 + $0x50] sm:$0xf]
        %v863 = vld [vmem:[#allocation10 + $0x54] sm:$0xff]
        %v864 = vld [vmem:[#allocation10 + $0x5c] sm:$0xf]
        %v865 = vld [vmem:[#allocation10 + $0x60] sm:$0xff]
        %v866 = vld [vmem:[#allocation10 + $0x68] sm:$0xf]
        %v867 = vld [vmem:[#allocation10 + $0x6c] sm:$0xff]
        %v868 = vld [vmem:[#allocation10 + $0x74] sm:$0xf]
        %v869 = vld [vmem:[#allocation10 + $0x78] sm:$0xff]
        %v870 = vld [vmem:[#allocation10 + $0x80] sm:$0xf]
        %v871 = vld [vmem:[#allocation10 + $0x84] sm:$0xff]
        %v872 = vld [vmem:[#allocation10 + $0x8c] sm:$0xf]
        %v873 = vld [vmem:[#allocation10 + $0x90] sm:$0xff]
        %v874 = vld [vmem:[#allocation10 + $0x98] sm:$0xf]
        %v875 = vld [vmem:[#allocation10 + $0x9c] sm:$0xff]
        %v876 = vld [vmem:[#allocation10 + $0xa4] sm:$0xf]
        %v877 = vld [vmem:[#allocation10 + $0xa8] sm:$0xff]
        %v878 = vld [vmem:[#allocation10 + $0xb0] sm:$0xf]
        %v879 = vld [vmem:[#allocation10 + $0xb4] sm:$0xff]
        %v880 = vld [vmem:[#allocation10 + $0xbc] sm:$0xf]
        %v881 = vld [vmem:[%s5] sm:$0x7]
        %v883 = vlaneseq
        %v884 = vshrl.u32 %v883, 7
        %v885 = vsub.s32 0, %v884
        %v886 = vrot.slane %v881, %v885
        %v887 = vlaneseq
        %v888 = vshrl.u32 %v887, 7
        %v889 = vsub.s32 1, %v888
        %v890 = vrot.slane %v881, %v889
        %v891 = vlaneseq
        %v892 = vshrl.u32 %v891, 7
        %v893 = vsub.s32 2, %v892
        %v894 = vrot.slane %v881, %v893
        %v930 = vunpack.c.l.b16 %v849
        %v931 = vunpack.c.h.b16 %v849
        %v932 = vunpack.c.l.b16 %v850
        %v933 = vunpack.c.l.b16 %v851
        %v934 = vunpack.c.h.b16 %v851
        %v935 = vunpack.c.l.b16 %v852
        %v936 = vunpack.c.l.b16 %v853
        %v937 = vunpack.c.h.b16 %v853
        %v938 = vunpack.c.l.b16 %v854
        %v939 = vunpack.c.l.b16 %v855
        %v940 = vunpack.c.h.b16 %v855
        %v941 = vunpack.c.l.b16 %v856
        %v942 = vunpack.c.l.b16 %v857
        %v943 = vunpack.c.h.b16 %v857
        %v944 = vunpack.c.l.b16 %v858
        %v945 = vunpack.c.l.b16 %v859
        %v946 = vunpack.c.h.b16 %v859
        %v947 = vunpack.c.l.b16 %v860
        %v948 = vunpack.c.l.b16 %v861
        %v949 = vunpack.c.h.b16 %v861
        %v950 = vunpack.c.l.b16 %v862
        %v951 = vunpack.c.l.b16 %v863
        %v952 = vunpack.c.h.b16 %v863
        %v953 = vunpack.c.l.b16 %v864
        %v954 = vunpack.c.l.b16 %v865
        %v955 = vunpack.c.h.b16 %v865
        %v956 = vunpack.c.l.b16 %v866
        %v957 = vunpack.c.l.b16 %v867
        %v958 = vunpack.c.h.b16 %v867
        %v959 = vunpack.c.l.b16 %v868
        %v960 = vunpack.c.l.b16 %v869
        %v961 = vunpack.c.h.b16 %v869
        %v962 = vunpack.c.l.b16 %v870
        %v963 = vunpack.c.l.b16 %v871
        %v964 = vunpack.c.h.b16 %v871
        %v965 = vunpack.c.l.b16 %v872
        %v966 = vunpack.c.l.b16 %v873
        %v967 = vunpack.c.h.b16 %v873
        %v968 = vunpack.c.l.b16 %v874
        %v969 = vunpack.c.l.b16 %v875
        %v970 = vunpack.c.h.b16 %v875
        %v971 = vunpack.c.l.b16 %v876
        %v972 = vunpack.c.l.b16 %v877
        %v973 = vunpack.c.h.b16 %v877
        %v974 = vunpack.c.l.b16 %v878
        %v975 = vunpack.c.l.b16 %v879
        %v976 = vunpack.c.h.b16 %v879
        %v977 = vunpack.c.l.b16 %v880
        %v978 = vpack.c.b16 %v933, %v930
        %v979 = vpack.c.b16 %v934, %v931
        %v980 = vpack.c.b16 %v935, %v932
        %v981 = vpack.c.b16 %v939, %v936
        %v982 = vpack.c.b16 %v940, %v937
        %v983 = vpack.c.b16 %v941, %v938
        %v984 = vpack.c.b16 %v945, %v942
        %v985 = vpack.c.b16 %v946, %v943
        %v986 = vpack.c.b16 %v947, %v944
        %v987 = vpack.c.b16 %v951, %v948
        %v988 = vpack.c.b16 %v952, %v949
        %v989 = vpack.c.b16 %v953, %v950
        %v990 = vpack.c.b16 %v957, %v954
        %v991 = vpack.c.b16 %v958, %v955
        %v992 = vpack.c.b16 %v959, %v956
        %v993 = vpack.c.b16 %v963, %v960
        %v994 = vpack.c.b16 %v964, %v961
        %v995 = vpack.c.b16 %v965, %v962
        %v996 = vpack.c.b16 %v969, %v966
        %v997 = vpack.c.b16 %v970, %v967
        %v998 = vpack.c.b16 %v971, %v968
        %v999 = vpack.c.b16 %v975, %v972
        %v1000 = vpack.c.b16 %v976, %v973
        %v1001 = vpack.c.b16 %v977, %v974
        %1026 = vmatprep.subr.bf16.mxu0 %v1000
        %1027 = vmatpush1.bf16.msra.mxu0 %v999
        %1028 = vmatprep.subr.bf16.mxu0 %v997
        %1029 = vmatpush1.bf16.msra.mxu0 %v996
        %1030 = vmatprep.subr.bf16.mxu0 %v994
        %1031 = vmatpush1.bf16.msra.mxu0 %v993
        %1032 = vmatprep.subr.bf16.mxu0 %v991
        %1033 = vmatpush1.bf16.msra.mxu0 %v990
        %1034 = vmatprep.subr.bf16.mxu0 %v988
        %1035 = vmatpush1.bf16.msra.mxu0 %v987
        %1036 = vmatprep.subr.bf16.mxu0 %v985
        %1037 = vmatpush1.bf16.msra.mxu0 %v984
        %1038 = vmatprep.subr.bf16.mxu0 %v982
        %1039 = vmatpush1.bf16.msra.mxu0 %v981
        %1040 = vmatprep.subr.bf16.mxu0 %v979
        %1041 = vmatpush1.bf16.msra.mxu0 %v978
        %1042 = vmatprep.subr.bf16.mxu0 0
        %1043 = vmatpush2.bf16.msra.mxu0 0
        %1044 = vmatprep.subr.bf16.mxu0 0
        %1045 = vmatpush2.bf16.msra.mxu0 0
        %1046 = vmatprep.subr.bf16.mxu0 0
        %1047 = vmatpush2.bf16.msra.mxu0 0
        %1048 = vmatprep.subr.bf16.mxu0 0
        %1049 = vmatpush2.bf16.msra.mxu0 0
        %1050 = vmatprep.subr.bf16.mxu0 0
        %1051 = vmatpush2.bf16.msra.mxu0 0
        %1052 = vmatprep.subr.bf16.mxu0 0
        %1053 = vmatpush2.bf16.msra.mxu0 0
        %1054 = vmatprep.subr.bf16.mxu0 0
        %1055 = vmatpush2.bf16.msra.mxu0 0
        %1056 = vmatprep.subr.bf16.mxu0 0
        %1057 = vmatpush2.bf16.msra.mxu0 0
        %1058 = vmatprep.mubr.bf16.mxu0 0
        %1059 = vmatmul.mubr.bf16.gmra.mxu0 %v841
        %v1060 = vpop.f32.mrf.mxu0
        %v1061 = vadd.f32 %v886, %v1060
        %v1062 = vpop.f32.mrf.mxu0
        %v1063 = vadd.f32 %v890, %v1062
        %v1064 = vpop.f32.mrf.mxu0
        %v1065 = vadd.f32 %v886, %v1064
        %v1066 = vpop.f32.mrf.mxu0
        %v1067 = vadd.f32 %v890, %v1066
        %1068 = vmatprep.mubr.bf16.mxu0 0
        %1069 = vmatmul.mubr.bf16.gmra.mxu0 %v842
        %v1070 = vpop.f32.mrf.mxu0
        %v1071 = vadd.f32 %v886, %v1070
        %v1072 = vpop.f32.mrf.mxu0
        %v1073 = vadd.f32 %v890, %v1072
        %v1074 = vpop.f32.mrf.mxu0
        %v1075 = vadd.f32 %v886, %v1074
        %v1076 = vpop.f32.mrf.mxu0
        %v1077 = vadd.f32 %v890, %v1076
        %1078 = vmatprep.mubr.bf16.mxu0 0
        %1079 = vmatmul.mubr.bf16.gmra.mxu0 %v843
        %v1080 = vpop.f32.mrf.mxu0
        %v1081 = vadd.f32 %v886, %v1080
        %v1082 = vpop.f32.mrf.mxu0
        %v1083 = vadd.f32 %v890, %v1082
        %v1084 = vpop.f32.mrf.mxu0
        %v1085 = vadd.f32 %v886, %v1084
        %v1086 = vpop.f32.mrf.mxu0
        %v1087 = vadd.f32 %v890, %v1086
        %1088 = vmatprep.mubr.bf16.mxu0 0
        %1089 = vmatmul.mubr.bf16.gmra.mxu0 %v844
        %v1090 = vpop.f32.mrf.mxu0
        %v1091 = vadd.f32 %v886, %v1090
        %v1092 = vpop.f32.mrf.mxu0
        %v1093 = vadd.f32 %v890, %v1092
        %v1094 = vpop.f32.mrf.mxu0
        %v1095 = vadd.f32 %v886, %v1094
        %v1096 = vpop.f32.mrf.mxu0
        %v1097 = vadd.f32 %v890, %v1096
        %1098 = vmatprep.mubr.bf16.mxu0 0
        %1099 = vmatmul.mubr.bf16.gmra.mxu0 %v845
        %v1100 = vpop.f32.mrf.mxu0
        %v1101 = vadd.f32 %v886, %v1100
        %v1102 = vpop.f32.mrf.mxu0
        %v1103 = vadd.f32 %v890, %v1102
        %v1104 = vpop.f32.mrf.mxu0
        %v1105 = vadd.f32 %v886, %v1104
        %v1106 = vpop.f32.mrf.mxu0
        %v1107 = vadd.f32 %v890, %v1106
        %1108 = vmatprep.mubr.bf16.mxu0 0
        %1109 = vmatmul.mubr.bf16.gmra.mxu0 %v846
        %v1110 = vpop.f32.mrf.mxu0
        %v1111 = vadd.f32 %v886, %v1110
        %v1112 = vpop.f32.mrf.mxu0
        %v1113 = vadd.f32 %v890, %v1112
        %v1114 = vpop.f32.mrf.mxu0
        %v1115 = vadd.f32 %v886, %v1114
        %v1116 = vpop.f32.mrf.mxu0
        %v1117 = vadd.f32 %v890, %v1116
        %1118 = vmatprep.mubr.bf16.mxu0 0
        %1119 = vmatmul.mubr.bf16.gmra.mxu0 %v847
        %v1120 = vpop.f32.mrf.mxu0
        %v1121 = vadd.f32 %v886, %v1120
        %v1122 = vpop.f32.mrf.mxu0
        %v1123 = vadd.f32 %v890, %v1122
        %v1124 = vpop.f32.mrf.mxu0
        %v1125 = vadd.f32 %v886, %v1124
        %v1126 = vpop.f32.mrf.mxu0
        %v1127 = vadd.f32 %v890, %v1126
        %1128 = vmatprep.mubr.bf16.mxu0 0
        %1129 = vmatmul.mubr.bf16.gmra.mxu0 %v848
        %v1130 = vpop.f32.mrf.mxu0
        %v1131 = vadd.f32 %v886, %v1130
        %v1132 = vpop.f32.mrf.mxu0
        %v1133 = vadd.f32 %v890, %v1132
        %v1134 = vpop.f32.mrf.mxu0
        %v1135 = vadd.f32 %v886, %v1134
        %v1136 = vpop.f32.mrf.mxu0
        %v1137 = vadd.f32 %v890, %v1136
        %1138 = vdwg.mxu0
        %1139 = vmatprep.subr.bf16.mxu0 0
        %1140 = vmatpush1.bf16.msra.mxu0 %v1001
        %1141 = vmatprep.subr.bf16.mxu0 0
        %1142 = vmatpush1.bf16.msra.mxu0 %v998
        %1143 = vmatprep.subr.bf16.mxu0 0
        %1144 = vmatpush1.bf16.msra.mxu0 %v995
        %1145 = vmatprep.subr.bf16.mxu0 0
        %1146 = vmatpush1.bf16.msra.mxu0 %v992
        %1147 = vmatprep.subr.bf16.mxu0 0
        %1148 = vmatpush1.bf16.msra.mxu0 %v989
        %1149 = vmatprep.subr.bf16.mxu0 0
        %1150 = vmatpush1.bf16.msra.mxu0 %v986
        %1151 = vmatprep.subr.bf16.mxu0 0
        %1152 = vmatpush1.bf16.msra.mxu0 %v983
        %1153 = vmatprep.subr.bf16.mxu0 0
        %1154 = vmatpush1.bf16.msra.mxu0 %v980
        %1155 = vmatprep.subr.bf16.mxu0 0
        %1156 = vmatpush2.bf16.msra.mxu0 0
        %1157 = vmatprep.subr.bf16.mxu0 0
        %1158 = vmatpush2.bf16.msra.mxu0 0
        %1159 = vmatprep.subr.bf16.mxu0 0
        %1160 = vmatpush2.bf16.msra.mxu0 0
        %1161 = vmatprep.subr.bf16.mxu0 0
        %1162 = vmatpush2.bf16.msra.mxu0 0
        %1163 = vmatprep.subr.bf16.mxu0 0
        %1164 = vmatpush2.bf16.msra.mxu0 0
        %1165 = vmatprep.subr.bf16.mxu0 0
        %1166 = vmatpush2.bf16.msra.mxu0 0
        %1167 = vmatprep.subr.bf16.mxu0 0
        %1168 = vmatpush2.bf16.msra.mxu0 0
        %1169 = vmatprep.subr.bf16.mxu0 0
        %1170 = vmatpush2.bf16.msra.mxu0 0
        %1171 = vmatprep.mubr.bf16.mxu0 0
        %1172 = vmatmul.mubr.bf16.gmra.mxu0 %v841
        %v1173 = vpop.f32.mrf.mxu0
        %v1174 = vadd.f32 %v894, %v1173
        %v1175 = vpop.f32.mrf.mxu0
        %v1176 = vpop.f32.mrf.mxu0
        %v1177 = vadd.f32 %v894, %v1176
        %v1178 = vpop.f32.mrf.mxu0
        %1179 = vmatprep.mubr.bf16.mxu0 0
        %1180 = vmatmul.mubr.bf16.gmra.mxu0 %v842
        %v1181 = vpop.f32.mrf.mxu0
        %v1182 = vadd.f32 %v894, %v1181
        %v1183 = vpop.f32.mrf.mxu0
        %v1184 = vpop.f32.mrf.mxu0
        %v1185 = vadd.f32 %v894, %v1184
        %v1186 = vpop.f32.mrf.mxu0
        %1187 = vmatprep.mubr.bf16.mxu0 0
        %1188 = vmatmul.mubr.bf16.gmra.mxu0 %v843
        %v1189 = vpop.f32.mrf.mxu0
        %v1190 = vadd.f32 %v894, %v1189
        %v1191 = vpop.f32.mrf.mxu0
        %v1192 = vpop.f32.mrf.mxu0
        %v1193 = vadd.f32 %v894, %v1192
        %v1194 = vpop.f32.mrf.mxu0
        %1195 = vmatprep.mubr.bf16.mxu0 0
        %1196 = vmatmul.mubr.bf16.gmra.mxu0 %v844
        %v1197 = vpop.f32.mrf.mxu0
        %v1198 = vadd.f32 %v894, %v1197
        %v1199 = vpop.f32.mrf.mxu0
        %v1200 = vpop.f32.mrf.mxu0
        %v1201 = vadd.f32 %v894, %v1200
        %v1202 = vpop.f32.mrf.mxu0
        %1203 = vmatprep.mubr.bf16.mxu0 0
        %1204 = vmatmul.mubr.bf16.gmra.mxu0 %v845
        %v1205 = vpop.f32.mrf.mxu0
        %v1206 = vadd.f32 %v894, %v1205
        %v1207 = vpop.f32.mrf.mxu0
        %v1208 = vpop.f32.mrf.mxu0
        %v1209 = vadd.f32 %v894, %v1208
        %v1210 = vpop.f32.mrf.mxu0
        %1211 = vmatprep.mubr.bf16.mxu0 0
        %1212 = vmatmul.mubr.bf16.gmra.mxu0 %v846
        %v1213 = vpop.f32.mrf.mxu0
        %v1214 = vadd.f32 %v894, %v1213
        %v1215 = vpop.f32.mrf.mxu0
        %v1216 = vpop.f32.mrf.mxu0
        %v1217 = vadd.f32 %v894, %v1216
        %v1218 = vpop.f32.mrf.mxu0
        %1219 = vmatprep.mubr.bf16.mxu0 0
        %1220 = vmatmul.mubr.bf16.gmra.mxu0 %v847
        %v1221 = vpop.f32.mrf.mxu0
        %v1222 = vadd.f32 %v894, %v1221
        %v1223 = vpop.f32.mrf.mxu0
        %v1224 = vpop.f32.mrf.mxu0
        %v1225 = vadd.f32 %v894, %v1224
        %v1226 = vpop.f32.mrf.mxu0
        %1227 = vmatprep.mubr.bf16.mxu0 0
        %1228 = vmatmul.mubr.bf16.gmra.mxu0 %v848
        %v1229 = vpop.f32.mrf.mxu0
        %v1230 = vadd.f32 %v894, %v1229
        %v1231 = vpop.f32.mrf.mxu0
        %v1232 = vpop.f32.mrf.mxu0
        %v1233 = vadd.f32 %v894, %v1232
        %v1234 = vpop.f32.mrf.mxu0
        %1235 = vdwg.mxu0
        %vm1236 = vcmask 523264
        %v1238 = vsel %vm1236, %v1061, 0
        %v1241 = vsel %vm1236, %v1063, 0
        %1243 = vmatprep.subr.mxu0 0.0
        %1244 = vmatpush1.xpose.msra.mxu0 0.0
        %1245 = vmatprep.subr.mxu0 0.0
        %1246 = vmatpush1.xpose.msra.mxu0 0.0
        %1247 = vmatprep.subr.mxu0 0.0
        %1248 = vmatpush1.xpose.msra.mxu0 0.0
        %1249 = vmatprep.subr.mxu0 0.0
        %1250 = vmatpush1.xpose.msra.mxu0 0.0
        %1251 = vmatprep.subr.mxu0 0.0
        %1252 = vmatpush1.xpose.msra.mxu0 0.0
        %1253 = vmatprep.subr.mxu0 0.0
        %1254 = vmatpush1.xpose.msra.mxu0 0.0
        %1255 = vmatprep.subr.mxu0 0.0
        %1256 = vmatpush1.xpose.msra.mxu0 0.0
        %1257 = vmatprep.subr.mxu0 0.0
        %1258 = vmatpush1.xpose.msra.mxu0 0.0
        %1259 = vmatprep.subr.mxu0 0.0
        %1260 = vmatpush1.xpose.msra.mxu0 0.0
        %1261 = vmatprep.subr.mxu0 0.0
        %1262 = vmatpush1.xpose.msra.mxu0 0.0
        %1263 = vmatprep.subr.mxu0 0.0
        %1264 = vmatpush1.xpose.msra.mxu0 0.0
        %1265 = vmatprep.subr.mxu0 0.0
        %1266 = vmatpush1.xpose.msra.mxu0 0.0
        %1267 = vmatprep.subr.mxu0 0.0
        %1268 = vmatpush1.xpose.msra.mxu0 0.0
        %1269 = vmatprep.subr.mxu0 0.0
        %1270 = vmatpush1.xpose.msra.mxu0 0.0
        %1271 = vmatprep.subr.mxu0 0.0
        %1272 = vmatpush1.xpose.msra.mxu0 0.0
        %1273 = vmatprep.subr.mxu0 0.0
        %1274 = vmatpush1.xpose.msra.mxu0 %v1241
        %1275 = vmatprep.subr.mxu0 0.0
        %1276 = vmatpush2.xpose.msra.mxu0 0.0
        %1277 = vmatprep.subr.mxu0 0.0
        %1278 = vmatpush2.xpose.msra.mxu0 0.0
        %1279 = vmatprep.subr.mxu0 0.0
        %1280 = vmatpush2.xpose.msra.mxu0 0.0
        %1281 = vmatprep.subr.mxu0 0.0
        %1282 = vmatpush2.xpose.msra.mxu0 0.0
        %1283 = vmatprep.subr.mxu0 0.0
        %1284 = vmatpush2.xpose.msra.mxu0 0.0
        %1285 = vmatprep.subr.mxu0 0.0
        %1286 = vmatpush2.xpose.msra.mxu0 0.0
        %1287 = vmatprep.subr.mxu0 0.0
        %1288 = vmatpush2.xpose.msra.mxu0 0.0
        %1289 = vmatprep.subr.mxu0 0.0
        %1290 = vmatpush2.xpose.msra.mxu0 0.0
        %1291 = vmatprep.subr.mxu0 0.0
        %1292 = vmatpush2.xpose.msra.mxu0 0.0
        %1293 = vmatprep.subr.mxu0 0.0
        %1294 = vmatpush2.xpose.msra.mxu0 0.0
        %1295 = vmatprep.subr.mxu0 0.0
        %1296 = vmatpush2.xpose.msra.mxu0 0.0
        %1297 = vmatprep.subr.mxu0 0.0
        %1298 = vmatpush2.xpose.msra.mxu0 0.0
        %1299 = vmatprep.subr.mxu0 0.0
        %1300 = vmatpush2.xpose.msra.mxu0 0.0
        %1301 = vmatprep.subr.mxu0 0.0
        %1302 = vmatpush2.xpose.msra.mxu0 0.0
        %1303 = vmatprep.subr.mxu0 0.0
        %1304 = vmatpush2.xpose.msra.mxu0 0.0
        %1305 = vmatprep.subr.mxu0 0.0
        %1306 = vmatpush2.xpose.msra.mxu0 0.0
        %1307 = vmatprep.mubr.f32.mxu0 0.0
        %1308 = vmatmul.mubr.f32.gmra.mxu0 %v1238
        %v1309 = vpop.f32.mrf.mxu0
        %v1310 = vadd.f32 0.0, %v1309
        %v1311 = vpop.f32.mrf.mxu0
        %1312 = vdwg.mxu0
        %v1314 = vsel %vm1236, %v1065, 0
        %v1317 = vsel %vm1236, %v1067, 0
        %1319 = vmatprep.subr.mxu0 0.0
        %1320 = vmatpush1.xpose.msra.mxu0 0.0
        %1321 = vmatprep.subr.mxu0 0.0
        %1322 = vmatpush1.xpose.msra.mxu0 0.0
        %1323 = vmatprep.subr.mxu0 0.0
        %1324 = vmatpush1.xpose.msra.mxu0 0.0
        %1325 = vmatprep.subr.mxu0 0.0
        %1326 = vmatpush1.xpose.msra.mxu0 0.0
        %1327 = vmatprep.subr.mxu0 0.0
        %1328 = vmatpush1.xpose.msra.mxu0 0.0
        %1329 = vmatprep.subr.mxu0 0.0
        %1330 = vmatpush1.xpose.msra.mxu0 0.0
        %1331 = vmatprep.subr.mxu0 0.0
        %1332 = vmatpush1.xpose.msra.mxu0 0.0
        %1333 = vmatprep.subr.mxu0 0.0
        %1334 = vmatpush1.xpose.msra.mxu0 0.0
        %1335 = vmatprep.subr.mxu0 0.0
        %1336 = vmatpush1.xpose.msra.mxu0 0.0
        %1337 = vmatprep.subr.mxu0 0.0
        %1338 = vmatpush1.xpose.msra.mxu0 0.0
        %1339 = vmatprep.subr.mxu0 0.0
        %1340 = vmatpush1.xpose.msra.mxu0 0.0
        %1341 = vmatprep.subr.mxu0 0.0
        %1342 = vmatpush1.xpose.msra.mxu0 0.0
        %1343 = vmatprep.subr.mxu0 0.0
        %1344 = vmatpush1.xpose.msra.mxu0 0.0
        %1345 = vmatprep.subr.mxu0 0.0
        %1346 = vmatpush1.xpose.msra.mxu0 0.0
        %1347 = vmatprep.subr.mxu0 0.0
        %1348 = vmatpush1.xpose.msra.mxu0 0.0
        %1349 = vmatprep.subr.mxu0 0.0
        %1350 = vmatpush1.xpose.msra.mxu0 %v1317
        %1351 = vmatprep.subr.mxu0 0.0
        %1352 = vmatpush2.xpose.msra.mxu0 0.0
        %1353 = vmatprep.subr.mxu0 0.0
        %1354 = vmatpush2.xpose.msra.mxu0 0.0
        %1355 = vmatprep.subr.mxu0 0.0
        %1356 = vmatpush2.xpose.msra.mxu0 0.0
        %1357 = vmatprep.subr.mxu0 0.0
        %1358 = vmatpush2.xpose.msra.mxu0 0.0
        %1359 = vmatprep.subr.mxu0 0.0
        %1360 = vmatpush2.xpose.msra.mxu0 0.0
        %1361 = vmatprep.subr.mxu0 0.0
        %1362 = vmatpush2.xpose.msra.mxu0 0.0
        %1363 = vmatprep.subr.mxu0 0.0
        %1364 = vmatpush2.xpose.msra.mxu0 0.0
        %1365 = vmatprep.subr.mxu0 0.0
        %1366 = vmatpush2.xpose.msra.mxu0 0.0
        %1367 = vmatprep.subr.mxu0 0.0
        %1368 = vmatpush2.xpose.msra.mxu0 0.0
        %1369 = vmatprep.subr.mxu0 0.0
        %1370 = vmatpush2.xpose.msra.mxu0 0.0
        %1371 = vmatprep.subr.mxu0 0.0
        %1372 = vmatpush2.xpose.msra.mxu0 0.0
        %1373 = vmatprep.subr.mxu0 0.0
        %1374 = vmatpush2.xpose.msra.mxu0 0.0
        %1375 = vmatprep.subr.mxu0 0.0
        %1376 = vmatpush2.xpose.msra.mxu0 0.0
        %1377 = vmatprep.subr.mxu0 0.0
        %1378 = vmatpush2.xpose.msra.mxu0 0.0
        %1379 = vmatprep.subr.mxu0 0.0
        %1380 = vmatpush2.xpose.msra.mxu0 0.0
        %1381 = vmatprep.subr.mxu0 0.0
        %1382 = vmatpush2.xpose.msra.mxu0 0.0
        %1383 = vmatprep.mubr.f32.mxu0 0.0
        %1384 = vmatmul.mubr.f32.gmra.mxu0 %v1314
        %v1385 = vpop.f32.mrf.mxu0
        %v1386 = vadd.f32 0.0, %v1385
        %v1387 = vpop.f32.mrf.mxu0
        %1388 = vdwg.mxu0
        %v1390 = vsel %vm1236, %v1071, 0
        %v1393 = vsel %vm1236, %v1073, 0
        %1395 = vmatprep.subr.mxu0 0.0
        %1396 = vmatpush1.xpose.msra.mxu0 0.0
        %1397 = vmatprep.subr.mxu0 0.0
        %1398 = vmatpush1.xpose.msra.mxu0 0.0
        %1399 = vmatprep.subr.mxu0 0.0
        %1400 = vmatpush1.xpose.msra.mxu0 0.0
        %1401 = vmatprep.subr.mxu0 0.0
        %1402 = vmatpush1.xpose.msra.mxu0 0.0
        %1403 = vmatprep.subr.mxu0 0.0
        %1404 = vmatpush1.xpose.msra.mxu0 0.0
        %1405 = vmatprep.subr.mxu0 0.0
        %1406 = vmatpush1.xpose.msra.mxu0 0.0
        %1407 = vmatprep.subr.mxu0 0.0
        %1408 = vmatpush1.xpose.msra.mxu0 0.0
        %1409 = vmatprep.subr.mxu0 0.0
        %1410 = vmatpush1.xpose.msra.mxu0 0.0
        %1411 = vmatprep.subr.mxu0 0.0
        %1412 = vmatpush1.xpose.msra.mxu0 0.0
        %1413 = vmatprep.subr.mxu0 0.0
        %1414 = vmatpush1.xpose.msra.mxu0 0.0
        %1415 = vmatprep.subr.mxu0 0.0
        %1416 = vmatpush1.xpose.msra.mxu0 0.0
        %1417 = vmatprep.subr.mxu0 0.0
        %1418 = vmatpush1.xpose.msra.mxu0 0.0
        %1419 = vmatprep.subr.mxu0 0.0
        %1420 = vmatpush1.xpose.msra.mxu0 0.0
        %1421 = vmatprep.subr.mxu0 0.0
        %1422 = vmatpush1.xpose.msra.mxu0 0.0
        %1423 = vmatprep.subr.mxu0 0.0
        %1424 = vmatpush1.xpose.msra.mxu0 0.0
        %1425 = vmatprep.subr.mxu0 0.0
        %1426 = vmatpush1.xpose.msra.mxu0 %v1393
        %1427 = vmatprep.subr.mxu0 0.0
        %1428 = vmatpush2.xpose.msra.mxu0 0.0
        %1429 = vmatprep.subr.mxu0 0.0
        %1430 = vmatpush2.xpose.msra.mxu0 0.0
        %1431 = vmatprep.subr.mxu0 0.0
        %1432 = vmatpush2.xpose.msra.mxu0 0.0
        %1433 = vmatprep.subr.mxu0 0.0
        %1434 = vmatpush2.xpose.msra.mxu0 0.0
        %1435 = vmatprep.subr.mxu0 0.0
        %1436 = vmatpush2.xpose.msra.mxu0 0.0
        %1437 = vmatprep.subr.mxu0 0.0
        %1438 = vmatpush2.xpose.msra.mxu0 0.0
        %1439 = vmatprep.subr.mxu0 0.0
        %1440 = vmatpush2.xpose.msra.mxu0 0.0
        %1441 = vmatprep.subr.mxu0 0.0
        %1442 = vmatpush2.xpose.msra.mxu0 0.0
        %1443 = vmatprep.subr.mxu0 0.0
        %1444 = vmatpush2.xpose.msra.mxu0 0.0
        %1445 = vmatprep.subr.mxu0 0.0
        %1446 = vmatpush2.xpose.msra.mxu0 0.0
        %1447 = vmatprep.subr.mxu0 0.0
        %1448 = vmatpush2.xpose.msra.mxu0 0.0
        %1449 = vmatprep.subr.mxu0 0.0
        %1450 = vmatpush2.xpose.msra.mxu0 0.0
        %1451 = vmatprep.subr.mxu0 0.0
        %1452 = vmatpush2.xpose.msra.mxu0 0.0
        %1453 = vmatprep.subr.mxu0 0.0
        %1454 = vmatpush2.xpose.msra.mxu0 0.0
        %1455 = vmatprep.subr.mxu0 0.0
        %1456 = vmatpush2.xpose.msra.mxu0 0.0
        %1457 = vmatprep.subr.mxu0 0.0
        %1458 = vmatpush2.xpose.msra.mxu0 0.0
        %1459 = vmatprep.mubr.f32.mxu0 0.0
        %1460 = vmatmul.mubr.f32.gmra.mxu0 %v1390
        %v1461 = vpop.f32.mrf.mxu0
        %v1462 = vadd.f32 0.0, %v1461
        %v1463 = vpop.f32.mrf.mxu0
        %1464 = vdwg.mxu0
        %v1466 = vsel %vm1236, %v1075, 0
        %v1469 = vsel %vm1236, %v1077, 0
        %1471 = vmatprep.subr.mxu0 0.0
        %1472 = vmatpush1.xpose.msra.mxu0 0.0
        %1473 = vmatprep.subr.mxu0 0.0
        %1474 = vmatpush1.xpose.msra.mxu0 0.0
        %1475 = vmatprep.subr.mxu0 0.0
        %1476 = vmatpush1.xpose.msra.mxu0 0.0
        %1477 = vmatprep.subr.mxu0 0.0
        %1478 = vmatpush1.xpose.msra.mxu0 0.0
        %1479 = vmatprep.subr.mxu0 0.0
        %1480 = vmatpush1.xpose.msra.mxu0 0.0
        %1481 = vmatprep.subr.mxu0 0.0
        %1482 = vmatpush1.xpose.msra.mxu0 0.0
        %1483 = vmatprep.subr.mxu0 0.0
        %1484 = vmatpush1.xpose.msra.mxu0 0.0
        %1485 = vmatprep.subr.mxu0 0.0
        %1486 = vmatpush1.xpose.msra.mxu0 0.0
        %1487 = vmatprep.subr.mxu0 0.0
        %1488 = vmatpush1.xpose.msra.mxu0 0.0
        %1489 = vmatprep.subr.mxu0 0.0
        %1490 = vmatpush1.xpose.msra.mxu0 0.0
        %1491 = vmatprep.subr.mxu0 0.0
        %1492 = vmatpush1.xpose.msra.mxu0 0.0
        %1493 = vmatprep.subr.mxu0 0.0
        %1494 = vmatpush1.xpose.msra.mxu0 0.0
        %1495 = vmatprep.subr.mxu0 0.0
        %1496 = vmatpush1.xpose.msra.mxu0 0.0
        %1497 = vmatprep.subr.mxu0 0.0
        %1498 = vmatpush1.xpose.msra.mxu0 0.0
        %1499 = vmatprep.subr.mxu0 0.0
        %1500 = vmatpush1.xpose.msra.mxu0 0.0
        %1501 = vmatprep.subr.mxu0 0.0
        %1502 = vmatpush1.xpose.msra.mxu0 %v1469
        %1503 = vmatprep.subr.mxu0 0.0
        %1504 = vmatpush2.xpose.msra.mxu0 0.0
        %1505 = vmatprep.subr.mxu0 0.0
        %1506 = vmatpush2.xpose.msra.mxu0 0.0
        %1507 = vmatprep.subr.mxu0 0.0
        %1508 = vmatpush2.xpose.msra.mxu0 0.0
        %1509 = vmatprep.subr.mxu0 0.0
        %1510 = vmatpush2.xpose.msra.mxu0 0.0
        %1511 = vmatprep.subr.mxu0 0.0
        %1512 = vmatpush2.xpose.msra.mxu0 0.0
        %1513 = vmatprep.subr.mxu0 0.0
        %1514 = vmatpush2.xpose.msra.mxu0 0.0
        %1515 = vmatprep.subr.mxu0 0.0
        %1516 = vmatpush2.xpose.msra.mxu0 0.0
        %1517 = vmatprep.subr.mxu0 0.0
        %1518 = vmatpush2.xpose.msra.mxu0 0.0
        %1519 = vmatprep.subr.mxu0 0.0
        %1520 = vmatpush2.xpose.msra.mxu0 0.0
        %1521 = vmatprep.subr.mxu0 0.0
        %1522 = vmatpush2.xpose.msra.mxu0 0.0
        %1523 = vmatprep.subr.mxu0 0.0
        %1524 = vmatpush2.xpose.msra.mxu0 0.0
        %1525 = vmatprep.subr.mxu0 0.0
        %1526 = vmatpush2.xpose.msra.mxu0 0.0
        %1527 = vmatprep.subr.mxu0 0.0
        %1528 = vmatpush2.xpose.msra.mxu0 0.0
        %1529 = vmatprep.subr.mxu0 0.0
        %1530 = vmatpush2.xpose.msra.mxu0 0.0
        %1531 = vmatprep.subr.mxu0 0.0
        %1532 = vmatpush2.xpose.msra.mxu0 0.0
        %1533 = vmatprep.subr.mxu0 0.0
        %1534 = vmatpush2.xpose.msra.mxu0 0.0
        %1535 = vmatprep.mubr.f32.mxu0 0.0
        %1536 = vmatmul.mubr.f32.gmra.mxu0 %v1466
        %v1537 = vpop.f32.mrf.mxu0
        %v1538 = vadd.f32 0.0, %v1537
        %v1539 = vpop.f32.mrf.mxu0
        %1540 = vdwg.mxu0
        %v1542 = vsel %vm1236, %v1081, 0
        %v1545 = vsel %vm1236, %v1083, 0
        %1547 = vmatprep.subr.mxu0 0.0
        %1548 = vmatpush1.xpose.msra.mxu0 0.0
        %1549 = vmatprep.subr.mxu0 0.0
        %1550 = vmatpush1.xpose.msra.mxu0 0.0
        %1551 = vmatprep.subr.mxu0 0.0
        %1552 = vmatpush1.xpose.msra.mxu0 0.0
        %1553 = vmatprep.subr.mxu0 0.0
        %1554 = vmatpush1.xpose.msra.mxu0 0.0
        %1555 = vmatprep.subr.mxu0 0.0
        %1556 = vmatpush1.xpose.msra.mxu0 0.0
        %1557 = vmatprep.subr.mxu0 0.0
        %1558 = vmatpush1.xpose.msra.mxu0 0.0
        %1559 = vmatprep.subr.mxu0 0.0
        %1560 = vmatpush1.xpose.msra.mxu0 0.0
        %1561 = vmatprep.subr.mxu0 0.0
        %1562 = vmatpush1.xpose.msra.mxu0 0.0
        %1563 = vmatprep.subr.mxu0 0.0
        %1564 = vmatpush1.xpose.msra.mxu0 0.0
        %1565 = vmatprep.subr.mxu0 0.0
        %1566 = vmatpush1.xpose.msra.mxu0 0.0
        %1567 = vmatprep.subr.mxu0 0.0
        %1568 = vmatpush1.xpose.msra.mxu0 0.0
        %1569 = vmatprep.subr.mxu0 0.0
        %1570 = vmatpush1.xpose.msra.mxu0 0.0
        %1571 = vmatprep.subr.mxu0 0.0
        %1572 = vmatpush1.xpose.msra.mxu0 0.0
        %1573 = vmatprep.subr.mxu0 0.0
        %1574 = vmatpush1.xpose.msra.mxu0 0.0
        %1575 = vmatprep.subr.mxu0 0.0
        %1576 = vmatpush1.xpose.msra.mxu0 0.0
        %1577 = vmatprep.subr.mxu0 0.0
        %1578 = vmatpush1.xpose.msra.mxu0 %v1545
        %1579 = vmatprep.subr.mxu0 0.0
        %1580 = vmatpush2.xpose.msra.mxu0 0.0
        %1581 = vmatprep.subr.mxu0 0.0
        %1582 = vmatpush2.xpose.msra.mxu0 0.0
        %1583 = vmatprep.subr.mxu0 0.0
        %1584 = vmatpush2.xpose.msra.mxu0 0.0
        %1585 = vmatprep.subr.mxu0 0.0
        %1586 = vmatpush2.xpose.msra.mxu0 0.0
        %1587 = vmatprep.subr.mxu0 0.0
        %1588 = vmatpush2.xpose.msra.mxu0 0.0
        %1589 = vmatprep.subr.mxu0 0.0
        %1590 = vmatpush2.xpose.msra.mxu0 0.0
        %1591 = vmatprep.subr.mxu0 0.0
        %1592 = vmatpush2.xpose.msra.mxu0 0.0
        %1593 = vmatprep.subr.mxu0 0.0
        %1594 = vmatpush2.xpose.msra.mxu0 0.0
        %1595 = vmatprep.subr.mxu0 0.0
        %1596 = vmatpush2.xpose.msra.mxu0 0.0
        %1597 = vmatprep.subr.mxu0 0.0
        %1598 = vmatpush2.xpose.msra.mxu0 0.0
        %1599 = vmatprep.subr.mxu0 0.0
        %1600 = vmatpush2.xpose.msra.mxu0 0.0
        %1601 = vmatprep.subr.mxu0 0.0
        %1602 = vmatpush2.xpose.msra.mxu0 0.0
        %1603 = vmatprep.subr.mxu0 0.0
        %1604 = vmatpush2.xpose.msra.mxu0 0.0
        %1605 = vmatprep.subr.mxu0 0.0
        %1606 = vmatpush2.xpose.msra.mxu0 0.0
        %1607 = vmatprep.subr.mxu0 0.0
        %1608 = vmatpush2.xpose.msra.mxu0 0.0
        %1609 = vmatprep.subr.mxu0 0.0
        %1610 = vmatpush2.xpose.msra.mxu0 0.0
        %1611 = vmatprep.mubr.f32.mxu0 0.0
        %1612 = vmatmul.mubr.f32.gmra.mxu0 %v1542
        %v1613 = vpop.f32.mrf.mxu0
        %v1614 = vadd.f32 0.0, %v1613
        %v1615 = vpop.f32.mrf.mxu0
        %1616 = vdwg.mxu0
        %v1618 = vsel %vm1236, %v1085, 0
        %v1621 = vsel %vm1236, %v1087, 0
        %1623 = vmatprep.subr.mxu0 0.0
        %1624 = vmatpush1.xpose.msra.mxu0 0.0
        %1625 = vmatprep.subr.mxu0 0.0
        %1626 = vmatpush1.xpose.msra.mxu0 0.0
        %1627 = vmatprep.subr.mxu0 0.0
        %1628 = vmatpush1.xpose.msra.mxu0 0.0
        %1629 = vmatprep.subr.mxu0 0.0
        %1630 = vmatpush1.xpose.msra.mxu0 0.0
        %1631 = vmatprep.subr.mxu0 0.0
        %1632 = vmatpush1.xpose.msra.mxu0 0.0
        %1633 = vmatprep.subr.mxu0 0.0
        %1634 = vmatpush1.xpose.msra.mxu0 0.0
        %1635 = vmatprep.subr.mxu0 0.0
        %1636 = vmatpush1.xpose.msra.mxu0 0.0
        %1637 = vmatprep.subr.mxu0 0.0
        %1638 = vmatpush1.xpose.msra.mxu0 0.0
        %1639 = vmatprep.subr.mxu0 0.0
        %1640 = vmatpush1.xpose.msra.mxu0 0.0
        %1641 = vmatprep.subr.mxu0 0.0
        %1642 = vmatpush1.xpose.msra.mxu0 0.0
        %1643 = vmatprep.subr.mxu0 0.0
        %1644 = vmatpush1.xpose.msra.mxu0 0.0
        %1645 = vmatprep.subr.mxu0 0.0
        %1646 = vmatpush1.xpose.msra.mxu0 0.0
        %1647 = vmatprep.subr.mxu0 0.0
        %1648 = vmatpush1.xpose.msra.mxu0 0.0
        %1649 = vmatprep.subr.mxu0 0.0
        %1650 = vmatpush1.xpose.msra.mxu0 0.0
        %1651 = vmatprep.subr.mxu0 0.0
        %1652 = vmatpush1.xpose.msra.mxu0 0.0
        %1653 = vmatprep.subr.mxu0 0.0
        %1654 = vmatpush1.xpose.msra.mxu0 %v1621
        %1655 = vmatprep.subr.mxu0 0.0
        %1656 = vmatpush2.xpose.msra.mxu0 0.0
        %1657 = vmatprep.subr.mxu0 0.0
        %1658 = vmatpush2.xpose.msra.mxu0 0.0
        %1659 = vmatprep.subr.mxu0 0.0
        %1660 = vmatpush2.xpose.msra.mxu0 0.0
        %1661 = vmatprep.subr.mxu0 0.0
        %1662 = vmatpush2.xpose.msra.mxu0 0.0
        %1663 = vmatprep.subr.mxu0 0.0
        %1664 = vmatpush2.xpose.msra.mxu0 0.0
        %1665 = vmatprep.subr.mxu0 0.0
        %1666 = vmatpush2.xpose.msra.mxu0 0.0
        %1667 = vmatprep.subr.mxu0 0.0
        %1668 = vmatpush2.xpose.msra.mxu0 0.0
        %1669 = vmatprep.subr.mxu0 0.0
        %1670 = vmatpush2.xpose.msra.mxu0 0.0
        %1671 = vmatprep.subr.mxu0 0.0
        %1672 = vmatpush2.xpose.msra.mxu0 0.0
        %1673 = vmatprep.subr.mxu0 0.0
        %1674 = vmatpush2.xpose.msra.mxu0 0.0
        %1675 = vmatprep.subr.mxu0 0.0
        %1676 = vmatpush2.xpose.msra.mxu0 0.0
        %1677 = vmatprep.subr.mxu0 0.0
        %1678 = vmatpush2.xpose.msra.mxu0 0.0
        %1679 = vmatprep.subr.mxu0 0.0
        %1680 = vmatpush2.xpose.msra.mxu0 0.0
        %1681 = vmatprep.subr.mxu0 0.0
        %1682 = vmatpush2.xpose.msra.mxu0 0.0
        %1683 = vmatprep.subr.mxu0 0.0
        %1684 = vmatpush2.xpose.msra.mxu0 0.0
        %1685 = vmatprep.subr.mxu0 0.0
        %1686 = vmatpush2.xpose.msra.mxu0 0.0
        %1687 = vmatprep.mubr.f32.mxu0 0.0
        %1688 = vmatmul.mubr.f32.gmra.mxu0 %v1618
        %v1689 = vpop.f32.mrf.mxu0
        %v1690 = vadd.f32 0.0, %v1689
        %v1691 = vpop.f32.mrf.mxu0
        %1692 = vdwg.mxu0
        %v1694 = vsel %vm1236, %v1091, 0
        %v1697 = vsel %vm1236, %v1093, 0
        %1699 = vmatprep.subr.mxu0 0.0
        %1700 = vmatpush1.xpose.msra.mxu0 0.0
        %1701 = vmatprep.subr.mxu0 0.0
        %1702 = vmatpush1.xpose.msra.mxu0 0.0
        %1703 = vmatprep.subr.mxu0 0.0
        %1704 = vmatpush1.xpose.msra.mxu0 0.0
        %1705 = vmatprep.subr.mxu0 0.0
        %1706 = vmatpush1.xpose.msra.mxu0 0.0
        %1707 = vmatprep.subr.mxu0 0.0
        %1708 = vmatpush1.xpose.msra.mxu0 0.0
        %1709 = vmatprep.subr.mxu0 0.0
        %1710 = vmatpush1.xpose.msra.mxu0 0.0
        %1711 = vmatprep.subr.mxu0 0.0
        %1712 = vmatpush1.xpose.msra.mxu0 0.0
        %1713 = vmatprep.subr.mxu0 0.0
        %1714 = vmatpush1.xpose.msra.mxu0 0.0
        %1715 = vmatprep.subr.mxu0 0.0
        %1716 = vmatpush1.xpose.msra.mxu0 0.0
        %1717 = vmatprep.subr.mxu0 0.0
        %1718 = vmatpush1.xpose.msra.mxu0 0.0
        %1719 = vmatprep.subr.mxu0 0.0
        %1720 = vmatpush1.xpose.msra.mxu0 0.0
        %1721 = vmatprep.subr.mxu0 0.0
        %1722 = vmatpush1.xpose.msra.mxu0 0.0
        %1723 = vmatprep.subr.mxu0 0.0
        %1724 = vmatpush1.xpose.msra.mxu0 0.0
        %1725 = vmatprep.subr.mxu0 0.0
        %1726 = vmatpush1.xpose.msra.mxu0 0.0
        %1727 = vmatprep.subr.mxu0 0.0
        %1728 = vmatpush1.xpose.msra.mxu0 0.0
        %1729 = vmatprep.subr.mxu0 0.0
        %1730 = vmatpush1.xpose.msra.mxu0 %v1697
        %1731 = vmatprep.subr.mxu0 0.0
        %1732 = vmatpush2.xpose.msra.mxu0 0.0
        %1733 = vmatprep.subr.mxu0 0.0
        %1734 = vmatpush2.xpose.msra.mxu0 0.0
        %1735 = vmatprep.subr.mxu0 0.0
        %1736 = vmatpush2.xpose.msra.mxu0 0.0
        %1737 = vmatprep.subr.mxu0 0.0
        %1738 = vmatpush2.xpose.msra.mxu0 0.0
        %1739 = vmatprep.subr.mxu0 0.0
        %1740 = vmatpush2.xpose.msra.mxu0 0.0
        %1741 = vmatprep.subr.mxu0 0.0
        %1742 = vmatpush2.xpose.msra.mxu0 0.0
        %1743 = vmatprep.subr.mxu0 0.0
        %1744 = vmatpush2.xpose.msra.mxu0 0.0
        %1745 = vmatprep.subr.mxu0 0.0
        %1746 = vmatpush2.xpose.msra.mxu0 0.0
        %1747 = vmatprep.subr.mxu0 0.0
        %1748 = vmatpush2.xpose.msra.mxu0 0.0
        %1749 = vmatprep.subr.mxu0 0.0
        %1750 = vmatpush2.xpose.msra.mxu0 0.0
        %1751 = vmatprep.subr.mxu0 0.0
        %1752 = vmatpush2.xpose.msra.mxu0 0.0
        %1753 = vmatprep.subr.mxu0 0.0
        %1754 = vmatpush2.xpose.msra.mxu0 0.0
        %1755 = vmatprep.subr.mxu0 0.0
        %1756 = vmatpush2.xpose.msra.mxu0 0.0
        %1757 = vmatprep.subr.mxu0 0.0
        %1758 = vmatpush2.xpose.msra.mxu0 0.0
        %1759 = vmatprep.subr.mxu0 0.0
        %1760 = vmatpush2.xpose.msra.mxu0 0.0
        %1761 = vmatprep.subr.mxu0 0.0
        %1762 = vmatpush2.xpose.msra.mxu0 0.0
        %1763 = vmatprep.mubr.f32.mxu0 0.0
        %1764 = vmatmul.mubr.f32.gmra.mxu0 %v1694
        %v1765 = vpop.f32.mrf.mxu0
        %v1766 = vadd.f32 0.0, %v1765
        %v1767 = vpop.f32.mrf.mxu0
        %1768 = vdwg.mxu0
        %v1770 = vsel %vm1236, %v1095, 0
        %v1773 = vsel %vm1236, %v1097, 0
        %1775 = vmatprep.subr.mxu0 0.0
        %1776 = vmatpush1.xpose.msra.mxu0 0.0
        %1777 = vmatprep.subr.mxu0 0.0
        %1778 = vmatpush1.xpose.msra.mxu0 0.0
        %1779 = vmatprep.subr.mxu0 0.0
        %1780 = vmatpush1.xpose.msra.mxu0 0.0
        %1781 = vmatprep.subr.mxu0 0.0
        %1782 = vmatpush1.xpose.msra.mxu0 0.0
        %1783 = vmatprep.subr.mxu0 0.0
        %1784 = vmatpush1.xpose.msra.mxu0 0.0
        %1785 = vmatprep.subr.mxu0 0.0
        %1786 = vmatpush1.xpose.msra.mxu0 0.0
        %1787 = vmatprep.subr.mxu0 0.0
        %1788 = vmatpush1.xpose.msra.mxu0 0.0
        %1789 = vmatprep.subr.mxu0 0.0
        %1790 = vmatpush1.xpose.msra.mxu0 0.0
        %1791 = vmatprep.subr.mxu0 0.0
        %1792 = vmatpush1.xpose.msra.mxu0 0.0
        %1793 = vmatprep.subr.mxu0 0.0
        %1794 = vmatpush1.xpose.msra.mxu0 0.0
        %1795 = vmatprep.subr.mxu0 0.0
        %1796 = vmatpush1.xpose.msra.mxu0 0.0
        %1797 = vmatprep.subr.mxu0 0.0
        %1798 = vmatpush1.xpose.msra.mxu0 0.0
        %1799 = vmatprep.subr.mxu0 0.0
        %1800 = vmatpush1.xpose.msra.mxu0 0.0
        %1801 = vmatprep.subr.mxu0 0.0
        %1802 = vmatpush1.xpose.msra.mxu0 0.0
        %1803 = vmatprep.subr.mxu0 0.0
        %1804 = vmatpush1.xpose.msra.mxu0 0.0
        %1805 = vmatprep.subr.mxu0 0.0
        %1806 = vmatpush1.xpose.msra.mxu0 %v1773
        %1807 = vmatprep.subr.mxu0 0.0
        %1808 = vmatpush2.xpose.msra.mxu0 0.0
        %1809 = vmatprep.subr.mxu0 0.0
        %1810 = vmatpush2.xpose.msra.mxu0 0.0
        %1811 = vmatprep.subr.mxu0 0.0
        %1812 = vmatpush2.xpose.msra.mxu0 0.0
        %1813 = vmatprep.subr.mxu0 0.0
        %1814 = vmatpush2.xpose.msra.mxu0 0.0
        %1815 = vmatprep.subr.mxu0 0.0
        %1816 = vmatpush2.xpose.msra.mxu0 0.0
        %1817 = vmatprep.subr.mxu0 0.0
        %1818 = vmatpush2.xpose.msra.mxu0 0.0
        %1819 = vmatprep.subr.mxu0 0.0
        %1820 = vmatpush2.xpose.msra.mxu0 0.0
        %1821 = vmatprep.subr.mxu0 0.0
        %1822 = vmatpush2.xpose.msra.mxu0 0.0
        %1823 = vmatprep.subr.mxu0 0.0
        %1824 = vmatpush2.xpose.msra.mxu0 0.0
        %1825 = vmatprep.subr.mxu0 0.0
        %1826 = vmatpush2.xpose.msra.mxu0 0.0
        %1827 = vmatprep.subr.mxu0 0.0
        %1828 = vmatpush2.xpose.msra.mxu0 0.0
        %1829 = vmatprep.subr.mxu0 0.0
        %1830 = vmatpush2.xpose.msra.mxu0 0.0
        %1831 = vmatprep.subr.mxu0 0.0
        %1832 = vmatpush2.xpose.msra.mxu0 0.0
        %1833 = vmatprep.subr.mxu0 0.0
        %1834 = vmatpush2.xpose.msra.mxu0 0.0
        %1835 = vmatprep.subr.mxu0 0.0
        %1836 = vmatpush2.xpose.msra.mxu0 0.0
        %1837 = vmatprep.subr.mxu0 0.0
        %1838 = vmatpush2.xpose.msra.mxu0 0.0
        %1839 = vmatprep.mubr.f32.mxu0 0.0
        %1840 = vmatmul.mubr.f32.gmra.mxu0 %v1770
        %v1841 = vpop.f32.mrf.mxu0
        %v1842 = vadd.f32 0.0, %v1841
        %v1843 = vpop.f32.mrf.mxu0
        %1844 = vdwg.mxu0
        %v1846 = vsel %vm1236, %v1101, 0
        %v1849 = vsel %vm1236, %v1103, 0
        %1851 = vmatprep.subr.mxu0 0.0
        %1852 = vmatpush1.xpose.msra.mxu0 0.0
        %1853 = vmatprep.subr.mxu0 0.0
        %1854 = vmatpush1.xpose.msra.mxu0 0.0
        %1855 = vmatprep.subr.mxu0 0.0
        %1856 = vmatpush1.xpose.msra.mxu0 0.0
        %1857 = vmatprep.subr.mxu0 0.0
        %1858 = vmatpush1.xpose.msra.mxu0 0.0
        %1859 = vmatprep.subr.mxu0 0.0
        %1860 = vmatpush1.xpose.msra.mxu0 0.0
        %1861 = vmatprep.subr.mxu0 0.0
        %1862 = vmatpush1.xpose.msra.mxu0 0.0
        %1863 = vmatprep.subr.mxu0 0.0
        %1864 = vmatpush1.xpose.msra.mxu0 0.0
        %1865 = vmatprep.subr.mxu0 0.0
        %1866 = vmatpush1.xpose.msra.mxu0 0.0
        %1867 = vmatprep.subr.mxu0 0.0
        %1868 = vmatpush1.xpose.msra.mxu0 0.0
        %1869 = vmatprep.subr.mxu0 0.0
        %1870 = vmatpush1.xpose.msra.mxu0 0.0
        %1871 = vmatprep.subr.mxu0 0.0
        %1872 = vmatpush1.xpose.msra.mxu0 0.0
        %1873 = vmatprep.subr.mxu0 0.0
        %1874 = vmatpush1.xpose.msra.mxu0 0.0
        %1875 = vmatprep.subr.mxu0 0.0
        %1876 = vmatpush1.xpose.msra.mxu0 0.0
        %1877 = vmatprep.subr.mxu0 0.0
        %1878 = vmatpush1.xpose.msra.mxu0 0.0
        %1879 = vmatprep.subr.mxu0 0.0
        %1880 = vmatpush1.xpose.msra.mxu0 0.0
        %1881 = vmatprep.subr.mxu0 0.0
        %1882 = vmatpush1.xpose.msra.mxu0 %v1849
        %1883 = vmatprep.subr.mxu0 0.0
        %1884 = vmatpush2.xpose.msra.mxu0 0.0
        %1885 = vmatprep.subr.mxu0 0.0
        %1886 = vmatpush2.xpose.msra.mxu0 0.0
        %1887 = vmatprep.subr.mxu0 0.0
        %1888 = vmatpush2.xpose.msra.mxu0 0.0
        %1889 = vmatprep.subr.mxu0 0.0
        %1890 = vmatpush2.xpose.msra.mxu0 0.0
        %1891 = vmatprep.subr.mxu0 0.0
        %1892 = vmatpush2.xpose.msra.mxu0 0.0
        %1893 = vmatprep.subr.mxu0 0.0
        %1894 = vmatpush2.xpose.msra.mxu0 0.0
        %1895 = vmatprep.subr.mxu0 0.0
        %1896 = vmatpush2.xpose.msra.mxu0 0.0
        %1897 = vmatprep.subr.mxu0 0.0
        %1898 = vmatpush2.xpose.msra.mxu0 0.0
        %1899 = vmatprep.subr.mxu0 0.0
        %1900 = vmatpush2.xpose.msra.mxu0 0.0
        %1901 = vmatprep.subr.mxu0 0.0
        %1902 = vmatpush2.xpose.msra.mxu0 0.0
        %1903 = vmatprep.subr.mxu0 0.0
        %1904 = vmatpush2.xpose.msra.mxu0 0.0
        %1905 = vmatprep.subr.mxu0 0.0
        %1906 = vmatpush2.xpose.msra.mxu0 0.0
        %1907 = vmatprep.subr.mxu0 0.0
        %1908 = vmatpush2.xpose.msra.mxu0 0.0
        %1909 = vmatprep.subr.mxu0 0.0
        %1910 = vmatpush2.xpose.msra.mxu0 0.0
        %1911 = vmatprep.subr.mxu0 0.0
        %1912 = vmatpush2.xpose.msra.mxu0 0.0
        %1913 = vmatprep.subr.mxu0 0.0
        %1914 = vmatpush2.xpose.msra.mxu0 0.0
        %1915 = vmatprep.mubr.f32.mxu0 0.0
        %1916 = vmatmul.mubr.f32.gmra.mxu0 %v1846
        %v1917 = vpop.f32.mrf.mxu0
        %v1918 = vadd.f32 0.0, %v1917
        %v1919 = vpop.f32.mrf.mxu0
        %1920 = vdwg.mxu0
        %v1922 = vsel %vm1236, %v1105, 0
        %v1925 = vsel %vm1236, %v1107, 0
        %1927 = vmatprep.subr.mxu0 0.0
        %1928 = vmatpush1.xpose.msra.mxu0 0.0
        %1929 = vmatprep.subr.mxu0 0.0
        %1930 = vmatpush1.xpose.msra.mxu0 0.0
        %1931 = vmatprep.subr.mxu0 0.0
        %1932 = vmatpush1.xpose.msra.mxu0 0.0
        %1933 = vmatprep.subr.mxu0 0.0
        %1934 = vmatpush1.xpose.msra.mxu0 0.0
        %1935 = vmatprep.subr.mxu0 0.0
        %1936 = vmatpush1.xpose.msra.mxu0 0.0
        %1937 = vmatprep.subr.mxu0 0.0
        %1938 = vmatpush1.xpose.msra.mxu0 0.0
        %1939 = vmatprep.subr.mxu0 0.0
        %1940 = vmatpush1.xpose.msra.mxu0 0.0
        %1941 = vmatprep.subr.mxu0 0.0
        %1942 = vmatpush1.xpose.msra.mxu0 0.0
        %1943 = vmatprep.subr.mxu0 0.0
        %1944 = vmatpush1.xpose.msra.mxu0 0.0
        %1945 = vmatprep.subr.mxu0 0.0
        %1946 = vmatpush1.xpose.msra.mxu0 0.0
        %1947 = vmatprep.subr.mxu0 0.0
        %1948 = vmatpush1.xpose.msra.mxu0 0.0
        %1949 = vmatprep.subr.mxu0 0.0
        %1950 = vmatpush1.xpose.msra.mxu0 0.0
        %1951 = vmatprep.subr.mxu0 0.0
        %1952 = vmatpush1.xpose.msra.mxu0 0.0
        %1953 = vmatprep.subr.mxu0 0.0
        %1954 = vmatpush1.xpose.msra.mxu0 0.0
        %1955 = vmatprep.subr.mxu0 0.0
        %1956 = vmatpush1.xpose.msra.mxu0 0.0
        %1957 = vmatprep.subr.mxu0 0.0
        %1958 = vmatpush1.xpose.msra.mxu0 %v1925
        %1959 = vmatprep.subr.mxu0 0.0
        %1960 = vmatpush2.xpose.msra.mxu0 0.0
        %1961 = vmatprep.subr.mxu0 0.0
        %1962 = vmatpush2.xpose.msra.mxu0 0.0
        %1963 = vmatprep.subr.mxu0 0.0
        %1964 = vmatpush2.xpose.msra.mxu0 0.0
        %1965 = vmatprep.subr.mxu0 0.0
        %1966 = vmatpush2.xpose.msra.mxu0 0.0
        %1967 = vmatprep.subr.mxu0 0.0
        %1968 = vmatpush2.xpose.msra.mxu0 0.0
        %1969 = vmatprep.subr.mxu0 0.0
        %1970 = vmatpush2.xpose.msra.mxu0 0.0
        %1971 = vmatprep.subr.mxu0 0.0
        %1972 = vmatpush2.xpose.msra.mxu0 0.0
        %1973 = vmatprep.subr.mxu0 0.0
        %1974 = vmatpush2.xpose.msra.mxu0 0.0
        %1975 = vmatprep.subr.mxu0 0.0
        %1976 = vmatpush2.xpose.msra.mxu0 0.0
        %1977 = vmatprep.subr.mxu0 0.0
        %1978 = vmatpush2.xpose.msra.mxu0 0.0
        %1979 = vmatprep.subr.mxu0 0.0
        %1980 = vmatpush2.xpose.msra.mxu0 0.0
        %1981 = vmatprep.subr.mxu0 0.0
        %1982 = vmatpush2.xpose.msra.mxu0 0.0
        %1983 = vmatprep.subr.mxu0 0.0
        %1984 = vmatpush2.xpose.msra.mxu0 0.0
        %1985 = vmatprep.subr.mxu0 0.0
        %1986 = vmatpush2.xpose.msra.mxu0 0.0
        %1987 = vmatprep.subr.mxu0 0.0
        %1988 = vmatpush2.xpose.msra.mxu0 0.0
        %1989 = vmatprep.subr.mxu0 0.0
        %1990 = vmatpush2.xpose.msra.mxu0 0.0
        %1991 = vmatprep.mubr.f32.mxu0 0.0
        %1992 = vmatmul.mubr.f32.gmra.mxu0 %v1922
        %v1993 = vpop.f32.mrf.mxu0
        %v1994 = vadd.f32 0.0, %v1993
        %v1995 = vpop.f32.mrf.mxu0
        %1996 = vdwg.mxu0
        %v1998 = vsel %vm1236, %v1111, 0
        %v2001 = vsel %vm1236, %v1113, 0
        %2003 = vmatprep.subr.mxu0 0.0
        %2004 = vmatpush1.xpose.msra.mxu0 0.0
        %2005 = vmatprep.subr.mxu0 0.0
        %2006 = vmatpush1.xpose.msra.mxu0 0.0
        %2007 = vmatprep.subr.mxu0 0.0
        %2008 = vmatpush1.xpose.msra.mxu0 0.0
        %2009 = vmatprep.subr.mxu0 0.0
        %2010 = vmatpush1.xpose.msra.mxu0 0.0
        %2011 = vmatprep.subr.mxu0 0.0
        %2012 = vmatpush1.xpose.msra.mxu0 0.0
        %2013 = vmatprep.subr.mxu0 0.0
        %2014 = vmatpush1.xpose.msra.mxu0 0.0
        %2015 = vmatprep.subr.mxu0 0.0
        %2016 = vmatpush1.xpose.msra.mxu0 0.0
        %2017 = vmatprep.subr.mxu0 0.0
        %2018 = vmatpush1.xpose.msra.mxu0 0.0
        %2019 = vmatprep.subr.mxu0 0.0
        %2020 = vmatpush1.xpose.msra.mxu0 0.0
        %2021 = vmatprep.subr.mxu0 0.0
        %2022 = vmatpush1.xpose.msra.mxu0 0.0
        %2023 = vmatprep.subr.mxu0 0.0
        %2024 = vmatpush1.xpose.msra.mxu0 0.0
        %2025 = vmatprep.subr.mxu0 0.0
        %2026 = vmatpush1.xpose.msra.mxu0 0.0
        %2027 = vmatprep.subr.mxu0 0.0
        %2028 = vmatpush1.xpose.msra.mxu0 0.0
        %2029 = vmatprep.subr.mxu0 0.0
        %2030 = vmatpush1.xpose.msra.mxu0 0.0
        %2031 = vmatprep.subr.mxu0 0.0
        %2032 = vmatpush1.xpose.msra.mxu0 0.0
        %2033 = vmatprep.subr.mxu0 0.0
        %2034 = vmatpush1.xpose.msra.mxu0 %v2001
        %2035 = vmatprep.subr.mxu0 0.0
        %2036 = vmatpush2.xpose.msra.mxu0 0.0
        %2037 = vmatprep.subr.mxu0 0.0
        %2038 = vmatpush2.xpose.msra.mxu0 0.0
        %2039 = vmatprep.subr.mxu0 0.0
        %2040 = vmatpush2.xpose.msra.mxu0 0.0
        %2041 = vmatprep.subr.mxu0 0.0
        %2042 = vmatpush2.xpose.msra.mxu0 0.0
        %2043 = vmatprep.subr.mxu0 0.0
        %2044 = vmatpush2.xpose.msra.mxu0 0.0
        %2045 = vmatprep.subr.mxu0 0.0
        %2046 = vmatpush2.xpose.msra.mxu0 0.0
        %2047 = vmatprep.subr.mxu0 0.0
        %2048 = vmatpush2.xpose.msra.mxu0 0.0
        %2049 = vmatprep.subr.mxu0 0.0
        %2050 = vmatpush2.xpose.msra.mxu0 0.0
        %2051 = vmatprep.subr.mxu0 0.0
        %2052 = vmatpush2.xpose.msra.mxu0 0.0
        %2053 = vmatprep.subr.mxu0 0.0
        %2054 = vmatpush2.xpose.msra.mxu0 0.0
        %2055 = vmatprep.subr.mxu0 0.0
        %2056 = vmatpush2.xpose.msra.mxu0 0.0
        %2057 = vmatprep.subr.mxu0 0.0
        %2058 = vmatpush2.xpose.msra.mxu0 0.0
        %2059 = vmatprep.subr.mxu0 0.0
        %2060 = vmatpush2.xpose.msra.mxu0 0.0
        %2061 = vmatprep.subr.mxu0 0.0
        %2062 = vmatpush2.xpose.msra.mxu0 0.0
        %2063 = vmatprep.subr.mxu0 0.0
        %2064 = vmatpush2.xpose.msra.mxu0 0.0
        %2065 = vmatprep.subr.mxu0 0.0
        %2066 = vmatpush2.xpose.msra.mxu0 0.0
        %2067 = vmatprep.mubr.f32.mxu0 0.0
        %2068 = vmatmul.mubr.f32.gmra.mxu0 %v1998
        %v2069 = vpop.f32.mrf.mxu0
        %v2070 = vadd.f32 0.0, %v2069
        %v2071 = vpop.f32.mrf.mxu0
        %2072 = vdwg.mxu0
        %v2074 = vsel %vm1236, %v1115, 0
        %v2077 = vsel %vm1236, %v1117, 0
        %2079 = vmatprep.subr.mxu0 0.0
        %2080 = vmatpush1.xpose.msra.mxu0 0.0
        %2081 = vmatprep.subr.mxu0 0.0
        %2082 = vmatpush1.xpose.msra.mxu0 0.0
        %2083 = vmatprep.subr.mxu0 0.0
        %2084 = vmatpush1.xpose.msra.mxu0 0.0
        %2085 = vmatprep.subr.mxu0 0.0
        %2086 = vmatpush1.xpose.msra.mxu0 0.0
        %2087 = vmatprep.subr.mxu0 0.0
        %2088 = vmatpush1.xpose.msra.mxu0 0.0
        %2089 = vmatprep.subr.mxu0 0.0
        %2090 = vmatpush1.xpose.msra.mxu0 0.0
        %2091 = vmatprep.subr.mxu0 0.0
        %2092 = vmatpush1.xpose.msra.mxu0 0.0
        %2093 = vmatprep.subr.mxu0 0.0
        %2094 = vmatpush1.xpose.msra.mxu0 0.0
        %2095 = vmatprep.subr.mxu0 0.0
        %2096 = vmatpush1.xpose.msra.mxu0 0.0
        %2097 = vmatprep.subr.mxu0 0.0
        %2098 = vmatpush1.xpose.msra.mxu0 0.0
        %2099 = vmatprep.subr.mxu0 0.0
        %2100 = vmatpush1.xpose.msra.mxu0 0.0
        %2101 = vmatprep.subr.mxu0 0.0
        %2102 = vmatpush1.xpose.msra.mxu0 0.0
        %2103 = vmatprep.subr.mxu0 0.0
        %2104 = vmatpush1.xpose.msra.mxu0 0.0
        %2105 = vmatprep.subr.mxu0 0.0
        %2106 = vmatpush1.xpose.msra.mxu0 0.0
        %2107 = vmatprep.subr.mxu0 0.0
        %2108 = vmatpush1.xpose.msra.mxu0 0.0
        %2109 = vmatprep.subr.mxu0 0.0
        %2110 = vmatpush1.xpose.msra.mxu0 %v2077
        %2111 = vmatprep.subr.mxu0 0.0
        %2112 = vmatpush2.xpose.msra.mxu0 0.0
        %2113 = vmatprep.subr.mxu0 0.0
        %2114 = vmatpush2.xpose.msra.mxu0 0.0
        %2115 = vmatprep.subr.mxu0 0.0
        %2116 = vmatpush2.xpose.msra.mxu0 0.0
        %2117 = vmatprep.subr.mxu0 0.0
        %2118 = vmatpush2.xpose.msra.mxu0 0.0
        %2119 = vmatprep.subr.mxu0 0.0
        %2120 = vmatpush2.xpose.msra.mxu0 0.0
        %2121 = vmatprep.subr.mxu0 0.0
        %2122 = vmatpush2.xpose.msra.mxu0 0.0
        %2123 = vmatprep.subr.mxu0 0.0
        %2124 = vmatpush2.xpose.msra.mxu0 0.0
        %2125 = vmatprep.subr.mxu0 0.0
        %2126 = vmatpush2.xpose.msra.mxu0 0.0
        %2127 = vmatprep.subr.mxu0 0.0
        %2128 = vmatpush2.xpose.msra.mxu0 0.0
        %2129 = vmatprep.subr.mxu0 0.0
        %2130 = vmatpush2.xpose.msra.mxu0 0.0
        %2131 = vmatprep.subr.mxu0 0.0
        %2132 = vmatpush2.xpose.msra.mxu0 0.0
        %2133 = vmatprep.subr.mxu0 0.0
        %2134 = vmatpush2.xpose.msra.mxu0 0.0
        %2135 = vmatprep.subr.mxu0 0.0
        %2136 = vmatpush2.xpose.msra.mxu0 0.0
        %2137 = vmatprep.subr.mxu0 0.0
        %2138 = vmatpush2.xpose.msra.mxu0 0.0
        %2139 = vmatprep.subr.mxu0 0.0
        %2140 = vmatpush2.xpose.msra.mxu0 0.0
        %2141 = vmatprep.subr.mxu0 0.0
        %2142 = vmatpush2.xpose.msra.mxu0 0.0
        %2143 = vmatprep.mubr.f32.mxu0 0.0
        %2144 = vmatmul.mubr.f32.gmra.mxu0 %v2074
        %v2145 = vpop.f32.mrf.mxu0
        %v2146 = vadd.f32 0.0, %v2145
        %v2147 = vpop.f32.mrf.mxu0
        %2148 = vdwg.mxu0
        %v2150 = vsel %vm1236, %v1121, 0
        %v2153 = vsel %vm1236, %v1123, 0
        %2155 = vmatprep.subr.mxu0 0.0
        %2156 = vmatpush1.xpose.msra.mxu0 0.0
        %2157 = vmatprep.subr.mxu0 0.0
        %2158 = vmatpush1.xpose.msra.mxu0 0.0
        %2159 = vmatprep.subr.mxu0 0.0
        %2160 = vmatpush1.xpose.msra.mxu0 0.0
        %2161 = vmatprep.subr.mxu0 0.0
        %2162 = vmatpush1.xpose.msra.mxu0 0.0
        %2163 = vmatprep.subr.mxu0 0.0
        %2164 = vmatpush1.xpose.msra.mxu0 0.0
        %2165 = vmatprep.subr.mxu0 0.0
        %2166 = vmatpush1.xpose.msra.mxu0 0.0
        %2167 = vmatprep.subr.mxu0 0.0
        %2168 = vmatpush1.xpose.msra.mxu0 0.0
        %2169 = vmatprep.subr.mxu0 0.0
        %2170 = vmatpush1.xpose.msra.mxu0 0.0
        %2171 = vmatprep.subr.mxu0 0.0
        %2172 = vmatpush1.xpose.msra.mxu0 0.0
        %2173 = vmatprep.subr.mxu0 0.0
        %2174 = vmatpush1.xpose.msra.mxu0 0.0
        %2175 = vmatprep.subr.mxu0 0.0
        %2176 = vmatpush1.xpose.msra.mxu0 0.0
        %2177 = vmatprep.subr.mxu0 0.0
        %2178 = vmatpush1.xpose.msra.mxu0 0.0
        %2179 = vmatprep.subr.mxu0 0.0
        %2180 = vmatpush1.xpose.msra.mxu0 0.0
        %2181 = vmatprep.subr.mxu0 0.0
        %2182 = vmatpush1.xpose.msra.mxu0 0.0
        %2183 = vmatprep.subr.mxu0 0.0
        %2184 = vmatpush1.xpose.msra.mxu0 0.0
        %2185 = vmatprep.subr.mxu0 0.0
        %2186 = vmatpush1.xpose.msra.mxu0 %v2153
        %2187 = vmatprep.subr.mxu0 0.0
        %2188 = vmatpush2.xpose.msra.mxu0 0.0
        %2189 = vmatprep.subr.mxu0 0.0
        %2190 = vmatpush2.xpose.msra.mxu0 0.0
        %2191 = vmatprep.subr.mxu0 0.0
        %2192 = vmatpush2.xpose.msra.mxu0 0.0
        %2193 = vmatprep.subr.mxu0 0.0
        %2194 = vmatpush2.xpose.msra.mxu0 0.0
        %2195 = vmatprep.subr.mxu0 0.0
        %2196 = vmatpush2.xpose.msra.mxu0 0.0
        %2197 = vmatprep.subr.mxu0 0.0
        %2198 = vmatpush2.xpose.msra.mxu0 0.0
        %2199 = vmatprep.subr.mxu0 0.0
        %2200 = vmatpush2.xpose.msra.mxu0 0.0
        %2201 = vmatprep.subr.mxu0 0.0
        %2202 = vmatpush2.xpose.msra.mxu0 0.0
        %2203 = vmatprep.subr.mxu0 0.0
        %2204 = vmatpush2.xpose.msra.mxu0 0.0
        %2205 = vmatprep.subr.mxu0 0.0
        %2206 = vmatpush2.xpose.msra.mxu0 0.0
        %2207 = vmatprep.subr.mxu0 0.0
        %2208 = vmatpush2.xpose.msra.mxu0 0.0
        %2209 = vmatprep.subr.mxu0 0.0
        %2210 = vmatpush2.xpose.msra.mxu0 0.0
        %2211 = vmatprep.subr.mxu0 0.0
        %2212 = vmatpush2.xpose.msra.mxu0 0.0
        %2213 = vmatprep.subr.mxu0 0.0
        %2214 = vmatpush2.xpose.msra.mxu0 0.0
        %2215 = vmatprep.subr.mxu0 0.0
        %2216 = vmatpush2.xpose.msra.mxu0 0.0
        %2217 = vmatprep.subr.mxu0 0.0
        %2218 = vmatpush2.xpose.msra.mxu0 0.0
        %2219 = vmatprep.mubr.f32.mxu0 0.0
        %2220 = vmatmul.mubr.f32.gmra.mxu0 %v2150
        %v2221 = vpop.f32.mrf.mxu0
        %v2222 = vadd.f32 0.0, %v2221
        %v2223 = vpop.f32.mrf.mxu0
        %2224 = vdwg.mxu0
        %v2226 = vsel %vm1236, %v1125, 0
        %v2229 = vsel %vm1236, %v1127, 0
        %2231 = vmatprep.subr.mxu0 0.0
        %2232 = vmatpush1.xpose.msra.mxu0 0.0
        %2233 = vmatprep.subr.mxu0 0.0
        %2234 = vmatpush1.xpose.msra.mxu0 0.0
        %2235 = vmatprep.subr.mxu0 0.0
        %2236 = vmatpush1.xpose.msra.mxu0 0.0
        %2237 = vmatprep.subr.mxu0 0.0
        %2238 = vmatpush1.xpose.msra.mxu0 0.0
        %2239 = vmatprep.subr.mxu0 0.0
        %2240 = vmatpush1.xpose.msra.mxu0 0.0
        %2241 = vmatprep.subr.mxu0 0.0
        %2242 = vmatpush1.xpose.msra.mxu0 0.0
        %2243 = vmatprep.subr.mxu0 0.0
        %2244 = vmatpush1.xpose.msra.mxu0 0.0
        %2245 = vmatprep.subr.mxu0 0.0
        %2246 = vmatpush1.xpose.msra.mxu0 0.0
        %2247 = vmatprep.subr.mxu0 0.0
        %2248 = vmatpush1.xpose.msra.mxu0 0.0
        %2249 = vmatprep.subr.mxu0 0.0
        %2250 = vmatpush1.xpose.msra.mxu0 0.0
        %2251 = vmatprep.subr.mxu0 0.0
        %2252 = vmatpush1.xpose.msra.mxu0 0.0
        %2253 = vmatprep.subr.mxu0 0.0
        %2254 = vmatpush1.xpose.msra.mxu0 0.0
        %2255 = vmatprep.subr.mxu0 0.0
        %2256 = vmatpush1.xpose.msra.mxu0 0.0
        %2257 = vmatprep.subr.mxu0 0.0
        %2258 = vmatpush1.xpose.msra.mxu0 0.0
        %2259 = vmatprep.subr.mxu0 0.0
        %2260 = vmatpush1.xpose.msra.mxu0 0.0
        %2261 = vmatprep.subr.mxu0 0.0
        %2262 = vmatpush1.xpose.msra.mxu0 %v2229
        %2263 = vmatprep.subr.mxu0 0.0
        %2264 = vmatpush2.xpose.msra.mxu0 0.0
        %2265 = vmatprep.subr.mxu0 0.0
        %2266 = vmatpush2.xpose.msra.mxu0 0.0
        %2267 = vmatprep.subr.mxu0 0.0
        %2268 = vmatpush2.xpose.msra.mxu0 0.0
        %2269 = vmatprep.subr.mxu0 0.0
        %2270 = vmatpush2.xpose.msra.mxu0 0.0
        %2271 = vmatprep.subr.mxu0 0.0
        %2272 = vmatpush2.xpose.msra.mxu0 0.0
        %2273 = vmatprep.subr.mxu0 0.0
        %2274 = vmatpush2.xpose.msra.mxu0 0.0
        %2275 = vmatprep.subr.mxu0 0.0
        %2276 = vmatpush2.xpose.msra.mxu0 0.0
        %2277 = vmatprep.subr.mxu0 0.0
        %2278 = vmatpush2.xpose.msra.mxu0 0.0
        %2279 = vmatprep.subr.mxu0 0.0
        %2280 = vmatpush2.xpose.msra.mxu0 0.0
        %2281 = vmatprep.subr.mxu0 0.0
        %2282 = vmatpush2.xpose.msra.mxu0 0.0
        %2283 = vmatprep.subr.mxu0 0.0
        %2284 = vmatpush2.xpose.msra.mxu0 0.0
        %2285 = vmatprep.subr.mxu0 0.0
        %2286 = vmatpush2.xpose.msra.mxu0 0.0
        %2287 = vmatprep.subr.mxu0 0.0
        %2288 = vmatpush2.xpose.msra.mxu0 0.0
        %2289 = vmatprep.subr.mxu0 0.0
        %2290 = vmatpush2.xpose.msra.mxu0 0.0
        %2291 = vmatprep.subr.mxu0 0.0
        %2292 = vmatpush2.xpose.msra.mxu0 0.0
        %2293 = vmatprep.subr.mxu0 0.0
        %2294 = vmatpush2.xpose.msra.mxu0 0.0
        %2295 = vmatprep.mubr.f32.mxu0 0.0
        %2296 = vmatmul.mubr.f32.gmra.mxu0 %v2226
        %v2297 = vpop.f32.mrf.mxu0
        %v2298 = vadd.f32 0.0, %v2297
        %v2299 = vpop.f32.mrf.mxu0
        %2300 = vdwg.mxu0
        %v2302 = vsel %vm1236, %v1131, 0
        %v2305 = vsel %vm1236, %v1133, 0
        %2307 = vmatprep.subr.mxu0 0.0
        %2308 = vmatpush1.xpose.msra.mxu0 0.0
        %2309 = vmatprep.subr.mxu0 0.0
        %2310 = vmatpush1.xpose.msra.mxu0 0.0
        %2311 = vmatprep.subr.mxu0 0.0
        %2312 = vmatpush1.xpose.msra.mxu0 0.0
        %2313 = vmatprep.subr.mxu0 0.0
        %2314 = vmatpush1.xpose.msra.mxu0 0.0
        %2315 = vmatprep.subr.mxu0 0.0
        %2316 = vmatpush1.xpose.msra.mxu0 0.0
        %2317 = vmatprep.subr.mxu0 0.0
        %2318 = vmatpush1.xpose.msra.mxu0 0.0
        %2319 = vmatprep.subr.mxu0 0.0
        %2320 = vmatpush1.xpose.msra.mxu0 0.0
        %2321 = vmatprep.subr.mxu0 0.0
        %2322 = vmatpush1.xpose.msra.mxu0 0.0
        %2323 = vmatprep.subr.mxu0 0.0
        %2324 = vmatpush1.xpose.msra.mxu0 0.0
        %2325 = vmatprep.subr.mxu0 0.0
        %2326 = vmatpush1.xpose.msra.mxu0 0.0
        %2327 = vmatprep.subr.mxu0 0.0
        %2328 = vmatpush1.xpose.msra.mxu0 0.0
        %2329 = vmatprep.subr.mxu0 0.0
        %2330 = vmatpush1.xpose.msra.mxu0 0.0
        %2331 = vmatprep.subr.mxu0 0.0
        %2332 = vmatpush1.xpose.msra.mxu0 0.0
        %2333 = vmatprep.subr.mxu0 0.0
        %2334 = vmatpush1.xpose.msra.mxu0 0.0
        %2335 = vmatprep.subr.mxu0 0.0
        %2336 = vmatpush1.xpose.msra.mxu0 0.0
        %2337 = vmatprep.subr.mxu0 0.0
        %2338 = vmatpush1.xpose.msra.mxu0 %v2305
        %2339 = vmatprep.subr.mxu0 0.0
        %2340 = vmatpush2.xpose.msra.mxu0 0.0
        %2341 = vmatprep.subr.mxu0 0.0
        %2342 = vmatpush2.xpose.msra.mxu0 0.0
        %2343 = vmatprep.subr.mxu0 0.0
        %2344 = vmatpush2.xpose.msra.mxu0 0.0
        %2345 = vmatprep.subr.mxu0 0.0
        %2346 = vmatpush2.xpose.msra.mxu0 0.0
        %2347 = vmatprep.subr.mxu0 0.0
        %2348 = vmatpush2.xpose.msra.mxu0 0.0
        %2349 = vmatprep.subr.mxu0 0.0
        %2350 = vmatpush2.xpose.msra.mxu0 0.0
        %2351 = vmatprep.subr.mxu0 0.0
        %2352 = vmatpush2.xpose.msra.mxu0 0.0
        %2353 = vmatprep.subr.mxu0 0.0
        %2354 = vmatpush2.xpose.msra.mxu0 0.0
        %2355 = vmatprep.subr.mxu0 0.0
        %2356 = vmatpush2.xpose.msra.mxu0 0.0
        %2357 = vmatprep.subr.mxu0 0.0
        %2358 = vmatpush2.xpose.msra.mxu0 0.0
        %2359 = vmatprep.subr.mxu0 0.0
        %2360 = vmatpush2.xpose.msra.mxu0 0.0
        %2361 = vmatprep.subr.mxu0 0.0
        %2362 = vmatpush2.xpose.msra.mxu0 0.0
        %2363 = vmatprep.subr.mxu0 0.0
        %2364 = vmatpush2.xpose.msra.mxu0 0.0
        %2365 = vmatprep.subr.mxu0 0.0
        %2366 = vmatpush2.xpose.msra.mxu0 0.0
        %2367 = vmatprep.subr.mxu0 0.0
        %2368 = vmatpush2.xpose.msra.mxu0 0.0
        %2369 = vmatprep.subr.mxu0 0.0
        %2370 = vmatpush2.xpose.msra.mxu0 0.0
        %2371 = vmatprep.mubr.f32.mxu0 0.0
        %2372 = vmatmul.mubr.f32.gmra.mxu0 %v2302
        %v2373 = vpop.f32.mrf.mxu0
        %v2374 = vadd.f32 0.0, %v2373
        %v2375 = vpop.f32.mrf.mxu0
        %2376 = vdwg.mxu0
        %v2378 = vsel %vm1236, %v1135, 0
        %v2381 = vsel %vm1236, %v1137, 0
        %2383 = vmatprep.subr.mxu0 0.0
        %2384 = vmatpush1.xpose.msra.mxu0 0.0
        %2385 = vmatprep.subr.mxu0 0.0
        %2386 = vmatpush1.xpose.msra.mxu0 0.0
        %2387 = vmatprep.subr.mxu0 0.0
        %2388 = vmatpush1.xpose.msra.mxu0 0.0
        %2389 = vmatprep.subr.mxu0 0.0
        %2390 = vmatpush1.xpose.msra.mxu0 0.0
        %2391 = vmatprep.subr.mxu0 0.0
        %2392 = vmatpush1.xpose.msra.mxu0 0.0
        %2393 = vmatprep.subr.mxu0 0.0
        %2394 = vmatpush1.xpose.msra.mxu0 0.0
        %2395 = vmatprep.subr.mxu0 0.0
        %2396 = vmatpush1.xpose.msra.mxu0 0.0
        %2397 = vmatprep.subr.mxu0 0.0
        %2398 = vmatpush1.xpose.msra.mxu0 0.0
        %2399 = vmatprep.subr.mxu0 0.0
        %2400 = vmatpush1.xpose.msra.mxu0 0.0
        %2401 = vmatprep.subr.mxu0 0.0
        %2402 = vmatpush1.xpose.msra.mxu0 0.0
        %2403 = vmatprep.subr.mxu0 0.0
        %2404 = vmatpush1.xpose.msra.mxu0 0.0
        %2405 = vmatprep.subr.mxu0 0.0
        %2406 = vmatpush1.xpose.msra.mxu0 0.0
        %2407 = vmatprep.subr.mxu0 0.0
        %2408 = vmatpush1.xpose.msra.mxu0 0.0
        %2409 = vmatprep.subr.mxu0 0.0
        %2410 = vmatpush1.xpose.msra.mxu0 0.0
        %2411 = vmatprep.subr.mxu0 0.0
        %2412 = vmatpush1.xpose.msra.mxu0 0.0
        %2413 = vmatprep.subr.mxu0 0.0
        %2414 = vmatpush1.xpose.msra.mxu0 %v2381
        %2415 = vmatprep.subr.mxu0 0.0
        %2416 = vmatpush2.xpose.msra.mxu0 0.0
        %2417 = vmatprep.subr.mxu0 0.0
        %2418 = vmatpush2.xpose.msra.mxu0 0.0
        %2419 = vmatprep.subr.mxu0 0.0
        %2420 = vmatpush2.xpose.msra.mxu0 0.0
        %2421 = vmatprep.subr.mxu0 0.0
        %2422 = vmatpush2.xpose.msra.mxu0 0.0
        %2423 = vmatprep.subr.mxu0 0.0
        %2424 = vmatpush2.xpose.msra.mxu0 0.0
        %2425 = vmatprep.subr.mxu0 0.0
        %2426 = vmatpush2.xpose.msra.mxu0 0.0
        %2427 = vmatprep.subr.mxu0 0.0
        %2428 = vmatpush2.xpose.msra.mxu0 0.0
        %2429 = vmatprep.subr.mxu0 0.0
        %2430 = vmatpush2.xpose.msra.mxu0 0.0
        %2431 = vmatprep.subr.mxu0 0.0
        %2432 = vmatpush2.xpose.msra.mxu0 0.0
        %2433 = vmatprep.subr.mxu0 0.0
        %2434 = vmatpush2.xpose.msra.mxu0 0.0
        %2435 = vmatprep.subr.mxu0 0.0
        %2436 = vmatpush2.xpose.msra.mxu0 0.0
        %2437 = vmatprep.subr.mxu0 0.0
        %2438 = vmatpush2.xpose.msra.mxu0 0.0
        %2439 = vmatprep.subr.mxu0 0.0
        %2440 = vmatpush2.xpose.msra.mxu0 0.0
        %2441 = vmatprep.subr.mxu0 0.0
        %2442 = vmatpush2.xpose.msra.mxu0 0.0
        %2443 = vmatprep.subr.mxu0 0.0
        %2444 = vmatpush2.xpose.msra.mxu0 0.0
        %2445 = vmatprep.subr.mxu0 0.0
        %2446 = vmatpush2.xpose.msra.mxu0 0.0
        %2447 = vmatprep.mubr.f32.mxu0 0.0
        %2448 = vmatmul.mubr.f32.gmra.mxu0 %v2378
        %v2449 = vpop.f32.mrf.mxu0
        %v2450 = vadd.f32 0.0, %v2449
        %v2451 = vpop.f32.mrf.mxu0
        %2452 = vdwg.mxu0
        %vm2453 = vcmask 64512
        %v2454 = vsel %vm2453, %v1310, -inf
        %2455 = vmax.xlane.f32.xlu0 %v2454
        %v2456 = vpop.xlane.xlu0 %2455
        %v2457 = vsel %vm2453, %v1386, -inf
        %2458 = vmax.xlane.f32.xlu0 %v2457
        %v2459 = vpop.xlane.xlu0 %2458
        %v2460 = vsel %vm2453, %v1462, -inf
        %2461 = vmax.xlane.f32.xlu0 %v2460
        %v2462 = vpop.xlane.xlu0 %2461
        %v2463 = vsel %vm2453, %v1538, -inf
        %2464 = vmax.xlane.f32.xlu0 %v2463
        %v2465 = vpop.xlane.xlu0 %2464
        %v2466 = vsel %vm2453, %v1614, -inf
        %2467 = vmax.xlane.f32.xlu0 %v2466
        %v2468 = vpop.xlane.xlu0 %2467
        %v2469 = vsel %vm2453, %v1690, -inf
        %2470 = vmax.xlane.f32.xlu0 %v2469
        %v2471 = vpop.xlane.xlu0 %2470
        %v2472 = vsel %vm2453, %v1766, -inf
        %2473 = vmax.xlane.f32.xlu0 %v2472
        %v2474 = vpop.xlane.xlu0 %2473
        %v2475 = vsel %vm2453, %v1842, -inf
        %2476 = vmax.xlane.f32.xlu0 %v2475
        %v2477 = vpop.xlane.xlu0 %2476
        %v2478 = vsel %vm2453, %v1918, -inf
        %2479 = vmax.xlane.f32.xlu0 %v2478
        %v2480 = vpop.xlane.xlu0 %2479
        %v2481 = vsel %vm2453, %v1994, -inf
        %2482 = vmax.xlane.f32.xlu0 %v2481
        %v2483 = vpop.xlane.xlu0 %2482
        %v2484 = vsel %vm2453, %v2070, -inf
        %2485 = vmax.xlane.f32.xlu0 %v2484
        %v2486 = vpop.xlane.xlu0 %2485
        %v2487 = vsel %vm2453, %v2146, -inf
        %2488 = vmax.xlane.f32.xlu0 %v2487
        %v2489 = vpop.xlane.xlu0 %2488
        %v2490 = vsel %vm2453, %v2222, -inf
        %2491 = vmax.xlane.f32.xlu0 %v2490
        %v2492 = vpop.xlane.xlu0 %2491
        %v2493 = vsel %vm2453, %v2298, -inf
        %2494 = vmax.xlane.f32.xlu0 %v2493
        %v2495 = vpop.xlane.xlu0 %2494
        %v2496 = vsel %vm2453, %v2374, -inf
        %2497 = vmax.xlane.f32.xlu0 %v2496
        %v2498 = vpop.xlane.xlu0 %2497
        %v2499 = vsel %vm2453, %v2450, -inf
        %2500 = vmax.xlane.f32.xlu0 %v2499
        %v2501 = vpop.xlane.xlu0 %2500
        %v2502 = vsub.f32 %v1310, %v2456
        %v2503 = vsub.f32 %v1386, %v2459
        %v2504 = vsub.f32 %v1462, %v2462
        %v2505 = vsub.f32 %v1538, %v2465
        %v2506 = vsub.f32 %v1614, %v2468
        %v2507 = vsub.f32 %v1690, %v2471
        %v2508 = vsub.f32 %v1766, %v2474
        %v2509 = vsub.f32 %v1842, %v2477
        %v2510 = vsub.f32 %v1918, %v2480
        %v2511 = vsub.f32 %v1994, %v2483
        %v2512 = vsub.f32 %v2070, %v2486
        %v2513 = vsub.f32 %v2146, %v2489
        %v2514 = vsub.f32 %v2222, %v2492
        %v2515 = vsub.f32 %v2298, %v2495
        %v2516 = vsub.f32 %v2374, %v2498
        %v2517 = vsub.f32 %v2450, %v2501
        %v2518 = vmul.f32 %v2502, 1.442695
        %v2519 = vpow.pop %v2518
        %v2520 = vmul.f32 %v2503, 1.442695
        %v2521 = vpow.pop %v2520
        %v2522 = vmul.f32 %v2504, 1.442695
        %v2523 = vpow.pop %v2522
        %v2524 = vmul.f32 %v2505, 1.442695
        %v2525 = vpow.pop %v2524
        %v2526 = vmul.f32 %v2506, 1.442695
        %v2527 = vpow.pop %v2526
        %v2528 = vmul.f32 %v2507, 1.442695
        %v2529 = vpow.pop %v2528
        %v2530 = vmul.f32 %v2508, 1.442695
        %v2531 = vpow.pop %v2530
        %v2532 = vmul.f32 %v2509, 1.442695
        %v2533 = vpow.pop %v2532
        %v2534 = vmul.f32 %v2510, 1.442695
        %v2535 = vpow.pop %v2534
        %v2536 = vmul.f32 %v2511, 1.442695
        %v2537 = vpow.pop %v2536
        %v2538 = vmul.f32 %v2512, 1.442695
        %v2539 = vpow.pop %v2538
        %v2540 = vmul.f32 %v2513, 1.442695
        %v2541 = vpow.pop %v2540
        %v2542 = vmul.f32 %v2514, 1.442695
        %v2543 = vpow.pop %v2542
        %v2544 = vmul.f32 %v2515, 1.442695
        %v2545 = vpow.pop %v2544
        %v2546 = vmul.f32 %v2516, 1.442695
        %v2547 = vpow.pop %v2546
        %v2548 = vmul.f32 %v2517, 1.442695
        %v2549 = vpow.pop %v2548
        %v2550 = vsel %vm2453, %v2519, 0.0
        %2551 = vadd.xlane.f32.xlu0 %v2550
        %v2552 = vpop.xlane.xlu0 %2551
        %v2553 = vsel %vm2453, %v2521, 0.0
        %2554 = vadd.xlane.f32.xlu0 %v2553
        %v2555 = vpop.xlane.xlu0 %2554
        %v2556 = vsel %vm2453, %v2523, 0.0
        %2557 = vadd.xlane.f32.xlu0 %v2556
        %v2558 = vpop.xlane.xlu0 %2557
        %v2559 = vsel %vm2453, %v2525, 0.0
        %2560 = vadd.xlane.f32.xlu0 %v2559
        %v2561 = vpop.xlane.xlu0 %2560
        %v2562 = vsel %vm2453, %v2527, 0.0
        %2563 = vadd.xlane.f32.xlu0 %v2562
        %v2564 = vpop.xlane.xlu0 %2563
        %v2565 = vsel %vm2453, %v2529, 0.0
        %2566 = vadd.xlane.f32.xlu0 %v2565
        %v2567 = vpop.xlane.xlu0 %2566
        %v2568 = vsel %vm2453, %v2531, 0.0
        %2569 = vadd.xlane.f32.xlu0 %v2568
        %v2570 = vpop.xlane.xlu0 %2569
        %v2571 = vsel %vm2453, %v2533, 0.0
        %2572 = vadd.xlane.f32.xlu0 %v2571
        %v2573 = vpop.xlane.xlu0 %2572
        %v2574 = vsel %vm2453, %v2535, 0.0
        %2575 = vadd.xlane.f32.xlu0 %v2574
        %v2576 = vpop.xlane.xlu0 %2575
        %v2577 = vsel %vm2453, %v2537, 0.0
        %2578 = vadd.xlane.f32.xlu0 %v2577
        %v2579 = vpop.xlane.xlu0 %2578
        %v2580 = vsel %vm2453, %v2539, 0.0
        %2581 = vadd.xlane.f32.xlu0 %v2580
        %v2582 = vpop.xlane.xlu0 %2581
        %v2583 = vsel %vm2453, %v2541, 0.0
        %2584 = vadd.xlane.f32.xlu0 %v2583
        %v2585 = vpop.xlane.xlu0 %2584
        %v2586 = vsel %vm2453, %v2543, 0.0
        %2587 = vadd.xlane.f32.xlu0 %v2586
        %v2588 = vpop.xlane.xlu0 %2587
        %v2589 = vsel %vm2453, %v2545, 0.0
        %2590 = vadd.xlane.f32.xlu0 %v2589
        %v2591 = vpop.xlane.xlu0 %2590
        %v2592 = vsel %vm2453, %v2547, 0.0
        %2593 = vadd.xlane.f32.xlu0 %v2592
        %v2594 = vpop.xlane.xlu0 %2593
        %v2595 = vsel %vm2453, %v2549, 0.0
        %2596 = vadd.xlane.f32.xlu0 %v2595
        %v2597 = vpop.xlane.xlu0 %2596
        %v2598 = vrcp.pop %v2552
        %v2599 = vrcp.pop %v2555
        %v2600 = vrcp.pop %v2558
        %v2601 = vrcp.pop %v2561
        %v2602 = vrcp.pop %v2564
        %v2603 = vrcp.pop %v2567
        %v2604 = vrcp.pop %v2570
        %v2605 = vrcp.pop %v2573
        %v2606 = vrcp.pop %v2576
        %v2607 = vrcp.pop %v2579
        %v2608 = vrcp.pop %v2582
        %v2609 = vrcp.pop %v2585
        %v2610 = vrcp.pop %v2588
        %v2611 = vrcp.pop %v2591
        %v2612 = vrcp.pop %v2594
        %v2613 = vrcp.pop %v2597
        %v2614 = vmul.f32 %v2519, %v2598
        %v2615 = vmul.f32 %v2521, %v2599
        %v2616 = vmul.f32 %v2523, %v2600
        %v2617 = vmul.f32 %v2525, %v2601
        %v2618 = vmul.f32 %v2527, %v2602
        %v2619 = vmul.f32 %v2529, %v2603
        %v2620 = vmul.f32 %v2531, %v2604
        %v2621 = vmul.f32 %v2533, %v2605
        %v2622 = vmul.f32 %v2535, %v2606
        %v2623 = vmul.f32 %v2537, %v2607
        %v2624 = vmul.f32 %v2539, %v2608
        %v2625 = vmul.f32 %v2541, %v2609
        %v2626 = vmul.f32 %v2543, %v2610
        %v2627 = vmul.f32 %v2545, %v2611
        %v2628 = vmul.f32 %v2547, %v2612
        %v2629 = vmul.f32 %v2549, %v2613
        %v2631 = vsel %vm2453, %v2614, 0
        %2633 = vmatprep.subr.mxu0 0.0
        %2634 = vmatpush1.msra.mxu0 0.0
        %2635 = vmatprep.subr.mxu0 0.0
        %2636 = vmatpush1.msra.mxu0 0.0
        %2637 = vmatprep.subr.mxu0 0.0
        %2638 = vmatpush1.msra.mxu0 0.0
        %2639 = vmatprep.subr.mxu0 0.0
        %2640 = vmatpush1.msra.mxu0 0.0
        %2641 = vmatprep.subr.mxu0 0.0
        %2642 = vmatpush1.msra.mxu0 0.0
        %2643 = vmatprep.subr.mxu0 0.0
        %2644 = vmatpush1.msra.mxu0 0.0
        %2645 = vmatprep.subr.mxu0 0.0
        %2646 = vmatpush1.msra.mxu0 0.0
        %2647 = vmatprep.subr.mxu0 0.0
        %2648 = vmatpush1.msra.mxu0 0.0
        %2649 = vmatprep.subr.mxu0 0.0
        %2650 = vmatpush1.msra.mxu0 0.0
        %2651 = vmatprep.subr.mxu0 0.0
        %2652 = vmatpush1.msra.mxu0 0.0
        %2653 = vmatprep.subr.mxu0 0.0
        %2654 = vmatpush1.msra.mxu0 0.0
        %2655 = vmatprep.subr.mxu0 0.0
        %2656 = vmatpush1.msra.mxu0 0.0
        %2657 = vmatprep.subr.mxu0 0.0
        %2658 = vmatpush1.msra.mxu0 0.0
        %2659 = vmatprep.subr.mxu0 0.0
        %2660 = vmatpush1.msra.mxu0 0.0
        %2661 = vmatprep.subr.mxu0 0.0
        %2662 = vmatpush1.msra.mxu0 0.0
        %2663 = vmatprep.subr.mxu0 0.0
        %2664 = vmatpush1.msra.mxu0 %v1174
        %2665 = vmatprep.subr.mxu0 0.0
        %2666 = vmatpush2.msra.mxu0 0.0
        %2667 = vmatprep.subr.mxu0 0.0
        %2668 = vmatpush2.msra.mxu0 0.0
        %2669 = vmatprep.subr.mxu0 0.0
        %2670 = vmatpush2.msra.mxu0 0.0
        %2671 = vmatprep.subr.mxu0 0.0
        %2672 = vmatpush2.msra.mxu0 0.0
        %2673 = vmatprep.subr.mxu0 0.0
        %2674 = vmatpush2.msra.mxu0 0.0
        %2675 = vmatprep.subr.mxu0 0.0
        %2676 = vmatpush2.msra.mxu0 0.0
        %2677 = vmatprep.subr.mxu0 0.0
        %2678 = vmatpush2.msra.mxu0 0.0
        %2679 = vmatprep.subr.mxu0 0.0
        %2680 = vmatpush2.msra.mxu0 0.0
        %2681 = vmatprep.subr.mxu0 0.0
        %2682 = vmatpush2.msra.mxu0 0.0
        %2683 = vmatprep.subr.mxu0 0.0
        %2684 = vmatpush2.msra.mxu0 0.0
        %2685 = vmatprep.subr.mxu0 0.0
        %2686 = vmatpush2.msra.mxu0 0.0
        %2687 = vmatprep.subr.mxu0 0.0
        %2688 = vmatpush2.msra.mxu0 0.0
        %2689 = vmatprep.subr.mxu0 0.0
        %2690 = vmatpush2.msra.mxu0 0.0
        %2691 = vmatprep.subr.mxu0 0.0
        %2692 = vmatpush2.msra.mxu0 0.0
        %2693 = vmatprep.subr.mxu0 0.0
        %2694 = vmatpush2.msra.mxu0 0.0
        %2695 = vmatprep.subr.mxu0 0.0
        %2696 = vmatpush2.msra.mxu0 0.0
        %2697 = vmatprep.mubr.f32.mxu0 0.0
        %2698 = vmatmul.mubr.f32.gmra.mxu0 %v2631
        %v2699 = vpop.f32.mrf.mxu0
        %v2700 = vadd.f32 0.0, %v2699
        %v2701 = vpop.f32.mrf.mxu0
        %2702 = vdwg.mxu0
        %v2704 = vsel %vm2453, %v2615, 0
        %2706 = vmatprep.subr.mxu0 0.0
        %2707 = vmatpush1.msra.mxu0 0.0
        %2708 = vmatprep.subr.mxu0 0.0
        %2709 = vmatpush1.msra.mxu0 0.0
        %2710 = vmatprep.subr.mxu0 0.0
        %2711 = vmatpush1.msra.mxu0 0.0
        %2712 = vmatprep.subr.mxu0 0.0
        %2713 = vmatpush1.msra.mxu0 0.0
        %2714 = vmatprep.subr.mxu0 0.0
        %2715 = vmatpush1.msra.mxu0 0.0
        %2716 = vmatprep.subr.mxu0 0.0
        %2717 = vmatpush1.msra.mxu0 0.0
        %2718 = vmatprep.subr.mxu0 0.0
        %2719 = vmatpush1.msra.mxu0 0.0
        %2720 = vmatprep.subr.mxu0 0.0
        %2721 = vmatpush1.msra.mxu0 0.0
        %2722 = vmatprep.subr.mxu0 0.0
        %2723 = vmatpush1.msra.mxu0 0.0
        %2724 = vmatprep.subr.mxu0 0.0
        %2725 = vmatpush1.msra.mxu0 0.0
        %2726 = vmatprep.subr.mxu0 0.0
        %2727 = vmatpush1.msra.mxu0 0.0
        %2728 = vmatprep.subr.mxu0 0.0
        %2729 = vmatpush1.msra.mxu0 0.0
        %2730 = vmatprep.subr.mxu0 0.0
        %2731 = vmatpush1.msra.mxu0 0.0
        %2732 = vmatprep.subr.mxu0 0.0
        %2733 = vmatpush1.msra.mxu0 0.0
        %2734 = vmatprep.subr.mxu0 0.0
        %2735 = vmatpush1.msra.mxu0 0.0
        %2736 = vmatprep.subr.mxu0 0.0
        %2737 = vmatpush1.msra.mxu0 %v1177
        %2738 = vmatprep.subr.mxu0 0.0
        %2739 = vmatpush2.msra.mxu0 0.0
        %2740 = vmatprep.subr.mxu0 0.0
        %2741 = vmatpush2.msra.mxu0 0.0
        %2742 = vmatprep.subr.mxu0 0.0
        %2743 = vmatpush2.msra.mxu0 0.0
        %2744 = vmatprep.subr.mxu0 0.0
        %2745 = vmatpush2.msra.mxu0 0.0
        %2746 = vmatprep.subr.mxu0 0.0
        %2747 = vmatpush2.msra.mxu0 0.0
        %2748 = vmatprep.subr.mxu0 0.0
        %2749 = vmatpush2.msra.mxu0 0.0
        %2750 = vmatprep.subr.mxu0 0.0
        %2751 = vmatpush2.msra.mxu0 0.0
        %2752 = vmatprep.subr.mxu0 0.0
        %2753 = vmatpush2.msra.mxu0 0.0
        %2754 = vmatprep.subr.mxu0 0.0
        %2755 = vmatpush2.msra.mxu0 0.0
        %2756 = vmatprep.subr.mxu0 0.0
        %2757 = vmatpush2.msra.mxu0 0.0
        %2758 = vmatprep.subr.mxu0 0.0
        %2759 = vmatpush2.msra.mxu0 0.0
        %2760 = vmatprep.subr.mxu0 0.0
        %2761 = vmatpush2.msra.mxu0 0.0
        %2762 = vmatprep.subr.mxu0 0.0
        %2763 = vmatpush2.msra.mxu0 0.0
        %2764 = vmatprep.subr.mxu0 0.0
        %2765 = vmatpush2.msra.mxu0 0.0
        %2766 = vmatprep.subr.mxu0 0.0
        %2767 = vmatpush2.msra.mxu0 0.0
        %2768 = vmatprep.subr.mxu0 0.0
        %2769 = vmatpush2.msra.mxu0 0.0
        %2770 = vmatprep.mubr.f32.mxu0 0.0
        %2771 = vmatmul.mubr.f32.gmra.mxu0 %v2704
        %v2772 = vpop.f32.mrf.mxu0
        %v2773 = vadd.f32 0.0, %v2772
        %v2774 = vpop.f32.mrf.mxu0
        %2775 = vdwg.mxu0
        %v2777 = vsel %vm2453, %v2616, 0
        %2779 = vmatprep.subr.mxu0 0.0
        %2780 = vmatpush1.msra.mxu0 0.0
        %2781 = vmatprep.subr.mxu0 0.0
        %2782 = vmatpush1.msra.mxu0 0.0
        %2783 = vmatprep.subr.mxu0 0.0
        %2784 = vmatpush1.msra.mxu0 0.0
        %2785 = vmatprep.subr.mxu0 0.0
        %2786 = vmatpush1.msra.mxu0 0.0
        %2787 = vmatprep.subr.mxu0 0.0
        %2788 = vmatpush1.msra.mxu0 0.0
        %2789 = vmatprep.subr.mxu0 0.0
        %2790 = vmatpush1.msra.mxu0 0.0
        %2791 = vmatprep.subr.mxu0 0.0
        %2792 = vmatpush1.msra.mxu0 0.0
        %2793 = vmatprep.subr.mxu0 0.0
        %2794 = vmatpush1.msra.mxu0 0.0
        %2795 = vmatprep.subr.mxu0 0.0
        %2796 = vmatpush1.msra.mxu0 0.0
        %2797 = vmatprep.subr.mxu0 0.0
        %2798 = vmatpush1.msra.mxu0 0.0
        %2799 = vmatprep.subr.mxu0 0.0
        %2800 = vmatpush1.msra.mxu0 0.0
        %2801 = vmatprep.subr.mxu0 0.0
        %2802 = vmatpush1.msra.mxu0 0.0
        %2803 = vmatprep.subr.mxu0 0.0
        %2804 = vmatpush1.msra.mxu0 0.0
        %2805 = vmatprep.subr.mxu0 0.0
        %2806 = vmatpush1.msra.mxu0 0.0
        %2807 = vmatprep.subr.mxu0 0.0
        %2808 = vmatpush1.msra.mxu0 0.0
        %2809 = vmatprep.subr.mxu0 0.0
        %2810 = vmatpush1.msra.mxu0 %v1182
        %2811 = vmatprep.subr.mxu0 0.0
        %2812 = vmatpush2.msra.mxu0 0.0
        %2813 = vmatprep.subr.mxu0 0.0
        %2814 = vmatpush2.msra.mxu0 0.0
        %2815 = vmatprep.subr.mxu0 0.0
        %2816 = vmatpush2.msra.mxu0 0.0
        %2817 = vmatprep.subr.mxu0 0.0
        %2818 = vmatpush2.msra.mxu0 0.0
        %2819 = vmatprep.subr.mxu0 0.0
        %2820 = vmatpush2.msra.mxu0 0.0
        %2821 = vmatprep.subr.mxu0 0.0
        %2822 = vmatpush2.msra.mxu0 0.0
        %2823 = vmatprep.subr.mxu0 0.0
        %2824 = vmatpush2.msra.mxu0 0.0
        %2825 = vmatprep.subr.mxu0 0.0
        %2826 = vmatpush2.msra.mxu0 0.0
        %2827 = vmatprep.subr.mxu0 0.0
        %2828 = vmatpush2.msra.mxu0 0.0
        %2829 = vmatprep.subr.mxu0 0.0
        %2830 = vmatpush2.msra.mxu0 0.0
        %2831 = vmatprep.subr.mxu0 0.0
        %2832 = vmatpush2.msra.mxu0 0.0
        %2833 = vmatprep.subr.mxu0 0.0
        %2834 = vmatpush2.msra.mxu0 0.0
        %2835 = vmatprep.subr.mxu0 0.0
        %2836 = vmatpush2.msra.mxu0 0.0
        %2837 = vmatprep.subr.mxu0 0.0
        %2838 = vmatpush2.msra.mxu0 0.0
        %2839 = vmatprep.subr.mxu0 0.0
        %2840 = vmatpush2.msra.mxu0 0.0
        %2841 = vmatprep.subr.mxu0 0.0
        %2842 = vmatpush2.msra.mxu0 0.0
        %2843 = vmatprep.mubr.f32.mxu0 0.0
        %2844 = vmatmul.mubr.f32.gmra.mxu0 %v2777
        %v2845 = vpop.f32.mrf.mxu0
        %v2846 = vadd.f32 0.0, %v2845
        %v2847 = vpop.f32.mrf.mxu0
        %2848 = vdwg.mxu0
        %v2850 = vsel %vm2453, %v2617, 0
        %2852 = vmatprep.subr.mxu0 0.0
        %2853 = vmatpush1.msra.mxu0 0.0
        %2854 = vmatprep.subr.mxu0 0.0
        %2855 = vmatpush1.msra.mxu0 0.0
        %2856 = vmatprep.subr.mxu0 0.0
        %2857 = vmatpush1.msra.mxu0 0.0
        %2858 = vmatprep.subr.mxu0 0.0
        %2859 = vmatpush1.msra.mxu0 0.0
        %2860 = vmatprep.subr.mxu0 0.0
        %2861 = vmatpush1.msra.mxu0 0.0
        %2862 = vmatprep.subr.mxu0 0.0
        %2863 = vmatpush1.msra.mxu0 0.0
        %2864 = vmatprep.subr.mxu0 0.0
        %2865 = vmatpush1.msra.mxu0 0.0
        %2866 = vmatprep.subr.mxu0 0.0
        %2867 = vmatpush1.msra.mxu0 0.0
        %2868 = vmatprep.subr.mxu0 0.0
        %2869 = vmatpush1.msra.mxu0 0.0
        %2870 = vmatprep.subr.mxu0 0.0
        %2871 = vmatpush1.msra.mxu0 0.0
        %2872 = vmatprep.subr.mxu0 0.0
        %2873 = vmatpush1.msra.mxu0 0.0
        %2874 = vmatprep.subr.mxu0 0.0
        %2875 = vmatpush1.msra.mxu0 0.0
        %2876 = vmatprep.subr.mxu0 0.0
        %2877 = vmatpush1.msra.mxu0 0.0
        %2878 = vmatprep.subr.mxu0 0.0
        %2879 = vmatpush1.msra.mxu0 0.0
        %2880 = vmatprep.subr.mxu0 0.0
        %2881 = vmatpush1.msra.mxu0 0.0
        %2882 = vmatprep.subr.mxu0 0.0
        %2883 = vmatpush1.msra.mxu0 %v1185
        %2884 = vmatprep.subr.mxu0 0.0
        %2885 = vmatpush2.msra.mxu0 0.0
        %2886 = vmatprep.subr.mxu0 0.0
        %2887 = vmatpush2.msra.mxu0 0.0
        %2888 = vmatprep.subr.mxu0 0.0
        %2889 = vmatpush2.msra.mxu0 0.0
        %2890 = vmatprep.subr.mxu0 0.0
        %2891 = vmatpush2.msra.mxu0 0.0
        %2892 = vmatprep.subr.mxu0 0.0
        %2893 = vmatpush2.msra.mxu0 0.0
        %2894 = vmatprep.subr.mxu0 0.0
        %2895 = vmatpush2.msra.mxu0 0.0
        %2896 = vmatprep.subr.mxu0 0.0
        %2897 = vmatpush2.msra.mxu0 0.0
        %2898 = vmatprep.subr.mxu0 0.0
        %2899 = vmatpush2.msra.mxu0 0.0
        %2900 = vmatprep.subr.mxu0 0.0
        %2901 = vmatpush2.msra.mxu0 0.0
        %2902 = vmatprep.subr.mxu0 0.0
        %2903 = vmatpush2.msra.mxu0 0.0
        %2904 = vmatprep.subr.mxu0 0.0
        %2905 = vmatpush2.msra.mxu0 0.0
        %2906 = vmatprep.subr.mxu0 0.0
        %2907 = vmatpush2.msra.mxu0 0.0
        %2908 = vmatprep.subr.mxu0 0.0
        %2909 = vmatpush2.msra.mxu0 0.0
        %2910 = vmatprep.subr.mxu0 0.0
        %2911 = vmatpush2.msra.mxu0 0.0
        %2912 = vmatprep.subr.mxu0 0.0
        %2913 = vmatpush2.msra.mxu0 0.0
        %2914 = vmatprep.subr.mxu0 0.0
        %2915 = vmatpush2.msra.mxu0 0.0
        %2916 = vmatprep.mubr.f32.mxu0 0.0
        %2917 = vmatmul.mubr.f32.gmra.mxu0 %v2850
        %v2918 = vpop.f32.mrf.mxu0
        %v2919 = vadd.f32 0.0, %v2918
        %v2920 = vpop.f32.mrf.mxu0
        %2921 = vdwg.mxu0
        %v2923 = vsel %vm2453, %v2618, 0
        %2925 = vmatprep.subr.mxu0 0.0
        %2926 = vmatpush1.msra.mxu0 0.0
        %2927 = vmatprep.subr.mxu0 0.0
        %2928 = vmatpush1.msra.mxu0 0.0
        %2929 = vmatprep.subr.mxu0 0.0
        %2930 = vmatpush1.msra.mxu0 0.0
        %2931 = vmatprep.subr.mxu0 0.0
        %2932 = vmatpush1.msra.mxu0 0.0
        %2933 = vmatprep.subr.mxu0 0.0
        %2934 = vmatpush1.msra.mxu0 0.0
        %2935 = vmatprep.subr.mxu0 0.0
        %2936 = vmatpush1.msra.mxu0 0.0
        %2937 = vmatprep.subr.mxu0 0.0
        %2938 = vmatpush1.msra.mxu0 0.0
        %2939 = vmatprep.subr.mxu0 0.0
        %2940 = vmatpush1.msra.mxu0 0.0
        %2941 = vmatprep.subr.mxu0 0.0
        %2942 = vmatpush1.msra.mxu0 0.0
        %2943 = vmatprep.subr.mxu0 0.0
        %2944 = vmatpush1.msra.mxu0 0.0
        %2945 = vmatprep.subr.mxu0 0.0
        %2946 = vmatpush1.msra.mxu0 0.0
        %2947 = vmatprep.subr.mxu0 0.0
        %2948 = vmatpush1.msra.mxu0 0.0
        %2949 = vmatprep.subr.mxu0 0.0
        %2950 = vmatpush1.msra.mxu0 0.0
        %2951 = vmatprep.subr.mxu0 0.0
        %2952 = vmatpush1.msra.mxu0 0.0
        %2953 = vmatprep.subr.mxu0 0.0
        %2954 = vmatpush1.msra.mxu0 0.0
        %2955 = vmatprep.subr.mxu0 0.0
        %2956 = vmatpush1.msra.mxu0 %v1190
        %2957 = vmatprep.subr.mxu0 0.0
        %2958 = vmatpush2.msra.mxu0 0.0
        %2959 = vmatprep.subr.mxu0 0.0
        %2960 = vmatpush2.msra.mxu0 0.0
        %2961 = vmatprep.subr.mxu0 0.0
        %2962 = vmatpush2.msra.mxu0 0.0
        %2963 = vmatprep.subr.mxu0 0.0
        %2964 = vmatpush2.msra.mxu0 0.0
        %2965 = vmatprep.subr.mxu0 0.0
        %2966 = vmatpush2.msra.mxu0 0.0
        %2967 = vmatprep.subr.mxu0 0.0
        %2968 = vmatpush2.msra.mxu0 0.0
        %2969 = vmatprep.subr.mxu0 0.0
        %2970 = vmatpush2.msra.mxu0 0.0
        %2971 = vmatprep.subr.mxu0 0.0
        %2972 = vmatpush2.msra.mxu0 0.0
        %2973 = vmatprep.subr.mxu0 0.0
        %2974 = vmatpush2.msra.mxu0 0.0
        %2975 = vmatprep.subr.mxu0 0.0
        %2976 = vmatpush2.msra.mxu0 0.0
        %2977 = vmatprep.subr.mxu0 0.0
        %2978 = vmatpush2.msra.mxu0 0.0
        %2979 = vmatprep.subr.mxu0 0.0
        %2980 = vmatpush2.msra.mxu0 0.0
        %2981 = vmatprep.subr.mxu0 0.0
        %2982 = vmatpush2.msra.mxu0 0.0
        %2983 = vmatprep.subr.mxu0 0.0
        %2984 = vmatpush2.msra.mxu0 0.0
        %2985 = vmatprep.subr.mxu0 0.0
        %2986 = vmatpush2.msra.mxu0 0.0
        %2987 = vmatprep.subr.mxu0 0.0
        %2988 = vmatpush2.msra.mxu0 0.0
        %2989 = vmatprep.mubr.f32.mxu0 0.0
        %2990 = vmatmul.mubr.f32.gmra.mxu0 %v2923
        %v2991 = vpop.f32.mrf.mxu0
        %v2992 = vadd.f32 0.0, %v2991
        %v2993 = vpop.f32.mrf.mxu0
        %2994 = vdwg.mxu0
        %v2996 = vsel %vm2453, %v2619, 0
        %2998 = vmatprep.subr.mxu0 0.0
        %2999 = vmatpush1.msra.mxu0 0.0
        %3000 = vmatprep.subr.mxu0 0.0
        %3001 = vmatpush1.msra.mxu0 0.0
        %3002 = vmatprep.subr.mxu0 0.0
        %3003 = vmatpush1.msra.mxu0 0.0
        %3004 = vmatprep.subr.mxu0 0.0
        %3005 = vmatpush1.msra.mxu0 0.0
        %3006 = vmatprep.subr.mxu0 0.0
        %3007 = vmatpush1.msra.mxu0 0.0
        %3008 = vmatprep.subr.mxu0 0.0
        %3009 = vmatpush1.msra.mxu0 0.0
        %3010 = vmatprep.subr.mxu0 0.0
        %3011 = vmatpush1.msra.mxu0 0.0
        %3012 = vmatprep.subr.mxu0 0.0
        %3013 = vmatpush1.msra.mxu0 0.0
        %3014 = vmatprep.subr.mxu0 0.0
        %3015 = vmatpush1.msra.mxu0 0.0
        %3016 = vmatprep.subr.mxu0 0.0
        %3017 = vmatpush1.msra.mxu0 0.0
        %3018 = vmatprep.subr.mxu0 0.0
        %3019 = vmatpush1.msra.mxu0 0.0
        %3020 = vmatprep.subr.mxu0 0.0
        %3021 = vmatpush1.msra.mxu0 0.0
        %3022 = vmatprep.subr.mxu0 0.0
        %3023 = vmatpush1.msra.mxu0 0.0
        %3024 = vmatprep.subr.mxu0 0.0
        %3025 = vmatpush1.msra.mxu0 0.0
        %3026 = vmatprep.subr.mxu0 0.0
        %3027 = vmatpush1.msra.mxu0 0.0
        %3028 = vmatprep.subr.mxu0 0.0
        %3029 = vmatpush1.msra.mxu0 %v1193
        %3030 = vmatprep.subr.mxu0 0.0
        %3031 = vmatpush2.msra.mxu0 0.0
        %3032 = vmatprep.subr.mxu0 0.0
        %3033 = vmatpush2.msra.mxu0 0.0
        %3034 = vmatprep.subr.mxu0 0.0
        %3035 = vmatpush2.msra.mxu0 0.0
        %3036 = vmatprep.subr.mxu0 0.0
        %3037 = vmatpush2.msra.mxu0 0.0
        %3038 = vmatprep.subr.mxu0 0.0
        %3039 = vmatpush2.msra.mxu0 0.0
        %3040 = vmatprep.subr.mxu0 0.0
        %3041 = vmatpush2.msra.mxu0 0.0
        %3042 = vmatprep.subr.mxu0 0.0
        %3043 = vmatpush2.msra.mxu0 0.0
        %3044 = vmatprep.subr.mxu0 0.0
        %3045 = vmatpush2.msra.mxu0 0.0
        %3046 = vmatprep.subr.mxu0 0.0
        %3047 = vmatpush2.msra.mxu0 0.0
        %3048 = vmatprep.subr.mxu0 0.0
        %3049 = vmatpush2.msra.mxu0 0.0
        %3050 = vmatprep.subr.mxu0 0.0
        %3051 = vmatpush2.msra.mxu0 0.0
        %3052 = vmatprep.subr.mxu0 0.0
        %3053 = vmatpush2.msra.mxu0 0.0
        %3054 = vmatprep.subr.mxu0 0.0
        %3055 = vmatpush2.msra.mxu0 0.0
        %3056 = vmatprep.subr.mxu0 0.0
        %3057 = vmatpush2.msra.mxu0 0.0
        %3058 = vmatprep.subr.mxu0 0.0
        %3059 = vmatpush2.msra.mxu0 0.0
        %3060 = vmatprep.subr.mxu0 0.0
        %3061 = vmatpush2.msra.mxu0 0.0
        %3062 = vmatprep.mubr.f32.mxu0 0.0
        %3063 = vmatmul.mubr.f32.gmra.mxu0 %v2996
        %v3064 = vpop.f32.mrf.mxu0
        %v3065 = vadd.f32 0.0, %v3064
        %v3066 = vpop.f32.mrf.mxu0
        %3067 = vdwg.mxu0
        %v3069 = vsel %vm2453, %v2620, 0
        %3071 = vmatprep.subr.mxu0 0.0
        %3072 = vmatpush1.msra.mxu0 0.0
        %3073 = vmatprep.subr.mxu0 0.0
        %3074 = vmatpush1.msra.mxu0 0.0
        %3075 = vmatprep.subr.mxu0 0.0
        %3076 = vmatpush1.msra.mxu0 0.0
        %3077 = vmatprep.subr.mxu0 0.0
        %3078 = vmatpush1.msra.mxu0 0.0
        %3079 = vmatprep.subr.mxu0 0.0
        %3080 = vmatpush1.msra.mxu0 0.0
        %3081 = vmatprep.subr.mxu0 0.0
        %3082 = vmatpush1.msra.mxu0 0.0
        %3083 = vmatprep.subr.mxu0 0.0
        %3084 = vmatpush1.msra.mxu0 0.0
        %3085 = vmatprep.subr.mxu0 0.0
        %3086 = vmatpush1.msra.mxu0 0.0
        %3087 = vmatprep.subr.mxu0 0.0
        %3088 = vmatpush1.msra.mxu0 0.0
        %3089 = vmatprep.subr.mxu0 0.0
        %3090 = vmatpush1.msra.mxu0 0.0
        %3091 = vmatprep.subr.mxu0 0.0
        %3092 = vmatpush1.msra.mxu0 0.0
        %3093 = vmatprep.subr.mxu0 0.0
        %3094 = vmatpush1.msra.mxu0 0.0
        %3095 = vmatprep.subr.mxu0 0.0
        %3096 = vmatpush1.msra.mxu0 0.0
        %3097 = vmatprep.subr.mxu0 0.0
        %3098 = vmatpush1.msra.mxu0 0.0
        %3099 = vmatprep.subr.mxu0 0.0
        %3100 = vmatpush1.msra.mxu0 0.0
        %3101 = vmatprep.subr.mxu0 0.0
        %3102 = vmatpush1.msra.mxu0 %v1198
        %3103 = vmatprep.subr.mxu0 0.0
        %3104 = vmatpush2.msra.mxu0 0.0
        %3105 = vmatprep.subr.mxu0 0.0
        %3106 = vmatpush2.msra.mxu0 0.0
        %3107 = vmatprep.subr.mxu0 0.0
        %3108 = vmatpush2.msra.mxu0 0.0
        %3109 = vmatprep.subr.mxu0 0.0
        %3110 = vmatpush2.msra.mxu0 0.0
        %3111 = vmatprep.subr.mxu0 0.0
        %3112 = vmatpush2.msra.mxu0 0.0
        %3113 = vmatprep.subr.mxu0 0.0
        %3114 = vmatpush2.msra.mxu0 0.0
        %3115 = vmatprep.subr.mxu0 0.0
        %3116 = vmatpush2.msra.mxu0 0.0
        %3117 = vmatprep.subr.mxu0 0.0
        %3118 = vmatpush2.msra.mxu0 0.0
        %3119 = vmatprep.subr.mxu0 0.0
        %3120 = vmatpush2.msra.mxu0 0.0
        %3121 = vmatprep.subr.mxu0 0.0
        %3122 = vmatpush2.msra.mxu0 0.0
        %3123 = vmatprep.subr.mxu0 0.0
        %3124 = vmatpush2.msra.mxu0 0.0
        %3125 = vmatprep.subr.mxu0 0.0
        %3126 = vmatpush2.msra.mxu0 0.0
        %3127 = vmatprep.subr.mxu0 0.0
        %3128 = vmatpush2.msra.mxu0 0.0
        %3129 = vmatprep.subr.mxu0 0.0
        %3130 = vmatpush2.msra.mxu0 0.0
        %3131 = vmatprep.subr.mxu0 0.0
        %3132 = vmatpush2.msra.mxu0 0.0
        %3133 = vmatprep.subr.mxu0 0.0
        %3134 = vmatpush2.msra.mxu0 0.0
        %3135 = vmatprep.mubr.f32.mxu0 0.0
        %3136 = vmatmul.mubr.f32.gmra.mxu0 %v3069
        %v3137 = vpop.f32.mrf.mxu0
        %v3138 = vadd.f32 0.0, %v3137
        %v3139 = vpop.f32.mrf.mxu0
        %3140 = vdwg.mxu0
        %v3142 = vsel %vm2453, %v2621, 0
        %3144 = vmatprep.subr.mxu0 0.0
        %3145 = vmatpush1.msra.mxu0 0.0
        %3146 = vmatprep.subr.mxu0 0.0
        %3147 = vmatpush1.msra.mxu0 0.0
        %3148 = vmatprep.subr.mxu0 0.0
        %3149 = vmatpush1.msra.mxu0 0.0
        %3150 = vmatprep.subr.mxu0 0.0
        %3151 = vmatpush1.msra.mxu0 0.0
        %3152 = vmatprep.subr.mxu0 0.0
        %3153 = vmatpush1.msra.mxu0 0.0
        %3154 = vmatprep.subr.mxu0 0.0
        %3155 = vmatpush1.msra.mxu0 0.0
        %3156 = vmatprep.subr.mxu0 0.0
        %3157 = vmatpush1.msra.mxu0 0.0
        %3158 = vmatprep.subr.mxu0 0.0
        %3159 = vmatpush1.msra.mxu0 0.0
        %3160 = vmatprep.subr.mxu0 0.0
        %3161 = vmatpush1.msra.mxu0 0.0
        %3162 = vmatprep.subr.mxu0 0.0
        %3163 = vmatpush1.msra.mxu0 0.0
        %3164 = vmatprep.subr.mxu0 0.0
        %3165 = vmatpush1.msra.mxu0 0.0
        %3166 = vmatprep.subr.mxu0 0.0
        %3167 = vmatpush1.msra.mxu0 0.0
        %3168 = vmatprep.subr.mxu0 0.0
        %3169 = vmatpush1.msra.mxu0 0.0
        %3170 = vmatprep.subr.mxu0 0.0
        %3171 = vmatpush1.msra.mxu0 0.0
        %3172 = vmatprep.subr.mxu0 0.0
        %3173 = vmatpush1.msra.mxu0 0.0
        %3174 = vmatprep.subr.mxu0 0.0
        %3175 = vmatpush1.msra.mxu0 %v1201
        %3176 = vmatprep.subr.mxu0 0.0
        %3177 = vmatpush2.msra.mxu0 0.0
        %3178 = vmatprep.subr.mxu0 0.0
        %3179 = vmatpush2.msra.mxu0 0.0
        %3180 = vmatprep.subr.mxu0 0.0
        %3181 = vmatpush2.msra.mxu0 0.0
        %3182 = vmatprep.subr.mxu0 0.0
        %3183 = vmatpush2.msra.mxu0 0.0
        %3184 = vmatprep.subr.mxu0 0.0
        %3185 = vmatpush2.msra.mxu0 0.0
        %3186 = vmatprep.subr.mxu0 0.0
        %3187 = vmatpush2.msra.mxu0 0.0
        %3188 = vmatprep.subr.mxu0 0.0
        %3189 = vmatpush2.msra.mxu0 0.0
        %3190 = vmatprep.subr.mxu0 0.0
        %3191 = vmatpush2.msra.mxu0 0.0
        %3192 = vmatprep.subr.mxu0 0.0
        %3193 = vmatpush2.msra.mxu0 0.0
        %3194 = vmatprep.subr.mxu0 0.0
        %3195 = vmatpush2.msra.mxu0 0.0
        %3196 = vmatprep.subr.mxu0 0.0
        %3197 = vmatpush2.msra.mxu0 0.0
        %3198 = vmatprep.subr.mxu0 0.0
        %3199 = vmatpush2.msra.mxu0 0.0
        %3200 = vmatprep.subr.mxu0 0.0
        %3201 = vmatpush2.msra.mxu0 0.0
        %3202 = vmatprep.subr.mxu0 0.0
        %3203 = vmatpush2.msra.mxu0 0.0
        %3204 = vmatprep.subr.mxu0 0.0
        %3205 = vmatpush2.msra.mxu0 0.0
        %3206 = vmatprep.subr.mxu0 0.0
        %3207 = vmatpush2.msra.mxu0 0.0
        %3208 = vmatprep.mubr.f32.mxu0 0.0
        %3209 = vmatmul.mubr.f32.gmra.mxu0 %v3142
        %v3210 = vpop.f32.mrf.mxu0
        %v3211 = vadd.f32 0.0, %v3210
        %v3212 = vpop.f32.mrf.mxu0
        %3213 = vdwg.mxu0
        %v3215 = vsel %vm2453, %v2622, 0
        %3217 = vmatprep.subr.mxu0 0.0
        %3218 = vmatpush1.msra.mxu0 0.0
        %3219 = vmatprep.subr.mxu0 0.0
        %3220 = vmatpush1.msra.mxu0 0.0
        %3221 = vmatprep.subr.mxu0 0.0
        %3222 = vmatpush1.msra.mxu0 0.0
        %3223 = vmatprep.subr.mxu0 0.0
        %3224 = vmatpush1.msra.mxu0 0.0
        %3225 = vmatprep.subr.mxu0 0.0
        %3226 = vmatpush1.msra.mxu0 0.0
        %3227 = vmatprep.subr.mxu0 0.0
        %3228 = vmatpush1.msra.mxu0 0.0
        %3229 = vmatprep.subr.mxu0 0.0
        %3230 = vmatpush1.msra.mxu0 0.0
        %3231 = vmatprep.subr.mxu0 0.0
        %3232 = vmatpush1.msra.mxu0 0.0
        %3233 = vmatprep.subr.mxu0 0.0
        %3234 = vmatpush1.msra.mxu0 0.0
        %3235 = vmatprep.subr.mxu0 0.0
        %3236 = vmatpush1.msra.mxu0 0.0
        %3237 = vmatprep.subr.mxu0 0.0
        %3238 = vmatpush1.msra.mxu0 0.0
        %3239 = vmatprep.subr.mxu0 0.0
        %3240 = vmatpush1.msra.mxu0 0.0
        %3241 = vmatprep.subr.mxu0 0.0
        %3242 = vmatpush1.msra.mxu0 0.0
        %3243 = vmatprep.subr.mxu0 0.0
        %3244 = vmatpush1.msra.mxu0 0.0
        %3245 = vmatprep.subr.mxu0 0.0
        %3246 = vmatpush1.msra.mxu0 0.0
        %3247 = vmatprep.subr.mxu0 0.0
        %3248 = vmatpush1.msra.mxu0 %v1206
        %3249 = vmatprep.subr.mxu0 0.0
        %3250 = vmatpush2.msra.mxu0 0.0
        %3251 = vmatprep.subr.mxu0 0.0
        %3252 = vmatpush2.msra.mxu0 0.0
        %3253 = vmatprep.subr.mxu0 0.0
        %3254 = vmatpush2.msra.mxu0 0.0
        %3255 = vmatprep.subr.mxu0 0.0
        %3256 = vmatpush2.msra.mxu0 0.0
        %3257 = vmatprep.subr.mxu0 0.0
        %3258 = vmatpush2.msra.mxu0 0.0
        %3259 = vmatprep.subr.mxu0 0.0
        %3260 = vmatpush2.msra.mxu0 0.0
        %3261 = vmatprep.subr.mxu0 0.0
        %3262 = vmatpush2.msra.mxu0 0.0
        %3263 = vmatprep.subr.mxu0 0.0
        %3264 = vmatpush2.msra.mxu0 0.0
        %3265 = vmatprep.subr.mxu0 0.0
        %3266 = vmatpush2.msra.mxu0 0.0
        %3267 = vmatprep.subr.mxu0 0.0
        %3268 = vmatpush2.msra.mxu0 0.0
        %3269 = vmatprep.subr.mxu0 0.0
        %3270 = vmatpush2.msra.mxu0 0.0
        %3271 = vmatprep.subr.mxu0 0.0
        %3272 = vmatpush2.msra.mxu0 0.0
        %3273 = vmatprep.subr.mxu0 0.0
        %3274 = vmatpush2.msra.mxu0 0.0
        %3275 = vmatprep.subr.mxu0 0.0
        %3276 = vmatpush2.msra.mxu0 0.0
        %3277 = vmatprep.subr.mxu0 0.0
        %3278 = vmatpush2.msra.mxu0 0.0
        %3279 = vmatprep.subr.mxu0 0.0
        %3280 = vmatpush2.msra.mxu0 0.0
        %3281 = vmatprep.mubr.f32.mxu0 0.0
        %3282 = vmatmul.mubr.f32.gmra.mxu0 %v3215
        %v3283 = vpop.f32.mrf.mxu0
        %v3284 = vadd.f32 0.0, %v3283
        %v3285 = vpop.f32.mrf.mxu0
        %3286 = vdwg.mxu0
        %v3288 = vsel %vm2453, %v2623, 0
        %3290 = vmatprep.subr.mxu0 0.0
        %3291 = vmatpush1.msra.mxu0 0.0
        %3292 = vmatprep.subr.mxu0 0.0
        %3293 = vmatpush1.msra.mxu0 0.0
        %3294 = vmatprep.subr.mxu0 0.0
        %3295 = vmatpush1.msra.mxu0 0.0
        %3296 = vmatprep.subr.mxu0 0.0
        %3297 = vmatpush1.msra.mxu0 0.0
        %3298 = vmatprep.subr.mxu0 0.0
        %3299 = vmatpush1.msra.mxu0 0.0
        %3300 = vmatprep.subr.mxu0 0.0
        %3301 = vmatpush1.msra.mxu0 0.0
        %3302 = vmatprep.subr.mxu0 0.0
        %3303 = vmatpush1.msra.mxu0 0.0
        %3304 = vmatprep.subr.mxu0 0.0
        %3305 = vmatpush1.msra.mxu0 0.0
        %3306 = vmatprep.subr.mxu0 0.0
        %3307 = vmatpush1.msra.mxu0 0.0
        %3308 = vmatprep.subr.mxu0 0.0
        %3309 = vmatpush1.msra.mxu0 0.0
        %3310 = vmatprep.subr.mxu0 0.0
        %3311 = vmatpush1.msra.mxu0 0.0
        %3312 = vmatprep.subr.mxu0 0.0
        %3313 = vmatpush1.msra.mxu0 0.0
        %3314 = vmatprep.subr.mxu0 0.0
        %3315 = vmatpush1.msra.mxu0 0.0
        %3316 = vmatprep.subr.mxu0 0.0
        %3317 = vmatpush1.msra.mxu0 0.0
        %3318 = vmatprep.subr.mxu0 0.0
        %3319 = vmatpush1.msra.mxu0 0.0
        %3320 = vmatprep.subr.mxu0 0.0
        %3321 = vmatpush1.msra.mxu0 %v1209
        %3322 = vmatprep.subr.mxu0 0.0
        %3323 = vmatpush2.msra.mxu0 0.0
        %3324 = vmatprep.subr.mxu0 0.0
        %3325 = vmatpush2.msra.mxu0 0.0
        %3326 = vmatprep.subr.mxu0 0.0
        %3327 = vmatpush2.msra.mxu0 0.0
        %3328 = vmatprep.subr.mxu0 0.0
        %3329 = vmatpush2.msra.mxu0 0.0
        %3330 = vmatprep.subr.mxu0 0.0
        %3331 = vmatpush2.msra.mxu0 0.0
        %3332 = vmatprep.subr.mxu0 0.0
        %3333 = vmatpush2.msra.mxu0 0.0
        %3334 = vmatprep.subr.mxu0 0.0
        %3335 = vmatpush2.msra.mxu0 0.0
        %3336 = vmatprep.subr.mxu0 0.0
        %3337 = vmatpush2.msra.mxu0 0.0
        %3338 = vmatprep.subr.mxu0 0.0
        %3339 = vmatpush2.msra.mxu0 0.0
        %3340 = vmatprep.subr.mxu0 0.0
        %3341 = vmatpush2.msra.mxu0 0.0
        %3342 = vmatprep.subr.mxu0 0.0
        %3343 = vmatpush2.msra.mxu0 0.0
        %3344 = vmatprep.subr.mxu0 0.0
        %3345 = vmatpush2.msra.mxu0 0.0
        %3346 = vmatprep.subr.mxu0 0.0
        %3347 = vmatpush2.msra.mxu0 0.0
        %3348 = vmatprep.subr.mxu0 0.0
        %3349 = vmatpush2.msra.mxu0 0.0
        %3350 = vmatprep.subr.mxu0 0.0
        %3351 = vmatpush2.msra.mxu0 0.0
        %3352 = vmatprep.subr.mxu0 0.0
        %3353 = vmatpush2.msra.mxu0 0.0
        %3354 = vmatprep.mubr.f32.mxu0 0.0
        %3355 = vmatmul.mubr.f32.gmra.mxu0 %v3288
        %v3356 = vpop.f32.mrf.mxu0
        %v3357 = vadd.f32 0.0, %v3356
        %v3358 = vpop.f32.mrf.mxu0
        %3359 = vdwg.mxu0
        %v3361 = vsel %vm2453, %v2624, 0
        %3363 = vmatprep.subr.mxu0 0.0
        %3364 = vmatpush1.msra.mxu0 0.0
        %3365 = vmatprep.subr.mxu0 0.0
        %3366 = vmatpush1.msra.mxu0 0.0
        %3367 = vmatprep.subr.mxu0 0.0
        %3368 = vmatpush1.msra.mxu0 0.0
        %3369 = vmatprep.subr.mxu0 0.0
        %3370 = vmatpush1.msra.mxu0 0.0
        %3371 = vmatprep.subr.mxu0 0.0
        %3372 = vmatpush1.msra.mxu0 0.0
        %3373 = vmatprep.subr.mxu0 0.0
        %3374 = vmatpush1.msra.mxu0 0.0
        %3375 = vmatprep.subr.mxu0 0.0
        %3376 = vmatpush1.msra.mxu0 0.0
        %3377 = vmatprep.subr.mxu0 0.0
        %3378 = vmatpush1.msra.mxu0 0.0
        %3379 = vmatprep.subr.mxu0 0.0
        %3380 = vmatpush1.msra.mxu0 0.0
        %3381 = vmatprep.subr.mxu0 0.0
        %3382 = vmatpush1.msra.mxu0 0.0
        %3383 = vmatprep.subr.mxu0 0.0
        %3384 = vmatpush1.msra.mxu0 0.0
        %3385 = vmatprep.subr.mxu0 0.0
        %3386 = vmatpush1.msra.mxu0 0.0
        %3387 = vmatprep.subr.mxu0 0.0
        %3388 = vmatpush1.msra.mxu0 0.0
        %3389 = vmatprep.subr.mxu0 0.0
        %3390 = vmatpush1.msra.mxu0 0.0
        %3391 = vmatprep.subr.mxu0 0.0
        %3392 = vmatpush1.msra.mxu0 0.0
        %3393 = vmatprep.subr.mxu0 0.0
        %3394 = vmatpush1.msra.mxu0 %v1214
        %3395 = vmatprep.subr.mxu0 0.0
        %3396 = vmatpush2.msra.mxu0 0.0
        %3397 = vmatprep.subr.mxu0 0.0
        %3398 = vmatpush2.msra.mxu0 0.0
        %3399 = vmatprep.subr.mxu0 0.0
        %3400 = vmatpush2.msra.mxu0 0.0
        %3401 = vmatprep.subr.mxu0 0.0
        %3402 = vmatpush2.msra.mxu0 0.0
        %3403 = vmatprep.subr.mxu0 0.0
        %3404 = vmatpush2.msra.mxu0 0.0
        %3405 = vmatprep.subr.mxu0 0.0
        %3406 = vmatpush2.msra.mxu0 0.0
        %3407 = vmatprep.subr.mxu0 0.0
        %3408 = vmatpush2.msra.mxu0 0.0
        %3409 = vmatprep.subr.mxu0 0.0
        %3410 = vmatpush2.msra.mxu0 0.0
        %3411 = vmatprep.subr.mxu0 0.0
        %3412 = vmatpush2.msra.mxu0 0.0
        %3413 = vmatprep.subr.mxu0 0.0
        %3414 = vmatpush2.msra.mxu0 0.0
        %3415 = vmatprep.subr.mxu0 0.0
        %3416 = vmatpush2.msra.mxu0 0.0
        %3417 = vmatprep.subr.mxu0 0.0
        %3418 = vmatpush2.msra.mxu0 0.0
        %3419 = vmatprep.subr.mxu0 0.0
        %3420 = vmatpush2.msra.mxu0 0.0
        %3421 = vmatprep.subr.mxu0 0.0
        %3422 = vmatpush2.msra.mxu0 0.0
        %3423 = vmatprep.subr.mxu0 0.0
        %3424 = vmatpush2.msra.mxu0 0.0
        %3425 = vmatprep.subr.mxu0 0.0
        %3426 = vmatpush2.msra.mxu0 0.0
        %3427 = vmatprep.mubr.f32.mxu0 0.0
        %3428 = vmatmul.mubr.f32.gmra.mxu0 %v3361
        %v3429 = vpop.f32.mrf.mxu0
        %v3430 = vadd.f32 0.0, %v3429
        %v3431 = vpop.f32.mrf.mxu0
        %3432 = vdwg.mxu0
        %v3434 = vsel %vm2453, %v2625, 0
        %3436 = vmatprep.subr.mxu0 0.0
        %3437 = vmatpush1.msra.mxu0 0.0
        %3438 = vmatprep.subr.mxu0 0.0
        %3439 = vmatpush1.msra.mxu0 0.0
        %3440 = vmatprep.subr.mxu0 0.0
        %3441 = vmatpush1.msra.mxu0 0.0
        %3442 = vmatprep.subr.mxu0 0.0
        %3443 = vmatpush1.msra.mxu0 0.0
        %3444 = vmatprep.subr.mxu0 0.0
        %3445 = vmatpush1.msra.mxu0 0.0
        %3446 = vmatprep.subr.mxu0 0.0
        %3447 = vmatpush1.msra.mxu0 0.0
        %3448 = vmatprep.subr.mxu0 0.0
        %3449 = vmatpush1.msra.mxu0 0.0
        %3450 = vmatprep.subr.mxu0 0.0
        %3451 = vmatpush1.msra.mxu0 0.0
        %3452 = vmatprep.subr.mxu0 0.0
        %3453 = vmatpush1.msra.mxu0 0.0
        %3454 = vmatprep.subr.mxu0 0.0
        %3455 = vmatpush1.msra.mxu0 0.0
        %3456 = vmatprep.subr.mxu0 0.0
        %3457 = vmatpush1.msra.mxu0 0.0
        %3458 = vmatprep.subr.mxu0 0.0
        %3459 = vmatpush1.msra.mxu0 0.0
        %3460 = vmatprep.subr.mxu0 0.0
        %3461 = vmatpush1.msra.mxu0 0.0
        %3462 = vmatprep.subr.mxu0 0.0
        %3463 = vmatpush1.msra.mxu0 0.0
        %3464 = vmatprep.subr.mxu0 0.0
        %3465 = vmatpush1.msra.mxu0 0.0
        %3466 = vmatprep.subr.mxu0 0.0
        %3467 = vmatpush1.msra.mxu0 %v1217
        %3468 = vmatprep.subr.mxu0 0.0
        %3469 = vmatpush2.msra.mxu0 0.0
        %3470 = vmatprep.subr.mxu0 0.0
        %3471 = vmatpush2.msra.mxu0 0.0
        %3472 = vmatprep.subr.mxu0 0.0
        %3473 = vmatpush2.msra.mxu0 0.0
        %3474 = vmatprep.subr.mxu0 0.0
        %3475 = vmatpush2.msra.mxu0 0.0
        %3476 = vmatprep.subr.mxu0 0.0
        %3477 = vmatpush2.msra.mxu0 0.0
        %3478 = vmatprep.subr.mxu0 0.0
        %3479 = vmatpush2.msra.mxu0 0.0
        %3480 = vmatprep.subr.mxu0 0.0
        %3481 = vmatpush2.msra.mxu0 0.0
        %3482 = vmatprep.subr.mxu0 0.0
        %3483 = vmatpush2.msra.mxu0 0.0
        %3484 = vmatprep.subr.mxu0 0.0
        %3485 = vmatpush2.msra.mxu0 0.0
        %3486 = vmatprep.subr.mxu0 0.0
        %3487 = vmatpush2.msra.mxu0 0.0
        %3488 = vmatprep.subr.mxu0 0.0
        %3489 = vmatpush2.msra.mxu0 0.0
        %3490 = vmatprep.subr.mxu0 0.0
        %3491 = vmatpush2.msra.mxu0 0.0
        %3492 = vmatprep.subr.mxu0 0.0
        %3493 = vmatpush2.msra.mxu0 0.0
        %3494 = vmatprep.subr.mxu0 0.0
        %3495 = vmatpush2.msra.mxu0 0.0
        %3496 = vmatprep.subr.mxu0 0.0
        %3497 = vmatpush2.msra.mxu0 0.0
        %3498 = vmatprep.subr.mxu0 0.0
        %3499 = vmatpush2.msra.mxu0 0.0
        %3500 = vmatprep.mubr.f32.mxu0 0.0
        %3501 = vmatmul.mubr.f32.gmra.mxu0 %v3434
        %v3502 = vpop.f32.mrf.mxu0
        %v3503 = vadd.f32 0.0, %v3502
        %v3504 = vpop.f32.mrf.mxu0
        %3505 = vdwg.mxu0
        %v3507 = vsel %vm2453, %v2626, 0
        %3509 = vmatprep.subr.mxu0 0.0
        %3510 = vmatpush1.msra.mxu0 0.0
        %3511 = vmatprep.subr.mxu0 0.0
        %3512 = vmatpush1.msra.mxu0 0.0
        %3513 = vmatprep.subr.mxu0 0.0
        %3514 = vmatpush1.msra.mxu0 0.0
        %3515 = vmatprep.subr.mxu0 0.0
        %3516 = vmatpush1.msra.mxu0 0.0
        %3517 = vmatprep.subr.mxu0 0.0
        %3518 = vmatpush1.msra.mxu0 0.0
        %3519 = vmatprep.subr.mxu0 0.0
        %3520 = vmatpush1.msra.mxu0 0.0
        %3521 = vmatprep.subr.mxu0 0.0
        %3522 = vmatpush1.msra.mxu0 0.0
        %3523 = vmatprep.subr.mxu0 0.0
        %3524 = vmatpush1.msra.mxu0 0.0
        %3525 = vmatprep.subr.mxu0 0.0
        %3526 = vmatpush1.msra.mxu0 0.0
        %3527 = vmatprep.subr.mxu0 0.0
        %3528 = vmatpush1.msra.mxu0 0.0
        %3529 = vmatprep.subr.mxu0 0.0
        %3530 = vmatpush1.msra.mxu0 0.0
        %3531 = vmatprep.subr.mxu0 0.0
        %3532 = vmatpush1.msra.mxu0 0.0
        %3533 = vmatprep.subr.mxu0 0.0
        %3534 = vmatpush1.msra.mxu0 0.0
        %3535 = vmatprep.subr.mxu0 0.0
        %3536 = vmatpush1.msra.mxu0 0.0
        %3537 = vmatprep.subr.mxu0 0.0
        %3538 = vmatpush1.msra.mxu0 0.0
        %3539 = vmatprep.subr.mxu0 0.0
        %3540 = vmatpush1.msra.mxu0 %v1222
        %3541 = vmatprep.subr.mxu0 0.0
        %3542 = vmatpush2.msra.mxu0 0.0
        %3543 = vmatprep.subr.mxu0 0.0
        %3544 = vmatpush2.msra.mxu0 0.0
        %3545 = vmatprep.subr.mxu0 0.0
        %3546 = vmatpush2.msra.mxu0 0.0
        %3547 = vmatprep.subr.mxu0 0.0
        %3548 = vmatpush2.msra.mxu0 0.0
        %3549 = vmatprep.subr.mxu0 0.0
        %3550 = vmatpush2.msra.mxu0 0.0
        %3551 = vmatprep.subr.mxu0 0.0
        %3552 = vmatpush2.msra.mxu0 0.0
        %3553 = vmatprep.subr.mxu0 0.0
        %3554 = vmatpush2.msra.mxu0 0.0
        %3555 = vmatprep.subr.mxu0 0.0
        %3556 = vmatpush2.msra.mxu0 0.0
        %3557 = vmatprep.subr.mxu0 0.0
        %3558 = vmatpush2.msra.mxu0 0.0
        %3559 = vmatprep.subr.mxu0 0.0
        %3560 = vmatpush2.msra.mxu0 0.0
        %3561 = vmatprep.subr.mxu0 0.0
        %3562 = vmatpush2.msra.mxu0 0.0
        %3563 = vmatprep.subr.mxu0 0.0
        %3564 = vmatpush2.msra.mxu0 0.0
        %3565 = vmatprep.subr.mxu0 0.0
        %3566 = vmatpush2.msra.mxu0 0.0
        %3567 = vmatprep.subr.mxu0 0.0
        %3568 = vmatpush2.msra.mxu0 0.0
        %3569 = vmatprep.subr.mxu0 0.0
        %3570 = vmatpush2.msra.mxu0 0.0
        %3571 = vmatprep.subr.mxu0 0.0
        %3572 = vmatpush2.msra.mxu0 0.0
        %3573 = vmatprep.mubr.f32.mxu0 0.0
        %3574 = vmatmul.mubr.f32.gmra.mxu0 %v3507
        %v3575 = vpop.f32.mrf.mxu0
        %v3576 = vadd.f32 0.0, %v3575
        %v3577 = vpop.f32.mrf.mxu0
        %3578 = vdwg.mxu0
        %v3580 = vsel %vm2453, %v2627, 0
        %3582 = vmatprep.subr.mxu0 0.0
        %3583 = vmatpush1.msra.mxu0 0.0
        %3584 = vmatprep.subr.mxu0 0.0
        %3585 = vmatpush1.msra.mxu0 0.0
        %3586 = vmatprep.subr.mxu0 0.0
        %3587 = vmatpush1.msra.mxu0 0.0
        %3588 = vmatprep.subr.mxu0 0.0
        %3589 = vmatpush1.msra.mxu0 0.0
        %3590 = vmatprep.subr.mxu0 0.0
        %3591 = vmatpush1.msra.mxu0 0.0
        %3592 = vmatprep.subr.mxu0 0.0
        %3593 = vmatpush1.msra.mxu0 0.0
        %3594 = vmatprep.subr.mxu0 0.0
        %3595 = vmatpush1.msra.mxu0 0.0
        %3596 = vmatprep.subr.mxu0 0.0
        %3597 = vmatpush1.msra.mxu0 0.0
        %3598 = vmatprep.subr.mxu0 0.0
        %3599 = vmatpush1.msra.mxu0 0.0
        %3600 = vmatprep.subr.mxu0 0.0
        %3601 = vmatpush1.msra.mxu0 0.0
        %3602 = vmatprep.subr.mxu0 0.0
        %3603 = vmatpush1.msra.mxu0 0.0
        %3604 = vmatprep.subr.mxu0 0.0
        %3605 = vmatpush1.msra.mxu0 0.0
        %3606 = vmatprep.subr.mxu0 0.0
        %3607 = vmatpush1.msra.mxu0 0.0
        %3608 = vmatprep.subr.mxu0 0.0
        %3609 = vmatpush1.msra.mxu0 0.0
        %3610 = vmatprep.subr.mxu0 0.0
        %3611 = vmatpush1.msra.mxu0 0.0
        %3612 = vmatprep.subr.mxu0 0.0
        %3613 = vmatpush1.msra.mxu0 %v1225
        %3614 = vmatprep.subr.mxu0 0.0
        %3615 = vmatpush2.msra.mxu0 0.0
        %3616 = vmatprep.subr.mxu0 0.0
        %3617 = vmatpush2.msra.mxu0 0.0
        %3618 = vmatprep.subr.mxu0 0.0
        %3619 = vmatpush2.msra.mxu0 0.0
        %3620 = vmatprep.subr.mxu0 0.0
        %3621 = vmatpush2.msra.mxu0 0.0
        %3622 = vmatprep.subr.mxu0 0.0
        %3623 = vmatpush2.msra.mxu0 0.0
        %3624 = vmatprep.subr.mxu0 0.0
        %3625 = vmatpush2.msra.mxu0 0.0
        %3626 = vmatprep.subr.mxu0 0.0
        %3627 = vmatpush2.msra.mxu0 0.0
        %3628 = vmatprep.subr.mxu0 0.0
        %3629 = vmatpush2.msra.mxu0 0.0
        %3630 = vmatprep.subr.mxu0 0.0
        %3631 = vmatpush2.msra.mxu0 0.0
        %3632 = vmatprep.subr.mxu0 0.0
        %3633 = vmatpush2.msra.mxu0 0.0
        %3634 = vmatprep.subr.mxu0 0.0
        %3635 = vmatpush2.msra.mxu0 0.0
        %3636 = vmatprep.subr.mxu0 0.0
        %3637 = vmatpush2.msra.mxu0 0.0
        %3638 = vmatprep.subr.mxu0 0.0
        %3639 = vmatpush2.msra.mxu0 0.0
        %3640 = vmatprep.subr.mxu0 0.0
        %3641 = vmatpush2.msra.mxu0 0.0
        %3642 = vmatprep.subr.mxu0 0.0
        %3643 = vmatpush2.msra.mxu0 0.0
        %3644 = vmatprep.subr.mxu0 0.0
        %3645 = vmatpush2.msra.mxu0 0.0
        %3646 = vmatprep.mubr.f32.mxu0 0.0
        %3647 = vmatmul.mubr.f32.gmra.mxu0 %v3580
        %v3648 = vpop.f32.mrf.mxu0
        %v3649 = vadd.f32 0.0, %v3648
        %v3650 = vpop.f32.mrf.mxu0
        %3651 = vdwg.mxu0
        %v3653 = vsel %vm2453, %v2628, 0
        %3655 = vmatprep.subr.mxu0 0.0
        %3656 = vmatpush1.msra.mxu0 0.0
        %3657 = vmatprep.subr.mxu0 0.0
        %3658 = vmatpush1.msra.mxu0 0.0
        %3659 = vmatprep.subr.mxu0 0.0
        %3660 = vmatpush1.msra.mxu0 0.0
        %3661 = vmatprep.subr.mxu0 0.0
        %3662 = vmatpush1.msra.mxu0 0.0
        %3663 = vmatprep.subr.mxu0 0.0
        %3664 = vmatpush1.msra.mxu0 0.0
        %3665 = vmatprep.subr.mxu0 0.0
        %3666 = vmatpush1.msra.mxu0 0.0
        %3667 = vmatprep.subr.mxu0 0.0
        %3668 = vmatpush1.msra.mxu0 0.0
        %3669 = vmatprep.subr.mxu0 0.0
        %3670 = vmatpush1.msra.mxu0 0.0
        %3671 = vmatprep.subr.mxu0 0.0
        %3672 = vmatpush1.msra.mxu0 0.0
        %3673 = vmatprep.subr.mxu0 0.0
        %3674 = vmatpush1.msra.mxu0 0.0
        %3675 = vmatprep.subr.mxu0 0.0
        %3676 = vmatpush1.msra.mxu0 0.0
        %3677 = vmatprep.subr.mxu0 0.0
        %3678 = vmatpush1.msra.mxu0 0.0
        %3679 = vmatprep.subr.mxu0 0.0
        %3680 = vmatpush1.msra.mxu0 0.0
        %3681 = vmatprep.subr.mxu0 0.0
        %3682 = vmatpush1.msra.mxu0 0.0
        %3683 = vmatprep.subr.mxu0 0.0
        %3684 = vmatpush1.msra.mxu0 0.0
        %3685 = vmatprep.subr.mxu0 0.0
        %3686 = vmatpush1.msra.mxu0 %v1230
        %3687 = vmatprep.subr.mxu0 0.0
        %3688 = vmatpush2.msra.mxu0 0.0
        %3689 = vmatprep.subr.mxu0 0.0
        %3690 = vmatpush2.msra.mxu0 0.0
        %3691 = vmatprep.subr.mxu0 0.0
        %3692 = vmatpush2.msra.mxu0 0.0
        %3693 = vmatprep.subr.mxu0 0.0
        %3694 = vmatpush2.msra.mxu0 0.0
        %3695 = vmatprep.subr.mxu0 0.0
        %3696 = vmatpush2.msra.mxu0 0.0
        %3697 = vmatprep.subr.mxu0 0.0
        %3698 = vmatpush2.msra.mxu0 0.0
        %3699 = vmatprep.subr.mxu0 0.0
        %3700 = vmatpush2.msra.mxu0 0.0
        %3701 = vmatprep.subr.mxu0 0.0
        %3702 = vmatpush2.msra.mxu0 0.0
        %3703 = vmatprep.subr.mxu0 0.0
        %3704 = vmatpush2.msra.mxu0 0.0
        %3705 = vmatprep.subr.mxu0 0.0
        %3706 = vmatpush2.msra.mxu0 0.0
        %3707 = vmatprep.subr.mxu0 0.0
        %3708 = vmatpush2.msra.mxu0 0.0
        %3709 = vmatprep.subr.mxu0 0.0
        %3710 = vmatpush2.msra.mxu0 0.0
        %3711 = vmatprep.subr.mxu0 0.0
        %3712 = vmatpush2.msra.mxu0 0.0
        %3713 = vmatprep.subr.mxu0 0.0
        %3714 = vmatpush2.msra.mxu0 0.0
        %3715 = vmatprep.subr.mxu0 0.0
        %3716 = vmatpush2.msra.mxu0 0.0
        %3717 = vmatprep.subr.mxu0 0.0
        %3718 = vmatpush2.msra.mxu0 0.0
        %3719 = vmatprep.mubr.f32.mxu0 0.0
        %3720 = vmatmul.mubr.f32.gmra.mxu0 %v3653
        %v3721 = vpop.f32.mrf.mxu0
        %v3722 = vadd.f32 0.0, %v3721
        %v3723 = vpop.f32.mrf.mxu0
        %3724 = vdwg.mxu0
        %v3726 = vsel %vm2453, %v2629, 0
        %3728 = vmatprep.subr.mxu0 0.0
        %3729 = vmatpush1.msra.mxu0 0.0
        %3730 = vmatprep.subr.mxu0 0.0
        %3731 = vmatpush1.msra.mxu0 0.0
        %3732 = vmatprep.subr.mxu0 0.0
        %3733 = vmatpush1.msra.mxu0 0.0
        %3734 = vmatprep.subr.mxu0 0.0
        %3735 = vmatpush1.msra.mxu0 0.0
        %3736 = vmatprep.subr.mxu0 0.0
        %3737 = vmatpush1.msra.mxu0 0.0
        %3738 = vmatprep.subr.mxu0 0.0
        %3739 = vmatpush1.msra.mxu0 0.0
        %3740 = vmatprep.subr.mxu0 0.0
        %3741 = vmatpush1.msra.mxu0 0.0
        %3742 = vmatprep.subr.mxu0 0.0
        %3743 = vmatpush1.msra.mxu0 0.0
        %3744 = vmatprep.subr.mxu0 0.0
        %3745 = vmatpush1.msra.mxu0 0.0
        %3746 = vmatprep.subr.mxu0 0.0
        %3747 = vmatpush1.msra.mxu0 0.0
        %3748 = vmatprep.subr.mxu0 0.0
        %3749 = vmatpush1.msra.mxu0 0.0
        %3750 = vmatprep.subr.mxu0 0.0
        %3751 = vmatpush1.msra.mxu0 0.0
        %3752 = vmatprep.subr.mxu0 0.0
        %3753 = vmatpush1.msra.mxu0 0.0
        %3754 = vmatprep.subr.mxu0 0.0
        %3755 = vmatpush1.msra.mxu0 0.0
        %3756 = vmatprep.subr.mxu0 0.0
        %3757 = vmatpush1.msra.mxu0 0.0
        %3758 = vmatprep.subr.mxu0 0.0
        %3759 = vmatpush1.msra.mxu0 %v1233
        %3760 = vmatprep.subr.mxu0 0.0
        %3761 = vmatpush2.msra.mxu0 0.0
        %3762 = vmatprep.subr.mxu0 0.0
        %3763 = vmatpush2.msra.mxu0 0.0
        %3764 = vmatprep.subr.mxu0 0.0
        %3765 = vmatpush2.msra.mxu0 0.0
        %3766 = vmatprep.subr.mxu0 0.0
        %3767 = vmatpush2.msra.mxu0 0.0
        %3768 = vmatprep.subr.mxu0 0.0
        %3769 = vmatpush2.msra.mxu0 0.0
        %3770 = vmatprep.subr.mxu0 0.0
        %3771 = vmatpush2.msra.mxu0 0.0
        %3772 = vmatprep.subr.mxu0 0.0
        %3773 = vmatpush2.msra.mxu0 0.0
        %3774 = vmatprep.subr.mxu0 0.0
        %3775 = vmatpush2.msra.mxu0 0.0
        %3776 = vmatprep.subr.mxu0 0.0
        %3777 = vmatpush2.msra.mxu0 0.0
        %3778 = vmatprep.subr.mxu0 0.0
        %3779 = vmatpush2.msra.mxu0 0.0
        %3780 = vmatprep.subr.mxu0 0.0
        %3781 = vmatpush2.msra.mxu0 0.0
        %3782 = vmatprep.subr.mxu0 0.0
        %3783 = vmatpush2.msra.mxu0 0.0
        %3784 = vmatprep.subr.mxu0 0.0
        %3785 = vmatpush2.msra.mxu0 0.0
        %3786 = vmatprep.subr.mxu0 0.0
        %3787 = vmatpush2.msra.mxu0 0.0
        %3788 = vmatprep.subr.mxu0 0.0
        %3789 = vmatpush2.msra.mxu0 0.0
        %3790 = vmatprep.subr.mxu0 0.0
        %3791 = vmatpush2.msra.mxu0 0.0
        %3792 = vmatprep.mubr.f32.mxu0 0.0
        %3793 = vmatmul.mubr.f32.gmra.mxu0 %v3726
        %v3794 = vpop.f32.mrf.mxu0
        %v3795 = vadd.f32 0.0, %v3794
        %v3796 = vpop.f32.mrf.mxu0
        %3797 = vdwg.mxu0
        %3798 = vrot.lane.b32.xlu0 %v1061, 64
        %v3799 = vpop.permute.xlu0 %3798
        %3800 = vrot.lane.b32.xlu0 %v1063, 64
        %v3801 = vpop.permute.xlu0 %3800
        %v3802 = vsel %vm1236, %v3799, 0
        %v3804 = vsel %vm1236, %v3801, 0
        %3806 = vmatprep.subr.mxu0 0.0
        %3807 = vmatpush1.xpose.msra.mxu0 0.0
        %3808 = vmatprep.subr.mxu0 0.0
        %3809 = vmatpush1.xpose.msra.mxu0 0.0
        %3810 = vmatprep.subr.mxu0 0.0
        %3811 = vmatpush1.xpose.msra.mxu0 0.0
        %3812 = vmatprep.subr.mxu0 0.0
        %3813 = vmatpush1.xpose.msra.mxu0 0.0
        %3814 = vmatprep.subr.mxu0 0.0
        %3815 = vmatpush1.xpose.msra.mxu0 0.0
        %3816 = vmatprep.subr.mxu0 0.0
        %3817 = vmatpush1.xpose.msra.mxu0 0.0
        %3818 = vmatprep.subr.mxu0 0.0
        %3819 = vmatpush1.xpose.msra.mxu0 0.0
        %3820 = vmatprep.subr.mxu0 0.0
        %3821 = vmatpush1.xpose.msra.mxu0 0.0
        %3822 = vmatprep.subr.mxu0 0.0
        %3823 = vmatpush1.xpose.msra.mxu0 0.0
        %3824 = vmatprep.subr.mxu0 0.0
        %3825 = vmatpush1.xpose.msra.mxu0 0.0
        %3826 = vmatprep.subr.mxu0 0.0
        %3827 = vmatpush1.xpose.msra.mxu0 0.0
        %3828 = vmatprep.subr.mxu0 0.0
        %3829 = vmatpush1.xpose.msra.mxu0 0.0
        %3830 = vmatprep.subr.mxu0 0.0
        %3831 = vmatpush1.xpose.msra.mxu0 0.0
        %3832 = vmatprep.subr.mxu0 0.0
        %3833 = vmatpush1.xpose.msra.mxu0 0.0
        %3834 = vmatprep.subr.mxu0 0.0
        %3835 = vmatpush1.xpose.msra.mxu0 0.0
        %3836 = vmatprep.subr.mxu0 0.0
        %3837 = vmatpush1.xpose.msra.mxu0 %v3804
        %3838 = vmatprep.subr.mxu0 0.0
        %3839 = vmatpush2.xpose.msra.mxu0 0.0
        %3840 = vmatprep.subr.mxu0 0.0
        %3841 = vmatpush2.xpose.msra.mxu0 0.0
        %3842 = vmatprep.subr.mxu0 0.0
        %3843 = vmatpush2.xpose.msra.mxu0 0.0
        %3844 = vmatprep.subr.mxu0 0.0
        %3845 = vmatpush2.xpose.msra.mxu0 0.0
        %3846 = vmatprep.subr.mxu0 0.0
        %3847 = vmatpush2.xpose.msra.mxu0 0.0
        %3848 = vmatprep.subr.mxu0 0.0
        %3849 = vmatpush2.xpose.msra.mxu0 0.0
        %3850 = vmatprep.subr.mxu0 0.0
        %3851 = vmatpush2.xpose.msra.mxu0 0.0
        %3852 = vmatprep.subr.mxu0 0.0
        %3853 = vmatpush2.xpose.msra.mxu0 0.0
        %3854 = vmatprep.subr.mxu0 0.0
        %3855 = vmatpush2.xpose.msra.mxu0 0.0
        %3856 = vmatprep.subr.mxu0 0.0
        %3857 = vmatpush2.xpose.msra.mxu0 0.0
        %3858 = vmatprep.subr.mxu0 0.0
        %3859 = vmatpush2.xpose.msra.mxu0 0.0
        %3860 = vmatprep.subr.mxu0 0.0
        %3861 = vmatpush2.xpose.msra.mxu0 0.0
        %3862 = vmatprep.subr.mxu0 0.0
        %3863 = vmatpush2.xpose.msra.mxu0 0.0
        %3864 = vmatprep.subr.mxu0 0.0
        %3865 = vmatpush2.xpose.msra.mxu0 0.0
        %3866 = vmatprep.subr.mxu0 0.0
        %3867 = vmatpush2.xpose.msra.mxu0 0.0
        %3868 = vmatprep.subr.mxu0 0.0
        %3869 = vmatpush2.xpose.msra.mxu0 0.0
        %3870 = vmatprep.mubr.f32.mxu0 0.0
        %3871 = vmatmul.mubr.f32.gmra.mxu0 %v3802
        %v3872 = vpop.f32.mrf.mxu0
        %v3873 = vadd.f32 0.0, %v3872
        %v3874 = vpop.f32.mrf.mxu0
        %3875 = vdwg.mxu0
        %3876 = vrot.lane.b32.xlu0 %v1065, 64
        %v3877 = vpop.permute.xlu0 %3876
        %3878 = vrot.lane.b32.xlu0 %v1067, 64
        %v3879 = vpop.permute.xlu0 %3878
        %v3880 = vsel %vm1236, %v3877, 0
        %v3882 = vsel %vm1236, %v3879, 0
        %3884 = vmatprep.subr.mxu0 0.0
        %3885 = vmatpush1.xpose.msra.mxu0 0.0
        %3886 = vmatprep.subr.mxu0 0.0
        %3887 = vmatpush1.xpose.msra.mxu0 0.0
        %3888 = vmatprep.subr.mxu0 0.0
        %3889 = vmatpush1.xpose.msra.mxu0 0.0
        %3890 = vmatprep.subr.mxu0 0.0
        %3891 = vmatpush1.xpose.msra.mxu0 0.0
        %3892 = vmatprep.subr.mxu0 0.0
        %3893 = vmatpush1.xpose.msra.mxu0 0.0
        %3894 = vmatprep.subr.mxu0 0.0
        %3895 = vmatpush1.xpose.msra.mxu0 0.0
        %3896 = vmatprep.subr.mxu0 0.0
        %3897 = vmatpush1.xpose.msra.mxu0 0.0
        %3898 = vmatprep.subr.mxu0 0.0
        %3899 = vmatpush1.xpose.msra.mxu0 0.0
        %3900 = vmatprep.subr.mxu0 0.0
        %3901 = vmatpush1.xpose.msra.mxu0 0.0
        %3902 = vmatprep.subr.mxu0 0.0
        %3903 = vmatpush1.xpose.msra.mxu0 0.0
        %3904 = vmatprep.subr.mxu0 0.0
        %3905 = vmatpush1.xpose.msra.mxu0 0.0
        %3906 = vmatprep.subr.mxu0 0.0
        %3907 = vmatpush1.xpose.msra.mxu0 0.0
        %3908 = vmatprep.subr.mxu0 0.0
        %3909 = vmatpush1.xpose.msra.mxu0 0.0
        %3910 = vmatprep.subr.mxu0 0.0
        %3911 = vmatpush1.xpose.msra.mxu0 0.0
        %3912 = vmatprep.subr.mxu0 0.0
        %3913 = vmatpush1.xpose.msra.mxu0 0.0
        %3914 = vmatprep.subr.mxu0 0.0
        %3915 = vmatpush1.xpose.msra.mxu0 %v3882
        %3916 = vmatprep.subr.mxu0 0.0
        %3917 = vmatpush2.xpose.msra.mxu0 0.0
        %3918 = vmatprep.subr.mxu0 0.0
        %3919 = vmatpush2.xpose.msra.mxu0 0.0
        %3920 = vmatprep.subr.mxu0 0.0
        %3921 = vmatpush2.xpose.msra.mxu0 0.0
        %3922 = vmatprep.subr.mxu0 0.0
        %3923 = vmatpush2.xpose.msra.mxu0 0.0
        %3924 = vmatprep.subr.mxu0 0.0
        %3925 = vmatpush2.xpose.msra.mxu0 0.0
        %3926 = vmatprep.subr.mxu0 0.0
        %3927 = vmatpush2.xpose.msra.mxu0 0.0
        %3928 = vmatprep.subr.mxu0 0.0
        %3929 = vmatpush2.xpose.msra.mxu0 0.0
        %3930 = vmatprep.subr.mxu0 0.0
        %3931 = vmatpush2.xpose.msra.mxu0 0.0
        %3932 = vmatprep.subr.mxu0 0.0
        %3933 = vmatpush2.xpose.msra.mxu0 0.0
        %3934 = vmatprep.subr.mxu0 0.0
        %3935 = vmatpush2.xpose.msra.mxu0 0.0
        %3936 = vmatprep.subr.mxu0 0.0
        %3937 = vmatpush2.xpose.msra.mxu0 0.0
        %3938 = vmatprep.subr.mxu0 0.0
        %3939 = vmatpush2.xpose.msra.mxu0 0.0
        %3940 = vmatprep.subr.mxu0 0.0
        %3941 = vmatpush2.xpose.msra.mxu0 0.0
        %3942 = vmatprep.subr.mxu0 0.0
        %3943 = vmatpush2.xpose.msra.mxu0 0.0
        %3944 = vmatprep.subr.mxu0 0.0
        %3945 = vmatpush2.xpose.msra.mxu0 0.0
        %3946 = vmatprep.subr.mxu0 0.0
        %3947 = vmatpush2.xpose.msra.mxu0 0.0
        %3948 = vmatprep.mubr.f32.mxu0 0.0
        %3949 = vmatmul.mubr.f32.gmra.mxu0 %v3880
        %v3950 = vpop.f32.mrf.mxu0
        %v3951 = vadd.f32 0.0, %v3950
        %v3952 = vpop.f32.mrf.mxu0
        %3953 = vdwg.mxu0
        %3954 = vrot.lane.b32.xlu0 %v1071, 64
        %v3955 = vpop.permute.xlu0 %3954
        %3956 = vrot.lane.b32.xlu0 %v1073, 64
        %v3957 = vpop.permute.xlu0 %3956
        %v3958 = vsel %vm1236, %v3955, 0
        %v3960 = vsel %vm1236, %v3957, 0
        %3962 = vmatprep.subr.mxu0 0.0
        %3963 = vmatpush1.xpose.msra.mxu0 0.0
        %3964 = vmatprep.subr.mxu0 0.0
        %3965 = vmatpush1.xpose.msra.mxu0 0.0
        %3966 = vmatprep.subr.mxu0 0.0
        %3967 = vmatpush1.xpose.msra.mxu0 0.0
        %3968 = vmatprep.subr.mxu0 0.0
        %3969 = vmatpush1.xpose.msra.mxu0 0.0
        %3970 = vmatprep.subr.mxu0 0.0
        %3971 = vmatpush1.xpose.msra.mxu0 0.0
        %3972 = vmatprep.subr.mxu0 0.0
        %3973 = vmatpush1.xpose.msra.mxu0 0.0
        %3974 = vmatprep.subr.mxu0 0.0
        %3975 = vmatpush1.xpose.msra.mxu0 0.0
        %3976 = vmatprep.subr.mxu0 0.0
        %3977 = vmatpush1.xpose.msra.mxu0 0.0
        %3978 = vmatprep.subr.mxu0 0.0
        %3979 = vmatpush1.xpose.msra.mxu0 0.0
        %3980 = vmatprep.subr.mxu0 0.0
        %3981 = vmatpush1.xpose.msra.mxu0 0.0
        %3982 = vmatprep.subr.mxu0 0.0
        %3983 = vmatpush1.xpose.msra.mxu0 0.0
        %3984 = vmatprep.subr.mxu0 0.0
        %3985 = vmatpush1.xpose.msra.mxu0 0.0
        %3986 = vmatprep.subr.mxu0 0.0
        %3987 = vmatpush1.xpose.msra.mxu0 0.0
        %3988 = vmatprep.subr.mxu0 0.0
        %3989 = vmatpush1.xpose.msra.mxu0 0.0
        %3990 = vmatprep.subr.mxu0 0.0
        %3991 = vmatpush1.xpose.msra.mxu0 0.0
        %3992 = vmatprep.subr.mxu0 0.0
        %3993 = vmatpush1.xpose.msra.mxu0 %v3960
        %3994 = vmatprep.subr.mxu0 0.0
        %3995 = vmatpush2.xpose.msra.mxu0 0.0
        %3996 = vmatprep.subr.mxu0 0.0
        %3997 = vmatpush2.xpose.msra.mxu0 0.0
        %3998 = vmatprep.subr.mxu0 0.0
        %3999 = vmatpush2.xpose.msra.mxu0 0.0
        %4000 = vmatprep.subr.mxu0 0.0
        %4001 = vmatpush2.xpose.msra.mxu0 0.0
        %4002 = vmatprep.subr.mxu0 0.0
        %4003 = vmatpush2.xpose.msra.mxu0 0.0
        %4004 = vmatprep.subr.mxu0 0.0
        %4005 = vmatpush2.xpose.msra.mxu0 0.0
        %4006 = vmatprep.subr.mxu0 0.0
        %4007 = vmatpush2.xpose.msra.mxu0 0.0
        %4008 = vmatprep.subr.mxu0 0.0
        %4009 = vmatpush2.xpose.msra.mxu0 0.0
        %4010 = vmatprep.subr.mxu0 0.0
        %4011 = vmatpush2.xpose.msra.mxu0 0.0
        %4012 = vmatprep.subr.mxu0 0.0
        %4013 = vmatpush2.xpose.msra.mxu0 0.0
        %4014 = vmatprep.subr.mxu0 0.0
        %4015 = vmatpush2.xpose.msra.mxu0 0.0
        %4016 = vmatprep.subr.mxu0 0.0
        %4017 = vmatpush2.xpose.msra.mxu0 0.0
        %4018 = vmatprep.subr.mxu0 0.0
        %4019 = vmatpush2.xpose.msra.mxu0 0.0
        %4020 = vmatprep.subr.mxu0 0.0
        %4021 = vmatpush2.xpose.msra.mxu0 0.0
        %4022 = vmatprep.subr.mxu0 0.0
        %4023 = vmatpush2.xpose.msra.mxu0 0.0
        %4024 = vmatprep.subr.mxu0 0.0
        %4025 = vmatpush2.xpose.msra.mxu0 0.0
        %4026 = vmatprep.mubr.f32.mxu0 0.0
        %4027 = vmatmul.mubr.f32.gmra.mxu0 %v3958
        %v4028 = vpop.f32.mrf.mxu0
        %v4029 = vadd.f32 0.0, %v4028
        %v4030 = vpop.f32.mrf.mxu0
        %4031 = vdwg.mxu0
        %4032 = vrot.lane.b32.xlu0 %v1075, 64
        %v4033 = vpop.permute.xlu0 %4032
        %4034 = vrot.lane.b32.xlu0 %v1077, 64
        %v4035 = vpop.permute.xlu0 %4034
        %v4036 = vsel %vm1236, %v4033, 0
        %v4038 = vsel %vm1236, %v4035, 0
        %4040 = vmatprep.subr.mxu0 0.0
        %4041 = vmatpush1.xpose.msra.mxu0 0.0
        %4042 = vmatprep.subr.mxu0 0.0
        %4043 = vmatpush1.xpose.msra.mxu0 0.0
        %4044 = vmatprep.subr.mxu0 0.0
        %4045 = vmatpush1.xpose.msra.mxu0 0.0
        %4046 = vmatprep.subr.mxu0 0.0
        %4047 = vmatpush1.xpose.msra.mxu0 0.0
        %4048 = vmatprep.subr.mxu0 0.0
        %4049 = vmatpush1.xpose.msra.mxu0 0.0
        %4050 = vmatprep.subr.mxu0 0.0
        %4051 = vmatpush1.xpose.msra.mxu0 0.0
        %4052 = vmatprep.subr.mxu0 0.0
        %4053 = vmatpush1.xpose.msra.mxu0 0.0
        %4054 = vmatprep.subr.mxu0 0.0
        %4055 = vmatpush1.xpose.msra.mxu0 0.0
        %4056 = vmatprep.subr.mxu0 0.0
        %4057 = vmatpush1.xpose.msra.mxu0 0.0
        %4058 = vmatprep.subr.mxu0 0.0
        %4059 = vmatpush1.xpose.msra.mxu0 0.0
        %4060 = vmatprep.subr.mxu0 0.0
        %4061 = vmatpush1.xpose.msra.mxu0 0.0
        %4062 = vmatprep.subr.mxu0 0.0
        %4063 = vmatpush1.xpose.msra.mxu0 0.0
        %4064 = vmatprep.subr.mxu0 0.0
        %4065 = vmatpush1.xpose.msra.mxu0 0.0
        %4066 = vmatprep.subr.mxu0 0.0
        %4067 = vmatpush1.xpose.msra.mxu0 0.0
        %4068 = vmatprep.subr.mxu0 0.0
        %4069 = vmatpush1.xpose.msra.mxu0 0.0
        %4070 = vmatprep.subr.mxu0 0.0
        %4071 = vmatpush1.xpose.msra.mxu0 %v4038
        %4072 = vmatprep.subr.mxu0 0.0
        %4073 = vmatpush2.xpose.msra.mxu0 0.0
        %4074 = vmatprep.subr.mxu0 0.0
        %4075 = vmatpush2.xpose.msra.mxu0 0.0
        %4076 = vmatprep.subr.mxu0 0.0
        %4077 = vmatpush2.xpose.msra.mxu0 0.0
        %4078 = vmatprep.subr.mxu0 0.0
        %4079 = vmatpush2.xpose.msra.mxu0 0.0
        %4080 = vmatprep.subr.mxu0 0.0
        %4081 = vmatpush2.xpose.msra.mxu0 0.0
        %4082 = vmatprep.subr.mxu0 0.0
        %4083 = vmatpush2.xpose.msra.mxu0 0.0
        %4084 = vmatprep.subr.mxu0 0.0
        %4085 = vmatpush2.xpose.msra.mxu0 0.0
        %4086 = vmatprep.subr.mxu0 0.0
        %4087 = vmatpush2.xpose.msra.mxu0 0.0
        %4088 = vmatprep.subr.mxu0 0.0
        %4089 = vmatpush2.xpose.msra.mxu0 0.0
        %4090 = vmatprep.subr.mxu0 0.0
        %4091 = vmatpush2.xpose.msra.mxu0 0.0
        %4092 = vmatprep.subr.mxu0 0.0
        %4093 = vmatpush2.xpose.msra.mxu0 0.0
        %4094 = vmatprep.subr.mxu0 0.0
        %4095 = vmatpush2.xpose.msra.mxu0 0.0
        %4096 = vmatprep.subr.mxu0 0.0
        %4097 = vmatpush2.xpose.msra.mxu0 0.0
        %4098 = vmatprep.subr.mxu0 0.0
        %4099 = vmatpush2.xpose.msra.mxu0 0.0
        %4100 = vmatprep.subr.mxu0 0.0
        %4101 = vmatpush2.xpose.msra.mxu0 0.0
        %4102 = vmatprep.subr.mxu0 0.0
        %4103 = vmatpush2.xpose.msra.mxu0 0.0
        %4104 = vmatprep.mubr.f32.mxu0 0.0
        %4105 = vmatmul.mubr.f32.gmra.mxu0 %v4036
        %v4106 = vpop.f32.mrf.mxu0
        %v4107 = vadd.f32 0.0, %v4106
        %v4108 = vpop.f32.mrf.mxu0
        %4109 = vdwg.mxu0
        %4110 = vrot.lane.b32.xlu0 %v1081, 64
        %v4111 = vpop.permute.xlu0 %4110
        %4112 = vrot.lane.b32.xlu0 %v1083, 64
        %v4113 = vpop.permute.xlu0 %4112
        %v4114 = vsel %vm1236, %v4111, 0
        %v4116 = vsel %vm1236, %v4113, 0
        %4118 = vmatprep.subr.mxu0 0.0
        %4119 = vmatpush1.xpose.msra.mxu0 0.0
        %4120 = vmatprep.subr.mxu0 0.0
        %4121 = vmatpush1.xpose.msra.mxu0 0.0
        %4122 = vmatprep.subr.mxu0 0.0
        %4123 = vmatpush1.xpose.msra.mxu0 0.0
        %4124 = vmatprep.subr.mxu0 0.0
        %4125 = vmatpush1.xpose.msra.mxu0 0.0
        %4126 = vmatprep.subr.mxu0 0.0
        %4127 = vmatpush1.xpose.msra.mxu0 0.0
        %4128 = vmatprep.subr.mxu0 0.0
        %4129 = vmatpush1.xpose.msra.mxu0 0.0
        %4130 = vmatprep.subr.mxu0 0.0
        %4131 = vmatpush1.xpose.msra.mxu0 0.0
        %4132 = vmatprep.subr.mxu0 0.0
        %4133 = vmatpush1.xpose.msra.mxu0 0.0
        %4134 = vmatprep.subr.mxu0 0.0
        %4135 = vmatpush1.xpose.msra.mxu0 0.0
        %4136 = vmatprep.subr.mxu0 0.0
        %4137 = vmatpush1.xpose.msra.mxu0 0.0
        %4138 = vmatprep.subr.mxu0 0.0
        %4139 = vmatpush1.xpose.msra.mxu0 0.0
        %4140 = vmatprep.subr.mxu0 0.0
        %4141 = vmatpush1.xpose.msra.mxu0 0.0
        %4142 = vmatprep.subr.mxu0 0.0
        %4143 = vmatpush1.xpose.msra.mxu0 0.0
        %4144 = vmatprep.subr.mxu0 0.0
        %4145 = vmatpush1.xpose.msra.mxu0 0.0
        %4146 = vmatprep.subr.mxu0 0.0
        %4147 = vmatpush1.xpose.msra.mxu0 0.0
        %4148 = vmatprep.subr.mxu0 0.0
        %4149 = vmatpush1.xpose.msra.mxu0 %v4116
        %4150 = vmatprep.subr.mxu0 0.0
        %4151 = vmatpush2.xpose.msra.mxu0 0.0
        %4152 = vmatprep.subr.mxu0 0.0
        %4153 = vmatpush2.xpose.msra.mxu0 0.0
        %4154 = vmatprep.subr.mxu0 0.0
        %4155 = vmatpush2.xpose.msra.mxu0 0.0
        %4156 = vmatprep.subr.mxu0 0.0
        %4157 = vmatpush2.xpose.msra.mxu0 0.0
        %4158 = vmatprep.subr.mxu0 0.0
        %4159 = vmatpush2.xpose.msra.mxu0 0.0
        %4160 = vmatprep.subr.mxu0 0.0
        %4161 = vmatpush2.xpose.msra.mxu0 0.0
        %4162 = vmatprep.subr.mxu0 0.0
        %4163 = vmatpush2.xpose.msra.mxu0 0.0
        %4164 = vmatprep.subr.mxu0 0.0
        %4165 = vmatpush2.xpose.msra.mxu0 0.0
        %4166 = vmatprep.subr.mxu0 0.0
        %4167 = vmatpush2.xpose.msra.mxu0 0.0
        %4168 = vmatprep.subr.mxu0 0.0
        %4169 = vmatpush2.xpose.msra.mxu0 0.0
        %4170 = vmatprep.subr.mxu0 0.0
        %4171 = vmatpush2.xpose.msra.mxu0 0.0
        %4172 = vmatprep.subr.mxu0 0.0
        %4173 = vmatpush2.xpose.msra.mxu0 0.0
        %4174 = vmatprep.subr.mxu0 0.0
        %4175 = vmatpush2.xpose.msra.mxu0 0.0
        %4176 = vmatprep.subr.mxu0 0.0
        %4177 = vmatpush2.xpose.msra.mxu0 0.0
        %4178 = vmatprep.subr.mxu0 0.0
        %4179 = vmatpush2.xpose.msra.mxu0 0.0
        %4180 = vmatprep.subr.mxu0 0.0
        %4181 = vmatpush2.xpose.msra.mxu0 0.0
        %4182 = vmatprep.mubr.f32.mxu0 0.0
        %4183 = vmatmul.mubr.f32.gmra.mxu0 %v4114
        %v4184 = vpop.f32.mrf.mxu0
        %v4185 = vadd.f32 0.0, %v4184
        %v4186 = vpop.f32.mrf.mxu0
        %4187 = vdwg.mxu0
        %4188 = vrot.lane.b32.xlu0 %v1085, 64
        %v4189 = vpop.permute.xlu0 %4188
        %4190 = vrot.lane.b32.xlu0 %v1087, 64
        %v4191 = vpop.permute.xlu0 %4190
        %v4192 = vsel %vm1236, %v4189, 0
        %v4194 = vsel %vm1236, %v4191, 0
        %4196 = vmatprep.subr.mxu0 0.0
        %4197 = vmatpush1.xpose.msra.mxu0 0.0
        %4198 = vmatprep.subr.mxu0 0.0
        %4199 = vmatpush1.xpose.msra.mxu0 0.0
        %4200 = vmatprep.subr.mxu0 0.0
        %4201 = vmatpush1.xpose.msra.mxu0 0.0
        %4202 = vmatprep.subr.mxu0 0.0
        %4203 = vmatpush1.xpose.msra.mxu0 0.0
        %4204 = vmatprep.subr.mxu0 0.0
        %4205 = vmatpush1.xpose.msra.mxu0 0.0
        %4206 = vmatprep.subr.mxu0 0.0
        %4207 = vmatpush1.xpose.msra.mxu0 0.0
        %4208 = vmatprep.subr.mxu0 0.0
        %4209 = vmatpush1.xpose.msra.mxu0 0.0
        %4210 = vmatprep.subr.mxu0 0.0
        %4211 = vmatpush1.xpose.msra.mxu0 0.0
        %4212 = vmatprep.subr.mxu0 0.0
        %4213 = vmatpush1.xpose.msra.mxu0 0.0
        %4214 = vmatprep.subr.mxu0 0.0
        %4215 = vmatpush1.xpose.msra.mxu0 0.0
        %4216 = vmatprep.subr.mxu0 0.0
        %4217 = vmatpush1.xpose.msra.mxu0 0.0
        %4218 = vmatprep.subr.mxu0 0.0
        %4219 = vmatpush1.xpose.msra.mxu0 0.0
        %4220 = vmatprep.subr.mxu0 0.0
        %4221 = vmatpush1.xpose.msra.mxu0 0.0
        %4222 = vmatprep.subr.mxu0 0.0
        %4223 = vmatpush1.xpose.msra.mxu0 0.0
        %4224 = vmatprep.subr.mxu0 0.0
        %4225 = vmatpush1.xpose.msra.mxu0 0.0
        %4226 = vmatprep.subr.mxu0 0.0
        %4227 = vmatpush1.xpose.msra.mxu0 %v4194
        %4228 = vmatprep.subr.mxu0 0.0
        %4229 = vmatpush2.xpose.msra.mxu0 0.0
        %4230 = vmatprep.subr.mxu0 0.0
        %4231 = vmatpush2.xpose.msra.mxu0 0.0
        %4232 = vmatprep.subr.mxu0 0.0
        %4233 = vmatpush2.xpose.msra.mxu0 0.0
        %4234 = vmatprep.subr.mxu0 0.0
        %4235 = vmatpush2.xpose.msra.mxu0 0.0
        %4236 = vmatprep.subr.mxu0 0.0
        %4237 = vmatpush2.xpose.msra.mxu0 0.0
        %4238 = vmatprep.subr.mxu0 0.0
        %4239 = vmatpush2.xpose.msra.mxu0 0.0
        %4240 = vmatprep.subr.mxu0 0.0
        %4241 = vmatpush2.xpose.msra.mxu0 0.0
        %4242 = vmatprep.subr.mxu0 0.0
        %4243 = vmatpush2.xpose.msra.mxu0 0.0
        %4244 = vmatprep.subr.mxu0 0.0
        %4245 = vmatpush2.xpose.msra.mxu0 0.0
        %4246 = vmatprep.subr.mxu0 0.0
        %4247 = vmatpush2.xpose.msra.mxu0 0.0
        %4248 = vmatprep.subr.mxu0 0.0
        %4249 = vmatpush2.xpose.msra.mxu0 0.0
        %4250 = vmatprep.subr.mxu0 0.0
        %4251 = vmatpush2.xpose.msra.mxu0 0.0
        %4252 = vmatprep.subr.mxu0 0.0
        %4253 = vmatpush2.xpose.msra.mxu0 0.0
        %4254 = vmatprep.subr.mxu0 0.0
        %4255 = vmatpush2.xpose.msra.mxu0 0.0
        %4256 = vmatprep.subr.mxu0 0.0
        %4257 = vmatpush2.xpose.msra.mxu0 0.0
        %4258 = vmatprep.subr.mxu0 0.0
        %4259 = vmatpush2.xpose.msra.mxu0 0.0
        %4260 = vmatprep.mubr.f32.mxu0 0.0
        %4261 = vmatmul.mubr.f32.gmra.mxu0 %v4192
        %v4262 = vpop.f32.mrf.mxu0
        %v4263 = vadd.f32 0.0, %v4262
        %v4264 = vpop.f32.mrf.mxu0
        %4265 = vdwg.mxu0
        %4266 = vrot.lane.b32.xlu0 %v1091, 64
        %v4267 = vpop.permute.xlu0 %4266
        %4268 = vrot.lane.b32.xlu0 %v1093, 64
        %v4269 = vpop.permute.xlu0 %4268
        %v4270 = vsel %vm1236, %v4267, 0
        %v4272 = vsel %vm1236, %v4269, 0
        %4274 = vmatprep.subr.mxu0 0.0
        %4275 = vmatpush1.xpose.msra.mxu0 0.0
        %4276 = vmatprep.subr.mxu0 0.0
        %4277 = vmatpush1.xpose.msra.mxu0 0.0
        %4278 = vmatprep.subr.mxu0 0.0
        %4279 = vmatpush1.xpose.msra.mxu0 0.0
        %4280 = vmatprep.subr.mxu0 0.0
        %4281 = vmatpush1.xpose.msra.mxu0 0.0
        %4282 = vmatprep.subr.mxu0 0.0
        %4283 = vmatpush1.xpose.msra.mxu0 0.0
        %4284 = vmatprep.subr.mxu0 0.0
        %4285 = vmatpush1.xpose.msra.mxu0 0.0
        %4286 = vmatprep.subr.mxu0 0.0
        %4287 = vmatpush1.xpose.msra.mxu0 0.0
        %4288 = vmatprep.subr.mxu0 0.0
        %4289 = vmatpush1.xpose.msra.mxu0 0.0
        %4290 = vmatprep.subr.mxu0 0.0
        %4291 = vmatpush1.xpose.msra.mxu0 0.0
        %4292 = vmatprep.subr.mxu0 0.0
        %4293 = vmatpush1.xpose.msra.mxu0 0.0
        %4294 = vmatprep.subr.mxu0 0.0
        %4295 = vmatpush1.xpose.msra.mxu0 0.0
        %4296 = vmatprep.subr.mxu0 0.0
        %4297 = vmatpush1.xpose.msra.mxu0 0.0
        %4298 = vmatprep.subr.mxu0 0.0
        %4299 = vmatpush1.xpose.msra.mxu0 0.0
        %4300 = vmatprep.subr.mxu0 0.0
        %4301 = vmatpush1.xpose.msra.mxu0 0.0
        %4302 = vmatprep.subr.mxu0 0.0
        %4303 = vmatpush1.xpose.msra.mxu0 0.0
        %4304 = vmatprep.subr.mxu0 0.0
        %4305 = vmatpush1.xpose.msra.mxu0 %v4272
        %4306 = vmatprep.subr.mxu0 0.0
        %4307 = vmatpush2.xpose.msra.mxu0 0.0
        %4308 = vmatprep.subr.mxu0 0.0
        %4309 = vmatpush2.xpose.msra.mxu0 0.0
        %4310 = vmatprep.subr.mxu0 0.0
        %4311 = vmatpush2.xpose.msra.mxu0 0.0
        %4312 = vmatprep.subr.mxu0 0.0
        %4313 = vmatpush2.xpose.msra.mxu0 0.0
        %4314 = vmatprep.subr.mxu0 0.0
        %4315 = vmatpush2.xpose.msra.mxu0 0.0
        %4316 = vmatprep.subr.mxu0 0.0
        %4317 = vmatpush2.xpose.msra.mxu0 0.0
        %4318 = vmatprep.subr.mxu0 0.0
        %4319 = vmatpush2.xpose.msra.mxu0 0.0
        %4320 = vmatprep.subr.mxu0 0.0
        %4321 = vmatpush2.xpose.msra.mxu0 0.0
        %4322 = vmatprep.subr.mxu0 0.0
        %4323 = vmatpush2.xpose.msra.mxu0 0.0
        %4324 = vmatprep.subr.mxu0 0.0
        %4325 = vmatpush2.xpose.msra.mxu0 0.0
        %4326 = vmatprep.subr.mxu0 0.0
        %4327 = vmatpush2.xpose.msra.mxu0 0.0
        %4328 = vmatprep.subr.mxu0 0.0
        %4329 = vmatpush2.xpose.msra.mxu0 0.0
        %4330 = vmatprep.subr.mxu0 0.0
        %4331 = vmatpush2.xpose.msra.mxu0 0.0
        %4332 = vmatprep.subr.mxu0 0.0
        %4333 = vmatpush2.xpose.msra.mxu0 0.0
        %4334 = vmatprep.subr.mxu0 0.0
        %4335 = vmatpush2.xpose.msra.mxu0 0.0
        %4336 = vmatprep.subr.mxu0 0.0
        %4337 = vmatpush2.xpose.msra.mxu0 0.0
        %4338 = vmatprep.mubr.f32.mxu0 0.0
        %4339 = vmatmul.mubr.f32.gmra.mxu0 %v4270
        %v4340 = vpop.f32.mrf.mxu0
        %v4341 = vadd.f32 0.0, %v4340
        %v4342 = vpop.f32.mrf.mxu0
        %4343 = vdwg.mxu0
        %4344 = vrot.lane.b32.xlu0 %v1095, 64
        %v4345 = vpop.permute.xlu0 %4344
        %4346 = vrot.lane.b32.xlu0 %v1097, 64
        %v4347 = vpop.permute.xlu0 %4346
        %v4348 = vsel %vm1236, %v4345, 0
        %v4350 = vsel %vm1236, %v4347, 0
        %4352 = vmatprep.subr.mxu0 0.0
        %4353 = vmatpush1.xpose.msra.mxu0 0.0
        %4354 = vmatprep.subr.mxu0 0.0
        %4355 = vmatpush1.xpose.msra.mxu0 0.0
        %4356 = vmatprep.subr.mxu0 0.0
        %4357 = vmatpush1.xpose.msra.mxu0 0.0
        %4358 = vmatprep.subr.mxu0 0.0
        %4359 = vmatpush1.xpose.msra.mxu0 0.0
        %4360 = vmatprep.subr.mxu0 0.0
        %4361 = vmatpush1.xpose.msra.mxu0 0.0
        %4362 = vmatprep.subr.mxu0 0.0
        %4363 = vmatpush1.xpose.msra.mxu0 0.0
        %4364 = vmatprep.subr.mxu0 0.0
        %4365 = vmatpush1.xpose.msra.mxu0 0.0
        %4366 = vmatprep.subr.mxu0 0.0
        %4367 = vmatpush1.xpose.msra.mxu0 0.0
        %4368 = vmatprep.subr.mxu0 0.0
        %4369 = vmatpush1.xpose.msra.mxu0 0.0
        %4370 = vmatprep.subr.mxu0 0.0
        %4371 = vmatpush1.xpose.msra.mxu0 0.0
        %4372 = vmatprep.subr.mxu0 0.0
        %4373 = vmatpush1.xpose.msra.mxu0 0.0
        %4374 = vmatprep.subr.mxu0 0.0
        %4375 = vmatpush1.xpose.msra.mxu0 0.0
        %4376 = vmatprep.subr.mxu0 0.0
        %4377 = vmatpush1.xpose.msra.mxu0 0.0
        %4378 = vmatprep.subr.mxu0 0.0
        %4379 = vmatpush1.xpose.msra.mxu0 0.0
        %4380 = vmatprep.subr.mxu0 0.0
        %4381 = vmatpush1.xpose.msra.mxu0 0.0
        %4382 = vmatprep.subr.mxu0 0.0
        %4383 = vmatpush1.xpose.msra.mxu0 %v4350
        %4384 = vmatprep.subr.mxu0 0.0
        %4385 = vmatpush2.xpose.msra.mxu0 0.0
        %4386 = vmatprep.subr.mxu0 0.0
        %4387 = vmatpush2.xpose.msra.mxu0 0.0
        %4388 = vmatprep.subr.mxu0 0.0
        %4389 = vmatpush2.xpose.msra.mxu0 0.0
        %4390 = vmatprep.subr.mxu0 0.0
        %4391 = vmatpush2.xpose.msra.mxu0 0.0
        %4392 = vmatprep.subr.mxu0 0.0
        %4393 = vmatpush2.xpose.msra.mxu0 0.0
        %4394 = vmatprep.subr.mxu0 0.0
        %4395 = vmatpush2.xpose.msra.mxu0 0.0
        %4396 = vmatprep.subr.mxu0 0.0
        %4397 = vmatpush2.xpose.msra.mxu0 0.0
        %4398 = vmatprep.subr.mxu0 0.0
        %4399 = vmatpush2.xpose.msra.mxu0 0.0
        %4400 = vmatprep.subr.mxu0 0.0
        %4401 = vmatpush2.xpose.msra.mxu0 0.0
        %4402 = vmatprep.subr.mxu0 0.0
        %4403 = vmatpush2.xpose.msra.mxu0 0.0
        %4404 = vmatprep.subr.mxu0 0.0
        %4405 = vmatpush2.xpose.msra.mxu0 0.0
        %4406 = vmatprep.subr.mxu0 0.0
        %4407 = vmatpush2.xpose.msra.mxu0 0.0
        %4408 = vmatprep.subr.mxu0 0.0
        %4409 = vmatpush2.xpose.msra.mxu0 0.0
        %4410 = vmatprep.subr.mxu0 0.0
        %4411 = vmatpush2.xpose.msra.mxu0 0.0
        %4412 = vmatprep.subr.mxu0 0.0
        %4413 = vmatpush2.xpose.msra.mxu0 0.0
        %4414 = vmatprep.subr.mxu0 0.0
        %4415 = vmatpush2.xpose.msra.mxu0 0.0
        %4416 = vmatprep.mubr.f32.mxu0 0.0
        %4417 = vmatmul.mubr.f32.gmra.mxu0 %v4348
        %v4418 = vpop.f32.mrf.mxu0
        %v4419 = vadd.f32 0.0, %v4418
        %v4420 = vpop.f32.mrf.mxu0
        %4421 = vdwg.mxu0
        %4422 = vrot.lane.b32.xlu0 %v1101, 64
        %v4423 = vpop.permute.xlu0 %4422
        %4424 = vrot.lane.b32.xlu0 %v1103, 64
        %v4425 = vpop.permute.xlu0 %4424
        %v4426 = vsel %vm1236, %v4423, 0
        %v4428 = vsel %vm1236, %v4425, 0
        %4430 = vmatprep.subr.mxu0 0.0
        %4431 = vmatpush1.xpose.msra.mxu0 0.0
        %4432 = vmatprep.subr.mxu0 0.0
        %4433 = vmatpush1.xpose.msra.mxu0 0.0
        %4434 = vmatprep.subr.mxu0 0.0
        %4435 = vmatpush1.xpose.msra.mxu0 0.0
        %4436 = vmatprep.subr.mxu0 0.0
        %4437 = vmatpush1.xpose.msra.mxu0 0.0
        %4438 = vmatprep.subr.mxu0 0.0
        %4439 = vmatpush1.xpose.msra.mxu0 0.0
        %4440 = vmatprep.subr.mxu0 0.0
        %4441 = vmatpush1.xpose.msra.mxu0 0.0
        %4442 = vmatprep.subr.mxu0 0.0
        %4443 = vmatpush1.xpose.msra.mxu0 0.0
        %4444 = vmatprep.subr.mxu0 0.0
        %4445 = vmatpush1.xpose.msra.mxu0 0.0
        %4446 = vmatprep.subr.mxu0 0.0
        %4447 = vmatpush1.xpose.msra.mxu0 0.0
        %4448 = vmatprep.subr.mxu0 0.0
        %4449 = vmatpush1.xpose.msra.mxu0 0.0
        %4450 = vmatprep.subr.mxu0 0.0
        %4451 = vmatpush1.xpose.msra.mxu0 0.0
        %4452 = vmatprep.subr.mxu0 0.0
        %4453 = vmatpush1.xpose.msra.mxu0 0.0
        %4454 = vmatprep.subr.mxu0 0.0
        %4455 = vmatpush1.xpose.msra.mxu0 0.0
        %4456 = vmatprep.subr.mxu0 0.0
        %4457 = vmatpush1.xpose.msra.mxu0 0.0
        %4458 = vmatprep.subr.mxu0 0.0
        %4459 = vmatpush1.xpose.msra.mxu0 0.0
        %4460 = vmatprep.subr.mxu0 0.0
        %4461 = vmatpush1.xpose.msra.mxu0 %v4428
        %4462 = vmatprep.subr.mxu0 0.0
        %4463 = vmatpush2.xpose.msra.mxu0 0.0
        %4464 = vmatprep.subr.mxu0 0.0
        %4465 = vmatpush2.xpose.msra.mxu0 0.0
        %4466 = vmatprep.subr.mxu0 0.0
        %4467 = vmatpush2.xpose.msra.mxu0 0.0
        %4468 = vmatprep.subr.mxu0 0.0
        %4469 = vmatpush2.xpose.msra.mxu0 0.0
        %4470 = vmatprep.subr.mxu0 0.0
        %4471 = vmatpush2.xpose.msra.mxu0 0.0
        %4472 = vmatprep.subr.mxu0 0.0
        %4473 = vmatpush2.xpose.msra.mxu0 0.0
        %4474 = vmatprep.subr.mxu0 0.0
        %4475 = vmatpush2.xpose.msra.mxu0 0.0
        %4476 = vmatprep.subr.mxu0 0.0
        %4477 = vmatpush2.xpose.msra.mxu0 0.0
        %4478 = vmatprep.subr.mxu0 0.0
        %4479 = vmatpush2.xpose.msra.mxu0 0.0
        %4480 = vmatprep.subr.mxu0 0.0
        %4481 = vmatpush2.xpose.msra.mxu0 0.0
        %4482 = vmatprep.subr.mxu0 0.0
        %4483 = vmatpush2.xpose.msra.mxu0 0.0
        %4484 = vmatprep.subr.mxu0 0.0
        %4485 = vmatpush2.xpose.msra.mxu0 0.0
        %4486 = vmatprep.subr.mxu0 0.0
        %4487 = vmatpush2.xpose.msra.mxu0 0.0
        %4488 = vmatprep.subr.mxu0 0.0
        %4489 = vmatpush2.xpose.msra.mxu0 0.0
        %4490 = vmatprep.subr.mxu0 0.0
        %4491 = vmatpush2.xpose.msra.mxu0 0.0
        %4492 = vmatprep.subr.mxu0 0.0
        %4493 = vmatpush2.xpose.msra.mxu0 0.0
        %4494 = vmatprep.mubr.f32.mxu0 0.0
        %4495 = vmatmul.mubr.f32.gmra.mxu0 %v4426
        %v4496 = vpop.f32.mrf.mxu0
        %v4497 = vadd.f32 0.0, %v4496
        %v4498 = vpop.f32.mrf.mxu0
        %4499 = vdwg.mxu0
        %4500 = vrot.lane.b32.xlu0 %v1105, 64
        %v4501 = vpop.permute.xlu0 %4500
        %4502 = vrot.lane.b32.xlu0 %v1107, 64
        %v4503 = vpop.permute.xlu0 %4502
        %v4504 = vsel %vm1236, %v4501, 0
        %v4506 = vsel %vm1236, %v4503, 0
        %4508 = vmatprep.subr.mxu0 0.0
        %4509 = vmatpush1.xpose.msra.mxu0 0.0
        %4510 = vmatprep.subr.mxu0 0.0
        %4511 = vmatpush1.xpose.msra.mxu0 0.0
        %4512 = vmatprep.subr.mxu0 0.0
        %4513 = vmatpush1.xpose.msra.mxu0 0.0
        %4514 = vmatprep.subr.mxu0 0.0
        %4515 = vmatpush1.xpose.msra.mxu0 0.0
        %4516 = vmatprep.subr.mxu0 0.0
        %4517 = vmatpush1.xpose.msra.mxu0 0.0
        %4518 = vmatprep.subr.mxu0 0.0
        %4519 = vmatpush1.xpose.msra.mxu0 0.0
        %4520 = vmatprep.subr.mxu0 0.0
        %4521 = vmatpush1.xpose.msra.mxu0 0.0
        %4522 = vmatprep.subr.mxu0 0.0
        %4523 = vmatpush1.xpose.msra.mxu0 0.0
        %4524 = vmatprep.subr.mxu0 0.0
        %4525 = vmatpush1.xpose.msra.mxu0 0.0
        %4526 = vmatprep.subr.mxu0 0.0
        %4527 = vmatpush1.xpose.msra.mxu0 0.0
        %4528 = vmatprep.subr.mxu0 0.0
        %4529 = vmatpush1.xpose.msra.mxu0 0.0
        %4530 = vmatprep.subr.mxu0 0.0
        %4531 = vmatpush1.xpose.msra.mxu0 0.0
        %4532 = vmatprep.subr.mxu0 0.0
        %4533 = vmatpush1.xpose.msra.mxu0 0.0
        %4534 = vmatprep.subr.mxu0 0.0
        %4535 = vmatpush1.xpose.msra.mxu0 0.0
        %4536 = vmatprep.subr.mxu0 0.0
        %4537 = vmatpush1.xpose.msra.mxu0 0.0
        %4538 = vmatprep.subr.mxu0 0.0
        %4539 = vmatpush1.xpose.msra.mxu0 %v4506
        %4540 = vmatprep.subr.mxu0 0.0
        %4541 = vmatpush2.xpose.msra.mxu0 0.0
        %4542 = vmatprep.subr.mxu0 0.0
        %4543 = vmatpush2.xpose.msra.mxu0 0.0
        %4544 = vmatprep.subr.mxu0 0.0
        %4545 = vmatpush2.xpose.msra.mxu0 0.0
        %4546 = vmatprep.subr.mxu0 0.0
        %4547 = vmatpush2.xpose.msra.mxu0 0.0
        %4548 = vmatprep.subr.mxu0 0.0
        %4549 = vmatpush2.xpose.msra.mxu0 0.0
        %4550 = vmatprep.subr.mxu0 0.0
        %4551 = vmatpush2.xpose.msra.mxu0 0.0
        %4552 = vmatprep.subr.mxu0 0.0
        %4553 = vmatpush2.xpose.msra.mxu0 0.0
        %4554 = vmatprep.subr.mxu0 0.0
        %4555 = vmatpush2.xpose.msra.mxu0 0.0
        %4556 = vmatprep.subr.mxu0 0.0
        %4557 = vmatpush2.xpose.msra.mxu0 0.0
        %4558 = vmatprep.subr.mxu0 0.0
        %4559 = vmatpush2.xpose.msra.mxu0 0.0
        %4560 = vmatprep.subr.mxu0 0.0
        %4561 = vmatpush2.xpose.msra.mxu0 0.0
        %4562 = vmatprep.subr.mxu0 0.0
        %4563 = vmatpush2.xpose.msra.mxu0 0.0
        %4564 = vmatprep.subr.mxu0 0.0
        %4565 = vmatpush2.xpose.msra.mxu0 0.0
        %4566 = vmatprep.subr.mxu0 0.0
        %4567 = vmatpush2.xpose.msra.mxu0 0.0
        %4568 = vmatprep.subr.mxu0 0.0
        %4569 = vmatpush2.xpose.msra.mxu0 0.0
        %4570 = vmatprep.subr.mxu0 0.0
        %4571 = vmatpush2.xpose.msra.mxu0 0.0
        %4572 = vmatprep.mubr.f32.mxu0 0.0
        %4573 = vmatmul.mubr.f32.gmra.mxu0 %v4504
        %v4574 = vpop.f32.mrf.mxu0
        %v4575 = vadd.f32 0.0, %v4574
        %v4576 = vpop.f32.mrf.mxu0
        %4577 = vdwg.mxu0
        %4578 = vrot.lane.b32.xlu0 %v1111, 64
        %v4579 = vpop.permute.xlu0 %4578
        %4580 = vrot.lane.b32.xlu0 %v1113, 64
        %v4581 = vpop.permute.xlu0 %4580
        %v4582 = vsel %vm1236, %v4579, 0
        %v4584 = vsel %vm1236, %v4581, 0
        %4586 = vmatprep.subr.mxu0 0.0
        %4587 = vmatpush1.xpose.msra.mxu0 0.0
        %4588 = vmatprep.subr.mxu0 0.0
        %4589 = vmatpush1.xpose.msra.mxu0 0.0
        %4590 = vmatprep.subr.mxu0 0.0
        %4591 = vmatpush1.xpose.msra.mxu0 0.0
        %4592 = vmatprep.subr.mxu0 0.0
        %4593 = vmatpush1.xpose.msra.mxu0 0.0
        %4594 = vmatprep.subr.mxu0 0.0
        %4595 = vmatpush1.xpose.msra.mxu0 0.0
        %4596 = vmatprep.subr.mxu0 0.0
        %4597 = vmatpush1.xpose.msra.mxu0 0.0
        %4598 = vmatprep.subr.mxu0 0.0
        %4599 = vmatpush1.xpose.msra.mxu0 0.0
        %4600 = vmatprep.subr.mxu0 0.0
        %4601 = vmatpush1.xpose.msra.mxu0 0.0
        %4602 = vmatprep.subr.mxu0 0.0
        %4603 = vmatpush1.xpose.msra.mxu0 0.0
        %4604 = vmatprep.subr.mxu0 0.0
        %4605 = vmatpush1.xpose.msra.mxu0 0.0
        %4606 = vmatprep.subr.mxu0 0.0
        %4607 = vmatpush1.xpose.msra.mxu0 0.0
        %4608 = vmatprep.subr.mxu0 0.0
        %4609 = vmatpush1.xpose.msra.mxu0 0.0
        %4610 = vmatprep.subr.mxu0 0.0
        %4611 = vmatpush1.xpose.msra.mxu0 0.0
        %4612 = vmatprep.subr.mxu0 0.0
        %4613 = vmatpush1.xpose.msra.mxu0 0.0
        %4614 = vmatprep.subr.mxu0 0.0
        %4615 = vmatpush1.xpose.msra.mxu0 0.0
        %4616 = vmatprep.subr.mxu0 0.0
        %4617 = vmatpush1.xpose.msra.mxu0 %v4584
        %4618 = vmatprep.subr.mxu0 0.0
        %4619 = vmatpush2.xpose.msra.mxu0 0.0
        %4620 = vmatprep.subr.mxu0 0.0
        %4621 = vmatpush2.xpose.msra.mxu0 0.0
        %4622 = vmatprep.subr.mxu0 0.0
        %4623 = vmatpush2.xpose.msra.mxu0 0.0
        %4624 = vmatprep.subr.mxu0 0.0
        %4625 = vmatpush2.xpose.msra.mxu0 0.0
        %4626 = vmatprep.subr.mxu0 0.0
        %4627 = vmatpush2.xpose.msra.mxu0 0.0
        %4628 = vmatprep.subr.mxu0 0.0
        %4629 = vmatpush2.xpose.msra.mxu0 0.0
        %4630 = vmatprep.subr.mxu0 0.0
        %4631 = vmatpush2.xpose.msra.mxu0 0.0
        %4632 = vmatprep.subr.mxu0 0.0
        %4633 = vmatpush2.xpose.msra.mxu0 0.0
        %4634 = vmatprep.subr.mxu0 0.0
        %4635 = vmatpush2.xpose.msra.mxu0 0.0
        %4636 = vmatprep.subr.mxu0 0.0
        %4637 = vmatpush2.xpose.msra.mxu0 0.0
        %4638 = vmatprep.subr.mxu0 0.0
        %4639 = vmatpush2.xpose.msra.mxu0 0.0
        %4640 = vmatprep.subr.mxu0 0.0
        %4641 = vmatpush2.xpose.msra.mxu0 0.0
        %4642 = vmatprep.subr.mxu0 0.0
        %4643 = vmatpush2.xpose.msra.mxu0 0.0
        %4644 = vmatprep.subr.mxu0 0.0
        %4645 = vmatpush2.xpose.msra.mxu0 0.0
        %4646 = vmatprep.subr.mxu0 0.0
        %4647 = vmatpush2.xpose.msra.mxu0 0.0
        %4648 = vmatprep.subr.mxu0 0.0
        %4649 = vmatpush2.xpose.msra.mxu0 0.0
        %4650 = vmatprep.mubr.f32.mxu0 0.0
        %4651 = vmatmul.mubr.f32.gmra.mxu0 %v4582
        %v4652 = vpop.f32.mrf.mxu0
        %v4653 = vadd.f32 0.0, %v4652
        %v4654 = vpop.f32.mrf.mxu0
        %4655 = vdwg.mxu0
        %4656 = vrot.lane.b32.xlu0 %v1115, 64
        %v4657 = vpop.permute.xlu0 %4656
        %4658 = vrot.lane.b32.xlu0 %v1117, 64
        %v4659 = vpop.permute.xlu0 %4658
        %v4660 = vsel %vm1236, %v4657, 0
        %v4662 = vsel %vm1236, %v4659, 0
        %4664 = vmatprep.subr.mxu0 0.0
        %4665 = vmatpush1.xpose.msra.mxu0 0.0
        %4666 = vmatprep.subr.mxu0 0.0
        %4667 = vmatpush1.xpose.msra.mxu0 0.0
        %4668 = vmatprep.subr.mxu0 0.0
        %4669 = vmatpush1.xpose.msra.mxu0 0.0
        %4670 = vmatprep.subr.mxu0 0.0
        %4671 = vmatpush1.xpose.msra.mxu0 0.0
        %4672 = vmatprep.subr.mxu0 0.0
        %4673 = vmatpush1.xpose.msra.mxu0 0.0
        %4674 = vmatprep.subr.mxu0 0.0
        %4675 = vmatpush1.xpose.msra.mxu0 0.0
        %4676 = vmatprep.subr.mxu0 0.0
        %4677 = vmatpush1.xpose.msra.mxu0 0.0
        %4678 = vmatprep.subr.mxu0 0.0
        %4679 = vmatpush1.xpose.msra.mxu0 0.0
        %4680 = vmatprep.subr.mxu0 0.0
        %4681 = vmatpush1.xpose.msra.mxu0 0.0
        %4682 = vmatprep.subr.mxu0 0.0
        %4683 = vmatpush1.xpose.msra.mxu0 0.0
        %4684 = vmatprep.subr.mxu0 0.0
        %4685 = vmatpush1.xpose.msra.mxu0 0.0
        %4686 = vmatprep.subr.mxu0 0.0
        %4687 = vmatpush1.xpose.msra.mxu0 0.0
        %4688 = vmatprep.subr.mxu0 0.0
        %4689 = vmatpush1.xpose.msra.mxu0 0.0
        %4690 = vmatprep.subr.mxu0 0.0
        %4691 = vmatpush1.xpose.msra.mxu0 0.0
        %4692 = vmatprep.subr.mxu0 0.0
        %4693 = vmatpush1.xpose.msra.mxu0 0.0
        %4694 = vmatprep.subr.mxu0 0.0
        %4695 = vmatpush1.xpose.msra.mxu0 %v4662
        %4696 = vmatprep.subr.mxu0 0.0
        %4697 = vmatpush2.xpose.msra.mxu0 0.0
        %4698 = vmatprep.subr.mxu0 0.0
        %4699 = vmatpush2.xpose.msra.mxu0 0.0
        %4700 = vmatprep.subr.mxu0 0.0
        %4701 = vmatpush2.xpose.msra.mxu0 0.0
        %4702 = vmatprep.subr.mxu0 0.0
        %4703 = vmatpush2.xpose.msra.mxu0 0.0
        %4704 = vmatprep.subr.mxu0 0.0
        %4705 = vmatpush2.xpose.msra.mxu0 0.0
        %4706 = vmatprep.subr.mxu0 0.0
        %4707 = vmatpush2.xpose.msra.mxu0 0.0
        %4708 = vmatprep.subr.mxu0 0.0
        %4709 = vmatpush2.xpose.msra.mxu0 0.0
        %4710 = vmatprep.subr.mxu0 0.0
        %4711 = vmatpush2.xpose.msra.mxu0 0.0
        %4712 = vmatprep.subr.mxu0 0.0
        %4713 = vmatpush2.xpose.msra.mxu0 0.0
        %4714 = vmatprep.subr.mxu0 0.0
        %4715 = vmatpush2.xpose.msra.mxu0 0.0
        %4716 = vmatprep.subr.mxu0 0.0
        %4717 = vmatpush2.xpose.msra.mxu0 0.0
        %4718 = vmatprep.subr.mxu0 0.0
        %4719 = vmatpush2.xpose.msra.mxu0 0.0
        %4720 = vmatprep.subr.mxu0 0.0
        %4721 = vmatpush2.xpose.msra.mxu0 0.0
        %4722 = vmatprep.subr.mxu0 0.0
        %4723 = vmatpush2.xpose.msra.mxu0 0.0
        %4724 = vmatprep.subr.mxu0 0.0
        %4725 = vmatpush2.xpose.msra.mxu0 0.0
        %4726 = vmatprep.subr.mxu0 0.0
        %4727 = vmatpush2.xpose.msra.mxu0 0.0
        %4728 = vmatprep.mubr.f32.mxu0 0.0
        %4729 = vmatmul.mubr.f32.gmra.mxu0 %v4660
        %v4730 = vpop.f32.mrf.mxu0
        %v4731 = vadd.f32 0.0, %v4730
        %v4732 = vpop.f32.mrf.mxu0
        %4733 = vdwg.mxu0
        %4734 = vrot.lane.b32.xlu0 %v1121, 64
        %v4735 = vpop.permute.xlu0 %4734
        %4736 = vrot.lane.b32.xlu0 %v1123, 64
        %v4737 = vpop.permute.xlu0 %4736
        %v4738 = vsel %vm1236, %v4735, 0
        %v4740 = vsel %vm1236, %v4737, 0
        %4742 = vmatprep.subr.mxu0 0.0
        %4743 = vmatpush1.xpose.msra.mxu0 0.0
        %4744 = vmatprep.subr.mxu0 0.0
        %4745 = vmatpush1.xpose.msra.mxu0 0.0
        %4746 = vmatprep.subr.mxu0 0.0
        %4747 = vmatpush1.xpose.msra.mxu0 0.0
        %4748 = vmatprep.subr.mxu0 0.0
        %4749 = vmatpush1.xpose.msra.mxu0 0.0
        %4750 = vmatprep.subr.mxu0 0.0
        %4751 = vmatpush1.xpose.msra.mxu0 0.0
        %4752 = vmatprep.subr.mxu0 0.0
        %4753 = vmatpush1.xpose.msra.mxu0 0.0
        %4754 = vmatprep.subr.mxu0 0.0
        %4755 = vmatpush1.xpose.msra.mxu0 0.0
        %4756 = vmatprep.subr.mxu0 0.0
        %4757 = vmatpush1.xpose.msra.mxu0 0.0
        %4758 = vmatprep.subr.mxu0 0.0
        %4759 = vmatpush1.xpose.msra.mxu0 0.0
        %4760 = vmatprep.subr.mxu0 0.0
        %4761 = vmatpush1.xpose.msra.mxu0 0.0
        %4762 = vmatprep.subr.mxu0 0.0
        %4763 = vmatpush1.xpose.msra.mxu0 0.0
        %4764 = vmatprep.subr.mxu0 0.0
        %4765 = vmatpush1.xpose.msra.mxu0 0.0
        %4766 = vmatprep.subr.mxu0 0.0
        %4767 = vmatpush1.xpose.msra.mxu0 0.0
        %4768 = vmatprep.subr.mxu0 0.0
        %4769 = vmatpush1.xpose.msra.mxu0 0.0
        %4770 = vmatprep.subr.mxu0 0.0
        %4771 = vmatpush1.xpose.msra.mxu0 0.0
        %4772 = vmatprep.subr.mxu0 0.0
        %4773 = vmatpush1.xpose.msra.mxu0 %v4740
        %4774 = vmatprep.subr.mxu0 0.0
        %4775 = vmatpush2.xpose.msra.mxu0 0.0
        %4776 = vmatprep.subr.mxu0 0.0
        %4777 = vmatpush2.xpose.msra.mxu0 0.0
        %4778 = vmatprep.subr.mxu0 0.0
        %4779 = vmatpush2.xpose.msra.mxu0 0.0
        %4780 = vmatprep.subr.mxu0 0.0
        %4781 = vmatpush2.xpose.msra.mxu0 0.0
        %4782 = vmatprep.subr.mxu0 0.0
        %4783 = vmatpush2.xpose.msra.mxu0 0.0
        %4784 = vmatprep.subr.mxu0 0.0
        %4785 = vmatpush2.xpose.msra.mxu0 0.0
        %4786 = vmatprep.subr.mxu0 0.0
        %4787 = vmatpush2.xpose.msra.mxu0 0.0
        %4788 = vmatprep.subr.mxu0 0.0
        %4789 = vmatpush2.xpose.msra.mxu0 0.0
        %4790 = vmatprep.subr.mxu0 0.0
        %4791 = vmatpush2.xpose.msra.mxu0 0.0
        %4792 = vmatprep.subr.mxu0 0.0
        %4793 = vmatpush2.xpose.msra.mxu0 0.0
        %4794 = vmatprep.subr.mxu0 0.0
        %4795 = vmatpush2.xpose.msra.mxu0 0.0
        %4796 = vmatprep.subr.mxu0 0.0
        %4797 = vmatpush2.xpose.msra.mxu0 0.0
        %4798 = vmatprep.subr.mxu0 0.0
        %4799 = vmatpush2.xpose.msra.mxu0 0.0
        %4800 = vmatprep.subr.mxu0 0.0
        %4801 = vmatpush2.xpose.msra.mxu0 0.0
        %4802 = vmatprep.subr.mxu0 0.0
        %4803 = vmatpush2.xpose.msra.mxu0 0.0
        %4804 = vmatprep.subr.mxu0 0.0
        %4805 = vmatpush2.xpose.msra.mxu0 0.0
        %4806 = vmatprep.mubr.f32.mxu0 0.0
        %4807 = vmatmul.mubr.f32.gmra.mxu0 %v4738
        %v4808 = vpop.f32.mrf.mxu0
        %v4809 = vadd.f32 0.0, %v4808
        %v4810 = vpop.f32.mrf.mxu0
        %4811 = vdwg.mxu0
        %4812 = vrot.lane.b32.xlu0 %v1125, 64
        %v4813 = vpop.permute.xlu0 %4812
        %4814 = vrot.lane.b32.xlu0 %v1127, 64
        %v4815 = vpop.permute.xlu0 %4814
        %v4816 = vsel %vm1236, %v4813, 0
        %v4818 = vsel %vm1236, %v4815, 0
        %4820 = vmatprep.subr.mxu0 0.0
        %4821 = vmatpush1.xpose.msra.mxu0 0.0
        %4822 = vmatprep.subr.mxu0 0.0
        %4823 = vmatpush1.xpose.msra.mxu0 0.0
        %4824 = vmatprep.subr.mxu0 0.0
        %4825 = vmatpush1.xpose.msra.mxu0 0.0
        %4826 = vmatprep.subr.mxu0 0.0
        %4827 = vmatpush1.xpose.msra.mxu0 0.0
        %4828 = vmatprep.subr.mxu0 0.0
        %4829 = vmatpush1.xpose.msra.mxu0 0.0
        %4830 = vmatprep.subr.mxu0 0.0
        %4831 = vmatpush1.xpose.msra.mxu0 0.0
        %4832 = vmatprep.subr.mxu0 0.0
        %4833 = vmatpush1.xpose.msra.mxu0 0.0
        %4834 = vmatprep.subr.mxu0 0.0
        %4835 = vmatpush1.xpose.msra.mxu0 0.0
        %4836 = vmatprep.subr.mxu0 0.0
        %4837 = vmatpush1.xpose.msra.mxu0 0.0
        %4838 = vmatprep.subr.mxu0 0.0
        %4839 = vmatpush1.xpose.msra.mxu0 0.0
        %4840 = vmatprep.subr.mxu0 0.0
        %4841 = vmatpush1.xpose.msra.mxu0 0.0
        %4842 = vmatprep.subr.mxu0 0.0
        %4843 = vmatpush1.xpose.msra.mxu0 0.0
        %4844 = vmatprep.subr.mxu0 0.0
        %4845 = vmatpush1.xpose.msra.mxu0 0.0
        %4846 = vmatprep.subr.mxu0 0.0
        %4847 = vmatpush1.xpose.msra.mxu0 0.0
        %4848 = vmatprep.subr.mxu0 0.0
        %4849 = vmatpush1.xpose.msra.mxu0 0.0
        %4850 = vmatprep.subr.mxu0 0.0
        %4851 = vmatpush1.xpose.msra.mxu0 %v4818
        %4852 = vmatprep.subr.mxu0 0.0
        %4853 = vmatpush2.xpose.msra.mxu0 0.0
        %4854 = vmatprep.subr.mxu0 0.0
        %4855 = vmatpush2.xpose.msra.mxu0 0.0
        %4856 = vmatprep.subr.mxu0 0.0
        %4857 = vmatpush2.xpose.msra.mxu0 0.0
        %4858 = vmatprep.subr.mxu0 0.0
        %4859 = vmatpush2.xpose.msra.mxu0 0.0
        %4860 = vmatprep.subr.mxu0 0.0
        %4861 = vmatpush2.xpose.msra.mxu0 0.0
        %4862 = vmatprep.subr.mxu0 0.0
        %4863 = vmatpush2.xpose.msra.mxu0 0.0
        %4864 = vmatprep.subr.mxu0 0.0
        %4865 = vmatpush2.xpose.msra.mxu0 0.0
        %4866 = vmatprep.subr.mxu0 0.0
        %4867 = vmatpush2.xpose.msra.mxu0 0.0
        %4868 = vmatprep.subr.mxu0 0.0
        %4869 = vmatpush2.xpose.msra.mxu0 0.0
        %4870 = vmatprep.subr.mxu0 0.0
        %4871 = vmatpush2.xpose.msra.mxu0 0.0
        %4872 = vmatprep.subr.mxu0 0.0
        %4873 = vmatpush2.xpose.msra.mxu0 0.0
        %4874 = vmatprep.subr.mxu0 0.0
        %4875 = vmatpush2.xpose.msra.mxu0 0.0
        %4876 = vmatprep.subr.mxu0 0.0
        %4877 = vmatpush2.xpose.msra.mxu0 0.0
        %4878 = vmatprep.subr.mxu0 0.0
        %4879 = vmatpush2.xpose.msra.mxu0 0.0
        %4880 = vmatprep.subr.mxu0 0.0
        %4881 = vmatpush2.xpose.msra.mxu0 0.0
        %4882 = vmatprep.subr.mxu0 0.0
        %4883 = vmatpush2.xpose.msra.mxu0 0.0
        %4884 = vmatprep.mubr.f32.mxu0 0.0
        %4885 = vmatmul.mubr.f32.gmra.mxu0 %v4816
        %v4886 = vpop.f32.mrf.mxu0
        %v4887 = vadd.f32 0.0, %v4886
        %v4888 = vpop.f32.mrf.mxu0
        %4889 = vdwg.mxu0
        %4890 = vrot.lane.b32.xlu0 %v1131, 64
        %v4891 = vpop.permute.xlu0 %4890
        %4892 = vrot.lane.b32.xlu0 %v1133, 64
        %v4893 = vpop.permute.xlu0 %4892
        %v4894 = vsel %vm1236, %v4891, 0
        %v4896 = vsel %vm1236, %v4893, 0
        %4898 = vmatprep.subr.mxu0 0.0
        %4899 = vmatpush1.xpose.msra.mxu0 0.0
        %4900 = vmatprep.subr.mxu0 0.0
        %4901 = vmatpush1.xpose.msra.mxu0 0.0
        %4902 = vmatprep.subr.mxu0 0.0
        %4903 = vmatpush1.xpose.msra.mxu0 0.0
        %4904 = vmatprep.subr.mxu0 0.0
        %4905 = vmatpush1.xpose.msra.mxu0 0.0
        %4906 = vmatprep.subr.mxu0 0.0
        %4907 = vmatpush1.xpose.msra.mxu0 0.0
        %4908 = vmatprep.subr.mxu0 0.0
        %4909 = vmatpush1.xpose.msra.mxu0 0.0
        %4910 = vmatprep.subr.mxu0 0.0
        %4911 = vmatpush1.xpose.msra.mxu0 0.0
        %4912 = vmatprep.subr.mxu0 0.0
        %4913 = vmatpush1.xpose.msra.mxu0 0.0
        %4914 = vmatprep.subr.mxu0 0.0
        %4915 = vmatpush1.xpose.msra.mxu0 0.0
        %4916 = vmatprep.subr.mxu0 0.0
        %4917 = vmatpush1.xpose.msra.mxu0 0.0
        %4918 = vmatprep.subr.mxu0 0.0
        %4919 = vmatpush1.xpose.msra.mxu0 0.0
        %4920 = vmatprep.subr.mxu0 0.0
        %4921 = vmatpush1.xpose.msra.mxu0 0.0
        %4922 = vmatprep.subr.mxu0 0.0
        %4923 = vmatpush1.xpose.msra.mxu0 0.0
        %4924 = vmatprep.subr.mxu0 0.0
        %4925 = vmatpush1.xpose.msra.mxu0 0.0
        %4926 = vmatprep.subr.mxu0 0.0
        %4927 = vmatpush1.xpose.msra.mxu0 0.0
        %4928 = vmatprep.subr.mxu0 0.0
        %4929 = vmatpush1.xpose.msra.mxu0 %v4896
        %4930 = vmatprep.subr.mxu0 0.0
        %4931 = vmatpush2.xpose.msra.mxu0 0.0
        %4932 = vmatprep.subr.mxu0 0.0
        %4933 = vmatpush2.xpose.msra.mxu0 0.0
        %4934 = vmatprep.subr.mxu0 0.0
        %4935 = vmatpush2.xpose.msra.mxu0 0.0
        %4936 = vmatprep.subr.mxu0 0.0
        %4937 = vmatpush2.xpose.msra.mxu0 0.0
        %4938 = vmatprep.subr.mxu0 0.0
        %4939 = vmatpush2.xpose.msra.mxu0 0.0
        %4940 = vmatprep.subr.mxu0 0.0
        %4941 = vmatpush2.xpose.msra.mxu0 0.0
        %4942 = vmatprep.subr.mxu0 0.0
        %4943 = vmatpush2.xpose.msra.mxu0 0.0
        %4944 = vmatprep.subr.mxu0 0.0
        %4945 = vmatpush2.xpose.msra.mxu0 0.0
        %4946 = vmatprep.subr.mxu0 0.0
        %4947 = vmatpush2.xpose.msra.mxu0 0.0
        %4948 = vmatprep.subr.mxu0 0.0
        %4949 = vmatpush2.xpose.msra.mxu0 0.0
        %4950 = vmatprep.subr.mxu0 0.0
        %4951 = vmatpush2.xpose.msra.mxu0 0.0
        %4952 = vmatprep.subr.mxu0 0.0
        %4953 = vmatpush2.xpose.msra.mxu0 0.0
        %4954 = vmatprep.subr.mxu0 0.0
        %4955 = vmatpush2.xpose.msra.mxu0 0.0
        %4956 = vmatprep.subr.mxu0 0.0
        %4957 = vmatpush2.xpose.msra.mxu0 0.0
        %4958 = vmatprep.subr.mxu0 0.0
        %4959 = vmatpush2.xpose.msra.mxu0 0.0
        %4960 = vmatprep.subr.mxu0 0.0
        %4961 = vmatpush2.xpose.msra.mxu0 0.0
        %4962 = vmatprep.mubr.f32.mxu0 0.0
        %4963 = vmatmul.mubr.f32.gmra.mxu0 %v4894
        %v4964 = vpop.f32.mrf.mxu0
        %v4965 = vadd.f32 0.0, %v4964
        %v4966 = vpop.f32.mrf.mxu0
        %4967 = vdwg.mxu0
        %4968 = vrot.lane.b32.xlu0 %v1135, 64
        %v4969 = vpop.permute.xlu0 %4968
        %4970 = vrot.lane.b32.xlu0 %v1137, 64
        %v4971 = vpop.permute.xlu0 %4970
        %v4972 = vsel %vm1236, %v4969, 0
        %v4974 = vsel %vm1236, %v4971, 0
        %4976 = vmatprep.subr.mxu0 0.0
        %4977 = vmatpush1.xpose.msra.mxu0 0.0
        %4978 = vmatprep.subr.mxu0 0.0
        %4979 = vmatpush1.xpose.msra.mxu0 0.0
        %4980 = vmatprep.subr.mxu0 0.0
        %4981 = vmatpush1.xpose.msra.mxu0 0.0
        %4982 = vmatprep.subr.mxu0 0.0
        %4983 = vmatpush1.xpose.msra.mxu0 0.0
        %4984 = vmatprep.subr.mxu0 0.0
        %4985 = vmatpush1.xpose.msra.mxu0 0.0
        %4986 = vmatprep.subr.mxu0 0.0
        %4987 = vmatpush1.xpose.msra.mxu0 0.0
        %4988 = vmatprep.subr.mxu0 0.0
        %4989 = vmatpush1.xpose.msra.mxu0 0.0
        %4990 = vmatprep.subr.mxu0 0.0
        %4991 = vmatpush1.xpose.msra.mxu0 0.0
        %4992 = vmatprep.subr.mxu0 0.0
        %4993 = vmatpush1.xpose.msra.mxu0 0.0
        %4994 = vmatprep.subr.mxu0 0.0
        %4995 = vmatpush1.xpose.msra.mxu0 0.0
        %4996 = vmatprep.subr.mxu0 0.0
        %4997 = vmatpush1.xpose.msra.mxu0 0.0
        %4998 = vmatprep.subr.mxu0 0.0
        %4999 = vmatpush1.xpose.msra.mxu0 0.0
        %5000 = vmatprep.subr.mxu0 0.0
        %5001 = vmatpush1.xpose.msra.mxu0 0.0
        %5002 = vmatprep.subr.mxu0 0.0
        %5003 = vmatpush1.xpose.msra.mxu0 0.0
        %5004 = vmatprep.subr.mxu0 0.0
        %5005 = vmatpush1.xpose.msra.mxu0 0.0
        %5006 = vmatprep.subr.mxu0 0.0
        %5007 = vmatpush1.xpose.msra.mxu0 %v4974
        %5008 = vmatprep.subr.mxu0 0.0
        %5009 = vmatpush2.xpose.msra.mxu0 0.0
        %5010 = vmatprep.subr.mxu0 0.0
        %5011 = vmatpush2.xpose.msra.mxu0 0.0
        %5012 = vmatprep.subr.mxu0 0.0
        %5013 = vmatpush2.xpose.msra.mxu0 0.0
        %5014 = vmatprep.subr.mxu0 0.0
        %5015 = vmatpush2.xpose.msra.mxu0 0.0
        %5016 = vmatprep.subr.mxu0 0.0
        %5017 = vmatpush2.xpose.msra.mxu0 0.0
        %5018 = vmatprep.subr.mxu0 0.0
        %5019 = vmatpush2.xpose.msra.mxu0 0.0
        %5020 = vmatprep.subr.mxu0 0.0
        %5021 = vmatpush2.xpose.msra.mxu0 0.0
        %5022 = vmatprep.subr.mxu0 0.0
        %5023 = vmatpush2.xpose.msra.mxu0 0.0
        %5024 = vmatprep.subr.mxu0 0.0
        %5025 = vmatpush2.xpose.msra.mxu0 0.0
        %5026 = vmatprep.subr.mxu0 0.0
        %5027 = vmatpush2.xpose.msra.mxu0 0.0
        %5028 = vmatprep.subr.mxu0 0.0
        %5029 = vmatpush2.xpose.msra.mxu0 0.0
        %5030 = vmatprep.subr.mxu0 0.0
        %5031 = vmatpush2.xpose.msra.mxu0 0.0
        %5032 = vmatprep.subr.mxu0 0.0
        %5033 = vmatpush2.xpose.msra.mxu0 0.0
        %5034 = vmatprep.subr.mxu0 0.0
        %5035 = vmatpush2.xpose.msra.mxu0 0.0
        %5036 = vmatprep.subr.mxu0 0.0
        %5037 = vmatpush2.xpose.msra.mxu0 0.0
        %5038 = vmatprep.subr.mxu0 0.0
        %5039 = vmatpush2.xpose.msra.mxu0 0.0
        %5040 = vmatprep.mubr.f32.mxu0 0.0
        %5041 = vmatmul.mubr.f32.gmra.mxu0 %v4972
        %v5042 = vpop.f32.mrf.mxu0
        %v5043 = vadd.f32 0.0, %v5042
        %v5044 = vpop.f32.mrf.mxu0
        %5045 = vdwg.mxu0
        %v5046 = vsel %vm2453, %v3873, -inf
        %5047 = vmax.xlane.f32.xlu0 %v5046
        %v5048 = vpop.xlane.xlu0 %5047
        %v5049 = vsel %vm2453, %v3951, -inf
        %5050 = vmax.xlane.f32.xlu0 %v5049
        %v5051 = vpop.xlane.xlu0 %5050
        %v5052 = vsel %vm2453, %v4029, -inf
        %5053 = vmax.xlane.f32.xlu0 %v5052
        %v5054 = vpop.xlane.xlu0 %5053
        %v5055 = vsel %vm2453, %v4107, -inf
        %5056 = vmax.xlane.f32.xlu0 %v5055
        %v5057 = vpop.xlane.xlu0 %5056
        %v5058 = vsel %vm2453, %v4185, -inf
        %5059 = vmax.xlane.f32.xlu0 %v5058
        %v5060 = vpop.xlane.xlu0 %5059
        %v5061 = vsel %vm2453, %v4263, -inf
        %5062 = vmax.xlane.f32.xlu0 %v5061
        %v5063 = vpop.xlane.xlu0 %5062
        %v5064 = vsel %vm2453, %v4341, -inf
        %5065 = vmax.xlane.f32.xlu0 %v5064
        %v5066 = vpop.xlane.xlu0 %5065
        %v5067 = vsel %vm2453, %v4419, -inf
        %5068 = vmax.xlane.f32.xlu0 %v5067
        %v5069 = vpop.xlane.xlu0 %5068
        %v5070 = vsel %vm2453, %v4497, -inf
        %5071 = vmax.xlane.f32.xlu0 %v5070
        %v5072 = vpop.xlane.xlu0 %5071
        %v5073 = vsel %vm2453, %v4575, -inf
        %5074 = vmax.xlane.f32.xlu0 %v5073
        %v5075 = vpop.xlane.xlu0 %5074
        %v5076 = vsel %vm2453, %v4653, -inf
        %5077 = vmax.xlane.f32.xlu0 %v5076
        %v5078 = vpop.xlane.xlu0 %5077
        %v5079 = vsel %vm2453, %v4731, -inf
        %5080 = vmax.xlane.f32.xlu0 %v5079
        %v5081 = vpop.xlane.xlu0 %5080
        %v5082 = vsel %vm2453, %v4809, -inf
        %5083 = vmax.xlane.f32.xlu0 %v5082
        %v5084 = vpop.xlane.xlu0 %5083
        %v5085 = vsel %vm2453, %v4887, -inf
        %5086 = vmax.xlane.f32.xlu0 %v5085
        %v5087 = vpop.xlane.xlu0 %5086
        %v5088 = vsel %vm2453, %v4965, -inf
        %5089 = vmax.xlane.f32.xlu0 %v5088
        %v5090 = vpop.xlane.xlu0 %5089
        %v5091 = vsel %vm2453, %v5043, -inf
        %5092 = vmax.xlane.f32.xlu0 %v5091
        %v5093 = vpop.xlane.xlu0 %5092
        %v5094 = vsub.f32 %v3873, %v5048
        %v5095 = vsub.f32 %v3951, %v5051
        %v5096 = vsub.f32 %v4029, %v5054
        %v5097 = vsub.f32 %v4107, %v5057
        %v5098 = vsub.f32 %v4185, %v5060
        %v5099 = vsub.f32 %v4263, %v5063
        %v5100 = vsub.f32 %v4341, %v5066
        %v5101 = vsub.f32 %v4419, %v5069
        %v5102 = vsub.f32 %v4497, %v5072
        %v5103 = vsub.f32 %v4575, %v5075
        %v5104 = vsub.f32 %v4653, %v5078
        %v5105 = vsub.f32 %v4731, %v5081
        %v5106 = vsub.f32 %v4809, %v5084
        %v5107 = vsub.f32 %v4887, %v5087
        %v5108 = vsub.f32 %v4965, %v5090
        %v5109 = vsub.f32 %v5043, %v5093
        %v5110 = vmul.f32 %v5094, 1.442695
        %v5111 = vpow.pop %v5110
        %v5112 = vmul.f32 %v5095, 1.442695
        %v5113 = vpow.pop %v5112
        %v5114 = vmul.f32 %v5096, 1.442695
        %v5115 = vpow.pop %v5114
        %v5116 = vmul.f32 %v5097, 1.442695
        %v5117 = vpow.pop %v5116
        %v5118 = vmul.f32 %v5098, 1.442695
        %v5119 = vpow.pop %v5118
        %v5120 = vmul.f32 %v5099, 1.442695
        %v5121 = vpow.pop %v5120
        %v5122 = vmul.f32 %v5100, 1.442695
        %v5123 = vpow.pop %v5122
        %v5124 = vmul.f32 %v5101, 1.442695
        %v5125 = vpow.pop %v5124
        %v5126 = vmul.f32 %v5102, 1.442695
        %v5127 = vpow.pop %v5126
        %v5128 = vmul.f32 %v5103, 1.442695
        %v5129 = vpow.pop %v5128
        %v5130 = vmul.f32 %v5104, 1.442695
        %v5131 = vpow.pop %v5130
        %v5132 = vmul.f32 %v5105, 1.442695
        %v5133 = vpow.pop %v5132
        %v5134 = vmul.f32 %v5106, 1.442695
        %v5135 = vpow.pop %v5134
        %v5136 = vmul.f32 %v5107, 1.442695
        %v5137 = vpow.pop %v5136
        %v5138 = vmul.f32 %v5108, 1.442695
        %v5139 = vpow.pop %v5138
        %v5140 = vmul.f32 %v5109, 1.442695
        %v5141 = vpow.pop %v5140
        %v5142 = vsel %vm2453, %v5111, 0.0
        %5143 = vadd.xlane.f32.xlu0 %v5142
        %v5144 = vpop.xlane.xlu0 %5143
        %v5145 = vsel %vm2453, %v5113, 0.0
        %5146 = vadd.xlane.f32.xlu0 %v5145
        %v5147 = vpop.xlane.xlu0 %5146
        %v5148 = vsel %vm2453, %v5115, 0.0
        %5149 = vadd.xlane.f32.xlu0 %v5148
        %v5150 = vpop.xlane.xlu0 %5149
        %v5151 = vsel %vm2453, %v5117, 0.0
        %5152 = vadd.xlane.f32.xlu0 %v5151
        %v5153 = vpop.xlane.xlu0 %5152
        %v5154 = vsel %vm2453, %v5119, 0.0
        %5155 = vadd.xlane.f32.xlu0 %v5154
        %v5156 = vpop.xlane.xlu0 %5155
        %v5157 = vsel %vm2453, %v5121, 0.0
        %5158 = vadd.xlane.f32.xlu0 %v5157
        %v5159 = vpop.xlane.xlu0 %5158
        %v5160 = vsel %vm2453, %v5123, 0.0
        %5161 = vadd.xlane.f32.xlu0 %v5160
        %v5162 = vpop.xlane.xlu0 %5161
        %v5163 = vsel %vm2453, %v5125, 0.0
        %5164 = vadd.xlane.f32.xlu0 %v5163
        %v5165 = vpop.xlane.xlu0 %5164
        %v5166 = vsel %vm2453, %v5127, 0.0
        %5167 = vadd.xlane.f32.xlu0 %v5166
        %v5168 = vpop.xlane.xlu0 %5167
        %v5169 = vsel %vm2453, %v5129, 0.0
        %5170 = vadd.xlane.f32.xlu0 %v5169
        %v5171 = vpop.xlane.xlu0 %5170
        %v5172 = vsel %vm2453, %v5131, 0.0
        %5173 = vadd.xlane.f32.xlu0 %v5172
        %v5174 = vpop.xlane.xlu0 %5173
        %v5175 = vsel %vm2453, %v5133, 0.0
        %5176 = vadd.xlane.f32.xlu0 %v5175
        %v5177 = vpop.xlane.xlu0 %5176
        %v5178 = vsel %vm2453, %v5135, 0.0
        %5179 = vadd.xlane.f32.xlu0 %v5178
        %v5180 = vpop.xlane.xlu0 %5179
        %v5181 = vsel %vm2453, %v5137, 0.0
        %5182 = vadd.xlane.f32.xlu0 %v5181
        %v5183 = vpop.xlane.xlu0 %5182
        %v5184 = vsel %vm2453, %v5139, 0.0
        %5185 = vadd.xlane.f32.xlu0 %v5184
        %v5186 = vpop.xlane.xlu0 %5185
        %v5187 = vsel %vm2453, %v5141, 0.0
        %5188 = vadd.xlane.f32.xlu0 %v5187
        %v5189 = vpop.xlane.xlu0 %5188
        %v5190 = vrcp.pop %v5144
        %v5191 = vrcp.pop %v5147
        %v5192 = vrcp.pop %v5150
        %v5193 = vrcp.pop %v5153
        %v5194 = vrcp.pop %v5156
        %v5195 = vrcp.pop %v5159
        %v5196 = vrcp.pop %v5162
        %v5197 = vrcp.pop %v5165
        %v5198 = vrcp.pop %v5168
        %v5199 = vrcp.pop %v5171
        %v5200 = vrcp.pop %v5174
        %v5201 = vrcp.pop %v5177
        %v5202 = vrcp.pop %v5180
        %v5203 = vrcp.pop %v5183
        %v5204 = vrcp.pop %v5186
        %v5205 = vrcp.pop %v5189
        %v5206 = vmul.f32 %v5111, %v5190
        %v5207 = vmul.f32 %v5113, %v5191
        %v5208 = vmul.f32 %v5115, %v5192
        %v5209 = vmul.f32 %v5117, %v5193
        %v5210 = vmul.f32 %v5119, %v5194
        %v5211 = vmul.f32 %v5121, %v5195
        %v5212 = vmul.f32 %v5123, %v5196
        %v5213 = vmul.f32 %v5125, %v5197
        %v5214 = vmul.f32 %v5127, %v5198
        %v5215 = vmul.f32 %v5129, %v5199
        %v5216 = vmul.f32 %v5131, %v5200
        %v5217 = vmul.f32 %v5133, %v5201
        %v5218 = vmul.f32 %v5135, %v5202
        %v5219 = vmul.f32 %v5137, %v5203
        %v5220 = vmul.f32 %v5139, %v5204
        %v5221 = vmul.f32 %v5141, %v5205
        %5223 = vrot.lane.b32.xlu0 %v1174, 64
        %v5224 = vpop.permute.xlu0 %5223
        %v5227 = vsel %vm2453, %v5206, 0
        %5229 = vmatprep.subr.mxu0 0.0
        %5230 = vmatpush1.msra.mxu0 0.0
        %5231 = vmatprep.subr.mxu0 0.0
        %5232 = vmatpush1.msra.mxu0 0.0
        %5233 = vmatprep.subr.mxu0 0.0
        %5234 = vmatpush1.msra.mxu0 0.0
        %5235 = vmatprep.subr.mxu0 0.0
        %5236 = vmatpush1.msra.mxu0 0.0
        %5237 = vmatprep.subr.mxu0 0.0
        %5238 = vmatpush1.msra.mxu0 0.0
        %5239 = vmatprep.subr.mxu0 0.0
        %5240 = vmatpush1.msra.mxu0 0.0
        %5241 = vmatprep.subr.mxu0 0.0
        %5242 = vmatpush1.msra.mxu0 0.0
        %5243 = vmatprep.subr.mxu0 0.0
        %5244 = vmatpush1.msra.mxu0 0.0
        %5245 = vmatprep.subr.mxu0 0.0
        %5246 = vmatpush1.msra.mxu0 0.0
        %5247 = vmatprep.subr.mxu0 0.0
        %5248 = vmatpush1.msra.mxu0 0.0
        %5249 = vmatprep.subr.mxu0 0.0
        %5250 = vmatpush1.msra.mxu0 0.0
        %5251 = vmatprep.subr.mxu0 0.0
        %5252 = vmatpush1.msra.mxu0 0.0
        %5253 = vmatprep.subr.mxu0 0.0
        %5254 = vmatpush1.msra.mxu0 0.0
        %5255 = vmatprep.subr.mxu0 0.0
        %5256 = vmatpush1.msra.mxu0 0.0
        %5257 = vmatprep.subr.mxu0 0.0
        %5258 = vmatpush1.msra.mxu0 0.0
        %5259 = vmatprep.subr.mxu0 0.0
        %5260 = vmatpush1.msra.mxu0 %v5224
        %5261 = vmatprep.subr.mxu0 0.0
        %5262 = vmatpush2.msra.mxu0 0.0
        %5263 = vmatprep.subr.mxu0 0.0
        %5264 = vmatpush2.msra.mxu0 0.0
        %5265 = vmatprep.subr.mxu0 0.0
        %5266 = vmatpush2.msra.mxu0 0.0
        %5267 = vmatprep.subr.mxu0 0.0
        %5268 = vmatpush2.msra.mxu0 0.0
        %5269 = vmatprep.subr.mxu0 0.0
        %5270 = vmatpush2.msra.mxu0 0.0
        %5271 = vmatprep.subr.mxu0 0.0
        %5272 = vmatpush2.msra.mxu0 0.0
        %5273 = vmatprep.subr.mxu0 0.0
        %5274 = vmatpush2.msra.mxu0 0.0
        %5275 = vmatprep.subr.mxu0 0.0
        %5276 = vmatpush2.msra.mxu0 0.0
        %5277 = vmatprep.subr.mxu0 0.0
        %5278 = vmatpush2.msra.mxu0 0.0
        %5279 = vmatprep.subr.mxu0 0.0
        %5280 = vmatpush2.msra.mxu0 0.0
        %5281 = vmatprep.subr.mxu0 0.0
        %5282 = vmatpush2.msra.mxu0 0.0
        %5283 = vmatprep.subr.mxu0 0.0
        %5284 = vmatpush2.msra.mxu0 0.0
        %5285 = vmatprep.subr.mxu0 0.0
        %5286 = vmatpush2.msra.mxu0 0.0
        %5287 = vmatprep.subr.mxu0 0.0
        %5288 = vmatpush2.msra.mxu0 0.0
        %5289 = vmatprep.subr.mxu0 0.0
        %5290 = vmatpush2.msra.mxu0 0.0
        %5291 = vmatprep.subr.mxu0 0.0
        %5292 = vmatpush2.msra.mxu0 0.0
        %5293 = vmatprep.mubr.f32.mxu0 0.0
        %5294 = vmatmul.mubr.f32.gmra.mxu0 %v5227
        %v5295 = vpop.f32.mrf.mxu0
        %v5296 = vadd.f32 0.0, %v5295
        %v5297 = vpop.f32.mrf.mxu0
        %5298 = vdwg.mxu0
        %5300 = vrot.lane.b32.xlu0 %v1177, 64
        %v5301 = vpop.permute.xlu0 %5300
        %v5304 = vsel %vm2453, %v5207, 0
        %5306 = vmatprep.subr.mxu0 0.0
        %5307 = vmatpush1.msra.mxu0 0.0
        %5308 = vmatprep.subr.mxu0 0.0
        %5309 = vmatpush1.msra.mxu0 0.0
        %5310 = vmatprep.subr.mxu0 0.0
        %5311 = vmatpush1.msra.mxu0 0.0
        %5312 = vmatprep.subr.mxu0 0.0
        %5313 = vmatpush1.msra.mxu0 0.0
        %5314 = vmatprep.subr.mxu0 0.0
        %5315 = vmatpush1.msra.mxu0 0.0
        %5316 = vmatprep.subr.mxu0 0.0
        %5317 = vmatpush1.msra.mxu0 0.0
        %5318 = vmatprep.subr.mxu0 0.0
        %5319 = vmatpush1.msra.mxu0 0.0
        %5320 = vmatprep.subr.mxu0 0.0
        %5321 = vmatpush1.msra.mxu0 0.0
        %5322 = vmatprep.subr.mxu0 0.0
        %5323 = vmatpush1.msra.mxu0 0.0
        %5324 = vmatprep.subr.mxu0 0.0
        %5325 = vmatpush1.msra.mxu0 0.0
        %5326 = vmatprep.subr.mxu0 0.0
        %5327 = vmatpush1.msra.mxu0 0.0
        %5328 = vmatprep.subr.mxu0 0.0
        %5329 = vmatpush1.msra.mxu0 0.0
        %5330 = vmatprep.subr.mxu0 0.0
        %5331 = vmatpush1.msra.mxu0 0.0
        %5332 = vmatprep.subr.mxu0 0.0
        %5333 = vmatpush1.msra.mxu0 0.0
        %5334 = vmatprep.subr.mxu0 0.0
        %5335 = vmatpush1.msra.mxu0 0.0
        %5336 = vmatprep.subr.mxu0 0.0
        %5337 = vmatpush1.msra.mxu0 %v5301
        %5338 = vmatprep.subr.mxu0 0.0
        %5339 = vmatpush2.msra.mxu0 0.0
        %5340 = vmatprep.subr.mxu0 0.0
        %5341 = vmatpush2.msra.mxu0 0.0
        %5342 = vmatprep.subr.mxu0 0.0
        %5343 = vmatpush2.msra.mxu0 0.0
        %5344 = vmatprep.subr.mxu0 0.0
        %5345 = vmatpush2.msra.mxu0 0.0
        %5346 = vmatprep.subr.mxu0 0.0
        %5347 = vmatpush2.msra.mxu0 0.0
        %5348 = vmatprep.subr.mxu0 0.0
        %5349 = vmatpush2.msra.mxu0 0.0
        %5350 = vmatprep.subr.mxu0 0.0
        %5351 = vmatpush2.msra.mxu0 0.0
        %5352 = vmatprep.subr.mxu0 0.0
        %5353 = vmatpush2.msra.mxu0 0.0
        %5354 = vmatprep.subr.mxu0 0.0
        %5355 = vmatpush2.msra.mxu0 0.0
        %5356 = vmatprep.subr.mxu0 0.0
        %5357 = vmatpush2.msra.mxu0 0.0
        %5358 = vmatprep.subr.mxu0 0.0
        %5359 = vmatpush2.msra.mxu0 0.0
        %5360 = vmatprep.subr.mxu0 0.0
        %5361 = vmatpush2.msra.mxu0 0.0
        %5362 = vmatprep.subr.mxu0 0.0
        %5363 = vmatpush2.msra.mxu0 0.0
        %5364 = vmatprep.subr.mxu0 0.0
        %5365 = vmatpush2.msra.mxu0 0.0
        %5366 = vmatprep.subr.mxu0 0.0
        %5367 = vmatpush2.msra.mxu0 0.0
        %5368 = vmatprep.subr.mxu0 0.0
        %5369 = vmatpush2.msra.mxu0 0.0
        %5370 = vmatprep.mubr.f32.mxu0 0.0
        %5371 = vmatmul.mubr.f32.gmra.mxu0 %v5304
        %v5372 = vpop.f32.mrf.mxu0
        %v5373 = vadd.f32 0.0, %v5372
        %v5374 = vpop.f32.mrf.mxu0
        %5375 = vdwg.mxu0
        %5377 = vrot.lane.b32.xlu0 %v1182, 64
        %v5378 = vpop.permute.xlu0 %5377
        %v5381 = vsel %vm2453, %v5208, 0
        %5383 = vmatprep.subr.mxu0 0.0
        %5384 = vmatpush1.msra.mxu0 0.0
        %5385 = vmatprep.subr.mxu0 0.0
        %5386 = vmatpush1.msra.mxu0 0.0
        %5387 = vmatprep.subr.mxu0 0.0
        %5388 = vmatpush1.msra.mxu0 0.0
        %5389 = vmatprep.subr.mxu0 0.0
        %5390 = vmatpush1.msra.mxu0 0.0
        %5391 = vmatprep.subr.mxu0 0.0
        %5392 = vmatpush1.msra.mxu0 0.0
        %5393 = vmatprep.subr.mxu0 0.0
        %5394 = vmatpush1.msra.mxu0 0.0
        %5395 = vmatprep.subr.mxu0 0.0
        %5396 = vmatpush1.msra.mxu0 0.0
        %5397 = vmatprep.subr.mxu0 0.0
        %5398 = vmatpush1.msra.mxu0 0.0
        %5399 = vmatprep.subr.mxu0 0.0
        %5400 = vmatpush1.msra.mxu0 0.0
        %5401 = vmatprep.subr.mxu0 0.0
        %5402 = vmatpush1.msra.mxu0 0.0
        %5403 = vmatprep.subr.mxu0 0.0
        %5404 = vmatpush1.msra.mxu0 0.0
        %5405 = vmatprep.subr.mxu0 0.0
        %5406 = vmatpush1.msra.mxu0 0.0
        %5407 = vmatprep.subr.mxu0 0.0
        %5408 = vmatpush1.msra.mxu0 0.0
        %5409 = vmatprep.subr.mxu0 0.0
        %5410 = vmatpush1.msra.mxu0 0.0
        %5411 = vmatprep.subr.mxu0 0.0
        %5412 = vmatpush1.msra.mxu0 0.0
        %5413 = vmatprep.subr.mxu0 0.0
        %5414 = vmatpush1.msra.mxu0 %v5378
        %5415 = vmatprep.subr.mxu0 0.0
        %5416 = vmatpush2.msra.mxu0 0.0
        %5417 = vmatprep.subr.mxu0 0.0
        %5418 = vmatpush2.msra.mxu0 0.0
        %5419 = vmatprep.subr.mxu0 0.0
        %5420 = vmatpush2.msra.mxu0 0.0
        %5421 = vmatprep.subr.mxu0 0.0
        %5422 = vmatpush2.msra.mxu0 0.0
        %5423 = vmatprep.subr.mxu0 0.0
        %5424 = vmatpush2.msra.mxu0 0.0
        %5425 = vmatprep.subr.mxu0 0.0
        %5426 = vmatpush2.msra.mxu0 0.0
        %5427 = vmatprep.subr.mxu0 0.0
        %5428 = vmatpush2.msra.mxu0 0.0
        %5429 = vmatprep.subr.mxu0 0.0
        %5430 = vmatpush2.msra.mxu0 0.0
        %5431 = vmatprep.subr.mxu0 0.0
        %5432 = vmatpush2.msra.mxu0 0.0
        %5433 = vmatprep.subr.mxu0 0.0
        %5434 = vmatpush2.msra.mxu0 0.0
        %5435 = vmatprep.subr.mxu0 0.0
        %5436 = vmatpush2.msra.mxu0 0.0
        %5437 = vmatprep.subr.mxu0 0.0
        %5438 = vmatpush2.msra.mxu0 0.0
        %5439 = vmatprep.subr.mxu0 0.0
        %5440 = vmatpush2.msra.mxu0 0.0
        %5441 = vmatprep.subr.mxu0 0.0
        %5442 = vmatpush2.msra.mxu0 0.0
        %5443 = vmatprep.subr.mxu0 0.0
        %5444 = vmatpush2.msra.mxu0 0.0
        %5445 = vmatprep.subr.mxu0 0.0
        %5446 = vmatpush2.msra.mxu0 0.0
        %5447 = vmatprep.mubr.f32.mxu0 0.0
        %5448 = vmatmul.mubr.f32.gmra.mxu0 %v5381
        %v5449 = vpop.f32.mrf.mxu0
        %v5450 = vadd.f32 0.0, %v5449
        %v5451 = vpop.f32.mrf.mxu0
        %5452 = vdwg.mxu0
        %5454 = vrot.lane.b32.xlu0 %v1185, 64
        %v5455 = vpop.permute.xlu0 %5454
        %v5458 = vsel %vm2453, %v5209, 0
        %5460 = vmatprep.subr.mxu0 0.0
        %5461 = vmatpush1.msra.mxu0 0.0
        %5462 = vmatprep.subr.mxu0 0.0
        %5463 = vmatpush1.msra.mxu0 0.0
        %5464 = vmatprep.subr.mxu0 0.0
        %5465 = vmatpush1.msra.mxu0 0.0
        %5466 = vmatprep.subr.mxu0 0.0
        %5467 = vmatpush1.msra.mxu0 0.0
        %5468 = vmatprep.subr.mxu0 0.0
        %5469 = vmatpush1.msra.mxu0 0.0
        %5470 = vmatprep.subr.mxu0 0.0
        %5471 = vmatpush1.msra.mxu0 0.0
        %5472 = vmatprep.subr.mxu0 0.0
        %5473 = vmatpush1.msra.mxu0 0.0
        %5474 = vmatprep.subr.mxu0 0.0
        %5475 = vmatpush1.msra.mxu0 0.0
        %5476 = vmatprep.subr.mxu0 0.0
        %5477 = vmatpush1.msra.mxu0 0.0
        %5478 = vmatprep.subr.mxu0 0.0
        %5479 = vmatpush1.msra.mxu0 0.0
        %5480 = vmatprep.subr.mxu0 0.0
        %5481 = vmatpush1.msra.mxu0 0.0
        %5482 = vmatprep.subr.mxu0 0.0
        %5483 = vmatpush1.msra.mxu0 0.0
        %5484 = vmatprep.subr.mxu0 0.0
        %5485 = vmatpush1.msra.mxu0 0.0
        %5486 = vmatprep.subr.mxu0 0.0
        %5487 = vmatpush1.msra.mxu0 0.0
        %5488 = vmatprep.subr.mxu0 0.0
        %5489 = vmatpush1.msra.mxu0 0.0
        %5490 = vmatprep.subr.mxu0 0.0
        %5491 = vmatpush1.msra.mxu0 %v5455
        %5492 = vmatprep.subr.mxu0 0.0
        %5493 = vmatpush2.msra.mxu0 0.0
        %5494 = vmatprep.subr.mxu0 0.0
        %5495 = vmatpush2.msra.mxu0 0.0
        %5496 = vmatprep.subr.mxu0 0.0
        %5497 = vmatpush2.msra.mxu0 0.0
        %5498 = vmatprep.subr.mxu0 0.0
        %5499 = vmatpush2.msra.mxu0 0.0
        %5500 = vmatprep.subr.mxu0 0.0
        %5501 = vmatpush2.msra.mxu0 0.0
        %5502 = vmatprep.subr.mxu0 0.0
        %5503 = vmatpush2.msra.mxu0 0.0
        %5504 = vmatprep.subr.mxu0 0.0
        %5505 = vmatpush2.msra.mxu0 0.0
        %5506 = vmatprep.subr.mxu0 0.0
        %5507 = vmatpush2.msra.mxu0 0.0
        %5508 = vmatprep.subr.mxu0 0.0
        %5509 = vmatpush2.msra.mxu0 0.0
        %5510 = vmatprep.subr.mxu0 0.0
        %5511 = vmatpush2.msra.mxu0 0.0
        %5512 = vmatprep.subr.mxu0 0.0
        %5513 = vmatpush2.msra.mxu0 0.0
        %5514 = vmatprep.subr.mxu0 0.0
        %5515 = vmatpush2.msra.mxu0 0.0
        %5516 = vmatprep.subr.mxu0 0.0
        %5517 = vmatpush2.msra.mxu0 0.0
        %5518 = vmatprep.subr.mxu0 0.0
        %5519 = vmatpush2.msra.mxu0 0.0
        %5520 = vmatprep.subr.mxu0 0.0
        %5521 = vmatpush2.msra.mxu0 0.0
        %5522 = vmatprep.subr.mxu0 0.0
        %5523 = vmatpush2.msra.mxu0 0.0
        %5524 = vmatprep.mubr.f32.mxu0 0.0
        %5525 = vmatmul.mubr.f32.gmra.mxu0 %v5458
        %v5526 = vpop.f32.mrf.mxu0
        %v5527 = vadd.f32 0.0, %v5526
        %v5528 = vpop.f32.mrf.mxu0
        %5529 = vdwg.mxu0
        %5531 = vrot.lane.b32.xlu0 %v1190, 64
        %v5532 = vpop.permute.xlu0 %5531
        %v5535 = vsel %vm2453, %v5210, 0
        %5537 = vmatprep.subr.mxu0 0.0
        %5538 = vmatpush1.msra.mxu0 0.0
        %5539 = vmatprep.subr.mxu0 0.0
        %5540 = vmatpush1.msra.mxu0 0.0
        %5541 = vmatprep.subr.mxu0 0.0
        %5542 = vmatpush1.msra.mxu0 0.0
        %5543 = vmatprep.subr.mxu0 0.0
        %5544 = vmatpush1.msra.mxu0 0.0
        %5545 = vmatprep.subr.mxu0 0.0
        %5546 = vmatpush1.msra.mxu0 0.0
        %5547 = vmatprep.subr.mxu0 0.0
        %5548 = vmatpush1.msra.mxu0 0.0
        %5549 = vmatprep.subr.mxu0 0.0
        %5550 = vmatpush1.msra.mxu0 0.0
        %5551 = vmatprep.subr.mxu0 0.0
        %5552 = vmatpush1.msra.mxu0 0.0
        %5553 = vmatprep.subr.mxu0 0.0
        %5554 = vmatpush1.msra.mxu0 0.0
        %5555 = vmatprep.subr.mxu0 0.0
        %5556 = vmatpush1.msra.mxu0 0.0
        %5557 = vmatprep.subr.mxu0 0.0
        %5558 = vmatpush1.msra.mxu0 0.0
        %5559 = vmatprep.subr.mxu0 0.0
        %5560 = vmatpush1.msra.mxu0 0.0
        %5561 = vmatprep.subr.mxu0 0.0
        %5562 = vmatpush1.msra.mxu0 0.0
        %5563 = vmatprep.subr.mxu0 0.0
        %5564 = vmatpush1.msra.mxu0 0.0
        %5565 = vmatprep.subr.mxu0 0.0
        %5566 = vmatpush1.msra.mxu0 0.0
        %5567 = vmatprep.subr.mxu0 0.0
        %5568 = vmatpush1.msra.mxu0 %v5532
        %5569 = vmatprep.subr.mxu0 0.0
        %5570 = vmatpush2.msra.mxu0 0.0
        %5571 = vmatprep.subr.mxu0 0.0
        %5572 = vmatpush2.msra.mxu0 0.0
        %5573 = vmatprep.subr.mxu0 0.0
        %5574 = vmatpush2.msra.mxu0 0.0
        %5575 = vmatprep.subr.mxu0 0.0
        %5576 = vmatpush2.msra.mxu0 0.0
        %5577 = vmatprep.subr.mxu0 0.0
        %5578 = vmatpush2.msra.mxu0 0.0
        %5579 = vmatprep.subr.mxu0 0.0
        %5580 = vmatpush2.msra.mxu0 0.0
        %5581 = vmatprep.subr.mxu0 0.0
        %5582 = vmatpush2.msra.mxu0 0.0
        %5583 = vmatprep.subr.mxu0 0.0
        %5584 = vmatpush2.msra.mxu0 0.0
        %5585 = vmatprep.subr.mxu0 0.0
        %5586 = vmatpush2.msra.mxu0 0.0
        %5587 = vmatprep.subr.mxu0 0.0
        %5588 = vmatpush2.msra.mxu0 0.0
        %5589 = vmatprep.subr.mxu0 0.0
        %5590 = vmatpush2.msra.mxu0 0.0
        %5591 = vmatprep.subr.mxu0 0.0
        %5592 = vmatpush2.msra.mxu0 0.0
        %5593 = vmatprep.subr.mxu0 0.0
        %5594 = vmatpush2.msra.mxu0 0.0
        %5595 = vmatprep.subr.mxu0 0.0
        %5596 = vmatpush2.msra.mxu0 0.0
        %5597 = vmatprep.subr.mxu0 0.0
        %5598 = vmatpush2.msra.mxu0 0.0
        %5599 = vmatprep.subr.mxu0 0.0
        %5600 = vmatpush2.msra.mxu0 0.0
        %5601 = vmatprep.mubr.f32.mxu0 0.0
        %5602 = vmatmul.mubr.f32.gmra.mxu0 %v5535
        %v5603 = vpop.f32.mrf.mxu0
        %v5604 = vadd.f32 0.0, %v5603
        %v5605 = vpop.f32.mrf.mxu0
        %5606 = vdwg.mxu0
        %5608 = vrot.lane.b32.xlu0 %v1193, 64
        %v5609 = vpop.permute.xlu0 %5608
        %v5612 = vsel %vm2453, %v5211, 0
        %5614 = vmatprep.subr.mxu0 0.0
        %5615 = vmatpush1.msra.mxu0 0.0
        %5616 = vmatprep.subr.mxu0 0.0
        %5617 = vmatpush1.msra.mxu0 0.0
        %5618 = vmatprep.subr.mxu0 0.0
        %5619 = vmatpush1.msra.mxu0 0.0
        %5620 = vmatprep.subr.mxu0 0.0
        %5621 = vmatpush1.msra.mxu0 0.0
        %5622 = vmatprep.subr.mxu0 0.0
        %5623 = vmatpush1.msra.mxu0 0.0
        %5624 = vmatprep.subr.mxu0 0.0
        %5625 = vmatpush1.msra.mxu0 0.0
        %5626 = vmatprep.subr.mxu0 0.0
        %5627 = vmatpush1.msra.mxu0 0.0
        %5628 = vmatprep.subr.mxu0 0.0
        %5629 = vmatpush1.msra.mxu0 0.0
        %5630 = vmatprep.subr.mxu0 0.0
        %5631 = vmatpush1.msra.mxu0 0.0
        %5632 = vmatprep.subr.mxu0 0.0
        %5633 = vmatpush1.msra.mxu0 0.0
        %5634 = vmatprep.subr.mxu0 0.0
        %5635 = vmatpush1.msra.mxu0 0.0
        %5636 = vmatprep.subr.mxu0 0.0
        %5637 = vmatpush1.msra.mxu0 0.0
        %5638 = vmatprep.subr.mxu0 0.0
        %5639 = vmatpush1.msra.mxu0 0.0
        %5640 = vmatprep.subr.mxu0 0.0
        %5641 = vmatpush1.msra.mxu0 0.0
        %5642 = vmatprep.subr.mxu0 0.0
        %5643 = vmatpush1.msra.mxu0 0.0
        %5644 = vmatprep.subr.mxu0 0.0
        %5645 = vmatpush1.msra.mxu0 %v5609
        %5646 = vmatprep.subr.mxu0 0.0
        %5647 = vmatpush2.msra.mxu0 0.0
        %5648 = vmatprep.subr.mxu0 0.0
        %5649 = vmatpush2.msra.mxu0 0.0
        %5650 = vmatprep.subr.mxu0 0.0
        %5651 = vmatpush2.msra.mxu0 0.0
        %5652 = vmatprep.subr.mxu0 0.0
        %5653 = vmatpush2.msra.mxu0 0.0
        %5654 = vmatprep.subr.mxu0 0.0
        %5655 = vmatpush2.msra.mxu0 0.0
        %5656 = vmatprep.subr.mxu0 0.0
        %5657 = vmatpush2.msra.mxu0 0.0
        %5658 = vmatprep.subr.mxu0 0.0
        %5659 = vmatpush2.msra.mxu0 0.0
        %5660 = vmatprep.subr.mxu0 0.0
        %5661 = vmatpush2.msra.mxu0 0.0
        %5662 = vmatprep.subr.mxu0 0.0
        %5663 = vmatpush2.msra.mxu0 0.0
        %5664 = vmatprep.subr.mxu0 0.0
        %5665 = vmatpush2.msra.mxu0 0.0
        %5666 = vmatprep.subr.mxu0 0.0
        %5667 = vmatpush2.msra.mxu0 0.0
        %5668 = vmatprep.subr.mxu0 0.0
        %5669 = vmatpush2.msra.mxu0 0.0
        %5670 = vmatprep.subr.mxu0 0.0
        %5671 = vmatpush2.msra.mxu0 0.0
        %5672 = vmatprep.subr.mxu0 0.0
        %5673 = vmatpush2.msra.mxu0 0.0
        %5674 = vmatprep.subr.mxu0 0.0
        %5675 = vmatpush2.msra.mxu0 0.0
        %5676 = vmatprep.subr.mxu0 0.0
        %5677 = vmatpush2.msra.mxu0 0.0
        %5678 = vmatprep.mubr.f32.mxu0 0.0
        %5679 = vmatmul.mubr.f32.gmra.mxu0 %v5612
        %v5680 = vpop.f32.mrf.mxu0
        %v5681 = vadd.f32 0.0, %v5680
        %v5682 = vpop.f32.mrf.mxu0
        %5683 = vdwg.mxu0
        %5685 = vrot.lane.b32.xlu0 %v1198, 64
        %v5686 = vpop.permute.xlu0 %5685
        %v5689 = vsel %vm2453, %v5212, 0
        %5691 = vmatprep.subr.mxu0 0.0
        %5692 = vmatpush1.msra.mxu0 0.0
        %5693 = vmatprep.subr.mxu0 0.0
        %5694 = vmatpush1.msra.mxu0 0.0
        %5695 = vmatprep.subr.mxu0 0.0
        %5696 = vmatpush1.msra.mxu0 0.0
        %5697 = vmatprep.subr.mxu0 0.0
        %5698 = vmatpush1.msra.mxu0 0.0
        %5699 = vmatprep.subr.mxu0 0.0
        %5700 = vmatpush1.msra.mxu0 0.0
        %5701 = vmatprep.subr.mxu0 0.0
        %5702 = vmatpush1.msra.mxu0 0.0
        %5703 = vmatprep.subr.mxu0 0.0
        %5704 = vmatpush1.msra.mxu0 0.0
        %5705 = vmatprep.subr.mxu0 0.0
        %5706 = vmatpush1.msra.mxu0 0.0
        %5707 = vmatprep.subr.mxu0 0.0
        %5708 = vmatpush1.msra.mxu0 0.0
        %5709 = vmatprep.subr.mxu0 0.0
        %5710 = vmatpush1.msra.mxu0 0.0
        %5711 = vmatprep.subr.mxu0 0.0
        %5712 = vmatpush1.msra.mxu0 0.0
        %5713 = vmatprep.subr.mxu0 0.0
        %5714 = vmatpush1.msra.mxu0 0.0
        %5715 = vmatprep.subr.mxu0 0.0
        %5716 = vmatpush1.msra.mxu0 0.0
        %5717 = vmatprep.subr.mxu0 0.0
        %5718 = vmatpush1.msra.mxu0 0.0
        %5719 = vmatprep.subr.mxu0 0.0
        %5720 = vmatpush1.msra.mxu0 0.0
        %5721 = vmatprep.subr.mxu0 0.0
        %5722 = vmatpush1.msra.mxu0 %v5686
        %5723 = vmatprep.subr.mxu0 0.0
        %5724 = vmatpush2.msra.mxu0 0.0
        %5725 = vmatprep.subr.mxu0 0.0
        %5726 = vmatpush2.msra.mxu0 0.0
        %5727 = vmatprep.subr.mxu0 0.0
        %5728 = vmatpush2.msra.mxu0 0.0
        %5729 = vmatprep.subr.mxu0 0.0
        %5730 = vmatpush2.msra.mxu0 0.0
        %5731 = vmatprep.subr.mxu0 0.0
        %5732 = vmatpush2.msra.mxu0 0.0
        %5733 = vmatprep.subr.mxu0 0.0
        %5734 = vmatpush2.msra.mxu0 0.0
        %5735 = vmatprep.subr.mxu0 0.0
        %5736 = vmatpush2.msra.mxu0 0.0
        %5737 = vmatprep.subr.mxu0 0.0
        %5738 = vmatpush2.msra.mxu0 0.0
        %5739 = vmatprep.subr.mxu0 0.0
        %5740 = vmatpush2.msra.mxu0 0.0
        %5741 = vmatprep.subr.mxu0 0.0
        %5742 = vmatpush2.msra.mxu0 0.0
        %5743 = vmatprep.subr.mxu0 0.0
        %5744 = vmatpush2.msra.mxu0 0.0
        %5745 = vmatprep.subr.mxu0 0.0
        %5746 = vmatpush2.msra.mxu0 0.0
        %5747 = vmatprep.subr.mxu0 0.0
        %5748 = vmatpush2.msra.mxu0 0.0
        %5749 = vmatprep.subr.mxu0 0.0
        %5750 = vmatpush2.msra.mxu0 0.0
        %5751 = vmatprep.subr.mxu0 0.0
        %5752 = vmatpush2.msra.mxu0 0.0
        %5753 = vmatprep.subr.mxu0 0.0
        %5754 = vmatpush2.msra.mxu0 0.0
        %5755 = vmatprep.mubr.f32.mxu0 0.0
        %5756 = vmatmul.mubr.f32.gmra.mxu0 %v5689
        %v5757 = vpop.f32.mrf.mxu0
        %v5758 = vadd.f32 0.0, %v5757
        %v5759 = vpop.f32.mrf.mxu0
        %5760 = vdwg.mxu0
        %5762 = vrot.lane.b32.xlu0 %v1201, 64
        %v5763 = vpop.permute.xlu0 %5762
        %v5766 = vsel %vm2453, %v5213, 0
        %5768 = vmatprep.subr.mxu0 0.0
        %5769 = vmatpush1.msra.mxu0 0.0
        %5770 = vmatprep.subr.mxu0 0.0
        %5771 = vmatpush1.msra.mxu0 0.0
        %5772 = vmatprep.subr.mxu0 0.0
        %5773 = vmatpush1.msra.mxu0 0.0
        %5774 = vmatprep.subr.mxu0 0.0
        %5775 = vmatpush1.msra.mxu0 0.0
        %5776 = vmatprep.subr.mxu0 0.0
        %5777 = vmatpush1.msra.mxu0 0.0
        %5778 = vmatprep.subr.mxu0 0.0
        %5779 = vmatpush1.msra.mxu0 0.0
        %5780 = vmatprep.subr.mxu0 0.0
        %5781 = vmatpush1.msra.mxu0 0.0
        %5782 = vmatprep.subr.mxu0 0.0
        %5783 = vmatpush1.msra.mxu0 0.0
        %5784 = vmatprep.subr.mxu0 0.0
        %5785 = vmatpush1.msra.mxu0 0.0
        %5786 = vmatprep.subr.mxu0 0.0
        %5787 = vmatpush1.msra.mxu0 0.0
        %5788 = vmatprep.subr.mxu0 0.0
        %5789 = vmatpush1.msra.mxu0 0.0
        %5790 = vmatprep.subr.mxu0 0.0
        %5791 = vmatpush1.msra.mxu0 0.0
        %5792 = vmatprep.subr.mxu0 0.0
        %5793 = vmatpush1.msra.mxu0 0.0
        %5794 = vmatprep.subr.mxu0 0.0
        %5795 = vmatpush1.msra.mxu0 0.0
        %5796 = vmatprep.subr.mxu0 0.0
        %5797 = vmatpush1.msra.mxu0 0.0
        %5798 = vmatprep.subr.mxu0 0.0
        %5799 = vmatpush1.msra.mxu0 %v5763
        %5800 = vmatprep.subr.mxu0 0.0
        %5801 = vmatpush2.msra.mxu0 0.0
        %5802 = vmatprep.subr.mxu0 0.0
        %5803 = vmatpush2.msra.mxu0 0.0
        %5804 = vmatprep.subr.mxu0 0.0
        %5805 = vmatpush2.msra.mxu0 0.0
        %5806 = vmatprep.subr.mxu0 0.0
        %5807 = vmatpush2.msra.mxu0 0.0
        %5808 = vmatprep.subr.mxu0 0.0
        %5809 = vmatpush2.msra.mxu0 0.0
        %5810 = vmatprep.subr.mxu0 0.0
        %5811 = vmatpush2.msra.mxu0 0.0
        %5812 = vmatprep.subr.mxu0 0.0
        %5813 = vmatpush2.msra.mxu0 0.0
        %5814 = vmatprep.subr.mxu0 0.0
        %5815 = vmatpush2.msra.mxu0 0.0
        %5816 = vmatprep.subr.mxu0 0.0
        %5817 = vmatpush2.msra.mxu0 0.0
        %5818 = vmatprep.subr.mxu0 0.0
        %5819 = vmatpush2.msra.mxu0 0.0
        %5820 = vmatprep.subr.mxu0 0.0
        %5821 = vmatpush2.msra.mxu0 0.0
        %5822 = vmatprep.subr.mxu0 0.0
        %5823 = vmatpush2.msra.mxu0 0.0
        %5824 = vmatprep.subr.mxu0 0.0
        %5825 = vmatpush2.msra.mxu0 0.0
        %5826 = vmatprep.subr.mxu0 0.0
        %5827 = vmatpush2.msra.mxu0 0.0
        %5828 = vmatprep.subr.mxu0 0.0
        %5829 = vmatpush2.msra.mxu0 0.0
        %5830 = vmatprep.subr.mxu0 0.0
        %5831 = vmatpush2.msra.mxu0 0.0
        %5832 = vmatprep.mubr.f32.mxu0 0.0
        %5833 = vmatmul.mubr.f32.gmra.mxu0 %v5766
        %v5834 = vpop.f32.mrf.mxu0
        %v5835 = vadd.f32 0.0, %v5834
        %v5836 = vpop.f32.mrf.mxu0
        %5837 = vdwg.mxu0
        %5839 = vrot.lane.b32.xlu0 %v1206, 64
        %v5840 = vpop.permute.xlu0 %5839
        %v5843 = vsel %vm2453, %v5214, 0
        %5845 = vmatprep.subr.mxu0 0.0
        %5846 = vmatpush1.msra.mxu0 0.0
        %5847 = vmatprep.subr.mxu0 0.0
        %5848 = vmatpush1.msra.mxu0 0.0
        %5849 = vmatprep.subr.mxu0 0.0
        %5850 = vmatpush1.msra.mxu0 0.0
        %5851 = vmatprep.subr.mxu0 0.0
        %5852 = vmatpush1.msra.mxu0 0.0
        %5853 = vmatprep.subr.mxu0 0.0
        %5854 = vmatpush1.msra.mxu0 0.0
        %5855 = vmatprep.subr.mxu0 0.0
        %5856 = vmatpush1.msra.mxu0 0.0
        %5857 = vmatprep.subr.mxu0 0.0
        %5858 = vmatpush1.msra.mxu0 0.0
        %5859 = vmatprep.subr.mxu0 0.0
        %5860 = vmatpush1.msra.mxu0 0.0
        %5861 = vmatprep.subr.mxu0 0.0
        %5862 = vmatpush1.msra.mxu0 0.0
        %5863 = vmatprep.subr.mxu0 0.0
        %5864 = vmatpush1.msra.mxu0 0.0
        %5865 = vmatprep.subr.mxu0 0.0
        %5866 = vmatpush1.msra.mxu0 0.0
        %5867 = vmatprep.subr.mxu0 0.0
        %5868 = vmatpush1.msra.mxu0 0.0
        %5869 = vmatprep.subr.mxu0 0.0
        %5870 = vmatpush1.msra.mxu0 0.0
        %5871 = vmatprep.subr.mxu0 0.0
        %5872 = vmatpush1.msra.mxu0 0.0
        %5873 = vmatprep.subr.mxu0 0.0
        %5874 = vmatpush1.msra.mxu0 0.0
        %5875 = vmatprep.subr.mxu0 0.0
        %5876 = vmatpush1.msra.mxu0 %v5840
        %5877 = vmatprep.subr.mxu0 0.0
        %5878 = vmatpush2.msra.mxu0 0.0
        %5879 = vmatprep.subr.mxu0 0.0
        %5880 = vmatpush2.msra.mxu0 0.0
        %5881 = vmatprep.subr.mxu0 0.0
        %5882 = vmatpush2.msra.mxu0 0.0
        %5883 = vmatprep.subr.mxu0 0.0
        %5884 = vmatpush2.msra.mxu0 0.0
        %5885 = vmatprep.subr.mxu0 0.0
        %5886 = vmatpush2.msra.mxu0 0.0
        %5887 = vmatprep.subr.mxu0 0.0
        %5888 = vmatpush2.msra.mxu0 0.0
        %5889 = vmatprep.subr.mxu0 0.0
        %5890 = vmatpush2.msra.mxu0 0.0
        %5891 = vmatprep.subr.mxu0 0.0
        %5892 = vmatpush2.msra.mxu0 0.0
        %5893 = vmatprep.subr.mxu0 0.0
        %5894 = vmatpush2.msra.mxu0 0.0
        %5895 = vmatprep.subr.mxu0 0.0
        %5896 = vmatpush2.msra.mxu0 0.0
        %5897 = vmatprep.subr.mxu0 0.0
        %5898 = vmatpush2.msra.mxu0 0.0
        %5899 = vmatprep.subr.mxu0 0.0
        %5900 = vmatpush2.msra.mxu0 0.0
        %5901 = vmatprep.subr.mxu0 0.0
        %5902 = vmatpush2.msra.mxu0 0.0
        %5903 = vmatprep.subr.mxu0 0.0
        %5904 = vmatpush2.msra.mxu0 0.0
        %5905 = vmatprep.subr.mxu0 0.0
        %5906 = vmatpush2.msra.mxu0 0.0
        %5907 = vmatprep.subr.mxu0 0.0
        %5908 = vmatpush2.msra.mxu0 0.0
        %5909 = vmatprep.mubr.f32.mxu0 0.0
        %5910 = vmatmul.mubr.f32.gmra.mxu0 %v5843
        %v5911 = vpop.f32.mrf.mxu0
        %v5912 = vadd.f32 0.0, %v5911
        %v5913 = vpop.f32.mrf.mxu0
        %5914 = vdwg.mxu0
        %5916 = vrot.lane.b32.xlu0 %v1209, 64
        %v5917 = vpop.permute.xlu0 %5916
        %v5920 = vsel %vm2453, %v5215, 0
        %5922 = vmatprep.subr.mxu0 0.0
        %5923 = vmatpush1.msra.mxu0 0.0
        %5924 = vmatprep.subr.mxu0 0.0
        %5925 = vmatpush1.msra.mxu0 0.0
        %5926 = vmatprep.subr.mxu0 0.0
        %5927 = vmatpush1.msra.mxu0 0.0
        %5928 = vmatprep.subr.mxu0 0.0
        %5929 = vmatpush1.msra.mxu0 0.0
        %5930 = vmatprep.subr.mxu0 0.0
        %5931 = vmatpush1.msra.mxu0 0.0
        %5932 = vmatprep.subr.mxu0 0.0
        %5933 = vmatpush1.msra.mxu0 0.0
        %5934 = vmatprep.subr.mxu0 0.0
        %5935 = vmatpush1.msra.mxu0 0.0
        %5936 = vmatprep.subr.mxu0 0.0
        %5937 = vmatpush1.msra.mxu0 0.0
        %5938 = vmatprep.subr.mxu0 0.0
        %5939 = vmatpush1.msra.mxu0 0.0
        %5940 = vmatprep.subr.mxu0 0.0
        %5941 = vmatpush1.msra.mxu0 0.0
        %5942 = vmatprep.subr.mxu0 0.0
        %5943 = vmatpush1.msra.mxu0 0.0
        %5944 = vmatprep.subr.mxu0 0.0
        %5945 = vmatpush1.msra.mxu0 0.0
        %5946 = vmatprep.subr.mxu0 0.0
        %5947 = vmatpush1.msra.mxu0 0.0
        %5948 = vmatprep.subr.mxu0 0.0
        %5949 = vmatpush1.msra.mxu0 0.0
        %5950 = vmatprep.subr.mxu0 0.0
        %5951 = vmatpush1.msra.mxu0 0.0
        %5952 = vmatprep.subr.mxu0 0.0
        %5953 = vmatpush1.msra.mxu0 %v5917
        %5954 = vmatprep.subr.mxu0 0.0
        %5955 = vmatpush2.msra.mxu0 0.0
        %5956 = vmatprep.subr.mxu0 0.0
        %5957 = vmatpush2.msra.mxu0 0.0
        %5958 = vmatprep.subr.mxu0 0.0
        %5959 = vmatpush2.msra.mxu0 0.0
        %5960 = vmatprep.subr.mxu0 0.0
        %5961 = vmatpush2.msra.mxu0 0.0
        %5962 = vmatprep.subr.mxu0 0.0
        %5963 = vmatpush2.msra.mxu0 0.0
        %5964 = vmatprep.subr.mxu0 0.0
        %5965 = vmatpush2.msra.mxu0 0.0
        %5966 = vmatprep.subr.mxu0 0.0
        %5967 = vmatpush2.msra.mxu0 0.0
        %5968 = vmatprep.subr.mxu0 0.0
        %5969 = vmatpush2.msra.mxu0 0.0
        %5970 = vmatprep.subr.mxu0 0.0
        %5971 = vmatpush2.msra.mxu0 0.0
        %5972 = vmatprep.subr.mxu0 0.0
        %5973 = vmatpush2.msra.mxu0 0.0
        %5974 = vmatprep.subr.mxu0 0.0
        %5975 = vmatpush2.msra.mxu0 0.0
        %5976 = vmatprep.subr.mxu0 0.0
        %5977 = vmatpush2.msra.mxu0 0.0
        %5978 = vmatprep.subr.mxu0 0.0
        %5979 = vmatpush2.msra.mxu0 0.0
        %5980 = vmatprep.subr.mxu0 0.0
        %5981 = vmatpush2.msra.mxu0 0.0
        %5982 = vmatprep.subr.mxu0 0.0
        %5983 = vmatpush2.msra.mxu0 0.0
        %5984 = vmatprep.subr.mxu0 0.0
        %5985 = vmatpush2.msra.mxu0 0.0
        %5986 = vmatprep.mubr.f32.mxu0 0.0
        %5987 = vmatmul.mubr.f32.gmra.mxu0 %v5920
        %v5988 = vpop.f32.mrf.mxu0
        %v5989 = vadd.f32 0.0, %v5988
        %v5990 = vpop.f32.mrf.mxu0
        %5991 = vdwg.mxu0
        %5993 = vrot.lane.b32.xlu0 %v1214, 64
        %v5994 = vpop.permute.xlu0 %5993
        %v5997 = vsel %vm2453, %v5216, 0
        %5999 = vmatprep.subr.mxu0 0.0
        %6000 = vmatpush1.msra.mxu0 0.0
        %6001 = vmatprep.subr.mxu0 0.0
        %6002 = vmatpush1.msra.mxu0 0.0
        %6003 = vmatprep.subr.mxu0 0.0
        %6004 = vmatpush1.msra.mxu0 0.0
        %6005 = vmatprep.subr.mxu0 0.0
        %6006 = vmatpush1.msra.mxu0 0.0
        %6007 = vmatprep.subr.mxu0 0.0
        %6008 = vmatpush1.msra.mxu0 0.0
        %6009 = vmatprep.subr.mxu0 0.0
        %6010 = vmatpush1.msra.mxu0 0.0
        %6011 = vmatprep.subr.mxu0 0.0
        %6012 = vmatpush1.msra.mxu0 0.0
        %6013 = vmatprep.subr.mxu0 0.0
        %6014 = vmatpush1.msra.mxu0 0.0
        %6015 = vmatprep.subr.mxu0 0.0
        %6016 = vmatpush1.msra.mxu0 0.0
        %6017 = vmatprep.subr.mxu0 0.0
        %6018 = vmatpush1.msra.mxu0 0.0
        %6019 = vmatprep.subr.mxu0 0.0
        %6020 = vmatpush1.msra.mxu0 0.0
        %6021 = vmatprep.subr.mxu0 0.0
        %6022 = vmatpush1.msra.mxu0 0.0
        %6023 = vmatprep.subr.mxu0 0.0
        %6024 = vmatpush1.msra.mxu0 0.0
        %6025 = vmatprep.subr.mxu0 0.0
        %6026 = vmatpush1.msra.mxu0 0.0
        %6027 = vmatprep.subr.mxu0 0.0
        %6028 = vmatpush1.msra.mxu0 0.0
        %6029 = vmatprep.subr.mxu0 0.0
        %6030 = vmatpush1.msra.mxu0 %v5994
        %6031 = vmatprep.subr.mxu0 0.0
        %6032 = vmatpush2.msra.mxu0 0.0
        %6033 = vmatprep.subr.mxu0 0.0
        %6034 = vmatpush2.msra.mxu0 0.0
        %6035 = vmatprep.subr.mxu0 0.0
        %6036 = vmatpush2.msra.mxu0 0.0
        %6037 = vmatprep.subr.mxu0 0.0
        %6038 = vmatpush2.msra.mxu0 0.0
        %6039 = vmatprep.subr.mxu0 0.0
        %6040 = vmatpush2.msra.mxu0 0.0
        %6041 = vmatprep.subr.mxu0 0.0
        %6042 = vmatpush2.msra.mxu0 0.0
        %6043 = vmatprep.subr.mxu0 0.0
        %6044 = vmatpush2.msra.mxu0 0.0
        %6045 = vmatprep.subr.mxu0 0.0
        %6046 = vmatpush2.msra.mxu0 0.0
        %6047 = vmatprep.subr.mxu0 0.0
        %6048 = vmatpush2.msra.mxu0 0.0
        %6049 = vmatprep.subr.mxu0 0.0
        %6050 = vmatpush2.msra.mxu0 0.0
        %6051 = vmatprep.subr.mxu0 0.0
        %6052 = vmatpush2.msra.mxu0 0.0
        %6053 = vmatprep.subr.mxu0 0.0
        %6054 = vmatpush2.msra.mxu0 0.0
        %6055 = vmatprep.subr.mxu0 0.0
        %6056 = vmatpush2.msra.mxu0 0.0
        %6057 = vmatprep.subr.mxu0 0.0
        %6058 = vmatpush2.msra.mxu0 0.0
        %6059 = vmatprep.subr.mxu0 0.0
        %6060 = vmatpush2.msra.mxu0 0.0
        %6061 = vmatprep.subr.mxu0 0.0
        %6062 = vmatpush2.msra.mxu0 0.0
        %6063 = vmatprep.mubr.f32.mxu0 0.0
        %6064 = vmatmul.mubr.f32.gmra.mxu0 %v5997
        %v6065 = vpop.f32.mrf.mxu0
        %v6066 = vadd.f32 0.0, %v6065
        %v6067 = vpop.f32.mrf.mxu0
        %6068 = vdwg.mxu0
        %6070 = vrot.lane.b32.xlu0 %v1217, 64
        %v6071 = vpop.permute.xlu0 %6070
        %v6074 = vsel %vm2453, %v5217, 0
        %6076 = vmatprep.subr.mxu0 0.0
        %6077 = vmatpush1.msra.mxu0 0.0
        %6078 = vmatprep.subr.mxu0 0.0
        %6079 = vmatpush1.msra.mxu0 0.0
        %6080 = vmatprep.subr.mxu0 0.0
        %6081 = vmatpush1.msra.mxu0 0.0
        %6082 = vmatprep.subr.mxu0 0.0
        %6083 = vmatpush1.msra.mxu0 0.0
        %6084 = vmatprep.subr.mxu0 0.0
        %6085 = vmatpush1.msra.mxu0 0.0
        %6086 = vmatprep.subr.mxu0 0.0
        %6087 = vmatpush1.msra.mxu0 0.0
        %6088 = vmatprep.subr.mxu0 0.0
        %6089 = vmatpush1.msra.mxu0 0.0
        %6090 = vmatprep.subr.mxu0 0.0
        %6091 = vmatpush1.msra.mxu0 0.0
        %6092 = vmatprep.subr.mxu0 0.0
        %6093 = vmatpush1.msra.mxu0 0.0
        %6094 = vmatprep.subr.mxu0 0.0
        %6095 = vmatpush1.msra.mxu0 0.0
        %6096 = vmatprep.subr.mxu0 0.0
        %6097 = vmatpush1.msra.mxu0 0.0
        %6098 = vmatprep.subr.mxu0 0.0
        %6099 = vmatpush1.msra.mxu0 0.0
        %6100 = vmatprep.subr.mxu0 0.0
        %6101 = vmatpush1.msra.mxu0 0.0
        %6102 = vmatprep.subr.mxu0 0.0
        %6103 = vmatpush1.msra.mxu0 0.0
        %6104 = vmatprep.subr.mxu0 0.0
        %6105 = vmatpush1.msra.mxu0 0.0
        %6106 = vmatprep.subr.mxu0 0.0
        %6107 = vmatpush1.msra.mxu0 %v6071
        %6108 = vmatprep.subr.mxu0 0.0
        %6109 = vmatpush2.msra.mxu0 0.0
        %6110 = vmatprep.subr.mxu0 0.0
        %6111 = vmatpush2.msra.mxu0 0.0
        %6112 = vmatprep.subr.mxu0 0.0
        %6113 = vmatpush2.msra.mxu0 0.0
        %6114 = vmatprep.subr.mxu0 0.0
        %6115 = vmatpush2.msra.mxu0 0.0
        %6116 = vmatprep.subr.mxu0 0.0
        %6117 = vmatpush2.msra.mxu0 0.0
        %6118 = vmatprep.subr.mxu0 0.0
        %6119 = vmatpush2.msra.mxu0 0.0
        %6120 = vmatprep.subr.mxu0 0.0
        %6121 = vmatpush2.msra.mxu0 0.0
        %6122 = vmatprep.subr.mxu0 0.0
        %6123 = vmatpush2.msra.mxu0 0.0
        %6124 = vmatprep.subr.mxu0 0.0
        %6125 = vmatpush2.msra.mxu0 0.0
        %6126 = vmatprep.subr.mxu0 0.0
        %6127 = vmatpush2.msra.mxu0 0.0
        %6128 = vmatprep.subr.mxu0 0.0
        %6129 = vmatpush2.msra.mxu0 0.0
        %6130 = vmatprep.subr.mxu0 0.0
        %6131 = vmatpush2.msra.mxu0 0.0
        %6132 = vmatprep.subr.mxu0 0.0
        %6133 = vmatpush2.msra.mxu0 0.0
        %6134 = vmatprep.subr.mxu0 0.0
        %6135 = vmatpush2.msra.mxu0 0.0
        %6136 = vmatprep.subr.mxu0 0.0
        %6137 = vmatpush2.msra.mxu0 0.0
        %6138 = vmatprep.subr.mxu0 0.0
        %6139 = vmatpush2.msra.mxu0 0.0
        %6140 = vmatprep.mubr.f32.mxu0 0.0
        %6141 = vmatmul.mubr.f32.gmra.mxu0 %v6074
        %v6142 = vpop.f32.mrf.mxu0
        %v6143 = vadd.f32 0.0, %v6142
        %v6144 = vpop.f32.mrf.mxu0
        %6145 = vdwg.mxu0
        %6147 = vrot.lane.b32.xlu0 %v1222, 64
        %v6148 = vpop.permute.xlu0 %6147
        %v6151 = vsel %vm2453, %v5218, 0
        %6153 = vmatprep.subr.mxu0 0.0
        %6154 = vmatpush1.msra.mxu0 0.0
        %6155 = vmatprep.subr.mxu0 0.0
        %6156 = vmatpush1.msra.mxu0 0.0
        %6157 = vmatprep.subr.mxu0 0.0
        %6158 = vmatpush1.msra.mxu0 0.0
        %6159 = vmatprep.subr.mxu0 0.0
        %6160 = vmatpush1.msra.mxu0 0.0
        %6161 = vmatprep.subr.mxu0 0.0
        %6162 = vmatpush1.msra.mxu0 0.0
        %6163 = vmatprep.subr.mxu0 0.0
        %6164 = vmatpush1.msra.mxu0 0.0
        %6165 = vmatprep.subr.mxu0 0.0
        %6166 = vmatpush1.msra.mxu0 0.0
        %6167 = vmatprep.subr.mxu0 0.0
        %6168 = vmatpush1.msra.mxu0 0.0
        %6169 = vmatprep.subr.mxu0 0.0
        %6170 = vmatpush1.msra.mxu0 0.0
        %6171 = vmatprep.subr.mxu0 0.0
        %6172 = vmatpush1.msra.mxu0 0.0
        %6173 = vmatprep.subr.mxu0 0.0
        %6174 = vmatpush1.msra.mxu0 0.0
        %6175 = vmatprep.subr.mxu0 0.0
        %6176 = vmatpush1.msra.mxu0 0.0
        %6177 = vmatprep.subr.mxu0 0.0
        %6178 = vmatpush1.msra.mxu0 0.0
        %6179 = vmatprep.subr.mxu0 0.0
        %6180 = vmatpush1.msra.mxu0 0.0
        %6181 = vmatprep.subr.mxu0 0.0
        %6182 = vmatpush1.msra.mxu0 0.0
        %6183 = vmatprep.subr.mxu0 0.0
        %6184 = vmatpush1.msra.mxu0 %v6148
        %6185 = vmatprep.subr.mxu0 0.0
        %6186 = vmatpush2.msra.mxu0 0.0
        %6187 = vmatprep.subr.mxu0 0.0
        %6188 = vmatpush2.msra.mxu0 0.0
        %6189 = vmatprep.subr.mxu0 0.0
        %6190 = vmatpush2.msra.mxu0 0.0
        %6191 = vmatprep.subr.mxu0 0.0
        %6192 = vmatpush2.msra.mxu0 0.0
        %6193 = vmatprep.subr.mxu0 0.0
        %6194 = vmatpush2.msra.mxu0 0.0
        %6195 = vmatprep.subr.mxu0 0.0
        %6196 = vmatpush2.msra.mxu0 0.0
        %6197 = vmatprep.subr.mxu0 0.0
        %6198 = vmatpush2.msra.mxu0 0.0
        %6199 = vmatprep.subr.mxu0 0.0
        %6200 = vmatpush2.msra.mxu0 0.0
        %6201 = vmatprep.subr.mxu0 0.0
        %6202 = vmatpush2.msra.mxu0 0.0
        %6203 = vmatprep.subr.mxu0 0.0
        %6204 = vmatpush2.msra.mxu0 0.0
        %6205 = vmatprep.subr.mxu0 0.0
        %6206 = vmatpush2.msra.mxu0 0.0
        %6207 = vmatprep.subr.mxu0 0.0
        %6208 = vmatpush2.msra.mxu0 0.0
        %6209 = vmatprep.subr.mxu0 0.0
        %6210 = vmatpush2.msra.mxu0 0.0
        %6211 = vmatprep.subr.mxu0 0.0
        %6212 = vmatpush2.msra.mxu0 0.0
        %6213 = vmatprep.subr.mxu0 0.0
        %6214 = vmatpush2.msra.mxu0 0.0
        %6215 = vmatprep.subr.mxu0 0.0
        %6216 = vmatpush2.msra.mxu0 0.0
        %6217 = vmatprep.mubr.f32.mxu0 0.0
        %6218 = vmatmul.mubr.f32.gmra.mxu0 %v6151
        %v6219 = vpop.f32.mrf.mxu0
        %v6220 = vadd.f32 0.0, %v6219
        %v6221 = vpop.f32.mrf.mxu0
        %6222 = vdwg.mxu0
        %6224 = vrot.lane.b32.xlu0 %v1225, 64
        %v6225 = vpop.permute.xlu0 %6224
        %v6228 = vsel %vm2453, %v5219, 0
        %6230 = vmatprep.subr.mxu0 0.0
        %6231 = vmatpush1.msra.mxu0 0.0
        %6232 = vmatprep.subr.mxu0 0.0
        %6233 = vmatpush1.msra.mxu0 0.0
        %6234 = vmatprep.subr.mxu0 0.0
        %6235 = vmatpush1.msra.mxu0 0.0
        %6236 = vmatprep.subr.mxu0 0.0
        %6237 = vmatpush1.msra.mxu0 0.0
        %6238 = vmatprep.subr.mxu0 0.0
        %6239 = vmatpush1.msra.mxu0 0.0
        %6240 = vmatprep.subr.mxu0 0.0
        %6241 = vmatpush1.msra.mxu0 0.0
        %6242 = vmatprep.subr.mxu0 0.0
        %6243 = vmatpush1.msra.mxu0 0.0
        %6244 = vmatprep.subr.mxu0 0.0
        %6245 = vmatpush1.msra.mxu0 0.0
        %6246 = vmatprep.subr.mxu0 0.0
        %6247 = vmatpush1.msra.mxu0 0.0
        %6248 = vmatprep.subr.mxu0 0.0
        %6249 = vmatpush1.msra.mxu0 0.0
        %6250 = vmatprep.subr.mxu0 0.0
        %6251 = vmatpush1.msra.mxu0 0.0
        %6252 = vmatprep.subr.mxu0 0.0
        %6253 = vmatpush1.msra.mxu0 0.0
        %6254 = vmatprep.subr.mxu0 0.0
        %6255 = vmatpush1.msra.mxu0 0.0
        %6256 = vmatprep.subr.mxu0 0.0
        %6257 = vmatpush1.msra.mxu0 0.0
        %6258 = vmatprep.subr.mxu0 0.0
        %6259 = vmatpush1.msra.mxu0 0.0
        %6260 = vmatprep.subr.mxu0 0.0
        %6261 = vmatpush1.msra.mxu0 %v6225
        %6262 = vmatprep.subr.mxu0 0.0
        %6263 = vmatpush2.msra.mxu0 0.0
        %6264 = vmatprep.subr.mxu0 0.0
        %6265 = vmatpush2.msra.mxu0 0.0
        %6266 = vmatprep.subr.mxu0 0.0
        %6267 = vmatpush2.msra.mxu0 0.0
        %6268 = vmatprep.subr.mxu0 0.0
        %6269 = vmatpush2.msra.mxu0 0.0
        %6270 = vmatprep.subr.mxu0 0.0
        %6271 = vmatpush2.msra.mxu0 0.0
        %6272 = vmatprep.subr.mxu0 0.0
        %6273 = vmatpush2.msra.mxu0 0.0
        %6274 = vmatprep.subr.mxu0 0.0
        %6275 = vmatpush2.msra.mxu0 0.0
        %6276 = vmatprep.subr.mxu0 0.0
        %6277 = vmatpush2.msra.mxu0 0.0
        %6278 = vmatprep.subr.mxu0 0.0
        %6279 = vmatpush2.msra.mxu0 0.0
        %6280 = vmatprep.subr.mxu0 0.0
        %6281 = vmatpush2.msra.mxu0 0.0
        %6282 = vmatprep.subr.mxu0 0.0
        %6283 = vmatpush2.msra.mxu0 0.0
        %6284 = vmatprep.subr.mxu0 0.0
        %6285 = vmatpush2.msra.mxu0 0.0
        %6286 = vmatprep.subr.mxu0 0.0
        %6287 = vmatpush2.msra.mxu0 0.0
        %6288 = vmatprep.subr.mxu0 0.0
        %6289 = vmatpush2.msra.mxu0 0.0
        %6290 = vmatprep.subr.mxu0 0.0
        %6291 = vmatpush2.msra.mxu0 0.0
        %6292 = vmatprep.subr.mxu0 0.0
        %6293 = vmatpush2.msra.mxu0 0.0
        %6294 = vmatprep.mubr.f32.mxu0 0.0
        %6295 = vmatmul.mubr.f32.gmra.mxu0 %v6228
        %v6296 = vpop.f32.mrf.mxu0
        %v6297 = vadd.f32 0.0, %v6296
        %v6298 = vpop.f32.mrf.mxu0
        %6299 = vdwg.mxu0
        %6301 = vrot.lane.b32.xlu0 %v1230, 64
        %v6302 = vpop.permute.xlu0 %6301
        %v6305 = vsel %vm2453, %v5220, 0
        %6307 = vmatprep.subr.mxu0 0.0
        %6308 = vmatpush1.msra.mxu0 0.0
        %6309 = vmatprep.subr.mxu0 0.0
        %6310 = vmatpush1.msra.mxu0 0.0
        %6311 = vmatprep.subr.mxu0 0.0
        %6312 = vmatpush1.msra.mxu0 0.0
        %6313 = vmatprep.subr.mxu0 0.0
        %6314 = vmatpush1.msra.mxu0 0.0
        %6315 = vmatprep.subr.mxu0 0.0
        %6316 = vmatpush1.msra.mxu0 0.0
        %6317 = vmatprep.subr.mxu0 0.0
        %6318 = vmatpush1.msra.mxu0 0.0
        %6319 = vmatprep.subr.mxu0 0.0
        %6320 = vmatpush1.msra.mxu0 0.0
        %6321 = vmatprep.subr.mxu0 0.0
        %6322 = vmatpush1.msra.mxu0 0.0
        %6323 = vmatprep.subr.mxu0 0.0
        %6324 = vmatpush1.msra.mxu0 0.0
        %6325 = vmatprep.subr.mxu0 0.0
        %6326 = vmatpush1.msra.mxu0 0.0
        %6327 = vmatprep.subr.mxu0 0.0
        %6328 = vmatpush1.msra.mxu0 0.0
        %6329 = vmatprep.subr.mxu0 0.0
        %6330 = vmatpush1.msra.mxu0 0.0
        %6331 = vmatprep.subr.mxu0 0.0
        %6332 = vmatpush1.msra.mxu0 0.0
        %6333 = vmatprep.subr.mxu0 0.0
        %6334 = vmatpush1.msra.mxu0 0.0
        %6335 = vmatprep.subr.mxu0 0.0
        %6336 = vmatpush1.msra.mxu0 0.0
        %6337 = vmatprep.subr.mxu0 0.0
        %6338 = vmatpush1.msra.mxu0 %v6302
        %6339 = vmatprep.subr.mxu0 0.0
        %6340 = vmatpush2.msra.mxu0 0.0
        %6341 = vmatprep.subr.mxu0 0.0
        %6342 = vmatpush2.msra.mxu0 0.0
        %6343 = vmatprep.subr.mxu0 0.0
        %6344 = vmatpush2.msra.mxu0 0.0
        %6345 = vmatprep.subr.mxu0 0.0
        %6346 = vmatpush2.msra.mxu0 0.0
        %6347 = vmatprep.subr.mxu0 0.0
        %6348 = vmatpush2.msra.mxu0 0.0
        %6349 = vmatprep.subr.mxu0 0.0
        %6350 = vmatpush2.msra.mxu0 0.0
        %6351 = vmatprep.subr.mxu0 0.0
        %6352 = vmatpush2.msra.mxu0 0.0
        %6353 = vmatprep.subr.mxu0 0.0
        %6354 = vmatpush2.msra.mxu0 0.0
        %6355 = vmatprep.subr.mxu0 0.0
        %6356 = vmatpush2.msra.mxu0 0.0
        %6357 = vmatprep.subr.mxu0 0.0
        %6358 = vmatpush2.msra.mxu0 0.0
        %6359 = vmatprep.subr.mxu0 0.0
        %6360 = vmatpush2.msra.mxu0 0.0
        %6361 = vmatprep.subr.mxu0 0.0
        %6362 = vmatpush2.msra.mxu0 0.0
        %6363 = vmatprep.subr.mxu0 0.0
        %6364 = vmatpush2.msra.mxu0 0.0
        %6365 = vmatprep.subr.mxu0 0.0
        %6366 = vmatpush2.msra.mxu0 0.0
        %6367 = vmatprep.subr.mxu0 0.0
        %6368 = vmatpush2.msra.mxu0 0.0
        %6369 = vmatprep.subr.mxu0 0.0
        %6370 = vmatpush2.msra.mxu0 0.0
        %6371 = vmatprep.mubr.f32.mxu0 0.0
        %6372 = vmatmul.mubr.f32.gmra.mxu0 %v6305
        %v6373 = vpop.f32.mrf.mxu0
        %v6374 = vadd.f32 0.0, %v6373
        %v6375 = vpop.f32.mrf.mxu0
        %6376 = vdwg.mxu0
        %6378 = vrot.lane.b32.xlu0 %v1233, 64
        %v6379 = vpop.permute.xlu0 %6378
        %v6382 = vsel %vm2453, %v5221, 0
        %6384 = vmatprep.subr.mxu0 0.0
        %6385 = vmatpush1.msra.mxu0 0.0
        %6386 = vmatprep.subr.mxu0 0.0
        %6387 = vmatpush1.msra.mxu0 0.0
        %6388 = vmatprep.subr.mxu0 0.0
        %6389 = vmatpush1.msra.mxu0 0.0
        %6390 = vmatprep.subr.mxu0 0.0
        %6391 = vmatpush1.msra.mxu0 0.0
        %6392 = vmatprep.subr.mxu0 0.0
        %6393 = vmatpush1.msra.mxu0 0.0
        %6394 = vmatprep.subr.mxu0 0.0
        %6395 = vmatpush1.msra.mxu0 0.0
        %6396 = vmatprep.subr.mxu0 0.0
        %6397 = vmatpush1.msra.mxu0 0.0
        %6398 = vmatprep.subr.mxu0 0.0
        %6399 = vmatpush1.msra.mxu0 0.0
        %6400 = vmatprep.subr.mxu0 0.0
        %6401 = vmatpush1.msra.mxu0 0.0
        %6402 = vmatprep.subr.mxu0 0.0
        %6403 = vmatpush1.msra.mxu0 0.0
        %6404 = vmatprep.subr.mxu0 0.0
        %6405 = vmatpush1.msra.mxu0 0.0
        %6406 = vmatprep.subr.mxu0 0.0
        %6407 = vmatpush1.msra.mxu0 0.0
        %6408 = vmatprep.subr.mxu0 0.0
        %6409 = vmatpush1.msra.mxu0 0.0
        %6410 = vmatprep.subr.mxu0 0.0
        %6411 = vmatpush1.msra.mxu0 0.0
        %6412 = vmatprep.subr.mxu0 0.0
        %6413 = vmatpush1.msra.mxu0 0.0
        %6414 = vmatprep.subr.mxu0 0.0
        %6415 = vmatpush1.msra.mxu0 %v6379
        %6416 = vmatprep.subr.mxu0 0.0
        %6417 = vmatpush2.msra.mxu0 0.0
        %6418 = vmatprep.subr.mxu0 0.0
        %6419 = vmatpush2.msra.mxu0 0.0
        %6420 = vmatprep.subr.mxu0 0.0
        %6421 = vmatpush2.msra.mxu0 0.0
        %6422 = vmatprep.subr.mxu0 0.0
        %6423 = vmatpush2.msra.mxu0 0.0
        %6424 = vmatprep.subr.mxu0 0.0
        %6425 = vmatpush2.msra.mxu0 0.0
        %6426 = vmatprep.subr.mxu0 0.0
        %6427 = vmatpush2.msra.mxu0 0.0
        %6428 = vmatprep.subr.mxu0 0.0
        %6429 = vmatpush2.msra.mxu0 0.0
        %6430 = vmatprep.subr.mxu0 0.0
        %6431 = vmatpush2.msra.mxu0 0.0
        %6432 = vmatprep.subr.mxu0 0.0
        %6433 = vmatpush2.msra.mxu0 0.0
        %6434 = vmatprep.subr.mxu0 0.0
        %6435 = vmatpush2.msra.mxu0 0.0
        %6436 = vmatprep.subr.mxu0 0.0
        %6437 = vmatpush2.msra.mxu0 0.0
        %6438 = vmatprep.subr.mxu0 0.0
        %6439 = vmatpush2.msra.mxu0 0.0
        %6440 = vmatprep.subr.mxu0 0.0
        %6441 = vmatpush2.msra.mxu0 0.0
        %6442 = vmatprep.subr.mxu0 0.0
        %6443 = vmatpush2.msra.mxu0 0.0
        %6444 = vmatprep.subr.mxu0 0.0
        %6445 = vmatpush2.msra.mxu0 0.0
        %6446 = vmatprep.subr.mxu0 0.0
        %6447 = vmatpush2.msra.mxu0 0.0
        %6448 = vmatprep.mubr.f32.mxu0 0.0
        %6449 = vmatmul.mubr.f32.gmra.mxu0 %v6382
        %v6450 = vpop.f32.mrf.mxu0
        %v6451 = vadd.f32 0.0, %v6450
        %v6452 = vpop.f32.mrf.mxu0
        %6453 = vdwg.mxu0
        %6470 = vrot.lane.b32.xlu0 %v5296, 64
        %v6471 = vpop.permute.xlu0 %6470
        %6472 = vrot.lane.b32.xlu0 %v5373, 64
        %v6473 = vpop.permute.xlu0 %6472
        %6474 = vrot.lane.b32.xlu0 %v5450, 64
        %v6475 = vpop.permute.xlu0 %6474
        %6476 = vrot.lane.b32.xlu0 %v5527, 64
        %v6477 = vpop.permute.xlu0 %6476
        %6478 = vrot.lane.b32.xlu0 %v5604, 64
        %v6479 = vpop.permute.xlu0 %6478
        %6480 = vrot.lane.b32.xlu0 %v5681, 64
        %v6481 = vpop.permute.xlu0 %6480
        %6482 = vrot.lane.b32.xlu0 %v5758, 64
        %v6483 = vpop.permute.xlu0 %6482
        %6484 = vrot.lane.b32.xlu0 %v5835, 64
        %v6485 = vpop.permute.xlu0 %6484
        %6486 = vrot.lane.b32.xlu0 %v5912, 64
        %v6487 = vpop.permute.xlu0 %6486
        %6488 = vrot.lane.b32.xlu0 %v5989, 64
        %v6489 = vpop.permute.xlu0 %6488
        %6490 = vrot.lane.b32.xlu0 %v6066, 64
        %v6491 = vpop.permute.xlu0 %6490
        %6492 = vrot.lane.b32.xlu0 %v6143, 64
        %v6493 = vpop.permute.xlu0 %6492
        %6494 = vrot.lane.b32.xlu0 %v6220, 64
        %v6495 = vpop.permute.xlu0 %6494
        %6496 = vrot.lane.b32.xlu0 %v6297, 64
        %v6497 = vpop.permute.xlu0 %6496
        %6498 = vrot.lane.b32.xlu0 %v6374, 64
        %v6499 = vpop.permute.xlu0 %6498
        %6500 = vrot.lane.b32.xlu0 %v6451, 64
        %v6501 = vpop.permute.xlu0 %6500
        %v6518 = vsel %vm1236, %v2700, %v6471
        %v6519 = vsel %vm1236, %v2773, %v6473
        %v6520 = vsel %vm1236, %v2846, %v6475
        %v6521 = vsel %vm1236, %v2919, %v6477
        %v6522 = vsel %vm1236, %v2992, %v6479
        %v6523 = vsel %vm1236, %v3065, %v6481
        %v6524 = vsel %vm1236, %v3138, %v6483
        %v6525 = vsel %vm1236, %v3211, %v6485
        %v6526 = vsel %vm1236, %v3284, %v6487
        %v6527 = vsel %vm1236, %v3357, %v6489
        %v6528 = vsel %vm1236, %v3430, %v6491
        %v6529 = vsel %vm1236, %v3503, %v6493
        %v6530 = vsel %vm1236, %v3576, %v6495
        %v6531 = vsel %vm1236, %v3649, %v6497
        %v6532 = vsel %vm1236, %v3722, %v6499
        %v6533 = vsel %vm1236, %v3795, %v6501
        %v6534 = vpack.c.bf16 %v6519, %v6518
        %v6535 = vpack.c.bf16 %v6521, %v6520
        %v6536 = vpack.c.bf16 %v6523, %v6522
        %v6537 = vpack.c.bf16 %v6525, %v6524
        %v6538 = vpack.c.bf16 %v6527, %v6526
        %v6539 = vpack.c.bf16 %v6529, %v6528
        %v6540 = vpack.c.bf16 %v6531, %v6530
        %v6541 = vpack.c.bf16 %v6533, %v6532
        %v6542 = vld [vmem:[#allocation11] sm:$0xf]
        %v6543 = vld [vmem:[#allocation11 + $0x4] sm:$0xf]
        %v6544 = vld [vmem:[#allocation11 + $0x8] sm:$0xf]
        %v6545 = vld [vmem:[#allocation11 + $0xc] sm:$0xf]
        %v6546 = vld [vmem:[#allocation11 + $0x10] sm:$0xf]
        %v6547 = vld [vmem:[#allocation11 + $0x14] sm:$0xf]
        %v6548 = vld [vmem:[#allocation11 + $0x18] sm:$0xf]
        %v6549 = vld [vmem:[#allocation11 + $0x1c] sm:$0xf]
        %v6550 = vld [vmem:[#allocation11 + $0x20] sm:$0xf]
        %v6551 = vld [vmem:[#allocation11 + $0x24] sm:$0xf]
        %v6552 = vld [vmem:[#allocation11 + $0x28] sm:$0xf]
        %v6553 = vld [vmem:[#allocation11 + $0x2c] sm:$0xf]
        %v6554 = vld [vmem:[#allocation11 + $0x30] sm:$0xf]
        %v6555 = vld [vmem:[#allocation11 + $0x34] sm:$0xf]
        %v6556 = vld [vmem:[#allocation11 + $0x38] sm:$0xf]
        %v6557 = vld [vmem:[#allocation11 + $0x3c] sm:$0xf]
        %v6558 = vld [vmem:[%s7] sm:$0x1]
        %v6560 = vlaneseq
        %v6561 = vshrl.u32 %v6560, 7
        %v6562 = vsub.s32 0, %v6561
        %v6563 = vrot.slane %v6558, %v6562
        %v6581 = vunpack.c.l.b16 %v6542
        %v6582 = vunpack.c.l.b16 %v6543
        %v6583 = vunpack.c.l.b16 %v6544
        %v6584 = vunpack.c.l.b16 %v6545
        %v6585 = vunpack.c.l.b16 %v6546
        %v6586 = vunpack.c.l.b16 %v6547
        %v6587 = vunpack.c.l.b16 %v6548
        %v6588 = vunpack.c.l.b16 %v6549
        %v6589 = vunpack.c.l.b16 %v6550
        %v6590 = vunpack.c.l.b16 %v6551
        %v6591 = vunpack.c.l.b16 %v6552
        %v6592 = vunpack.c.l.b16 %v6553
        %v6593 = vunpack.c.l.b16 %v6554
        %v6594 = vunpack.c.l.b16 %v6555
        %v6595 = vunpack.c.l.b16 %v6556
        %v6596 = vunpack.c.l.b16 %v6557
        %v6597 = vpack.c.b16 %v6582, %v6581
        %v6598 = vpack.c.b16 %v6584, %v6583
        %v6599 = vpack.c.b16 %v6586, %v6585
        %v6600 = vpack.c.b16 %v6588, %v6587
        %v6601 = vpack.c.b16 %v6590, %v6589
        %v6602 = vpack.c.b16 %v6592, %v6591
        %v6603 = vpack.c.b16 %v6594, %v6593
        %v6604 = vpack.c.b16 %v6596, %v6595
        %6613 = vmatprep.subr.bf16.mxu0 0
        %6614 = vmatpush1.bf16.msra.mxu0 %v6604
        %6615 = vmatprep.subr.bf16.mxu0 0
        %6616 = vmatpush1.bf16.msra.mxu0 %v6603
        %6617 = vmatprep.subr.bf16.mxu0 0
        %6618 = vmatpush1.bf16.msra.mxu0 %v6602
        %6619 = vmatprep.subr.bf16.mxu0 0
        %6620 = vmatpush1.bf16.msra.mxu0 %v6601
        %6621 = vmatprep.subr.bf16.mxu0 0
        %6622 = vmatpush1.bf16.msra.mxu0 %v6600
        %6623 = vmatprep.subr.bf16.mxu0 0
        %6624 = vmatpush1.bf16.msra.mxu0 %v6599
        %6625 = vmatprep.subr.bf16.mxu0 0
        %6626 = vmatpush1.bf16.msra.mxu0 %v6598
        %6627 = vmatprep.subr.bf16.mxu0 0
        %6628 = vmatpush1.bf16.msra.mxu0 %v6597
        %6629 = vmatprep.subr.bf16.mxu0 0
        %6630 = vmatpush2.bf16.msra.mxu0 0
        %6631 = vmatprep.subr.bf16.mxu0 0
        %6632 = vmatpush2.bf16.msra.mxu0 0
        %6633 = vmatprep.subr.bf16.mxu0 0
        %6634 = vmatpush2.bf16.msra.mxu0 0
        %6635 = vmatprep.subr.bf16.mxu0 0
        %6636 = vmatpush2.bf16.msra.mxu0 0
        %6637 = vmatprep.subr.bf16.mxu0 0
        %6638 = vmatpush2.bf16.msra.mxu0 0
        %6639 = vmatprep.subr.bf16.mxu0 0
        %6640 = vmatpush2.bf16.msra.mxu0 0
        %6641 = vmatprep.subr.bf16.mxu0 0
        %6642 = vmatpush2.bf16.msra.mxu0 0
        %6643 = vmatprep.subr.bf16.mxu0 0
        %6644 = vmatpush2.bf16.msra.mxu0 0
        %6645 = vmatprep.mubr.bf16.mxu0 0
        %6646 = vmatmul.mubr.bf16.gmra.mxu0 %v6534
        %v6647 = vpop.f32.mrf.mxu0
        %v6648 = vadd.f32 %v6563, %v6647
        %v6649 = vpop.f32.mrf.mxu0
        %v6650 = vpop.f32.mrf.mxu0
        %v6651 = vadd.f32 %v6563, %v6650
        %v6652 = vpop.f32.mrf.mxu0
        %6653 = vmatprep.mubr.bf16.mxu0 0
        %6654 = vmatmul.mubr.bf16.gmra.mxu0 %v6535
        %v6655 = vpop.f32.mrf.mxu0
        %v6656 = vadd.f32 %v6563, %v6655
        %v6657 = vpop.f32.mrf.mxu0
        %v6658 = vpop.f32.mrf.mxu0
        %v6659 = vadd.f32 %v6563, %v6658
        %v6660 = vpop.f32.mrf.mxu0
        %6661 = vmatprep.mubr.bf16.mxu0 0
        %6662 = vmatmul.mubr.bf16.gmra.mxu0 %v6536
        %v6663 = vpop.f32.mrf.mxu0
        %v6664 = vadd.f32 %v6563, %v6663
        %v6665 = vpop.f32.mrf.mxu0
        %v6666 = vpop.f32.mrf.mxu0
        %v6667 = vadd.f32 %v6563, %v6666
        %v6668 = vpop.f32.mrf.mxu0
        %6669 = vmatprep.mubr.bf16.mxu0 0
        %6670 = vmatmul.mubr.bf16.gmra.mxu0 %v6537
        %v6671 = vpop.f32.mrf.mxu0
        %v6672 = vadd.f32 %v6563, %v6671
        %v6673 = vpop.f32.mrf.mxu0
        %v6674 = vpop.f32.mrf.mxu0
        %v6675 = vadd.f32 %v6563, %v6674
        %v6676 = vpop.f32.mrf.mxu0
        %6677 = vmatprep.mubr.bf16.mxu0 0
        %6678 = vmatmul.mubr.bf16.gmra.mxu0 %v6538
        %v6679 = vpop.f32.mrf.mxu0
        %v6680 = vadd.f32 %v6563, %v6679
        %v6681 = vpop.f32.mrf.mxu0
        %v6682 = vpop.f32.mrf.mxu0
        %v6683 = vadd.f32 %v6563, %v6682
        %v6684 = vpop.f32.mrf.mxu0
        %6685 = vmatprep.mubr.bf16.mxu0 0
        %6686 = vmatmul.mubr.bf16.gmra.mxu0 %v6539
        %v6687 = vpop.f32.mrf.mxu0
        %v6688 = vadd.f32 %v6563, %v6687
        %v6689 = vpop.f32.mrf.mxu0
        %v6690 = vpop.f32.mrf.mxu0
        %v6691 = vadd.f32 %v6563, %v6690
        %v6692 = vpop.f32.mrf.mxu0
        %6693 = vmatprep.mubr.bf16.mxu0 0
        %6694 = vmatmul.mubr.bf16.gmra.mxu0 %v6540
        %v6695 = vpop.f32.mrf.mxu0
        %v6696 = vadd.f32 %v6563, %v6695
        %v6697 = vpop.f32.mrf.mxu0
        %v6698 = vpop.f32.mrf.mxu0
        %v6699 = vadd.f32 %v6563, %v6698
        %v6700 = vpop.f32.mrf.mxu0
        %6701 = vmatprep.mubr.bf16.mxu0 0
        %6702 = vmatmul.mubr.bf16.gmra.mxu0 %v6541
        %v6703 = vpop.f32.mrf.mxu0
        %v6704 = vadd.f32 %v6563, %v6703
        %v6705 = vpop.f32.mrf.mxu0
        %v6706 = vpop.f32.mrf.mxu0
        %v6707 = vadd.f32 %v6563, %v6706
        %v6708 = vpop.f32.mrf.mxu0
        %6709 = vdwg.mxu0
        %v6710 = vadd.f32 %v602, %v6648
        %v6711 = vadd.f32 %v603, %v6651
        %v6712 = vadd.f32 %v604, %v6656
        %v6713 = vadd.f32 %v605, %v6659
        %v6714 = vadd.f32 %v606, %v6664
        %v6715 = vadd.f32 %v607, %v6667
        %v6716 = vadd.f32 %v608, %v6672
        %v6717 = vadd.f32 %v609, %v6675
        %v6718 = vadd.f32 %v610, %v6680
        %v6719 = vadd.f32 %v611, %v6683
        %v6720 = vadd.f32 %v612, %v6688
        %v6721 = vadd.f32 %v613, %v6691
        %v6722 = vadd.f32 %v614, %v6696
        %v6723 = vadd.f32 %v615, %v6699
        %v6724 = vadd.f32 %v616, %v6704
        %v6725 = vadd.f32 %v617, %v6707
        %v6726 = vld [vmem:[%s8] sm:$0x1]
        %v6727 = vld [vmem:[%s9] sm:$0x1]
        %6728 = vadd.xlane.f32.xlu0 %v6710
        %v6729 = vpop.xlane.xlu0 %6728
        %6730 = vadd.xlane.f32.xlu0 %v6711
        %v6731 = vpop.xlane.xlu0 %6730
        %6732 = vadd.xlane.f32.xlu0 %v6712
        %v6733 = vpop.xlane.xlu0 %6732
        %6734 = vadd.xlane.f32.xlu0 %v6713
        %v6735 = vpop.xlane.xlu0 %6734
        %6736 = vadd.xlane.f32.xlu0 %v6714
        %v6737 = vpop.xlane.xlu0 %6736
        %6738 = vadd.xlane.f32.xlu0 %v6715
        %v6739 = vpop.xlane.xlu0 %6738
        %6740 = vadd.xlane.f32.xlu0 %v6716
        %v6741 = vpop.xlane.xlu0 %6740
        %6742 = vadd.xlane.f32.xlu0 %v6717
        %v6743 = vpop.xlane.xlu0 %6742
        %6744 = vadd.xlane.f32.xlu0 %v6718
        %v6745 = vpop.xlane.xlu0 %6744
        %6746 = vadd.xlane.f32.xlu0 %v6719
        %v6747 = vpop.xlane.xlu0 %6746
        %6748 = vadd.xlane.f32.xlu0 %v6720
        %v6749 = vpop.xlane.xlu0 %6748
        %6750 = vadd.xlane.f32.xlu0 %v6721
        %v6751 = vpop.xlane.xlu0 %6750
        %6752 = vadd.xlane.f32.xlu0 %v6722
        %v6753 = vpop.xlane.xlu0 %6752
        %6754 = vadd.xlane.f32.xlu0 %v6723
        %v6755 = vpop.xlane.xlu0 %6754
        %6756 = vadd.xlane.f32.xlu0 %v6724
        %v6757 = vpop.xlane.xlu0 %6756
        %6758 = vadd.xlane.f32.xlu0 %v6725
        %v6759 = vpop.xlane.xlu0 %6758
        %v6760 = vmul.f32 %v6729, %v652
        %v6761 = vmul.f32 %v6731, %v652
        %v6762 = vmul.f32 %v6733, %v652
        %v6763 = vmul.f32 %v6735, %v652
        %v6764 = vmul.f32 %v6737, %v652
        %v6765 = vmul.f32 %v6739, %v652
        %v6766 = vmul.f32 %v6741, %v652
        %v6767 = vmul.f32 %v6743, %v652
        %v6768 = vmul.f32 %v6745, %v652
        %v6769 = vmul.f32 %v6747, %v652
        %v6770 = vmul.f32 %v6749, %v652
        %v6771 = vmul.f32 %v6751, %v652
        %v6772 = vmul.f32 %v6753, %v652
        %v6773 = vmul.f32 %v6755, %v652
        %v6774 = vmul.f32 %v6757, %v652
        %v6775 = vmul.f32 %v6759, %v652
        %v6776 = vsub.f32 %v6710, %v6760
        %v6777 = vsub.f32 %v6711, %v6761
        %v6778 = vsub.f32 %v6712, %v6762
        %v6779 = vsub.f32 %v6713, %v6763
        %v6780 = vsub.f32 %v6714, %v6764
        %v6781 = vsub.f32 %v6715, %v6765
        %v6782 = vsub.f32 %v6716, %v6766
        %v6783 = vsub.f32 %v6717, %v6767
        %v6784 = vsub.f32 %v6718, %v6768
        %v6785 = vsub.f32 %v6719, %v6769
        %v6786 = vsub.f32 %v6720, %v6770
        %v6787 = vsub.f32 %v6721, %v6771
        %v6788 = vsub.f32 %v6722, %v6772
        %v6789 = vsub.f32 %v6723, %v6773
        %v6790 = vsub.f32 %v6724, %v6774
        %v6791 = vsub.f32 %v6725, %v6775
        %v6792 = vmul.f32 %v6776, %v6776
        %v6793 = vmul.f32 %v6777, %v6777
        %v6794 = vmul.f32 %v6778, %v6778
        %v6795 = vmul.f32 %v6779, %v6779
        %v6796 = vmul.f32 %v6780, %v6780
        %v6797 = vmul.f32 %v6781, %v6781
        %v6798 = vmul.f32 %v6782, %v6782
        %v6799 = vmul.f32 %v6783, %v6783
        %v6800 = vmul.f32 %v6784, %v6784
        %v6801 = vmul.f32 %v6785, %v6785
        %v6802 = vmul.f32 %v6786, %v6786
        %v6803 = vmul.f32 %v6787, %v6787
        %v6804 = vmul.f32 %v6788, %v6788
        %v6805 = vmul.f32 %v6789, %v6789
        %v6806 = vmul.f32 %v6790, %v6790
        %v6807 = vmul.f32 %v6791, %v6791
        %6808 = vadd.xlane.f32.xlu0 %v6792
        %v6809 = vpop.xlane.xlu0 %6808
        %6810 = vadd.xlane.f32.xlu0 %v6793
        %v6811 = vpop.xlane.xlu0 %6810
        %6812 = vadd.xlane.f32.xlu0 %v6794
        %v6813 = vpop.xlane.xlu0 %6812
        %6814 = vadd.xlane.f32.xlu0 %v6795
        %v6815 = vpop.xlane.xlu0 %6814
        %6816 = vadd.xlane.f32.xlu0 %v6796
        %v6817 = vpop.xlane.xlu0 %6816
        %6818 = vadd.xlane.f32.xlu0 %v6797
        %v6819 = vpop.xlane.xlu0 %6818
        %6820 = vadd.xlane.f32.xlu0 %v6798
        %v6821 = vpop.xlane.xlu0 %6820
        %6822 = vadd.xlane.f32.xlu0 %v6799
        %v6823 = vpop.xlane.xlu0 %6822
        %6824 = vadd.xlane.f32.xlu0 %v6800
        %v6825 = vpop.xlane.xlu0 %6824
        %6826 = vadd.xlane.f32.xlu0 %v6801
        %v6827 = vpop.xlane.xlu0 %6826
        %6828 = vadd.xlane.f32.xlu0 %v6802
        %v6829 = vpop.xlane.xlu0 %6828
        %6830 = vadd.xlane.f32.xlu0 %v6803
        %v6831 = vpop.xlane.xlu0 %6830
        %6832 = vadd.xlane.f32.xlu0 %v6804
        %v6833 = vpop.xlane.xlu0 %6832
        %6834 = vadd.xlane.f32.xlu0 %v6805
        %v6835 = vpop.xlane.xlu0 %6834
        %6836 = vadd.xlane.f32.xlu0 %v6806
        %v6837 = vpop.xlane.xlu0 %6836
        %6838 = vadd.xlane.f32.xlu0 %v6807
        %v6839 = vpop.xlane.xlu0 %6838
        %v6840 = vmul.f32 %v6809, %v652
        %v6841 = vmul.f32 %v6811, %v652
        %v6842 = vmul.f32 %v6813, %v652
        %v6843 = vmul.f32 %v6815, %v652
        %v6844 = vmul.f32 %v6817, %v652
        %v6845 = vmul.f32 %v6819, %v652
        %v6846 = vmul.f32 %v6821, %v652
        %v6847 = vmul.f32 %v6823, %v652
        %v6848 = vmul.f32 %v6825, %v652
        %v6849 = vmul.f32 %v6827, %v652
        %v6850 = vmul.f32 %v6829, %v652
        %v6851 = vmul.f32 %v6831, %v652
        %v6852 = vmul.f32 %v6833, %v652
        %v6853 = vmul.f32 %v6835, %v652
        %v6854 = vmul.f32 %v6837, %v652
        %v6855 = vmul.f32 %v6839, %v652
        %v6856 = vadd.f32 %v6840, 1e-05
        %v6857 = vadd.f32 %v6841, 1e-05
        %v6858 = vadd.f32 %v6842, 1e-05
        %v6859 = vadd.f32 %v6843, 1e-05
        %v6860 = vadd.f32 %v6844, 1e-05
        %v6861 = vadd.f32 %v6845, 1e-05
        %v6862 = vadd.f32 %v6846, 1e-05
        %v6863 = vadd.f32 %v6847, 1e-05
        %v6864 = vadd.f32 %v6848, 1e-05
        %v6865 = vadd.f32 %v6849, 1e-05
        %v6866 = vadd.f32 %v6850, 1e-05
        %v6867 = vadd.f32 %v6851, 1e-05
        %v6868 = vadd.f32 %v6852, 1e-05
        %v6869 = vadd.f32 %v6853, 1e-05
        %v6870 = vadd.f32 %v6854, 1e-05
        %v6871 = vadd.f32 %v6855, 1e-05
        %v6872 = vrsqrt.pop %v6856
        %v6873 = vrsqrt.pop %v6857
        %v6874 = vrsqrt.pop %v6858
        %v6875 = vrsqrt.pop %v6859
        %v6876 = vrsqrt.pop %v6860
        %v6877 = vrsqrt.pop %v6861
        %v6878 = vrsqrt.pop %v6862
        %v6879 = vrsqrt.pop %v6863
        %v6880 = vrsqrt.pop %v6864
        %v6881 = vrsqrt.pop %v6865
        %v6882 = vrsqrt.pop %v6866
        %v6883 = vrsqrt.pop %v6867
        %v6884 = vrsqrt.pop %v6868
        %v6885 = vrsqrt.pop %v6869
        %v6886 = vrsqrt.pop %v6870
        %v6887 = vrsqrt.pop %v6871
        %v6888 = vmul.f32 %v6776, %v6872
        %v6889 = vmul.f32 %v6777, %v6873
        %v6890 = vmul.f32 %v6778, %v6874
        %v6891 = vmul.f32 %v6779, %v6875
        %v6892 = vmul.f32 %v6780, %v6876
        %v6893 = vmul.f32 %v6781, %v6877
        %v6894 = vmul.f32 %v6782, %v6878
        %v6895 = vmul.f32 %v6783, %v6879
        %v6896 = vmul.f32 %v6784, %v6880
        %v6897 = vmul.f32 %v6785, %v6881
        %v6898 = vmul.f32 %v6786, %v6882
        %v6899 = vmul.f32 %v6787, %v6883
        %v6900 = vmul.f32 %v6788, %v6884
        %v6901 = vmul.f32 %v6789, %v6885
        %v6902 = vmul.f32 %v6790, %v6886
        %v6903 = vmul.f32 %v6791, %v6887
        %v6905 = vlaneseq
        %v6906 = vshrl.u32 %v6905, 7
        %v6907 = vsub.s32 0, %v6906
        %v6908 = vrot.slane %v6726, %v6907
        %v6910 = vmul.f32 %v6888, %v6908
        %v6911 = vmul.f32 %v6889, %v6908
        %v6912 = vmul.f32 %v6890, %v6908
        %v6913 = vmul.f32 %v6891, %v6908
        %v6914 = vmul.f32 %v6892, %v6908
        %v6915 = vmul.f32 %v6893, %v6908
        %v6916 = vmul.f32 %v6894, %v6908
        %v6917 = vmul.f32 %v6895, %v6908
        %v6918 = vmul.f32 %v6896, %v6908
        %v6919 = vmul.f32 %v6897, %v6908
        %v6920 = vmul.f32 %v6898, %v6908
        %v6921 = vmul.f32 %v6899, %v6908
        %v6922 = vmul.f32 %v6900, %v6908
        %v6923 = vmul.f32 %v6901, %v6908
        %v6924 = vmul.f32 %v6902, %v6908
        %v6925 = vmul.f32 %v6903, %v6908
        %v6927 = vlaneseq
        %v6928 = vshrl.u32 %v6927, 7
        %v6929 = vsub.s32 0, %v6928
        %v6930 = vrot.slane %v6727, %v6929
        %v6932 = vadd.f32 %v6910, %v6930
        %v6933 = vadd.f32 %v6911, %v6930
        %v6934 = vadd.f32 %v6912, %v6930
        %v6935 = vadd.f32 %v6913, %v6930
        %v6936 = vadd.f32 %v6914, %v6930
        %v6937 = vadd.f32 %v6915, %v6930
        %v6938 = vadd.f32 %v6916, %v6930
        %v6939 = vadd.f32 %v6917, %v6930
        %v6940 = vadd.f32 %v6918, %v6930
        %v6941 = vadd.f32 %v6919, %v6930
        %v6942 = vadd.f32 %v6920, %v6930
        %v6943 = vadd.f32 %v6921, %v6930
        %v6944 = vadd.f32 %v6922, %v6930
        %v6945 = vadd.f32 %v6923, %v6930
        %v6946 = vadd.f32 %v6924, %v6930
        %v6947 = vadd.f32 %v6925, %v6930
        %v6948 = vpack.c.bf16 %v6933, %v6932
        %v6949 = vpack.c.bf16 %v6935, %v6934
        %v6950 = vpack.c.bf16 %v6937, %v6936
        %v6951 = vpack.c.bf16 %v6939, %v6938
        %v6952 = vpack.c.bf16 %v6941, %v6940
        %v6953 = vpack.c.bf16 %v6943, %v6942
        %v6954 = vpack.c.bf16 %v6945, %v6944
        %v6955 = vpack.c.bf16 %v6947, %v6946
        %v6956 = vld [vmem:[#allocation13] sm:$0xff]
        %v6957 = vld [vmem:[#allocation13 + $0x8] sm:$0xff]
        %v6958 = vld [vmem:[#allocation13 + $0x10] sm:$0xff]
        %v6959 = vld [vmem:[#allocation13 + $0x18] sm:$0xff]
        %v6960 = vld [vmem:[#allocation13 + $0x20] sm:$0xff]
        %v6961 = vld [vmem:[#allocation13 + $0x28] sm:$0xff]
        %v6962 = vld [vmem:[#allocation13 + $0x30] sm:$0xff]
        %v6963 = vld [vmem:[#allocation13 + $0x38] sm:$0xff]
        %v6964 = vld [vmem:[#allocation13 + $0x40] sm:$0xff]
        %v6965 = vld [vmem:[#allocation13 + $0x48] sm:$0xff]
        %v6966 = vld [vmem:[#allocation13 + $0x50] sm:$0xff]
        %v6967 = vld [vmem:[#allocation13 + $0x58] sm:$0xff]
        %v6968 = vld [vmem:[#allocation13 + $0x60] sm:$0xff]
        %v6969 = vld [vmem:[#allocation13 + $0x68] sm:$0xff]
        %v6970 = vld [vmem:[#allocation13 + $0x70] sm:$0xff]
        %v6971 = vld [vmem:[#allocation13 + $0x78] sm:$0xff]
        %v6972 = vld [vmem:[#allocation13 + $0x80] sm:$0xff]
        %v6973 = vld [vmem:[#allocation13 + $0x88] sm:$0xff]
        %v6974 = vld [vmem:[#allocation13 + $0x90] sm:$0xff]
        %v6975 = vld [vmem:[#allocation13 + $0x98] sm:$0xff]
        %v6976 = vld [vmem:[#allocation13 + $0xa0] sm:$0xff]
        %v6977 = vld [vmem:[#allocation13 + $0xa8] sm:$0xff]
        %v6978 = vld [vmem:[#allocation13 + $0xb0] sm:$0xff]
        %v6979 = vld [vmem:[#allocation13 + $0xb8] sm:$0xff]
        %v6980 = vld [vmem:[#allocation13 + $0xc0] sm:$0xff]
        %v6981 = vld [vmem:[#allocation13 + $0xc8] sm:$0xff]
        %v6982 = vld [vmem:[#allocation13 + $0xd0] sm:$0xff]
        %v6983 = vld [vmem:[#allocation13 + $0xd8] sm:$0xff]
        %v6984 = vld [vmem:[#allocation13 + $0xe0] sm:$0xff]
        %v6985 = vld [vmem:[#allocation13 + $0xe8] sm:$0xff]
        %v6986 = vld [vmem:[#allocation13 + $0xf0] sm:$0xff]
        %v6987 = vld [vmem:[#allocation13 + $0xf8] sm:$0xff]
        %v6988 = vld [vmem:[%s11] sm:$0xf]
        %v6990 = vlaneseq
        %v6991 = vshrl.u32 %v6990, 7
        %v6992 = vsub.s32 0, %v6991
        %v6993 = vrot.slane %v6988, %v6992
        %v6994 = vlaneseq
        %v6995 = vshrl.u32 %v6994, 7
        %v6996 = vsub.s32 1, %v6995
        %v6997 = vrot.slane %v6988, %v6996
        %v6998 = vlaneseq
        %v6999 = vshrl.u32 %v6998, 7
        %v7000 = vsub.s32 2, %v6999
        %v7001 = vrot.slane %v6988, %v7000
        %v7002 = vlaneseq
        %v7003 = vshrl.u32 %v7002, 7
        %v7004 = vsub.s32 3, %v7003
        %v7005 = vrot.slane %v6988, %v7004
        %v7042 = vunpack.c.l.b16 %v6956
        %v7043 = vunpack.c.h.b16 %v6956
        %v7044 = vunpack.c.l.b16 %v6957
        %v7045 = vunpack.c.h.b16 %v6957
        %v7046 = vunpack.c.l.b16 %v6958
        %v7047 = vunpack.c.h.b16 %v6958
        %v7048 = vunpack.c.l.b16 %v6959
        %v7049 = vunpack.c.h.b16 %v6959
        %v7050 = vunpack.c.l.b16 %v6960
        %v7051 = vunpack.c.h.b16 %v6960
        %v7052 = vunpack.c.l.b16 %v6961
        %v7053 = vunpack.c.h.b16 %v6961
        %v7054 = vunpack.c.l.b16 %v6962
        %v7055 = vunpack.c.h.b16 %v6962
        %v7056 = vunpack.c.l.b16 %v6963
        %v7057 = vunpack.c.h.b16 %v6963
        %v7058 = vunpack.c.l.b16 %v6964
        %v7059 = vunpack.c.h.b16 %v6964
        %v7060 = vunpack.c.l.b16 %v6965
        %v7061 = vunpack.c.h.b16 %v6965
        %v7062 = vunpack.c.l.b16 %v6966
        %v7063 = vunpack.c.h.b16 %v6966
        %v7064 = vunpack.c.l.b16 %v6967
        %v7065 = vunpack.c.h.b16 %v6967
        %v7066 = vunpack.c.l.b16 %v6968
        %v7067 = vunpack.c.h.b16 %v6968
        %v7068 = vunpack.c.l.b16 %v6969
        %v7069 = vunpack.c.h.b16 %v6969
        %v7070 = vunpack.c.l.b16 %v6970
        %v7071 = vunpack.c.h.b16 %v6970
        %v7072 = vunpack.c.l.b16 %v6971
        %v7073 = vunpack.c.h.b16 %v6971
        %v7074 = vunpack.c.l.b16 %v6972
        %v7075 = vunpack.c.h.b16 %v6972
        %v7076 = vunpack.c.l.b16 %v6973
        %v7077 = vunpack.c.h.b16 %v6973
        %v7078 = vunpack.c.l.b16 %v6974
        %v7079 = vunpack.c.h.b16 %v6974
        %v7080 = vunpack.c.l.b16 %v6975
        %v7081 = vunpack.c.h.b16 %v6975
        %v7082 = vunpack.c.l.b16 %v6976
        %v7083 = vunpack.c.h.b16 %v6976
        %v7084 = vunpack.c.l.b16 %v6977
        %v7085 = vunpack.c.h.b16 %v6977
        %v7086 = vunpack.c.l.b16 %v6978
        %v7087 = vunpack.c.h.b16 %v6978
        %v7088 = vunpack.c.l.b16 %v6979
        %v7089 = vunpack.c.h.b16 %v6979
        %v7090 = vunpack.c.l.b16 %v6980
        %v7091 = vunpack.c.h.b16 %v6980
        %v7092 = vunpack.c.l.b16 %v6981
        %v7093 = vunpack.c.h.b16 %v6981
        %v7094 = vunpack.c.l.b16 %v6982
        %v7095 = vunpack.c.h.b16 %v6982
        %v7096 = vunpack.c.l.b16 %v6983
        %v7097 = vunpack.c.h.b16 %v6983
        %v7098 = vunpack.c.l.b16 %v6984
        %v7099 = vunpack.c.h.b16 %v6984
        %v7100 = vunpack.c.l.b16 %v6985
        %v7101 = vunpack.c.h.b16 %v6985
        %v7102 = vunpack.c.l.b16 %v6986
        %v7103 = vunpack.c.h.b16 %v6986
        %v7104 = vunpack.c.l.b16 %v6987
        %v7105 = vunpack.c.h.b16 %v6987
        %v7106 = vpack.c.b16 %v7046, %v7042
        %v7107 = vpack.c.b16 %v7047, %v7043
        %v7108 = vpack.c.b16 %v7048, %v7044
        %v7109 = vpack.c.b16 %v7049, %v7045
        %v7110 = vpack.c.b16 %v7054, %v7050
        %v7111 = vpack.c.b16 %v7055, %v7051
        %v7112 = vpack.c.b16 %v7056, %v7052
        %v7113 = vpack.c.b16 %v7057, %v7053
        %v7114 = vpack.c.b16 %v7062, %v7058
        %v7115 = vpack.c.b16 %v7063, %v7059
        %v7116 = vpack.c.b16 %v7064, %v7060
        %v7117 = vpack.c.b16 %v7065, %v7061
        %v7118 = vpack.c.b16 %v7070, %v7066
        %v7119 = vpack.c.b16 %v7071, %v7067
        %v7120 = vpack.c.b16 %v7072, %v7068
        %v7121 = vpack.c.b16 %v7073, %v7069
        %v7122 = vpack.c.b16 %v7078, %v7074
        %v7123 = vpack.c.b16 %v7079, %v7075
        %v7124 = vpack.c.b16 %v7080, %v7076
        %v7125 = vpack.c.b16 %v7081, %v7077
        %v7126 = vpack.c.b16 %v7086, %v7082
        %v7127 = vpack.c.b16 %v7087, %v7083
        %v7128 = vpack.c.b16 %v7088, %v7084
        %v7129 = vpack.c.b16 %v7089, %v7085
        %v7130 = vpack.c.b16 %v7094, %v7090
        %v7131 = vpack.c.b16 %v7095, %v7091
        %v7132 = vpack.c.b16 %v7096, %v7092
        %v7133 = vpack.c.b16 %v7097, %v7093
        %v7134 = vpack.c.b16 %v7102, %v7098
        %v7135 = vpack.c.b16 %v7103, %v7099
        %v7136 = vpack.c.b16 %v7104, %v7100
        %v7137 = vpack.c.b16 %v7105, %v7101
        %7170 = vmatprep.subr.bf16.mxu0 %v7135
        %7171 = vmatpush1.bf16.msra.mxu0 %v7134
        %7172 = vmatprep.subr.bf16.mxu0 %v7131
        %7173 = vmatpush1.bf16.msra.mxu0 %v7130
        %7174 = vmatprep.subr.bf16.mxu0 %v7127
        %7175 = vmatpush1.bf16.msra.mxu0 %v7126
        %7176 = vmatprep.subr.bf16.mxu0 %v7123
        %7177 = vmatpush1.bf16.msra.mxu0 %v7122
        %7178 = vmatprep.subr.bf16.mxu0 %v7119
        %7179 = vmatpush1.bf16.msra.mxu0 %v7118
        %7180 = vmatprep.subr.bf16.mxu0 %v7115
        %7181 = vmatpush1.bf16.msra.mxu0 %v7114
        %7182 = vmatprep.subr.bf16.mxu0 %v7111
        %7183 = vmatpush1.bf16.msra.mxu0 %v7110
        %7184 = vmatprep.subr.bf16.mxu0 %v7107
        %7185 = vmatpush1.bf16.msra.mxu0 %v7106
        %7186 = vmatprep.subr.bf16.mxu0 0
        %7187 = vmatpush2.bf16.msra.mxu0 0
        %7188 = vmatprep.subr.bf16.mxu0 0
        %7189 = vmatpush2.bf16.msra.mxu0 0
        %7190 = vmatprep.subr.bf16.mxu0 0
        %7191 = vmatpush2.bf16.msra.mxu0 0
        %7192 = vmatprep.subr.bf16.mxu0 0
        %7193 = vmatpush2.bf16.msra.mxu0 0
        %7194 = vmatprep.subr.bf16.mxu0 0
        %7195 = vmatpush2.bf16.msra.mxu0 0
        %7196 = vmatprep.subr.bf16.mxu0 0
        %7197 = vmatpush2.bf16.msra.mxu0 0
        %7198 = vmatprep.subr.bf16.mxu0 0
        %7199 = vmatpush2.bf16.msra.mxu0 0
        %7200 = vmatprep.subr.bf16.mxu0 0
        %7201 = vmatpush2.bf16.msra.mxu0 0
        %7202 = vmatprep.mubr.bf16.mxu0 0
        %7203 = vmatmul.mubr.bf16.gmra.mxu0 %v6948
        %v7204 = vpop.f32.mrf.mxu0
        %v7205 = vadd.f32 %v6993, %v7204
        %v7206 = vpop.f32.mrf.mxu0
        %v7207 = vadd.f32 %v6997, %v7206
        %v7208 = vpop.f32.mrf.mxu0
        %v7209 = vadd.f32 %v6993, %v7208
        %v7210 = vpop.f32.mrf.mxu0
        %v7211 = vadd.f32 %v6997, %v7210
        %7212 = vmatprep.mubr.bf16.mxu0 0
        %7213 = vmatmul.mubr.bf16.gmra.mxu0 %v6949
        %v7214 = vpop.f32.mrf.mxu0
        %v7215 = vadd.f32 %v6993, %v7214
        %v7216 = vpop.f32.mrf.mxu0
        %v7217 = vadd.f32 %v6997, %v7216
        %v7218 = vpop.f32.mrf.mxu0
        %v7219 = vadd.f32 %v6993, %v7218
        %v7220 = vpop.f32.mrf.mxu0
        %v7221 = vadd.f32 %v6997, %v7220
        %7222 = vmatprep.mubr.bf16.mxu0 0
        %7223 = vmatmul.mubr.bf16.gmra.mxu0 %v6950
        %v7224 = vpop.f32.mrf.mxu0
        %v7225 = vadd.f32 %v6993, %v7224
        %v7226 = vpop.f32.mrf.mxu0
        %v7227 = vadd.f32 %v6997, %v7226
        %v7228 = vpop.f32.mrf.mxu0
        %v7229 = vadd.f32 %v6993, %v7228
        %v7230 = vpop.f32.mrf.mxu0
        %v7231 = vadd.f32 %v6997, %v7230
        %7232 = vmatprep.mubr.bf16.mxu0 0
        %7233 = vmatmul.mubr.bf16.gmra.mxu0 %v6951
        %v7234 = vpop.f32.mrf.mxu0
        %v7235 = vadd.f32 %v6993, %v7234
        %v7236 = vpop.f32.mrf.mxu0
        %v7237 = vadd.f32 %v6997, %v7236
        %v7238 = vpop.f32.mrf.mxu0
        %v7239 = vadd.f32 %v6993, %v7238
        %v7240 = vpop.f32.mrf.mxu0
        %v7241 = vadd.f32 %v6997, %v7240
        %7242 = vmatprep.mubr.bf16.mxu0 0
        %7243 = vmatmul.mubr.bf16.gmra.mxu0 %v6952
        %v7244 = vpop.f32.mrf.mxu0
        %v7245 = vadd.f32 %v6993, %v7244
        %v7246 = vpop.f32.mrf.mxu0
        %v7247 = vadd.f32 %v6997, %v7246
        %v7248 = vpop.f32.mrf.mxu0
        %v7249 = vadd.f32 %v6993, %v7248
        %v7250 = vpop.f32.mrf.mxu0
        %v7251 = vadd.f32 %v6997, %v7250
        %7252 = vmatprep.mubr.bf16.mxu0 0
        %7253 = vmatmul.mubr.bf16.gmra.mxu0 %v6953
        %v7254 = vpop.f32.mrf.mxu0
        %v7255 = vadd.f32 %v6993, %v7254
        %v7256 = vpop.f32.mrf.mxu0
        %v7257 = vadd.f32 %v6997, %v7256
        %v7258 = vpop.f32.mrf.mxu0
        %v7259 = vadd.f32 %v6993, %v7258
        %v7260 = vpop.f32.mrf.mxu0
        %v7261 = vadd.f32 %v6997, %v7260
        %7262 = vmatprep.mubr.bf16.mxu0 0
        %7263 = vmatmul.mubr.bf16.gmra.mxu0 %v6954
        %v7264 = vpop.f32.mrf.mxu0
        %v7265 = vadd.f32 %v6993, %v7264
        %v7266 = vpop.f32.mrf.mxu0
        %v7267 = vadd.f32 %v6997, %v7266
        %v7268 = vpop.f32.mrf.mxu0
        %v7269 = vadd.f32 %v6993, %v7268
        %v7270 = vpop.f32.mrf.mxu0
        %v7271 = vadd.f32 %v6997, %v7270
        %7272 = vmatprep.mubr.bf16.mxu0 0
        %7273 = vmatmul.mubr.bf16.gmra.mxu0 %v6955
        %v7274 = vpop.f32.mrf.mxu0
        %v7275 = vadd.f32 %v6993, %v7274
        %v7276 = vpop.f32.mrf.mxu0
        %v7277 = vadd.f32 %v6997, %v7276
        %v7278 = vpop.f32.mrf.mxu0
        %v7279 = vadd.f32 %v6993, %v7278
        %v7280 = vpop.f32.mrf.mxu0
        %v7281 = vadd.f32 %v6997, %v7280
        %7282 = vdwg.mxu0
        %7283 = vmatprep.subr.bf16.mxu0 %v7137
        %7284 = vmatpush1.bf16.msra.mxu0 %v7136
        %7285 = vmatprep.subr.bf16.mxu0 %v7133
        %7286 = vmatpush1.bf16.msra.mxu0 %v7132
        %7287 = vmatprep.subr.bf16.mxu0 %v7129
        %7288 = vmatpush1.bf16.msra.mxu0 %v7128
        %7289 = vmatprep.subr.bf16.mxu0 %v7125
        %7290 = vmatpush1.bf16.msra.mxu0 %v7124
        %7291 = vmatprep.subr.bf16.mxu0 %v7121
        %7292 = vmatpush1.bf16.msra.mxu0 %v7120
        %7293 = vmatprep.subr.bf16.mxu0 %v7117
        %7294 = vmatpush1.bf16.msra.mxu0 %v7116
        %7295 = vmatprep.subr.bf16.mxu0 %v7113
        %7296 = vmatpush1.bf16.msra.mxu0 %v7112
        %7297 = vmatprep.subr.bf16.mxu0 %v7109
        %7298 = vmatpush1.bf16.msra.mxu0 %v7108
        %7299 = vmatprep.subr.bf16.mxu0 0
        %7300 = vmatpush2.bf16.msra.mxu0 0
        %7301 = vmatprep.subr.bf16.mxu0 0
        %7302 = vmatpush2.bf16.msra.mxu0 0
        %7303 = vmatprep.subr.bf16.mxu0 0
        %7304 = vmatpush2.bf16.msra.mxu0 0
        %7305 = vmatprep.subr.bf16.mxu0 0
        %7306 = vmatpush2.bf16.msra.mxu0 0
        %7307 = vmatprep.subr.bf16.mxu0 0
        %7308 = vmatpush2.bf16.msra.mxu0 0
        %7309 = vmatprep.subr.bf16.mxu0 0
        %7310 = vmatpush2.bf16.msra.mxu0 0
        %7311 = vmatprep.subr.bf16.mxu0 0
        %7312 = vmatpush2.bf16.msra.mxu0 0
        %7313 = vmatprep.subr.bf16.mxu0 0
        %7314 = vmatpush2.bf16.msra.mxu0 0
        %7315 = vmatprep.mubr.bf16.mxu0 0
        %7316 = vmatmul.mubr.bf16.gmra.mxu0 %v6948
        %v7317 = vpop.f32.mrf.mxu0
        %v7318 = vadd.f32 %v7001, %v7317
        %v7319 = vpop.f32.mrf.mxu0
        %v7320 = vadd.f32 %v7005, %v7319
        %v7321 = vpop.f32.mrf.mxu0
        %v7322 = vadd.f32 %v7001, %v7321
        %v7323 = vpop.f32.mrf.mxu0
        %v7324 = vadd.f32 %v7005, %v7323
        %7325 = vmatprep.mubr.bf16.mxu0 0
        %7326 = vmatmul.mubr.bf16.gmra.mxu0 %v6949
        %v7327 = vpop.f32.mrf.mxu0
        %v7328 = vadd.f32 %v7001, %v7327
        %v7329 = vpop.f32.mrf.mxu0
        %v7330 = vadd.f32 %v7005, %v7329
        %v7331 = vpop.f32.mrf.mxu0
        %v7332 = vadd.f32 %v7001, %v7331
        %v7333 = vpop.f32.mrf.mxu0
        %v7334 = vadd.f32 %v7005, %v7333
        %7335 = vmatprep.mubr.bf16.mxu0 0
        %7336 = vmatmul.mubr.bf16.gmra.mxu0 %v6950
        %v7337 = vpop.f32.mrf.mxu0
        %v7338 = vadd.f32 %v7001, %v7337
        %v7339 = vpop.f32.mrf.mxu0
        %v7340 = vadd.f32 %v7005, %v7339
        %v7341 = vpop.f32.mrf.mxu0
        %v7342 = vadd.f32 %v7001, %v7341
        %v7343 = vpop.f32.mrf.mxu0
        %v7344 = vadd.f32 %v7005, %v7343
        %7345 = vmatprep.mubr.bf16.mxu0 0
        %7346 = vmatmul.mubr.bf16.gmra.mxu0 %v6951
        %v7347 = vpop.f32.mrf.mxu0
        %v7348 = vadd.f32 %v7001, %v7347
        %v7349 = vpop.f32.mrf.mxu0
        %v7350 = vadd.f32 %v7005, %v7349
        %v7351 = vpop.f32.mrf.mxu0
        %v7352 = vadd.f32 %v7001, %v7351
        %v7353 = vpop.f32.mrf.mxu0
        %v7354 = vadd.f32 %v7005, %v7353
        %7355 = vmatprep.mubr.bf16.mxu0 0
        %7356 = vmatmul.mubr.bf16.gmra.mxu0 %v6952
        %v7357 = vpop.f32.mrf.mxu0
        %v7358 = vadd.f32 %v7001, %v7357
        %v7359 = vpop.f32.mrf.mxu0
        %v7360 = vadd.f32 %v7005, %v7359
        %v7361 = vpop.f32.mrf.mxu0
        %v7362 = vadd.f32 %v7001, %v7361
        %v7363 = vpop.f32.mrf.mxu0
        %v7364 = vadd.f32 %v7005, %v7363
        %7365 = vmatprep.mubr.bf16.mxu0 0
        %7366 = vmatmul.mubr.bf16.gmra.mxu0 %v6953
        %v7367 = vpop.f32.mrf.mxu0
        %v7368 = vadd.f32 %v7001, %v7367
        %v7369 = vpop.f32.mrf.mxu0
        %v7370 = vadd.f32 %v7005, %v7369
        %v7371 = vpop.f32.mrf.mxu0
        %v7372 = vadd.f32 %v7001, %v7371
        %v7373 = vpop.f32.mrf.mxu0
        %v7374 = vadd.f32 %v7005, %v7373
        %7375 = vmatprep.mubr.bf16.mxu0 0
        %7376 = vmatmul.mubr.bf16.gmra.mxu0 %v6954
        %v7377 = vpop.f32.mrf.mxu0
        %v7378 = vadd.f32 %v7001, %v7377
        %v7379 = vpop.f32.mrf.mxu0
        %v7380 = vadd.f32 %v7005, %v7379
        %v7381 = vpop.f32.mrf.mxu0
        %v7382 = vadd.f32 %v7001, %v7381
        %v7383 = vpop.f32.mrf.mxu0
        %v7384 = vadd.f32 %v7005, %v7383
        %7385 = vmatprep.mubr.bf16.mxu0 0
        %7386 = vmatmul.mubr.bf16.gmra.mxu0 %v6955
        %v7387 = vpop.f32.mrf.mxu0
        %v7388 = vadd.f32 %v7001, %v7387
        %v7389 = vpop.f32.mrf.mxu0
        %v7390 = vadd.f32 %v7005, %v7389
        %v7391 = vpop.f32.mrf.mxu0
        %v7392 = vadd.f32 %v7001, %v7391
        %v7393 = vpop.f32.mrf.mxu0
        %v7394 = vadd.f32 %v7005, %v7393
        %7395 = vdwg.mxu0
        %v7396 = vmul.f32 %v7205, 1.702
        %v7397 = vmul.f32 %v7207, 1.702
        %v7398 = vmul.f32 %v7318, 1.702
        %v7399 = vmul.f32 %v7320, 1.702
        %v7400 = vmul.f32 %v7209, 1.702
        %v7401 = vmul.f32 %v7211, 1.702
        %v7402 = vmul.f32 %v7322, 1.702
        %v7403 = vmul.f32 %v7324, 1.702
        %v7404 = vmul.f32 %v7215, 1.702
        %v7405 = vmul.f32 %v7217, 1.702
        %v7406 = vmul.f32 %v7328, 1.702
        %v7407 = vmul.f32 %v7330, 1.702
        %v7408 = vmul.f32 %v7219, 1.702
        %v7409 = vmul.f32 %v7221, 1.702
        %v7410 = vmul.f32 %v7332, 1.702
        %v7411 = vmul.f32 %v7334, 1.702
        %v7412 = vmul.f32 %v7225, 1.702
        %v7413 = vmul.f32 %v7227, 1.702
        %v7414 = vmul.f32 %v7338, 1.702
        %v7415 = vmul.f32 %v7340, 1.702
        %v7416 = vmul.f32 %v7229, 1.702
        %v7417 = vmul.f32 %v7231, 1.702
        %v7418 = vmul.f32 %v7342, 1.702
        %v7419 = vmul.f32 %v7344, 1.702
        %v7420 = vmul.f32 %v7235, 1.702
        %v7421 = vmul.f32 %v7237, 1.702
        %v7422 = vmul.f32 %v7348, 1.702
        %v7423 = vmul.f32 %v7350, 1.702
        %v7424 = vmul.f32 %v7239, 1.702
        %v7425 = vmul.f32 %v7241, 1.702
        %v7426 = vmul.f32 %v7352, 1.702
        %v7427 = vmul.f32 %v7354, 1.702
        %v7428 = vmul.f32 %v7245, 1.702
        %v7429 = vmul.f32 %v7247, 1.702
        %v7430 = vmul.f32 %v7358, 1.702
        %v7431 = vmul.f32 %v7360, 1.702
        %v7432 = vmul.f32 %v7249, 1.702
        %v7433 = vmul.f32 %v7251, 1.702
        %v7434 = vmul.f32 %v7362, 1.702
        %v7435 = vmul.f32 %v7364, 1.702
        %v7436 = vmul.f32 %v7255, 1.702
        %v7437 = vmul.f32 %v7257, 1.702
        %v7438 = vmul.f32 %v7368, 1.702
        %v7439 = vmul.f32 %v7370, 1.702
        %v7440 = vmul.f32 %v7259, 1.702
        %v7441 = vmul.f32 %v7261, 1.702
        %v7442 = vmul.f32 %v7372, 1.702
        %v7443 = vmul.f32 %v7374, 1.702
        %v7444 = vmul.f32 %v7265, 1.702
        %v7445 = vmul.f32 %v7267, 1.702
        %v7446 = vmul.f32 %v7378, 1.702
        %v7447 = vmul.f32 %v7380, 1.702
        %v7448 = vmul.f32 %v7269, 1.702
        %v7449 = vmul.f32 %v7271, 1.702
        %v7450 = vmul.f32 %v7382, 1.702
        %v7451 = vmul.f32 %v7384, 1.702
        %v7452 = vmul.f32 %v7275, 1.702
        %v7453 = vmul.f32 %v7277, 1.702
        %v7454 = vmul.f32 %v7388, 1.702
        %v7455 = vmul.f32 %v7390, 1.702
        %v7456 = vmul.f32 %v7279, 1.702
        %v7457 = vmul.f32 %v7281, 1.702
        %v7458 = vmul.f32 %v7392, 1.702
        %v7459 = vmul.f32 %v7394, 1.702
        %v7460 = vxor.u32 %v7396, 2147483648
        %v7461 = vxor.u32 %v7397, 2147483648
        %v7462 = vxor.u32 %v7398, 2147483648
        %v7463 = vxor.u32 %v7399, 2147483648
        %v7464 = vxor.u32 %v7400, 2147483648
        %v7465 = vxor.u32 %v7401, 2147483648
        %v7466 = vxor.u32 %v7402, 2147483648
        %v7467 = vxor.u32 %v7403, 2147483648
        %v7468 = vxor.u32 %v7404, 2147483648
        %v7469 = vxor.u32 %v7405, 2147483648
        %v7470 = vxor.u32 %v7406, 2147483648
        %v7471 = vxor.u32 %v7407, 2147483648
        %v7472 = vxor.u32 %v7408, 2147483648
        %v7473 = vxor.u32 %v7409, 2147483648
        %v7474 = vxor.u32 %v7410, 2147483648
        %v7475 = vxor.u32 %v7411, 2147483648
        %v7476 = vxor.u32 %v7412, 2147483648
        %v7477 = vxor.u32 %v7413, 2147483648
        %v7478 = vxor.u32 %v7414, 2147483648
        %v7479 = vxor.u32 %v7415, 2147483648
        %v7480 = vxor.u32 %v7416, 2147483648
        %v7481 = vxor.u32 %v7417, 2147483648
        %v7482 = vxor.u32 %v7418, 2147483648
        %v7483 = vxor.u32 %v7419, 2147483648
        %v7484 = vxor.u32 %v7420, 2147483648
        %v7485 = vxor.u32 %v7421, 2147483648
        %v7486 = vxor.u32 %v7422, 2147483648
        %v7487 = vxor.u32 %v7423, 2147483648
        %v7488 = vxor.u32 %v7424, 2147483648
        %v7489 = vxor.u32 %v7425, 2147483648
        %v7490 = vxor.u32 %v7426, 2147483648
        %v7491 = vxor.u32 %v7427, 2147483648
        %v7492 = vxor.u32 %v7428, 2147483648
        %v7493 = vxor.u32 %v7429, 2147483648
        %v7494 = vxor.u32 %v7430, 2147483648
        %v7495 = vxor.u32 %v7431, 2147483648
        %v7496 = vxor.u32 %v7432, 2147483648
        %v7497 = vxor.u32 %v7433, 2147483648
        %v7498 = vxor.u32 %v7434, 2147483648
        %v7499 = vxor.u32 %v7435, 2147483648
        %v7500 = vxor.u32 %v7436, 2147483648
        %v7501 = vxor.u32 %v7437, 2147483648
        %v7502 = vxor.u32 %v7438, 2147483648
        %v7503 = vxor.u32 %v7439, 2147483648
        %v7504 = vxor.u32 %v7440, 2147483648
        %v7505 = vxor.u32 %v7441, 2147483648
        %v7506 = vxor.u32 %v7442, 2147483648
        %v7507 = vxor.u32 %v7443, 2147483648
        %v7508 = vxor.u32 %v7444, 2147483648
        %v7509 = vxor.u32 %v7445, 2147483648
        %v7510 = vxor.u32 %v7446, 2147483648
        %v7511 = vxor.u32 %v7447, 2147483648
        %v7512 = vxor.u32 %v7448, 2147483648
        %v7513 = vxor.u32 %v7449, 2147483648
        %v7514 = vxor.u32 %v7450, 2147483648
        %v7515 = vxor.u32 %v7451, 2147483648
        %v7516 = vxor.u32 %v7452, 2147483648
        %v7517 = vxor.u32 %v7453, 2147483648
        %v7518 = vxor.u32 %v7454, 2147483648
        %v7519 = vxor.u32 %v7455, 2147483648
        %v7520 = vxor.u32 %v7456, 2147483648
        %v7521 = vxor.u32 %v7457, 2147483648
        %v7522 = vxor.u32 %v7458, 2147483648
        %v7523 = vxor.u32 %v7459, 2147483648
        %v7524 = vmul.f32 %v7460, 1.442695
        %v7525 = vpow.pop %v7524
        %v7526 = vmul.f32 %v7461, 1.442695
        %v7527 = vpow.pop %v7526
        %v7528 = vmul.f32 %v7462, 1.442695
        %v7529 = vpow.pop %v7528
        %v7530 = vmul.f32 %v7463, 1.442695
        %v7531 = vpow.pop %v7530
        %v7532 = vmul.f32 %v7464, 1.442695
        %v7533 = vpow.pop %v7532
        %v7534 = vmul.f32 %v7465, 1.442695
        %v7535 = vpow.pop %v7534
        %v7536 = vmul.f32 %v7466, 1.442695
        %v7537 = vpow.pop %v7536
        %v7538 = vmul.f32 %v7467, 1.442695
        %v7539 = vpow.pop %v7538
        %v7540 = vmul.f32 %v7468, 1.442695
        %v7541 = vpow.pop %v7540
        %v7542 = vmul.f32 %v7469, 1.442695
        %v7543 = vpow.pop %v7542
        %v7544 = vmul.f32 %v7470, 1.442695
        %v7545 = vpow.pop %v7544
        %v7546 = vmul.f32 %v7471, 1.442695
        %v7547 = vpow.pop %v7546
        %v7548 = vmul.f32 %v7472, 1.442695
        %v7549 = vpow.pop %v7548
        %v7550 = vmul.f32 %v7473, 1.442695
        %v7551 = vpow.pop %v7550
        %v7552 = vmul.f32 %v7474, 1.442695
        %v7553 = vpow.pop %v7552
        %v7554 = vmul.f32 %v7475, 1.442695
        %v7555 = vpow.pop %v7554
        %v7556 = vmul.f32 %v7476, 1.442695
        %v7557 = vpow.pop %v7556
        %v7558 = vmul.f32 %v7477, 1.442695
        %v7559 = vpow.pop %v7558
        %v7560 = vmul.f32 %v7478, 1.442695
        %v7561 = vpow.pop %v7560
        %v7562 = vmul.f32 %v7479, 1.442695
        %v7563 = vpow.pop %v7562
        %v7564 = vmul.f32 %v7480, 1.442695
        %v7565 = vpow.pop %v7564
        %v7566 = vmul.f32 %v7481, 1.442695
        %v7567 = vpow.pop %v7566
        %v7568 = vmul.f32 %v7482, 1.442695
        %v7569 = vpow.pop %v7568
        %v7570 = vmul.f32 %v7483, 1.442695
        %v7571 = vpow.pop %v7570
        %v7572 = vmul.f32 %v7484, 1.442695
        %v7573 = vpow.pop %v7572
        %v7574 = vmul.f32 %v7485, 1.442695
        %v7575 = vpow.pop %v7574
        %v7576 = vmul.f32 %v7486, 1.442695
        %v7577 = vpow.pop %v7576
        %v7578 = vmul.f32 %v7487, 1.442695
        %v7579 = vpow.pop %v7578
        %v7580 = vmul.f32 %v7488, 1.442695
        %v7581 = vpow.pop %v7580
        %v7582 = vmul.f32 %v7489, 1.442695
        %v7583 = vpow.pop %v7582
        %v7584 = vmul.f32 %v7490, 1.442695
        %v7585 = vpow.pop %v7584
        %v7586 = vmul.f32 %v7491, 1.442695
        %v7587 = vpow.pop %v7586
        %v7588 = vmul.f32 %v7492, 1.442695
        %v7589 = vpow.pop %v7588
        %v7590 = vmul.f32 %v7493, 1.442695
        %v7591 = vpow.pop %v7590
        %v7592 = vmul.f32 %v7494, 1.442695
        %v7593 = vpow.pop %v7592
        %v7594 = vmul.f32 %v7495, 1.442695
        %v7595 = vpow.pop %v7594
        %v7596 = vmul.f32 %v7496, 1.442695
        %v7597 = vpow.pop %v7596
        %v7598 = vmul.f32 %v7497, 1.442695
        %v7599 = vpow.pop %v7598
        %v7600 = vmul.f32 %v7498, 1.442695
        %v7601 = vpow.pop %v7600
        %v7602 = vmul.f32 %v7499, 1.442695
        %v7603 = vpow.pop %v7602
        %v7604 = vmul.f32 %v7500, 1.442695
        %v7605 = vpow.pop %v7604
        %v7606 = vmul.f32 %v7501, 1.442695
        %v7607 = vpow.pop %v7606
        %v7608 = vmul.f32 %v7502, 1.442695
        %v7609 = vpow.pop %v7608
        %v7610 = vmul.f32 %v7503, 1.442695
        %v7611 = vpow.pop %v7610
        %v7612 = vmul.f32 %v7504, 1.442695
        %v7613 = vpow.pop %v7612
        %v7614 = vmul.f32 %v7505, 1.442695
        %v7615 = vpow.pop %v7614
        %v7616 = vmul.f32 %v7506, 1.442695
        %v7617 = vpow.pop %v7616
        %v7618 = vmul.f32 %v7507, 1.442695
        %v7619 = vpow.pop %v7618
        %v7620 = vmul.f32 %v7508, 1.442695
        %v7621 = vpow.pop %v7620
        %v7622 = vmul.f32 %v7509, 1.442695
        %v7623 = vpow.pop %v7622
        %v7624 = vmul.f32 %v7510, 1.442695
        %v7625 = vpow.pop %v7624
        %v7626 = vmul.f32 %v7511, 1.442695
        %v7627 = vpow.pop %v7626
        %v7628 = vmul.f32 %v7512, 1.442695
        %v7629 = vpow.pop %v7628
        %v7630 = vmul.f32 %v7513, 1.442695
        %v7631 = vpow.pop %v7630
        %v7632 = vmul.f32 %v7514, 1.442695
        %v7633 = vpow.pop %v7632
        %v7634 = vmul.f32 %v7515, 1.442695
        %v7635 = vpow.pop %v7634
        %v7636 = vmul.f32 %v7516, 1.442695
        %v7637 = vpow.pop %v7636
        %v7638 = vmul.f32 %v7517, 1.442695
        %v7639 = vpow.pop %v7638
        %v7640 = vmul.f32 %v7518, 1.442695
        %v7641 = vpow.pop %v7640
        %v7642 = vmul.f32 %v7519, 1.442695
        %v7643 = vpow.pop %v7642
        %v7644 = vmul.f32 %v7520, 1.442695
        %v7645 = vpow.pop %v7644
        %v7646 = vmul.f32 %v7521, 1.442695
        %v7647 = vpow.pop %v7646
        %v7648 = vmul.f32 %v7522, 1.442695
        %v7649 = vpow.pop %v7648
        %v7650 = vmul.f32 %v7523, 1.442695
        %v7651 = vpow.pop %v7650
        %v7652 = vadd.f32 %v7525, 1.0
        %v7653 = vadd.f32 %v7527, 1.0
        %v7654 = vadd.f32 %v7529, 1.0
        %v7655 = vadd.f32 %v7531, 1.0
        %v7656 = vadd.f32 %v7533, 1.0
        %v7657 = vadd.f32 %v7535, 1.0
        %v7658 = vadd.f32 %v7537, 1.0
        %v7659 = vadd.f32 %v7539, 1.0
        %v7660 = vadd.f32 %v7541, 1.0
        %v7661 = vadd.f32 %v7543, 1.0
        %v7662 = vadd.f32 %v7545, 1.0
        %v7663 = vadd.f32 %v7547, 1.0
        %v7664 = vadd.f32 %v7549, 1.0
        %v7665 = vadd.f32 %v7551, 1.0
        %v7666 = vadd.f32 %v7553, 1.0
        %v7667 = vadd.f32 %v7555, 1.0
        %v7668 = vadd.f32 %v7557, 1.0
        %v7669 = vadd.f32 %v7559, 1.0
        %v7670 = vadd.f32 %v7561, 1.0
        %v7671 = vadd.f32 %v7563, 1.0
        %v7672 = vadd.f32 %v7565, 1.0
        %v7673 = vadd.f32 %v7567, 1.0
        %v7674 = vadd.f32 %v7569, 1.0
        %v7675 = vadd.f32 %v7571, 1.0
        %v7676 = vadd.f32 %v7573, 1.0
        %v7677 = vadd.f32 %v7575, 1.0
        %v7678 = vadd.f32 %v7577, 1.0
        %v7679 = vadd.f32 %v7579, 1.0
        %v7680 = vadd.f32 %v7581, 1.0
        %v7681 = vadd.f32 %v7583, 1.0
        %v7682 = vadd.f32 %v7585, 1.0
        %v7683 = vadd.f32 %v7587, 1.0
        %v7684 = vadd.f32 %v7589, 1.0
        %v7685 = vadd.f32 %v7591, 1.0
        %v7686 = vadd.f32 %v7593, 1.0
        %v7687 = vadd.f32 %v7595, 1.0
        %v7688 = vadd.f32 %v7597, 1.0
        %v7689 = vadd.f32 %v7599, 1.0
        %v7690 = vadd.f32 %v7601, 1.0
        %v7691 = vadd.f32 %v7603, 1.0
        %v7692 = vadd.f32 %v7605, 1.0
        %v7693 = vadd.f32 %v7607, 1.0
        %v7694 = vadd.f32 %v7609, 1.0
        %v7695 = vadd.f32 %v7611, 1.0
        %v7696 = vadd.f32 %v7613, 1.0
        %v7697 = vadd.f32 %v7615, 1.0
        %v7698 = vadd.f32 %v7617, 1.0
        %v7699 = vadd.f32 %v7619, 1.0
        %v7700 = vadd.f32 %v7621, 1.0
        %v7701 = vadd.f32 %v7623, 1.0
        %v7702 = vadd.f32 %v7625, 1.0
        %v7703 = vadd.f32 %v7627, 1.0
        %v7704 = vadd.f32 %v7629, 1.0
        %v7705 = vadd.f32 %v7631, 1.0
        %v7706 = vadd.f32 %v7633, 1.0
        %v7707 = vadd.f32 %v7635, 1.0
        %v7708 = vadd.f32 %v7637, 1.0
        %v7709 = vadd.f32 %v7639, 1.0
        %v7710 = vadd.f32 %v7641, 1.0
        %v7711 = vadd.f32 %v7643, 1.0
        %v7712 = vadd.f32 %v7645, 1.0
        %v7713 = vadd.f32 %v7647, 1.0
        %v7714 = vadd.f32 %v7649, 1.0
        %v7715 = vadd.f32 %v7651, 1.0
        %v7716 = vrcp.pop %v7652
        %v7717 = vmul.f32 1.0, %v7716
        %v7718 = vrcp.pop %v7653
        %v7719 = vmul.f32 1.0, %v7718
        %v7720 = vrcp.pop %v7654
        %v7721 = vmul.f32 1.0, %v7720
        %v7722 = vrcp.pop %v7655
        %v7723 = vmul.f32 1.0, %v7722
        %v7724 = vrcp.pop %v7656
        %v7725 = vmul.f32 1.0, %v7724
        %v7726 = vrcp.pop %v7657
        %v7727 = vmul.f32 1.0, %v7726
        %v7728 = vrcp.pop %v7658
        %v7729 = vmul.f32 1.0, %v7728
        %v7730 = vrcp.pop %v7659
        %v7731 = vmul.f32 1.0, %v7730
        %v7732 = vrcp.pop %v7660
        %v7733 = vmul.f32 1.0, %v7732
        %v7734 = vrcp.pop %v7661
        %v7735 = vmul.f32 1.0, %v7734
        %v7736 = vrcp.pop %v7662
        %v7737 = vmul.f32 1.0, %v7736
        %v7738 = vrcp.pop %v7663
        %v7739 = vmul.f32 1.0, %v7738
        %v7740 = vrcp.pop %v7664
        %v7741 = vmul.f32 1.0, %v7740
        %v7742 = vrcp.pop %v7665
        %v7743 = vmul.f32 1.0, %v7742
        %v7744 = vrcp.pop %v7666
        %v7745 = vmul.f32 1.0, %v7744
        %v7746 = vrcp.pop %v7667
        %v7747 = vmul.f32 1.0, %v7746
        %v7748 = vrcp.pop %v7668
        %v7749 = vmul.f32 1.0, %v7748
        %v7750 = vrcp.pop %v7669
        %v7751 = vmul.f32 1.0, %v7750
        %v7752 = vrcp.pop %v7670
        %v7753 = vmul.f32 1.0, %v7752
        %v7754 = vrcp.pop %v7671
        %v7755 = vmul.f32 1.0, %v7754
        %v7756 = vrcp.pop %v7672
        %v7757 = vmul.f32 1.0, %v7756
        %v7758 = vrcp.pop %v7673
        %v7759 = vmul.f32 1.0, %v7758
        %v7760 = vrcp.pop %v7674
        %v7761 = vmul.f32 1.0, %v7760
        %v7762 = vrcp.pop %v7675
        %v7763 = vmul.f32 1.0, %v7762
        %v7764 = vrcp.pop %v7676
        %v7765 = vmul.f32 1.0, %v7764
        %v7766 = vrcp.pop %v7677
        %v7767 = vmul.f32 1.0, %v7766
        %v7768 = vrcp.pop %v7678
        %v7769 = vmul.f32 1.0, %v7768
        %v7770 = vrcp.pop %v7679
        %v7771 = vmul.f32 1.0, %v7770
        %v7772 = vrcp.pop %v7680
        %v7773 = vmul.f32 1.0, %v7772
        %v7774 = vrcp.pop %v7681
        %v7775 = vmul.f32 1.0, %v7774
        %v7776 = vrcp.pop %v7682
        %v7777 = vmul.f32 1.0, %v7776
        %v7778 = vrcp.pop %v7683
        %v7779 = vmul.f32 1.0, %v7778
        %v7780 = vrcp.pop %v7684
        %v7781 = vmul.f32 1.0, %v7780
        %v7782 = vrcp.pop %v7685
        %v7783 = vmul.f32 1.0, %v7782
        %v7784 = vrcp.pop %v7686
        %v7785 = vmul.f32 1.0, %v7784
        %v7786 = vrcp.pop %v7687
        %v7787 = vmul.f32 1.0, %v7786
        %v7788 = vrcp.pop %v7688
        %v7789 = vmul.f32 1.0, %v7788
        %v7790 = vrcp.pop %v7689
        %v7791 = vmul.f32 1.0, %v7790
        %v7792 = vrcp.pop %v7690
        %v7793 = vmul.f32 1.0, %v7792
        %v7794 = vrcp.pop %v7691
        %v7795 = vmul.f32 1.0, %v7794
        %v7796 = vrcp.pop %v7692
        %v7797 = vmul.f32 1.0, %v7796
        %v7798 = vrcp.pop %v7693
        %v7799 = vmul.f32 1.0, %v7798
        %v7800 = vrcp.pop %v7694
        %v7801 = vmul.f32 1.0, %v7800
        %v7802 = vrcp.pop %v7695
        %v7803 = vmul.f32 1.0, %v7802
        %v7804 = vrcp.pop %v7696
        %v7805 = vmul.f32 1.0, %v7804
        %v7806 = vrcp.pop %v7697
        %v7807 = vmul.f32 1.0, %v7806
        %v7808 = vrcp.pop %v7698
        %v7809 = vmul.f32 1.0, %v7808
        %v7810 = vrcp.pop %v7699
        %v7811 = vmul.f32 1.0, %v7810
        %v7812 = vrcp.pop %v7700
        %v7813 = vmul.f32 1.0, %v7812
        %v7814 = vrcp.pop %v7701
        %v7815 = vmul.f32 1.0, %v7814
        %v7816 = vrcp.pop %v7702
        %v7817 = vmul.f32 1.0, %v7816
        %v7818 = vrcp.pop %v7703
        %v7819 = vmul.f32 1.0, %v7818
        %v7820 = vrcp.pop %v7704
        %v7821 = vmul.f32 1.0, %v7820
        %v7822 = vrcp.pop %v7705
        %v7823 = vmul.f32 1.0, %v7822
        %v7824 = vrcp.pop %v7706
        %v7825 = vmul.f32 1.0, %v7824
        %v7826 = vrcp.pop %v7707
        %v7827 = vmul.f32 1.0, %v7826
        %v7828 = vrcp.pop %v7708
        %v7829 = vmul.f32 1.0, %v7828
        %v7830 = vrcp.pop %v7709
        %v7831 = vmul.f32 1.0, %v7830
        %v7832 = vrcp.pop %v7710
        %v7833 = vmul.f32 1.0, %v7832
        %v7834 = vrcp.pop %v7711
        %v7835 = vmul.f32 1.0, %v7834
        %v7836 = vrcp.pop %v7712
        %v7837 = vmul.f32 1.0, %v7836
        %v7838 = vrcp.pop %v7713
        %v7839 = vmul.f32 1.0, %v7838
        %v7840 = vrcp.pop %v7714
        %v7841 = vmul.f32 1.0, %v7840
        %v7842 = vrcp.pop %v7715
        %v7843 = vmul.f32 1.0, %v7842
        %v7844 = vmul.f32 %v7205, %v7717
        %v7845 = vmul.f32 %v7207, %v7719
        %v7846 = vmul.f32 %v7318, %v7721
        %v7847 = vmul.f32 %v7320, %v7723
        %v7848 = vmul.f32 %v7209, %v7725
        %v7849 = vmul.f32 %v7211, %v7727
        %v7850 = vmul.f32 %v7322, %v7729
        %v7851 = vmul.f32 %v7324, %v7731
        %v7852 = vmul.f32 %v7215, %v7733
        %v7853 = vmul.f32 %v7217, %v7735
        %v7854 = vmul.f32 %v7328, %v7737
        %v7855 = vmul.f32 %v7330, %v7739
        %v7856 = vmul.f32 %v7219, %v7741
        %v7857 = vmul.f32 %v7221, %v7743
        %v7858 = vmul.f32 %v7332, %v7745
        %v7859 = vmul.f32 %v7334, %v7747
        %v7860 = vmul.f32 %v7225, %v7749
        %v7861 = vmul.f32 %v7227, %v7751
        %v7862 = vmul.f32 %v7338, %v7753
        %v7863 = vmul.f32 %v7340, %v7755
        %v7864 = vmul.f32 %v7229, %v7757
        %v7865 = vmul.f32 %v7231, %v7759
        %v7866 = vmul.f32 %v7342, %v7761
        %v7867 = vmul.f32 %v7344, %v7763
        %v7868 = vmul.f32 %v7235, %v7765
        %v7869 = vmul.f32 %v7237, %v7767
        %v7870 = vmul.f32 %v7348, %v7769
        %v7871 = vmul.f32 %v7350, %v7771
        %v7872 = vmul.f32 %v7239, %v7773
        %v7873 = vmul.f32 %v7241, %v7775
        %v7874 = vmul.f32 %v7352, %v7777
        %v7875 = vmul.f32 %v7354, %v7779
        %v7876 = vmul.f32 %v7245, %v7781
        %v7877 = vmul.f32 %v7247, %v7783
        %v7878 = vmul.f32 %v7358, %v7785
        %v7879 = vmul.f32 %v7360, %v7787
        %v7880 = vmul.f32 %v7249, %v7789
        %v7881 = vmul.f32 %v7251, %v7791
        %v7882 = vmul.f32 %v7362, %v7793
        %v7883 = vmul.f32 %v7364, %v7795
        %v7884 = vmul.f32 %v7255, %v7797
        %v7885 = vmul.f32 %v7257, %v7799
        %v7886 = vmul.f32 %v7368, %v7801
        %v7887 = vmul.f32 %v7370, %v7803
        %v7888 = vmul.f32 %v7259, %v7805
        %v7889 = vmul.f32 %v7261, %v7807
        %v7890 = vmul.f32 %v7372, %v7809
        %v7891 = vmul.f32 %v7374, %v7811
        %v7892 = vmul.f32 %v7265, %v7813
        %v7893 = vmul.f32 %v7267, %v7815
        %v7894 = vmul.f32 %v7378, %v7817
        %v7895 = vmul.f32 %v7380, %v7819
        %v7896 = vmul.f32 %v7269, %v7821
        %v7897 = vmul.f32 %v7271, %v7823
        %v7898 = vmul.f32 %v7382, %v7825
        %v7899 = vmul.f32 %v7384, %v7827
        %v7900 = vmul.f32 %v7275, %v7829
        %v7901 = vmul.f32 %v7277, %v7831
        %v7902 = vmul.f32 %v7388, %v7833
        %v7903 = vmul.f32 %v7390, %v7835
        %v7904 = vmul.f32 %v7279, %v7837
        %v7905 = vmul.f32 %v7281, %v7839
        %v7906 = vmul.f32 %v7392, %v7841
        %v7907 = vmul.f32 %v7394, %v7843
        %v7908 = vpack.c.bf16 %v7848, %v7844
        %v7909 = vpack.c.bf16 %v7849, %v7845
        %v7910 = vpack.c.bf16 %v7850, %v7846
        %v7911 = vpack.c.bf16 %v7851, %v7847
        %v7912 = vpack.c.bf16 %v7856, %v7852
        %v7913 = vpack.c.bf16 %v7857, %v7853
        %v7914 = vpack.c.bf16 %v7858, %v7854
        %v7915 = vpack.c.bf16 %v7859, %v7855
        %v7916 = vpack.c.bf16 %v7864, %v7860
        %v7917 = vpack.c.bf16 %v7865, %v7861
        %v7918 = vpack.c.bf16 %v7866, %v7862
        %v7919 = vpack.c.bf16 %v7867, %v7863
        %v7920 = vpack.c.bf16 %v7872, %v7868
        %v7921 = vpack.c.bf16 %v7873, %v7869
        %v7922 = vpack.c.bf16 %v7874, %v7870
        %v7923 = vpack.c.bf16 %v7875, %v7871
        %v7924 = vpack.c.bf16 %v7880, %v7876
        %v7925 = vpack.c.bf16 %v7881, %v7877
        %v7926 = vpack.c.bf16 %v7882, %v7878
        %v7927 = vpack.c.bf16 %v7883, %v7879
        %v7928 = vpack.c.bf16 %v7888, %v7884
        %v7929 = vpack.c.bf16 %v7889, %v7885
        %v7930 = vpack.c.bf16 %v7890, %v7886
        %v7931 = vpack.c.bf16 %v7891, %v7887
        %v7932 = vpack.c.bf16 %v7896, %v7892
        %v7933 = vpack.c.bf16 %v7897, %v7893
        %v7934 = vpack.c.bf16 %v7898, %v7894
        %v7935 = vpack.c.bf16 %v7899, %v7895
        %v7936 = vpack.c.bf16 %v7904, %v7900
        %v7937 = vpack.c.bf16 %v7905, %v7901
        %v7938 = vpack.c.bf16 %v7906, %v7902
        %v7939 = vpack.c.bf16 %v7907, %v7903
        %v7940 = vld [vmem:[#allocation14] sm:$0xf]
        %v7941 = vld [vmem:[#allocation14 + $0x4] sm:$0xf]
        %v7942 = vld [vmem:[#allocation14 + $0x8] sm:$0xf]
        %v7943 = vld [vmem:[#allocation14 + $0xc] sm:$0xf]
        %v7944 = vld [vmem:[#allocation14 + $0x10] sm:$0xf]
        %v7945 = vld [vmem:[#allocation14 + $0x14] sm:$0xf]
        %v7946 = vld [vmem:[#allocation14 + $0x18] sm:$0xf]
        %v7947 = vld [vmem:[#allocation14 + $0x1c] sm:$0xf]
        %v7948 = vld [vmem:[#allocation14 + $0x20] sm:$0xf]
        %v7949 = vld [vmem:[#allocation14 + $0x24] sm:$0xf]
        %v7950 = vld [vmem:[#allocation14 + $0x28] sm:$0xf]
        %v7951 = vld [vmem:[#allocation14 + $0x2c] sm:$0xf]
        %v7952 = vld [vmem:[#allocation14 + $0x30] sm:$0xf]
        %v7953 = vld [vmem:[#allocation14 + $0x34] sm:$0xf]
        %v7954 = vld [vmem:[#allocation14 + $0x38] sm:$0xf]
        %v7955 = vld [vmem:[#allocation14 + $0x3c] sm:$0xf]
        %v7956 = vld [vmem:[#allocation14 + $0x40] sm:$0xf]
        %v7957 = vld [vmem:[#allocation14 + $0x44] sm:$0xf]
        %v7958 = vld [vmem:[#allocation14 + $0x48] sm:$0xf]
        %v7959 = vld [vmem:[#allocation14 + $0x4c] sm:$0xf]
        %v7960 = vld [vmem:[#allocation14 + $0x50] sm:$0xf]
        %v7961 = vld [vmem:[#allocation14 + $0x54] sm:$0xf]
        %v7962 = vld [vmem:[#allocation14 + $0x58] sm:$0xf]
        %v7963 = vld [vmem:[#allocation14 + $0x5c] sm:$0xf]
        %v7964 = vld [vmem:[#allocation14 + $0x60] sm:$0xf]
        %v7965 = vld [vmem:[#allocation14 + $0x64] sm:$0xf]
        %v7966 = vld [vmem:[#allocation14 + $0x68] sm:$0xf]
        %v7967 = vld [vmem:[#allocation14 + $0x6c] sm:$0xf]
        %v7968 = vld [vmem:[#allocation14 + $0x70] sm:$0xf]
        %v7969 = vld [vmem:[#allocation14 + $0x74] sm:$0xf]
        %v7970 = vld [vmem:[#allocation14 + $0x78] sm:$0xf]
        %v7971 = vld [vmem:[#allocation14 + $0x7c] sm:$0xf]
        %v7972 = vld [vmem:[#allocation14 + $0x80] sm:$0xf]
        %v7973 = vld [vmem:[#allocation14 + $0x84] sm:$0xf]
        %v7974 = vld [vmem:[#allocation14 + $0x88] sm:$0xf]
        %v7975 = vld [vmem:[#allocation14 + $0x8c] sm:$0xf]
        %v7976 = vld [vmem:[#allocation14 + $0x90] sm:$0xf]
        %v7977 = vld [vmem:[#allocation14 + $0x94] sm:$0xf]
        %v7978 = vld [vmem:[#allocation14 + $0x98] sm:$0xf]
        %v7979 = vld [vmem:[#allocation14 + $0x9c] sm:$0xf]
        %v7980 = vld [vmem:[#allocation14 + $0xa0] sm:$0xf]
        %v7981 = vld [vmem:[#allocation14 + $0xa4] sm:$0xf]
        %v7982 = vld [vmem:[#allocation14 + $0xa8] sm:$0xf]
        %v7983 = vld [vmem:[#allocation14 + $0xac] sm:$0xf]
        %v7984 = vld [vmem:[#allocation14 + $0xb0] sm:$0xf]
        %v7985 = vld [vmem:[#allocation14 + $0xb4] sm:$0xf]
        %v7986 = vld [vmem:[#allocation14 + $0xb8] sm:$0xf]
        %v7987 = vld [vmem:[#allocation14 + $0xbc] sm:$0xf]
        %v7988 = vld [vmem:[#allocation14 + $0xc0] sm:$0xf]
        %v7989 = vld [vmem:[#allocation14 + $0xc4] sm:$0xf]
        %v7990 = vld [vmem:[#allocation14 + $0xc8] sm:$0xf]
        %v7991 = vld [vmem:[#allocation14 + $0xcc] sm:$0xf]
        %v7992 = vld [vmem:[#allocation14 + $0xd0] sm:$0xf]
        %v7993 = vld [vmem:[#allocation14 + $0xd4] sm:$0xf]
        %v7994 = vld [vmem:[#allocation14 + $0xd8] sm:$0xf]
        %v7995 = vld [vmem:[#allocation14 + $0xdc] sm:$0xf]
        %v7996 = vld [vmem:[#allocation14 + $0xe0] sm:$0xf]
        %v7997 = vld [vmem:[#allocation14 + $0xe4] sm:$0xf]
        %v7998 = vld [vmem:[#allocation14 + $0xe8] sm:$0xf]
        %v7999 = vld [vmem:[#allocation14 + $0xec] sm:$0xf]
        %v8000 = vld [vmem:[#allocation14 + $0xf0] sm:$0xf]
        %v8001 = vld [vmem:[#allocation14 + $0xf4] sm:$0xf]
        %v8002 = vld [vmem:[#allocation14 + $0xf8] sm:$0xf]
        %v8003 = vld [vmem:[#allocation14 + $0xfc] sm:$0xf]
        %v8004 = vld [vmem:[%s13] sm:$0x1]
        %v8006 = vlaneseq
        %v8007 = vshrl.u32 %v8006, 7
        %v8008 = vsub.s32 0, %v8007
        %v8009 = vrot.slane %v8004, %v8008
        %v8075 = vunpack.c.l.b16 %v7940
        %v8076 = vunpack.c.l.b16 %v7941
        %v8077 = vunpack.c.l.b16 %v7942
        %v8078 = vunpack.c.l.b16 %v7943
        %v8079 = vunpack.c.l.b16 %v7944
        %v8080 = vunpack.c.l.b16 %v7945
        %v8081 = vunpack.c.l.b16 %v7946
        %v8082 = vunpack.c.l.b16 %v7947
        %v8083 = vunpack.c.l.b16 %v7948
        %v8084 = vunpack.c.l.b16 %v7949
        %v8085 = vunpack.c.l.b16 %v7950
        %v8086 = vunpack.c.l.b16 %v7951
        %v8087 = vunpack.c.l.b16 %v7952
        %v8088 = vunpack.c.l.b16 %v7953
        %v8089 = vunpack.c.l.b16 %v7954
        %v8090 = vunpack.c.l.b16 %v7955
        %v8091 = vunpack.c.l.b16 %v7956
        %v8092 = vunpack.c.l.b16 %v7957
        %v8093 = vunpack.c.l.b16 %v7958
        %v8094 = vunpack.c.l.b16 %v7959
        %v8095 = vunpack.c.l.b16 %v7960
        %v8096 = vunpack.c.l.b16 %v7961
        %v8097 = vunpack.c.l.b16 %v7962
        %v8098 = vunpack.c.l.b16 %v7963
        %v8099 = vunpack.c.l.b16 %v7964
        %v8100 = vunpack.c.l.b16 %v7965
        %v8101 = vunpack.c.l.b16 %v7966
        %v8102 = vunpack.c.l.b16 %v7967
        %v8103 = vunpack.c.l.b16 %v7968
        %v8104 = vunpack.c.l.b16 %v7969
        %v8105 = vunpack.c.l.b16 %v7970
        %v8106 = vunpack.c.l.b16 %v7971
        %v8107 = vunpack.c.l.b16 %v7972
        %v8108 = vunpack.c.l.b16 %v7973
        %v8109 = vunpack.c.l.b16 %v7974
        %v8110 = vunpack.c.l.b16 %v7975
        %v8111 = vunpack.c.l.b16 %v7976
        %v8112 = vunpack.c.l.b16 %v7977
        %v8113 = vunpack.c.l.b16 %v7978
        %v8114 = vunpack.c.l.b16 %v7979
        %v8115 = vunpack.c.l.b16 %v7980
        %v8116 = vunpack.c.l.b16 %v7981
        %v8117 = vunpack.c.l.b16 %v7982
        %v8118 = vunpack.c.l.b16 %v7983
        %v8119 = vunpack.c.l.b16 %v7984
        %v8120 = vunpack.c.l.b16 %v7985
        %v8121 = vunpack.c.l.b16 %v7986
        %v8122 = vunpack.c.l.b16 %v7987
        %v8123 = vunpack.c.l.b16 %v7988
        %v8124 = vunpack.c.l.b16 %v7989
        %v8125 = vunpack.c.l.b16 %v7990
        %v8126 = vunpack.c.l.b16 %v7991
        %v8127 = vunpack.c.l.b16 %v7992
        %v8128 = vunpack.c.l.b16 %v7993
        %v8129 = vunpack.c.l.b16 %v7994
        %v8130 = vunpack.c.l.b16 %v7995
        %v8131 = vunpack.c.l.b16 %v7996
        %v8132 = vunpack.c.l.b16 %v7997
        %v8133 = vunpack.c.l.b16 %v7998
        %v8134 = vunpack.c.l.b16 %v7999
        %v8135 = vunpack.c.l.b16 %v8000
        %v8136 = vunpack.c.l.b16 %v8001
        %v8137 = vunpack.c.l.b16 %v8002
        %v8138 = vunpack.c.l.b16 %v8003
        %v8139 = vpack.c.b16 %v8076, %v8075
        %v8140 = vpack.c.b16 %v8078, %v8077
        %v8141 = vpack.c.b16 %v8080, %v8079
        %v8142 = vpack.c.b16 %v8082, %v8081
        %v8143 = vpack.c.b16 %v8084, %v8083
        %v8144 = vpack.c.b16 %v8086, %v8085
        %v8145 = vpack.c.b16 %v8088, %v8087
        %v8146 = vpack.c.b16 %v8090, %v8089
        %v8147 = vpack.c.b16 %v8092, %v8091
        %v8148 = vpack.c.b16 %v8094, %v8093
        %v8149 = vpack.c.b16 %v8096, %v8095
        %v8150 = vpack.c.b16 %v8098, %v8097
        %v8151 = vpack.c.b16 %v8100, %v8099
        %v8152 = vpack.c.b16 %v8102, %v8101
        %v8153 = vpack.c.b16 %v8104, %v8103
        %v8154 = vpack.c.b16 %v8106, %v8105
        %v8155 = vpack.c.b16 %v8108, %v8107
        %v8156 = vpack.c.b16 %v8110, %v8109
        %v8157 = vpack.c.b16 %v8112, %v8111
        %v8158 = vpack.c.b16 %v8114, %v8113
        %v8159 = vpack.c.b16 %v8116, %v8115
        %v8160 = vpack.c.b16 %v8118, %v8117
        %v8161 = vpack.c.b16 %v8120, %v8119
        %v8162 = vpack.c.b16 %v8122, %v8121
        %v8163 = vpack.c.b16 %v8124, %v8123
        %v8164 = vpack.c.b16 %v8126, %v8125
        %v8165 = vpack.c.b16 %v8128, %v8127
        %v8166 = vpack.c.b16 %v8130, %v8129
        %v8167 = vpack.c.b16 %v8132, %v8131
        %v8168 = vpack.c.b16 %v8134, %v8133
        %v8169 = vpack.c.b16 %v8136, %v8135
        %v8170 = vpack.c.b16 %v8138, %v8137
        %8203 = vmatprep.subr.bf16.mxu0 0
        %8204 = vmatpush1.bf16.msra.mxu0 %v8146
        %8205 = vmatprep.subr.bf16.mxu0 0
        %8206 = vmatpush1.bf16.msra.mxu0 %v8145
        %8207 = vmatprep.subr.bf16.mxu0 0
        %8208 = vmatpush1.bf16.msra.mxu0 %v8144
        %8209 = vmatprep.subr.bf16.mxu0 0
        %8210 = vmatpush1.bf16.msra.mxu0 %v8143
        %8211 = vmatprep.subr.bf16.mxu0 0
        %8212 = vmatpush1.bf16.msra.mxu0 %v8142
        %8213 = vmatprep.subr.bf16.mxu0 0
        %8214 = vmatpush1.bf16.msra.mxu0 %v8141
        %8215 = vmatprep.subr.bf16.mxu0 0
        %8216 = vmatpush1.bf16.msra.mxu0 %v8140
        %8217 = vmatprep.subr.bf16.mxu0 0
        %8218 = vmatpush1.bf16.msra.mxu0 %v8139
        %8219 = vmatprep.subr.bf16.mxu0 0
        %8220 = vmatpush2.bf16.msra.mxu0 %v8154
        %8221 = vmatprep.subr.bf16.mxu0 0
        %8222 = vmatpush2.bf16.msra.mxu0 %v8153
        %8223 = vmatprep.subr.bf16.mxu0 0
        %8224 = vmatpush2.bf16.msra.mxu0 %v8152
        %8225 = vmatprep.subr.bf16.mxu0 0
        %8226 = vmatpush2.bf16.msra.mxu0 %v8151
        %8227 = vmatprep.subr.bf16.mxu0 0
        %8228 = vmatpush2.bf16.msra.mxu0 %v8150
        %8229 = vmatprep.subr.bf16.mxu0 0
        %8230 = vmatpush2.bf16.msra.mxu0 %v8149
        %8231 = vmatprep.subr.bf16.mxu0 0
        %8232 = vmatpush2.bf16.msra.mxu0 %v8148
        %8233 = vmatprep.subr.bf16.mxu0 0
        %8234 = vmatpush2.bf16.msra.mxu0 %v8147
        %8235 = vmatprep.mubr.bf16.mxu0 %v7909
        %8236 = vmatmul.mubr.bf16.gmra.mxu0 %v7908
        %v8237 = vpop.f32.mrf.mxu0
        %v8238 = vadd.f32 %v8009, %v8237
        %v8239 = vpop.f32.mrf.mxu0
        %v8240 = vpop.f32.mrf.mxu0
        %v8241 = vadd.f32 %v8009, %v8240
        %v8242 = vpop.f32.mrf.mxu0
        %8243 = vmatprep.mubr.bf16.mxu0 %v7913
        %8244 = vmatmul.mubr.bf16.gmra.mxu0 %v7912
        %v8245 = vpop.f32.mrf.mxu0
        %v8246 = vadd.f32 %v8009, %v8245
        %v8247 = vpop.f32.mrf.mxu0
        %v8248 = vpop.f32.mrf.mxu0
        %v8249 = vadd.f32 %v8009, %v8248
        %v8250 = vpop.f32.mrf.mxu0
        %8251 = vmatprep.mubr.bf16.mxu0 %v7917
        %8252 = vmatmul.mubr.bf16.gmra.mxu0 %v7916
        %v8253 = vpop.f32.mrf.mxu0
        %v8254 = vadd.f32 %v8009, %v8253
        %v8255 = vpop.f32.mrf.mxu0
        %v8256 = vpop.f32.mrf.mxu0
        %v8257 = vadd.f32 %v8009, %v8256
        %v8258 = vpop.f32.mrf.mxu0
        %8259 = vmatprep.mubr.bf16.mxu0 %v7921
        %8260 = vmatmul.mubr.bf16.gmra.mxu0 %v7920
        %v8261 = vpop.f32.mrf.mxu0
        %v8262 = vadd.f32 %v8009, %v8261
        %v8263 = vpop.f32.mrf.mxu0
        %v8264 = vpop.f32.mrf.mxu0
        %v8265 = vadd.f32 %v8009, %v8264
        %v8266 = vpop.f32.mrf.mxu0
        %8267 = vmatprep.mubr.bf16.mxu0 %v7925
        %8268 = vmatmul.mubr.bf16.gmra.mxu0 %v7924
        %v8269 = vpop.f32.mrf.mxu0
        %v8270 = vadd.f32 %v8009, %v8269
        %v8271 = vpop.f32.mrf.mxu0
        %v8272 = vpop.f32.mrf.mxu0
        %v8273 = vadd.f32 %v8009, %v8272
        %v8274 = vpop.f32.mrf.mxu0
        %8275 = vmatprep.mubr.bf16.mxu0 %v7929
        %8276 = vmatmul.mubr.bf16.gmra.mxu0 %v7928
        %v8277 = vpop.f32.mrf.mxu0
        %v8278 = vadd.f32 %v8009, %v8277
        %v8279 = vpop.f32.mrf.mxu0
        %v8280 = vpop.f32.mrf.mxu0
        %v8281 = vadd.f32 %v8009, %v8280
        %v8282 = vpop.f32.mrf.mxu0
        %8283 = vmatprep.mubr.bf16.mxu0 %v7933
        %8284 = vmatmul.mubr.bf16.gmra.mxu0 %v7932
        %v8285 = vpop.f32.mrf.mxu0
        %v8286 = vadd.f32 %v8009, %v8285
        %v8287 = vpop.f32.mrf.mxu0
        %v8288 = vpop.f32.mrf.mxu0
        %v8289 = vadd.f32 %v8009, %v8288
        %v8290 = vpop.f32.mrf.mxu0
        %8291 = vmatprep.mubr.bf16.mxu0 %v7937
        %8292 = vmatmul.mubr.bf16.gmra.mxu0 %v7936
        %v8293 = vpop.f32.mrf.mxu0
        %v8294 = vadd.f32 %v8009, %v8293
        %v8295 = vpop.f32.mrf.mxu0
        %v8296 = vpop.f32.mrf.mxu0
        %v8297 = vadd.f32 %v8009, %v8296
        %v8298 = vpop.f32.mrf.mxu0
        %8299 = vdwg.mxu0
        %8300 = vmatprep.subr.bf16.mxu0 0
        %8301 = vmatpush1.bf16.msra.mxu0 %v8162
        %8302 = vmatprep.subr.bf16.mxu0 0
        %8303 = vmatpush1.bf16.msra.mxu0 %v8161
        %8304 = vmatprep.subr.bf16.mxu0 0
        %8305 = vmatpush1.bf16.msra.mxu0 %v8160
        %8306 = vmatprep.subr.bf16.mxu0 0
        %8307 = vmatpush1.bf16.msra.mxu0 %v8159
        %8308 = vmatprep.subr.bf16.mxu0 0
        %8309 = vmatpush1.bf16.msra.mxu0 %v8158
        %8310 = vmatprep.subr.bf16.mxu0 0
        %8311 = vmatpush1.bf16.msra.mxu0 %v8157
        %8312 = vmatprep.subr.bf16.mxu0 0
        %8313 = vmatpush1.bf16.msra.mxu0 %v8156
        %8314 = vmatprep.subr.bf16.mxu0 0
        %8315 = vmatpush1.bf16.msra.mxu0 %v8155
        %8316 = vmatprep.subr.bf16.mxu0 0
        %8317 = vmatpush2.bf16.msra.mxu0 %v8170
        %8318 = vmatprep.subr.bf16.mxu0 0
        %8319 = vmatpush2.bf16.msra.mxu0 %v8169
        %8320 = vmatprep.subr.bf16.mxu0 0
        %8321 = vmatpush2.bf16.msra.mxu0 %v8168
        %8322 = vmatprep.subr.bf16.mxu0 0
        %8323 = vmatpush2.bf16.msra.mxu0 %v8167
        %8324 = vmatprep.subr.bf16.mxu0 0
        %8325 = vmatpush2.bf16.msra.mxu0 %v8166
        %8326 = vmatprep.subr.bf16.mxu0 0
        %8327 = vmatpush2.bf16.msra.mxu0 %v8165
        %8328 = vmatprep.subr.bf16.mxu0 0
        %8329 = vmatpush2.bf16.msra.mxu0 %v8164
        %8330 = vmatprep.subr.bf16.mxu0 0
        %8331 = vmatpush2.bf16.msra.mxu0 %v8163
        %8332 = vmatprep.mubr.bf16.mxu0 %v7911
        %8333 = vmatmul.mubr.bf16.gmra.mxu0 %v7910
        %v8334 = vpop.f32.mrf.mxu0
        %v8335 = vadd.f32 %v8238, %v8334
        %v8336 = vpop.f32.mrf.mxu0
        %v8337 = vpop.f32.mrf.mxu0
        %v8338 = vadd.f32 %v8241, %v8337
        %v8339 = vpop.f32.mrf.mxu0
        %8340 = vmatprep.mubr.bf16.mxu0 %v7915
        %8341 = vmatmul.mubr.bf16.gmra.mxu0 %v7914
        %v8342 = vpop.f32.mrf.mxu0
        %v8343 = vadd.f32 %v8246, %v8342
        %v8344 = vpop.f32.mrf.mxu0
        %v8345 = vpop.f32.mrf.mxu0
        %v8346 = vadd.f32 %v8249, %v8345
        %v8347 = vpop.f32.mrf.mxu0
        %8348 = vmatprep.mubr.bf16.mxu0 %v7919
        %8349 = vmatmul.mubr.bf16.gmra.mxu0 %v7918
        %v8350 = vpop.f32.mrf.mxu0
        %v8351 = vadd.f32 %v8254, %v8350
        %v8352 = vpop.f32.mrf.mxu0
        %v8353 = vpop.f32.mrf.mxu0
        %v8354 = vadd.f32 %v8257, %v8353
        %v8355 = vpop.f32.mrf.mxu0
        %8356 = vmatprep.mubr.bf16.mxu0 %v7923
        %8357 = vmatmul.mubr.bf16.gmra.mxu0 %v7922
        %v8358 = vpop.f32.mrf.mxu0
        %v8359 = vadd.f32 %v8262, %v8358
        %v8360 = vpop.f32.mrf.mxu0
        %v8361 = vpop.f32.mrf.mxu0
        %v8362 = vadd.f32 %v8265, %v8361
        %v8363 = vpop.f32.mrf.mxu0
        %8364 = vmatprep.mubr.bf16.mxu0 %v7927
        %8365 = vmatmul.mubr.bf16.gmra.mxu0 %v7926
        %v8366 = vpop.f32.mrf.mxu0
        %v8367 = vadd.f32 %v8270, %v8366
        %v8368 = vpop.f32.mrf.mxu0
        %v8369 = vpop.f32.mrf.mxu0
        %v8370 = vadd.f32 %v8273, %v8369
        %v8371 = vpop.f32.mrf.mxu0
        %8372 = vmatprep.mubr.bf16.mxu0 %v7931
        %8373 = vmatmul.mubr.bf16.gmra.mxu0 %v7930
        %v8374 = vpop.f32.mrf.mxu0
        %v8375 = vadd.f32 %v8278, %v8374
        %v8376 = vpop.f32.mrf.mxu0
        %v8377 = vpop.f32.mrf.mxu0
        %v8378 = vadd.f32 %v8281, %v8377
        %v8379 = vpop.f32.mrf.mxu0
        %8380 = vmatprep.mubr.bf16.mxu0 %v7935
        %8381 = vmatmul.mubr.bf16.gmra.mxu0 %v7934
        %v8382 = vpop.f32.mrf.mxu0
        %v8383 = vadd.f32 %v8286, %v8382
        %v8384 = vpop.f32.mrf.mxu0
        %v8385 = vpop.f32.mrf.mxu0
        %v8386 = vadd.f32 %v8289, %v8385
        %v8387 = vpop.f32.mrf.mxu0
        %8388 = vmatprep.mubr.bf16.mxu0 %v7939
        %8389 = vmatmul.mubr.bf16.gmra.mxu0 %v7938
        %v8390 = vpop.f32.mrf.mxu0
        %v8391 = vadd.f32 %v8294, %v8390
        %v8392 = vpop.f32.mrf.mxu0
        %v8393 = vpop.f32.mrf.mxu0
        %v8394 = vadd.f32 %v8297, %v8393
        %v8395 = vpop.f32.mrf.mxu0
        %8396 = vdwg.mxu0
        %v8397 = vadd.f32 %v6710, %v8335
        %v8398 = vadd.f32 %v6711, %v8338
        %v8399 = vadd.f32 %v6712, %v8343
        %v8400 = vadd.f32 %v6713, %v8346
        %v8401 = vadd.f32 %v6714, %v8351
        %v8402 = vadd.f32 %v6715, %v8354
        %v8403 = vadd.f32 %v6716, %v8359
        %v8404 = vadd.f32 %v6717, %v8362
        %v8405 = vadd.f32 %v6718, %v8367
        %v8406 = vadd.f32 %v6719, %v8370
        %v8407 = vadd.f32 %v6720, %v8375
        %v8408 = vadd.f32 %v6721, %v8378
        %v8409 = vadd.f32 %v6722, %v8383
        %v8410 = vadd.f32 %v6723, %v8386
        %v8411 = vadd.f32 %v6724, %v8391
        %v8412 = vadd.f32 %v6725, %v8394
        %v8413 = vadd.f32 %v8397, %v585
        %v8414 = vadd.f32 %v8398, %v586
        %v8415 = vadd.f32 %v8399, %v587
        %v8416 = vadd.f32 %v8400, %v588
        %v8417 = vadd.f32 %v8401, %v589
        %v8418 = vadd.f32 %v8402, %v590
        %v8419 = vadd.f32 %v8403, %v591
        %v8420 = vadd.f32 %v8404, %v592
        %v8421 = vadd.f32 %v8405, %v593
        %v8422 = vadd.f32 %v8406, %v594
        %v8423 = vadd.f32 %v8407, %v595
        %v8424 = vadd.f32 %v8408, %v596
        %v8425 = vadd.f32 %v8409, %v597
        %v8426 = vadd.f32 %v8410, %v598
        %v8427 = vadd.f32 %v8411, %v599
        %v8428 = vadd.f32 %v8412, %v600
        %v8429 = vrot.slane %v8413, 4
        %v8430 = vadd.f32 %v8413, %v8429
        %v8431 = vrot.slane %v8430, 2
        %v8432 = vadd.f32 %v8430, %v8431
        %v8433 = vrot.slane %v8432, 1
        %v8434 = vadd.f32 %v8432, %v8433
        %v8435 = vrot.slane %v8414, 4
        %v8436 = vadd.f32 %v8414, %v8435
        %v8437 = vrot.slane %v8436, 2
        %v8438 = vadd.f32 %v8436, %v8437
        %v8439 = vrot.slane %v8438, 1
        %v8440 = vadd.f32 %v8438, %v8439
        %v8441 = vrot.slane %v8415, 4
        %v8442 = vadd.f32 %v8415, %v8441
        %v8443 = vrot.slane %v8442, 2
        %v8444 = vadd.f32 %v8442, %v8443
        %v8445 = vrot.slane %v8444, 1
        %v8446 = vadd.f32 %v8444, %v8445
        %v8447 = vrot.slane %v8416, 4
        %v8448 = vadd.f32 %v8416, %v8447
        %v8449 = vrot.slane %v8448, 2
        %v8450 = vadd.f32 %v8448, %v8449
        %v8451 = vrot.slane %v8450, 1
        %v8452 = vadd.f32 %v8450, %v8451
        %v8453 = vrot.slane %v8417, 4
        %v8454 = vadd.f32 %v8417, %v8453
        %v8455 = vrot.slane %v8454, 2
        %v8456 = vadd.f32 %v8454, %v8455
        %v8457 = vrot.slane %v8456, 1
        %v8458 = vadd.f32 %v8456, %v8457
        %v8459 = vrot.slane %v8418, 4
        %v8460 = vadd.f32 %v8418, %v8459
        %v8461 = vrot.slane %v8460, 2
        %v8462 = vadd.f32 %v8460, %v8461
        %v8463 = vrot.slane %v8462, 1
        %v8464 = vadd.f32 %v8462, %v8463
        %v8465 = vrot.slane %v8419, 4
        %v8466 = vadd.f32 %v8419, %v8465
        %v8467 = vrot.slane %v8466, 2
        %v8468 = vadd.f32 %v8466, %v8467
        %v8469 = vrot.slane %v8468, 1
        %v8470 = vadd.f32 %v8468, %v8469
        %v8471 = vrot.slane %v8420, 4
        %v8472 = vadd.f32 %v8420, %v8471
        %v8473 = vrot.slane %v8472, 2
        %v8474 = vadd.f32 %v8472, %v8473
        %v8475 = vrot.slane %v8474, 1
        %v8476 = vadd.f32 %v8474, %v8475
        %v8477 = vrot.slane %v8421, 4
        %v8478 = vadd.f32 %v8421, %v8477
        %v8479 = vrot.slane %v8478, 2
        %v8480 = vadd.f32 %v8478, %v8479
        %v8481 = vrot.slane %v8480, 1
        %v8482 = vadd.f32 %v8480, %v8481
        %v8483 = vrot.slane %v8422, 4
        %v8484 = vadd.f32 %v8422, %v8483
        %v8485 = vrot.slane %v8484, 2
        %v8486 = vadd.f32 %v8484, %v8485
        %v8487 = vrot.slane %v8486, 1
        %v8488 = vadd.f32 %v8486, %v8487
        %v8489 = vrot.slane %v8423, 4
        %v8490 = vadd.f32 %v8423, %v8489
        %v8491 = vrot.slane %v8490, 2
        %v8492 = vadd.f32 %v8490, %v8491
        %v8493 = vrot.slane %v8492, 1
        %v8494 = vadd.f32 %v8492, %v8493
        %v8495 = vrot.slane %v8424, 4
        %v8496 = vadd.f32 %v8424, %v8495
        %v8497 = vrot.slane %v8496, 2
        %v8498 = vadd.f32 %v8496, %v8497
        %v8499 = vrot.slane %v8498, 1
        %v8500 = vadd.f32 %v8498, %v8499
        %v8501 = vrot.slane %v8425, 4
        %v8502 = vadd.f32 %v8425, %v8501
        %v8503 = vrot.slane %v8502, 2
        %v8504 = vadd.f32 %v8502, %v8503
        %v8505 = vrot.slane %v8504, 1
        %v8506 = vadd.f32 %v8504, %v8505
        %v8507 = vrot.slane %v8426, 4
        %v8508 = vadd.f32 %v8426, %v8507
        %v8509 = vrot.slane %v8508, 2
        %v8510 = vadd.f32 %v8508, %v8509
        %v8511 = vrot.slane %v8510, 1
        %v8512 = vadd.f32 %v8510, %v8511
        %v8513 = vrot.slane %v8427, 4
        %v8514 = vadd.f32 %v8427, %v8513
        %v8515 = vrot.slane %v8514, 2
        %v8516 = vadd.f32 %v8514, %v8515
        %v8517 = vrot.slane %v8516, 1
        %v8518 = vadd.f32 %v8516, %v8517
        %v8519 = vrot.slane %v8428, 4
        %v8520 = vadd.f32 %v8428, %v8519
        %v8521 = vrot.slane %v8520, 2
        %v8522 = vadd.f32 %v8520, %v8521
        %v8523 = vrot.slane %v8522, 1
        %v8524 = vadd.f32 %v8522, %v8523
        %v8525 = vrcp.pop 8.0
        %v8526 = vmul.f32 %v8434, %v8525
        %v8527 = vmul.f32 %v8440, %v8525
        %v8528 = vmul.f32 %v8446, %v8525
        %v8529 = vmul.f32 %v8452, %v8525
        %v8530 = vmul.f32 %v8458, %v8525
        %v8531 = vmul.f32 %v8464, %v8525
        %v8532 = vmul.f32 %v8470, %v8525
        %v8533 = vmul.f32 %v8476, %v8525
        %v8534 = vmul.f32 %v8482, %v8525
        %v8535 = vmul.f32 %v8488, %v8525
        %v8536 = vmul.f32 %v8494, %v8525
        %v8537 = vmul.f32 %v8500, %v8525
        %v8538 = vmul.f32 %v8506, %v8525
        %v8539 = vmul.f32 %v8512, %v8525
        %v8540 = vmul.f32 %v8518, %v8525
        %v8541 = vmul.f32 %v8524, %v8525
        %vm8558 = vcmask 1041409
        %v8559 = vsel %vm8558, %v8527, %v8526
        %vm8560 = vcmask 1042434
        %v8561 = vsel %vm8560, %v8528, %v8559
        %vm8562 = vcmask 1043459
        %v8563 = vsel %vm8562, %v8529, %v8561
        %vm8564 = vcmask 1044484
        %v8565 = vsel %vm8564, %v8530, %v8563
        %vm8566 = vcmask 1045509
        %v8567 = vsel %vm8566, %v8531, %v8565
        %vm8568 = vcmask 1046534
        %v8569 = vsel %vm8568, %v8532, %v8567
        %vm8570 = vcmask 1047559
        %v8571 = vsel %vm8570, %v8533, %v8569
        %v8572 = vsel %vm8558, %v8535, %v8534
        %v8573 = vsel %vm8560, %v8536, %v8572
        %v8574 = vsel %vm8562, %v8537, %v8573
        %v8575 = vsel %vm8564, %v8538, %v8574
        %v8576 = vsel %vm8566, %v8539, %v8575
        %v8577 = vsel %vm8568, %v8540, %v8576
        %v8578 = vsel %vm8570, %v8541, %v8577
        %8581 = vst [vmem:[%s581] sm:$0xff] %v8571
        %8582 = vst [vmem:[%s581 + $0x8] sm:$0xff] %v8578
        %s8583 = sand.u32 %s342, 1
        %s8584 = scalar_lea.sflag [#allocation4], %s8583
        %s8585 = sand.u32 %s342, 1
        %s8586 = smul.addr %s8585, 16
        %s8587 = scalar_lea.vmem [#allocation16], %s8586
        // Predicated region
        $region109: #{tpu_custom_call.1} parent=75 // pred_check
          %p8588 = pneg %p352
        $region110: #{tpu_custom_call.1} parent=75 // pred_check_branch
          %8590 = sbr.rel (%p8588) target = $region112
        $region111: #{tpu_custom_call.1} parent=75 // pred_region
          %s8591 = smul.u32 2, %s35
          %s8593 = ssub.s32 256, 256
          %8594 = vsyncadd %s8584, %s8593
          %s8595 = smul.addr %s8591, 128
          %s8596 = scalar_lea.hbm %s14, %s8595
          %s8597 = sshll.u32 %s8587, 4
          %s8598 = int_to_ptr.vmem [resolvable:$true] %s8597
          %8603 = dma.vmem_to_hbm [thread:$0]  %s8598, 256, %s8596, %s8584, 128, 128, 8
        $region112: #{tpu_custom_call.1} parent=75 // pred_fallthru
          _
      $region76: #{tpu_custom_call.1} parent=5 // pred_fallthru
        _
      %p8604 = scmp.le.s32.totalorder 2, %s30
      // Predicated region
      $region113: #{tpu_custom_call.1} parent=5 // pred_check
        %p8605 = pneg %p8604
      $region114: #{tpu_custom_call.1} parent=5 // pred_check_branch
        %8607 = sbr.rel (%p8605) target = $region116
      $region115: #{tpu_custom_call.1} parent=5 // pred_region
        %s8608 = ssub.s32 %s30, 2
        // Predicated region
        $region117: #{tpu_custom_call.1} parent=115 // pred_check
          %p8609 = pneg %p358
        $region118: #{tpu_custom_call.1} parent=115 // pred_check_branch
          %8611 = sbr.rel (%p8609) target = $region120
        $region119: #{tpu_custom_call.1} parent=115 // pred_region
          %s8612 = sand.u32 %s343, 1
          %s8613 = scalar_lea.sflag [#allocation4], %s8612
          %s8614 = sand.u32 %s343, 1
          %s8615 = smul.addr %s8614, 16
          %s8616 = scalar_lea.vmem [#allocation16], %s8615
          %8617 = dma.done %s8613, 256
        $region120: #{tpu_custom_call.1} parent=115 // pred_fallthru
          _
      $region116: #{tpu_custom_call.1} parent=5 // pred_fallthru
        _
    $region6: #{tpu_custom_call.1} parent=1 // loop_footer
      %s34 = sadd.s32 1, %s30
    $region7: #{tpu_custom_call.1} parent=1 // loop_footer_branch
      %29 = sbr.rel target = $region3
    $region8: #{tpu_custom_call.1} parent=1 // loop_exit
      _
    %8618 = vsyncpa [#allocation3], 1
    %s8619 = scalar_lea.sflag [#allocation3], 1
    %8620 = vsyncpa %s8619, 1
    %8621 = vsyncpa [#allocation6], 1
    %8622 = vsyncpa [#allocation9], 1
    %8623 = vsyncpa [#allocation12], 1
    %8624 = vsyncpa [#allocation15], 1
    %8625 = vsyncpa [#allocation4], 1
    %s8626 = scalar_lea.sflag [#allocation4], 1
    %8627 = vsyncpa %s8626, 1

</llo_original>
